<compile_context>
chip_gen: v5e
topology: v5e:2x2
jax: 0.10.0
libtpu: 0.0.40
codegen_flags: <defaults>
</compile_context>

<pallas_src>
import functools

import jax
import jax.numpy as jnp
from jax.experimental import pallas as pl
from jax.experimental.pallas import tpu as pltpu

BN_EPS = 1e-5
LRELU_SLOPE = 0.01  # F.leaky_relu default negative_slope
LANE = 128


def _round_up(n, m):
    return ((n + m - 1) // m) * m


# -----------------------------------------------------------------------------
# Kernel
# -----------------------------------------------------------------------------
def ae_kernel(x_ref, w_ref, vec_ref, z_ref, xhat_ref, *,
              dims, wcols, bn_offs, out_bias_off):
    """Fused autoencoder forward pass. Everything resident in VMEM.

    dims         : tuple of (K, N) per layer (8 layers, dims padded to 128).
    wcols        : static column offset of each layer's [K, N] weight in w_ref.
    bn_offs      : {layer: (bias_off, gamma_off, beta_off)} into vec_ref.
    out_bias_off : offset of the final (dec4) bias inside vec_ref.
    """

    def matmul(h, li):
        K, N = dims[li]
        c = wcols[li]
        # bf16 operands on the MXU, f32 accumulation.
        return jnp.dot(h.astype(jnp.bfloat16), w_ref[:K, c:c + N],
                       preferred_element_type=jnp.float32)

    def bn_lrelu(y, li):
        N = dims[li][1]
        ob, og, obt = bn_offs[li]
        y = y + vec_ref[:, ob:ob + N]                       # linear bias (f32)
        # BatchNorm1d, training mode: batch statistics, biased variance.
        # Single reduction pass: var = E[y^2] - E[y]^2.
        mean = jnp.mean(y, axis=0, keepdims=True)
        var = jnp.maximum(jnp.mean(y * y, axis=0, keepdims=True) - mean * mean, 0.0)
        yn = (y - mean) * jax.lax.rsqrt(var + BN_EPS)
        yn = yn * vec_ref[:, og:og + N] + vec_ref[:, obt:obt + N]
        # LeakyReLU(0.01) == max(y, 0.01*y)
        return jnp.maximum(yn, LRELU_SLOPE * yn)

    h = x_ref[...]                                          # bf16 [B, in_pad]

    # --- encoder ---
    h = bn_lrelu(matmul(h, 0), 0)
    h = bn_lrelu(matmul(h, 1), 1)
    h = bn_lrelu(matmul(h, 2), 2)
    z = matmul(h, 3)                                        # enc4: no bias, no BN
    z_ref[...] = z.astype(z_ref.dtype)                      # lane-dense [B, z_pad]

    # --- decoder ---
    h = bn_lrelu(matmul(z, 4), 4)
    h = bn_lrelu(matmul(h, 5), 5)
    h = bn_lrelu(matmul(h, 6), 6)
    n_out = dims[7][1]
    y = matmul(h, 7) + vec_ref[:, out_bias_off:out_bias_off + n_out]
    xhat_ref[...] = jnp.tanh(y).astype(xhat_ref.dtype)      # lane-dense [B, in_pad]


# -----------------------------------------------------------------------------
# Wrapper
# -----------------------------------------------------------------------------
def ae_forward(x, params):
    """params: flat list in the same order as make_params (PyTorch weight.T layout)."""
    (ew1, eb1, eg1, ebt1, ew2, eb2, eg2, ebt2, ew3, eb3, eg3, ebt3, ew4,
     dw1, db1, dg1, dbt1, dw2, db2, dg2, dbt2, dw3, db3, dg3, dbt3, dw4, db4) = params

    B, in_dim = x.shape
    z_dim = ew4.shape[1]
    in_pad = _round_up(in_dim, LANE)
    z_pad = _round_up(z_dim, LANE)

    dims = ((in_pad, 512), (512, 256), (256, 128), (128, z_pad),
            (z_pad, 128), (128, 256), (256, 512), (512, in_pad))
    weights = (ew1, ew2, ew3, ew4, dw1, dw2, dw3, dw4)
    R = max(k for k, _ in dims)

    # Pack all (zero-padded) weights side by side into a single bf16 [R, sum(N)] slab.
    wcols, slabs, col = [], [], 0
    for (K, N), w in zip(dims, weights):
        k0, n0 = w.shape
        slabs.append(jnp.pad(w, ((0, R - k0), (0, N - n0))))
        wcols.append(col)
        col += N
    w_slab = jnp.concatenate(slabs, axis=1).astype(jnp.bfloat16)

    # Pack every bias / BN gamma / BN beta into one f32 [1, V] row (128-aligned chunks).
    vec_parts, offs = [], {}
    off = 0

    def _add(name, v, N):
        nonlocal off
        vec_parts.append(jnp.pad(v, ((0, 0), (0, N - v.shape[1]))))
        offs[name] = off
        off += N

    bn_specs = [(0, eb1, eg1, ebt1, 512), (1, eb2, eg2, ebt2, 256),
                (2, eb3, eg3, ebt3, 128), (4, db1, dg1, dbt1, 128),
                (5, db2, dg2, dbt2, 256), (6, db3, dg3, dbt3, 512)]
    bn_offs = {}
    for li, b, g, bt, N in bn_specs:
        _add(f"b{li}", b, N)
        _add(f"g{li}", g, N)
        _add(f"bt{li}", bt, N)
        bn_offs[li] = (offs[f"b{li}"], offs[f"g{li}"], offs[f"bt{li}"])
    _add("b7", db4, in_pad)
    out_bias_off = offs["b7"]
    vec_slab = jnp.concatenate(vec_parts, axis=1).astype(jnp.float32)

    # Zero-pad input features to a lane-dense 128 multiple, cast to bf16 for the MXU.
    x_p = jnp.pad(x, ((0, 0), (0, in_pad - in_dim))).astype(jnp.bfloat16)

    # Rough VMEM budget: weights + vectors + input + outputs + live f32 activations.
    # Must fit the 32 MiB scoped default (leaves headroom on v7x's 64 MiB VMEM).
    est_bytes = (w_slab.size * 2 + vec_slab.size * 4 + x_p.size * 2
                 + B * (z_pad + in_pad) * 4 + 6 * B * 512 * 4)
    assert est_bytes < 24 * 1024 * 1024, (
        "Batch too large to keep resident in VMEM; exact full-batch BatchNorm "
        "requires a two-pass sum/sumsq reduction if the batch is tiled.")
    # TODO(synk): for batches exceeding VMEM, implement two-pass BatchNorm
    # (per-tile sum/sumsq accumulation) instead of a naive batch grid.

    kernel = functools.partial(ae_kernel, dims=dims, wcols=tuple(wcols),
                               bn_offs=bn_offs, out_bias_off=out_bias_off)

    z_full, xhat_full = pl.pallas_call(
        kernel,
        out_shape=(
            jax.ShapeDtypeStruct((B, z_pad), jnp.float32),
            jax.ShapeDtypeStruct((B, in_pad), jnp.float32),
        ),
        in_specs=[pl.BlockSpec(memory_space=pltpu.MemorySpace.VMEM)] * 3,
        out_specs=(
            pl.BlockSpec(memory_space=pltpu.MemorySpace.VMEM),
            pl.BlockSpec(memory_space=pltpu.MemorySpace.VMEM),
        ),
        compiler_params=pltpu.CompilerParams(vmem_limit_bytes=32 * 1024 * 1024),
    )(x_p, w_slab, vec_slab)

    return z_full[:, :z_dim], xhat_full[:, :in_dim]


# -----------------------------------------------------------------------------
# Parameter init (PyTorch-style defaults) and pure-JAX reference
# -----------------------------------------------------------------------------
def init_linear(key, fan_in, fan_out, bias=True):
    kw, kb = jax.random.split(key)
    bound = 1.0 / jnp.sqrt(jnp.float32(fan_in))
    w = jax.random.uniform(kw, (fan_in, fan_out), jnp.float32, -bound, bound)
    if not bias:
        return w, None
    b = jax.random.uniform(kb, (1, fan_out), jnp.float32, -bound, bound)
    return w, b


def init_bn(dim):
    return jnp.ones((1, dim), jnp.float32), jnp.zeros((1, dim), jnp.float32)


def make_params(key, in_dim, z_dim):
    ks = jax.random.split(key, 8)
    ew1, eb1 = init_linear(ks[0], in_dim, 512); eg1, ebt1 = init_bn(512)
    ew2, eb2 = init_linear(ks[1], 512, 256);    eg2, ebt2 = init_bn(256)
    ew3, eb3 = init_linear(ks[2], 256, 128);    eg3, ebt3 = init_bn(128)
    ew4, _   = init_linear(ks[3], 128, z_dim, bias=False)
    dw1, db1 = init_linear(ks[4], z_dim, 128);  dg1, dbt1 = init_bn(128)
    dw2, db2 = init_linear(ks[5], 128, 256);    dg2, dbt2 = init_bn(256)
    dw3, db3 = init_linear(ks[6], 256, 512);    dg3, dbt3 = init_bn(512)
    dw4, db4 = init_linear(ks[7], 512, in_dim)
    return [ew1, eb1, eg1, ebt1, ew2, eb2, eg2, ebt2, ew3, eb3, eg3, ebt3, ew4,
            dw1, db1, dg1, dbt1, dw2, db2, dg2, dbt2, dw3, db3, dg3, dbt3, dw4, db4]


def reference_forward(x, params, matmul_dtype=jnp.float32):
    """Pure-JAX reference mirroring the PyTorch module (training-mode BN).
    matmul_dtype=jnp.bfloat16 matches the kernel's MXU numerics."""
    (ew1, eb1, eg1, ebt1, ew2, eb2, eg2, ebt2, ew3, eb3, eg3, ebt3, ew4,
     dw1, db1, dg1, dbt1, dw2, db2, dg2, dbt2, dw3, db3, dg3, dbt3, dw4, db4) = params

    def mm(a, w):
        return jnp.dot(a.astype(matmul_dtype), w.astype(matmul_dtype),
                       preferred_element_type=jnp.float32)

    def block(h, w, b, g, bt):
        y = mm(h, w) + b
        m = jnp.mean(y, axis=0, keepdims=True)
        v = jnp.mean((y - m) ** 2, axis=0, keepdims=True)
        yn = (y - m) / jnp.sqrt(v + BN_EPS) * g + bt
        return jnp.where(yn >= 0, yn, LRELU_SLOPE * yn)

    h = block(x, ew1, eb1, eg1, ebt1)
    h = block(h, ew2, eb2, eg2, ebt2)
    h = block(h, ew3, eb3, eg3, ebt3)
    z = mm(h, ew4)
    h = block(z, dw1, db1, dg1, dbt1)
    h = block(h, dw2, db2, dg2, dbt2)
    h = block(h, dw3, db3, dg3, dbt3)
    return z, jnp.tanh(mm(h, dw4) + db4)


if __name__ == "__main__":
    # args.in_dim = 64, args.z_dim = 32; B=256 fills the MXU M axis on v5e/v6e/v7x
    # while the whole batch stays VMEM-resident for exact full-batch BatchNorm.
    B, in_dim, z_dim = 256, 64, 32

    key = jax.random.PRNGKey(0)
    kx, kp = jax.random.split(key)
    x = jax.random.normal(kx, (B, in_dim), jnp.float32)
    params = make_params(kp, in_dim, z_dim)

    fwd = jax.jit(ae_forward)
    z, x_hat = jax.block_until_ready(fwd(x, params))

    assert z.shape == (B, z_dim) and x_hat.shape == (B, in_dim)

    # Numerics-matched reference (bf16 matmul operands, f32 accumulation/BN math).
    z_m, xh_m = reference_forward(x, params, matmul_dtype=jnp.bfloat16)
    assert jnp.allclose(z, z_m, atol=1e-2, rtol=1e-2)
    assert jnp.allclose(x_hat, xh_m, atol=1e-2, rtol=1e-2)

    # Loose sanity check against the pure-f32 spec semantics.
    z_f, xh_f = reference_forward(x, params, matmul_dtype=jnp.float32)
    assert jnp.allclose(z, z_f, atol=0.25)
    assert jnp.allclose(x_hat, xh_f, atol=0.25)

    print("KERNEL_OK")
</pallas_src>

<mosaic_0001>
module attributes {stable_mosaic.version = 11 : i64} {
  func.func @ae_kernel(%arg0: memref<256x128xbf16, #tpu.memory_space<vmem>>, %arg1: memref<512x2048xbf16, #tpu.memory_space<vmem>>, %arg2: memref<1x5504xf32, #tpu.memory_space<vmem>>, %arg3: memref<256x128xf32, #tpu.memory_space<vmem>>, %arg4: memref<256x128xf32, #tpu.memory_space<vmem>>) attributes {dimension_semantics = [], scalar_prefetch = 0 : i64, scratch_operands = 0 : i64, tpu.core_type = #tpu.core_type<tc>} {
    %c0 = arith.constant 0 : index
    %c0_0 = arith.constant 0 : index
    %0 = vector.load %arg0[%c0, %c0_0] : memref<256x128xbf16, #tpu.memory_space<vmem>>, vector<256x128xbf16>
    %c0_1 = arith.constant 0 : index
    %c0_2 = arith.constant 0 : index
    %1 = vector.load %arg1[%c0_1, %c0_2] : memref<512x2048xbf16, #tpu.memory_space<vmem>>, vector<128x512xbf16>
    %cst = arith.constant dense<0.000000e+00> : vector<256x512xf32>
    %2 = tpu.matmul %0, %1, %cst {dimension_numbers = #tpu.dot_dimension_numbers<[1], [0], [0], [1], [0, 0, 1, 1], [], []>} : vector<256x128xbf16>, vector<128x512xbf16>, vector<256x512xf32> -> vector<256x512xf32>
    %c0_3 = arith.constant 0 : index
    %c0_4 = arith.constant 0 : index
    %3 = vector.load %arg2[%c0_3, %c0_4] : memref<1x5504xf32, #tpu.memory_space<vmem>>, vector<1x512xf32>
    %4 = vector.broadcast %3 : vector<1x512xf32> to vector<256x512xf32>
    %5 = arith.addf %2, %4 : vector<256x512xf32>
    %cst_5 = arith.constant dense<0.000000e+00> : vector<512xf32>
    %6 = vector.multi_reduction <add>, %5, %cst_5 [0] : vector<256x512xf32> to vector<512xf32>
    %7 = vector.shape_cast %6 : vector<512xf32> to vector<1x512xf32>
    %cst_6 = arith.constant 2.560000e+02 : f32
    %8 = vector.broadcast %cst_6 : f32 to vector<1x512xf32>
    %9 = arith.divf %7, %8 : vector<1x512xf32>
    %10 = arith.mulf %5, %5 : vector<256x512xf32>
    %cst_7 = arith.constant dense<0.000000e+00> : vector<512xf32>
    %11 = vector.multi_reduction <add>, %10, %cst_7 [0] : vector<256x512xf32> to vector<512xf32>
    %12 = vector.shape_cast %11 : vector<512xf32> to vector<1x512xf32>
    %cst_8 = arith.constant 2.560000e+02 : f32
    %13 = vector.broadcast %cst_8 : f32 to vector<1x512xf32>
    %14 = arith.divf %12, %13 : vector<1x512xf32>
    %15 = arith.mulf %9, %9 : vector<1x512xf32>
    %16 = arith.subf %14, %15 : vector<1x512xf32>
    %cst_9 = arith.constant 0.000000e+00 : f32
    %17 = vector.broadcast %cst_9 : f32 to vector<1x512xf32>
    %18 = arith.maximumf %16, %17 : vector<1x512xf32>
    %19 = vector.broadcast %9 : vector<1x512xf32> to vector<256x512xf32>
    %20 = arith.subf %5, %19 : vector<256x512xf32>
    %cst_10 = arith.constant 9.99999974E-6 : f32
    %21 = vector.broadcast %cst_10 : f32 to vector<1x512xf32>
    %22 = arith.addf %18, %21 : vector<1x512xf32>
    %23 = math.rsqrt %22 : vector<1x512xf32>
    %24 = vector.broadcast %23 : vector<1x512xf32> to vector<256x512xf32>
    %25 = arith.mulf %20, %24 : vector<256x512xf32>
    %c0_11 = arith.constant 0 : index
    %c512 = arith.constant 512 : index
    %26 = vector.load %arg2[%c0_11, %c512] : memref<1x5504xf32, #tpu.memory_space<vmem>>, vector<1x512xf32>
    %27 = vector.broadcast %26 : vector<1x512xf32> to vector<256x512xf32>
    %28 = arith.mulf %25, %27 : vector<256x512xf32>
    %c0_12 = arith.constant 0 : index
    %c1024 = arith.constant 1024 : index
    %29 = vector.load %arg2[%c0_12, %c1024] : memref<1x5504xf32, #tpu.memory_space<vmem>>, vector<1x512xf32>
    %30 = vector.broadcast %29 : vector<1x512xf32> to vector<256x512xf32>
    %31 = arith.addf %28, %30 : vector<256x512xf32>
    %cst_13 = arith.constant 0.00999999977 : f32
    %32 = vector.broadcast %cst_13 : f32 to vector<256x512xf32>
    %33 = arith.mulf %32, %31 : vector<256x512xf32>
    %34 = arith.maximumf %31, %33 : vector<256x512xf32>
    %35 = arith.truncf %34 : vector<256x512xf32> to vector<256x512xbf16>
    %c0_14 = arith.constant 0 : index
    %c512_15 = arith.constant 512 : index
    %36 = vector.load %arg1[%c0_14, %c512_15] : memref<512x2048xbf16, #tpu.memory_space<vmem>>, vector<512x256xbf16>
    %cst_16 = arith.constant dense<0.000000e+00> : vector<256x256xf32>
    %37 = tpu.matmul %35, %36, %cst_16 {dimension_numbers = #tpu.dot_dimension_numbers<[1], [0], [0], [1], [0, 0, 1, 1], [], []>} : vector<256x512xbf16>, vector<512x256xbf16>, vector<256x256xf32> -> vector<256x256xf32>
    %c0_17 = arith.constant 0 : index
    %c1536 = arith.constant 1536 : index
    %38 = vector.load %arg2[%c0_17, %c1536] : memref<1x5504xf32, #tpu.memory_space<vmem>>, vector<1x256xf32>
    %39 = vector.broadcast %38 : vector<1x256xf32> to vector<256x256xf32>
    %40 = arith.addf %37, %39 : vector<256x256xf32>
    %cst_18 = arith.constant dense<0.000000e+00> : vector<256xf32>
    %41 = vector.multi_reduction <add>, %40, %cst_18 [0] : vector<256x256xf32> to vector<256xf32>
    %42 = vector.shape_cast %41 : vector<256xf32> to vector<1x256xf32>
    %cst_19 = arith.constant 2.560000e+02 : f32
    %43 = vector.broadcast %cst_19 : f32 to vector<1x256xf32>
    %44 = arith.divf %42, %43 : vector<1x256xf32>
    %45 = arith.mulf %40, %40 : vector<256x256xf32>
    %cst_20 = arith.constant dense<0.000000e+00> : vector<256xf32>
    %46 = vector.multi_reduction <add>, %45, %cst_20 [0] : vector<256x256xf32> to vector<256xf32>
    %47 = vector.shape_cast %46 : vector<256xf32> to vector<1x256xf32>
    %cst_21 = arith.constant 2.560000e+02 : f32
    %48 = vector.broadcast %cst_21 : f32 to vector<1x256xf32>
    %49 = arith.divf %47, %48 : vector<1x256xf32>
    %50 = arith.mulf %44, %44 : vector<1x256xf32>
    %51 = arith.subf %49, %50 : vector<1x256xf32>
    %cst_22 = arith.constant 0.000000e+00 : f32
    %52 = vector.broadcast %cst_22 : f32 to vector<1x256xf32>
    %53 = arith.maximumf %51, %52 : vector<1x256xf32>
    %54 = vector.broadcast %44 : vector<1x256xf32> to vector<256x256xf32>
    %55 = arith.subf %40, %54 : vector<256x256xf32>
    %cst_23 = arith.constant 9.99999974E-6 : f32
    %56 = vector.broadcast %cst_23 : f32 to vector<1x256xf32>
    %57 = arith.addf %53, %56 : vector<1x256xf32>
    %58 = math.rsqrt %57 : vector<1x256xf32>
    %59 = vector.broadcast %58 : vector<1x256xf32> to vector<256x256xf32>
    %60 = arith.mulf %55, %59 : vector<256x256xf32>
    %c0_24 = arith.constant 0 : index
    %c1792 = arith.constant 1792 : index
    %61 = vector.load %arg2[%c0_24, %c1792] : memref<1x5504xf32, #tpu.memory_space<vmem>>, vector<1x256xf32>
    %62 = vector.broadcast %61 : vector<1x256xf32> to vector<256x256xf32>
    %63 = arith.mulf %60, %62 : vector<256x256xf32>
    %c0_25 = arith.constant 0 : index
    %c2048 = arith.constant 2048 : index
    %64 = vector.load %arg2[%c0_25, %c2048] : memref<1x5504xf32, #tpu.memory_space<vmem>>, vector<1x256xf32>
    %65 = vector.broadcast %64 : vector<1x256xf32> to vector<256x256xf32>
    %66 = arith.addf %63, %65 : vector<256x256xf32>
    %cst_26 = arith.constant 0.00999999977 : f32
    %67 = vector.broadcast %cst_26 : f32 to vector<256x256xf32>
    %68 = arith.mulf %67, %66 : vector<256x256xf32>
    %69 = arith.maximumf %66, %68 : vector<256x256xf32>
    %70 = arith.truncf %69 : vector<256x256xf32> to vector<256x256xbf16>
    %c0_27 = arith.constant 0 : index
    %c768 = arith.constant 768 : index
    %71 = vector.load %arg1[%c0_27, %c768] : memref<512x2048xbf16, #tpu.memory_space<vmem>>, vector<256x128xbf16>
    %cst_28 = arith.constant dense<0.000000e+00> : vector<256x128xf32>
    %72 = tpu.matmul %70, %71, %cst_28 {dimension_numbers = #tpu.dot_dimension_numbers<[1], [0], [0], [1], [0, 0, 1, 1], [], []>} : vector<256x256xbf16>, vector<256x128xbf16>, vector<256x128xf32> -> vector<256x128xf32>
    %c0_29 = arith.constant 0 : index
    %c2304 = arith.constant 2304 : index
    %73 = vector.load %arg2[%c0_29, %c2304] : memref<1x5504xf32, #tpu.memory_space<vmem>>, vector<1x128xf32>
    %74 = vector.broadcast %73 : vector<1x128xf32> to vector<256x128xf32>
    %75 = arith.addf %72, %74 : vector<256x128xf32>
    %cst_30 = arith.constant dense<0.000000e+00> : vector<128xf32>
    %76 = vector.multi_reduction <add>, %75, %cst_30 [0] : vector<256x128xf32> to vector<128xf32>
    %77 = vector.shape_cast %76 : vector<128xf32> to vector<1x128xf32>
    %cst_31 = arith.constant 2.560000e+02 : f32
    %78 = vector.broadcast %cst_31 : f32 to vector<1x128xf32>
    %79 = arith.divf %77, %78 : vector<1x128xf32>
    %80 = arith.mulf %75, %75 : vector<256x128xf32>
    %cst_32 = arith.constant dense<0.000000e+00> : vector<128xf32>
    %81 = vector.multi_reduction <add>, %80, %cst_32 [0] : vector<256x128xf32> to vector<128xf32>
    %82 = vector.shape_cast %81 : vector<128xf32> to vector<1x128xf32>
    %cst_33 = arith.constant 2.560000e+02 : f32
    %83 = vector.broadcast %cst_33 : f32 to vector<1x128xf32>
    %84 = arith.divf %82, %83 : vector<1x128xf32>
    %85 = arith.mulf %79, %79 : vector<1x128xf32>
    %86 = arith.subf %84, %85 : vector<1x128xf32>
    %cst_34 = arith.constant 0.000000e+00 : f32
    %87 = vector.broadcast %cst_34 : f32 to vector<1x128xf32>
    %88 = arith.maximumf %86, %87 : vector<1x128xf32>
    %89 = vector.broadcast %79 : vector<1x128xf32> to vector<256x128xf32>
    %90 = arith.subf %75, %89 : vector<256x128xf32>
    %cst_35 = arith.constant 9.99999974E-6 : f32
    %91 = vector.broadcast %cst_35 : f32 to vector<1x128xf32>
    %92 = arith.addf %88, %91 : vector<1x128xf32>
    %93 = math.rsqrt %92 : vector<1x128xf32>
    %94 = vector.broadcast %93 : vector<1x128xf32> to vector<256x128xf32>
    %95 = arith.mulf %90, %94 : vector<256x128xf32>
    %c0_36 = arith.constant 0 : index
    %c2432 = arith.constant 2432 : index
    %96 = vector.load %arg2[%c0_36, %c2432] : memref<1x5504xf32, #tpu.memory_space<vmem>>, vector<1x128xf32>
    %97 = vector.broadcast %96 : vector<1x128xf32> to vector<256x128xf32>
    %98 = arith.mulf %95, %97 : vector<256x128xf32>
    %c0_37 = arith.constant 0 : index
    %c2560 = arith.constant 2560 : index
    %99 = vector.load %arg2[%c0_37, %c2560] : memref<1x5504xf32, #tpu.memory_space<vmem>>, vector<1x128xf32>
    %100 = vector.broadcast %99 : vector<1x128xf32> to vector<256x128xf32>
    %101 = arith.addf %98, %100 : vector<256x128xf32>
    %cst_38 = arith.constant 0.00999999977 : f32
    %102 = vector.broadcast %cst_38 : f32 to vector<256x128xf32>
    %103 = arith.mulf %102, %101 : vector<256x128xf32>
    %104 = arith.maximumf %101, %103 : vector<256x128xf32>
    %105 = arith.truncf %104 : vector<256x128xf32> to vector<256x128xbf16>
    %c0_39 = arith.constant 0 : index
    %c896 = arith.constant 896 : index
    %106 = vector.load %arg1[%c0_39, %c896] : memref<512x2048xbf16, #tpu.memory_space<vmem>>, vector<128x128xbf16>
    %cst_40 = arith.constant dense<0.000000e+00> : vector<256x128xf32>
    %107 = tpu.matmul %105, %106, %cst_40 {dimension_numbers = #tpu.dot_dimension_numbers<[1], [0], [0], [1], [0, 0, 1, 1], [], []>} : vector<256x128xbf16>, vector<128x128xbf16>, vector<256x128xf32> -> vector<256x128xf32>
    %c0_41 = arith.constant 0 : index
    %c0_42 = arith.constant 0 : index
    %108 = vector.load %arg3[%c0_41, %c0_42] : memref<256x128xf32, #tpu.memory_space<vmem>>, vector<256x128xf32>
    tpu.vector_store %arg3[%c0_41, %c0_42], %107 {strides = array<i32>} : memref<256x128xf32, #tpu.memory_space<vmem>>, vector<256x128xf32>,
    %109 = arith.truncf %107 : vector<256x128xf32> to vector<256x128xbf16>
    %c0_43 = arith.constant 0 : index
    %c1024_44 = arith.constant 1024 : index
    %110 = vector.load %arg1[%c0_43, %c1024_44] : memref<512x2048xbf16, #tpu.memory_space<vmem>>, vector<128x128xbf16>
    %cst_45 = arith.constant dense<0.000000e+00> : vector<256x128xf32>
    %111 = tpu.matmul %109, %110, %cst_45 {dimension_numbers = #tpu.dot_dimension_numbers<[1], [0], [0], [1], [0, 0, 1, 1], [], []>} : vector<256x128xbf16>, vector<128x128xbf16>, vector<256x128xf32> -> vector<256x128xf32>
    %c0_46 = arith.constant 0 : index
    %c2688 = arith.constant 2688 : index
    %112 = vector.load %arg2[%c0_46, %c2688] : memref<1x5504xf32, #tpu.memory_space<vmem>>, vector<1x128xf32>
    %113 = vector.broadcast %112 : vector<1x128xf32> to vector<256x128xf32>
    %114 = arith.addf %111, %113 : vector<256x128xf32>
    %cst_47 = arith.constant dense<0.000000e+00> : vector<128xf32>
    %115 = vector.multi_reduction <add>, %114, %cst_47 [0] : vector<256x128xf32> to vector<128xf32>
    %116 = vector.shape_cast %115 : vector<128xf32> to vector<1x128xf32>
    %cst_48 = arith.constant 2.560000e+02 : f32
    %117 = vector.broadcast %cst_48 : f32 to vector<1x128xf32>
    %118 = arith.divf %116, %117 : vector<1x128xf32>
    %119 = arith.mulf %114, %114 : vector<256x128xf32>
    %cst_49 = arith.constant dense<0.000000e+00> : vector<128xf32>
    %120 = vector.multi_reduction <add>, %119, %cst_49 [0] : vector<256x128xf32> to vector<128xf32>
    %121 = vector.shape_cast %120 : vector<128xf32> to vector<1x128xf32>
    %cst_50 = arith.constant 2.560000e+02 : f32
    %122 = vector.broadcast %cst_50 : f32 to vector<1x128xf32>
    %123 = arith.divf %121, %122 : vector<1x128xf32>
    %124 = arith.mulf %118, %118 : vector<1x128xf32>
    %125 = arith.subf %123, %124 : vector<1x128xf32>
    %cst_51 = arith.constant 0.000000e+00 : f32
    %126 = vector.broadcast %cst_51 : f32 to vector<1x128xf32>
    %127 = arith.maximumf %125, %126 : vector<1x128xf32>
    %128 = vector.broadcast %118 : vector<1x128xf32> to vector<256x128xf32>
    %129 = arith.subf %114, %128 : vector<256x128xf32>
    %cst_52 = arith.constant 9.99999974E-6 : f32
    %130 = vector.broadcast %cst_52 : f32 to vector<1x128xf32>
    %131 = arith.addf %127, %130 : vector<1x128xf32>
    %132 = math.rsqrt %131 : vector<1x128xf32>
    %133 = vector.broadcast %132 : vector<1x128xf32> to vector<256x128xf32>
    %134 = arith.mulf %129, %133 : vector<256x128xf32>
    %c0_53 = arith.constant 0 : index
    %c2816 = arith.constant 2816 : index
    %135 = vector.load %arg2[%c0_53, %c2816] : memref<1x5504xf32, #tpu.memory_space<vmem>>, vector<1x128xf32>
    %136 = vector.broadcast %135 : vector<1x128xf32> to vector<256x128xf32>
    %137 = arith.mulf %134, %136 : vector<256x128xf32>
    %c0_54 = arith.constant 0 : index
    %c2944 = arith.constant 2944 : index
    %138 = vector.load %arg2[%c0_54, %c2944] : memref<1x5504xf32, #tpu.memory_space<vmem>>, vector<1x128xf32>
    %139 = vector.broadcast %138 : vector<1x128xf32> to vector<256x128xf32>
    %140 = arith.addf %137, %139 : vector<256x128xf32>
    %cst_55 = arith.constant 0.00999999977 : f32
    %141 = vector.broadcast %cst_55 : f32 to vector<256x128xf32>
    %142 = arith.mulf %141, %140 : vector<256x128xf32>
    %143 = arith.maximumf %140, %142 : vector<256x128xf32>
    %144 = arith.truncf %143 : vector<256x128xf32> to vector<256x128xbf16>
    %c0_56 = arith.constant 0 : index
    %c1152 = arith.constant 1152 : index
    %145 = vector.load %arg1[%c0_56, %c1152] : memref<512x2048xbf16, #tpu.memory_space<vmem>>, vector<128x256xbf16>
    %cst_57 = arith.constant dense<0.000000e+00> : vector<256x256xf32>
    %146 = tpu.matmul %144, %145, %cst_57 {dimension_numbers = #tpu.dot_dimension_numbers<[1], [0], [0], [1], [0, 0, 1, 1], [], []>} : vector<256x128xbf16>, vector<128x256xbf16>, vector<256x256xf32> -> vector<256x256xf32>
    %c0_58 = arith.constant 0 : index
    %c3072 = arith.constant 3072 : index
    %147 = vector.load %arg2[%c0_58, %c3072] : memref<1x5504xf32, #tpu.memory_space<vmem>>, vector<1x256xf32>
    %148 = vector.broadcast %147 : vector<1x256xf32> to vector<256x256xf32>
    %149 = arith.addf %146, %148 : vector<256x256xf32>
    %cst_59 = arith.constant dense<0.000000e+00> : vector<256xf32>
    %150 = vector.multi_reduction <add>, %149, %cst_59 [0] : vector<256x256xf32> to vector<256xf32>
    %151 = vector.shape_cast %150 : vector<256xf32> to vector<1x256xf32>
    %cst_60 = arith.constant 2.560000e+02 : f32
    %152 = vector.broadcast %cst_60 : f32 to vector<1x256xf32>
    %153 = arith.divf %151, %152 : vector<1x256xf32>
    %154 = arith.mulf %149, %149 : vector<256x256xf32>
    %cst_61 = arith.constant dense<0.000000e+00> : vector<256xf32>
    %155 = vector.multi_reduction <add>, %154, %cst_61 [0] : vector<256x256xf32> to vector<256xf32>
    %156 = vector.shape_cast %155 : vector<256xf32> to vector<1x256xf32>
    %cst_62 = arith.constant 2.560000e+02 : f32
    %157 = vector.broadcast %cst_62 : f32 to vector<1x256xf32>
    %158 = arith.divf %156, %157 : vector<1x256xf32>
    %159 = arith.mulf %153, %153 : vector<1x256xf32>
    %160 = arith.subf %158, %159 : vector<1x256xf32>
    %cst_63 = arith.constant 0.000000e+00 : f32
    %161 = vector.broadcast %cst_63 : f32 to vector<1x256xf32>
    %162 = arith.maximumf %160, %161 : vector<1x256xf32>
    %163 = vector.broadcast %153 : vector<1x256xf32> to vector<256x256xf32>
    %164 = arith.subf %149, %163 : vector<256x256xf32>
    %cst_64 = arith.constant 9.99999974E-6 : f32
    %165 = vector.broadcast %cst_64 : f32 to vector<1x256xf32>
    %166 = arith.addf %162, %165 : vector<1x256xf32>
    %167 = math.rsqrt %166 : vector<1x256xf32>
    %168 = vector.broadcast %167 : vector<1x256xf32> to vector<256x256xf32>
    %169 = arith.mulf %164, %168 : vector<256x256xf32>
    %c0_65 = arith.constant 0 : index
    %c3328 = arith.constant 3328 : index
    %170 = vector.load %arg2[%c0_65, %c3328] : memref<1x5504xf32, #tpu.memory_space<vmem>>, vector<1x256xf32>
    %171 = vector.broadcast %170 : vector<1x256xf32> to vector<256x256xf32>
    %172 = arith.mulf %169, %171 : vector<256x256xf32>
    %c0_66 = arith.constant 0 : index
    %c3584 = arith.constant 3584 : index
    %173 = vector.load %arg2[%c0_66, %c3584] : memref<1x5504xf32, #tpu.memory_space<vmem>>, vector<1x256xf32>
    %174 = vector.broadcast %173 : vector<1x256xf32> to vector<256x256xf32>
    %175 = arith.addf %172, %174 : vector<256x256xf32>
    %cst_67 = arith.constant 0.00999999977 : f32
    %176 = vector.broadcast %cst_67 : f32 to vector<256x256xf32>
    %177 = arith.mulf %176, %175 : vector<256x256xf32>
    %178 = arith.maximumf %175, %177 : vector<256x256xf32>
    %179 = arith.truncf %178 : vector<256x256xf32> to vector<256x256xbf16>
    %c0_68 = arith.constant 0 : index
    %c1408 = arith.constant 1408 : index
    %180 = vector.load %arg1[%c0_68, %c1408] : memref<512x2048xbf16, #tpu.memory_space<vmem>>, vector<256x512xbf16>
    %cst_69 = arith.constant dense<0.000000e+00> : vector<256x512xf32>
    %181 = tpu.matmul %179, %180, %cst_69 {dimension_numbers = #tpu.dot_dimension_numbers<[1], [0], [0], [1], [0, 0, 1, 1], [], []>} : vector<256x256xbf16>, vector<256x512xbf16>, vector<256x512xf32> -> vector<256x512xf32>
    %c0_70 = arith.constant 0 : index
    %c3840 = arith.constant 3840 : index
    %182 = vector.load %arg2[%c0_70, %c3840] : memref<1x5504xf32, #tpu.memory_space<vmem>>, vector<1x512xf32>
    %183 = vector.broadcast %182 : vector<1x512xf32> to vector<256x512xf32>
    %184 = arith.addf %181, %183 : vector<256x512xf32>
    %cst_71 = arith.constant dense<0.000000e+00> : vector<512xf32>
    %185 = vector.multi_reduction <add>, %184, %cst_71 [0] : vector<256x512xf32> to vector<512xf32>
    %186 = vector.shape_cast %185 : vector<512xf32> to vector<1x512xf32>
    %cst_72 = arith.constant 2.560000e+02 : f32
    %187 = vector.broadcast %cst_72 : f32 to vector<1x512xf32>
    %188 = arith.divf %186, %187 : vector<1x512xf32>
    %189 = arith.mulf %184, %184 : vector<256x512xf32>
    %cst_73 = arith.constant dense<0.000000e+00> : vector<512xf32>
    %190 = vector.multi_reduction <add>, %189, %cst_73 [0] : vector<256x512xf32> to vector<512xf32>
    %191 = vector.shape_cast %190 : vector<512xf32> to vector<1x512xf32>
    %cst_74 = arith.constant 2.560000e+02 : f32
    %192 = vector.broadcast %cst_74 : f32 to vector<1x512xf32>
    %193 = arith.divf %191, %192 : vector<1x512xf32>
    %194 = arith.mulf %188, %188 : vector<1x512xf32>
    %195 = arith.subf %193, %194 : vector<1x512xf32>
    %cst_75 = arith.constant 0.000000e+00 : f32
    %196 = vector.broadcast %cst_75 : f32 to vector<1x512xf32>
    %197 = arith.maximumf %195, %196 : vector<1x512xf32>
    %198 = vector.broadcast %188 : vector<1x512xf32> to vector<256x512xf32>
    %199 = arith.subf %184, %198 : vector<256x512xf32>
    %cst_76 = arith.constant 9.99999974E-6 : f32
    %200 = vector.broadcast %cst_76 : f32 to vector<1x512xf32>
    %201 = arith.addf %197, %200 : vector<1x512xf32>
    %202 = math.rsqrt %201 : vector<1x512xf32>
    %203 = vector.broadcast %202 : vector<1x512xf32> to vector<256x512xf32>
    %204 = arith.mulf %199, %203 : vector<256x512xf32>
    %c0_77 = arith.constant 0 : index
    %c4352 = arith.constant 4352 : index
    %205 = vector.load %arg2[%c0_77, %c4352] : memref<1x5504xf32, #tpu.memory_space<vmem>>, vector<1x512xf32>
    %206 = vector.broadcast %205 : vector<1x512xf32> to vector<256x512xf32>
    %207 = arith.mulf %204, %206 : vector<256x512xf32>
    %c0_78 = arith.constant 0 : index
    %c4864 = arith.constant 4864 : index
    %208 = vector.load %arg2[%c0_78, %c4864] : memref<1x5504xf32, #tpu.memory_space<vmem>>, vector<1x512xf32>
    %209 = vector.broadcast %208 : vector<1x512xf32> to vector<256x512xf32>
    %210 = arith.addf %207, %209 : vector<256x512xf32>
    %cst_79 = arith.constant 0.00999999977 : f32
    %211 = vector.broadcast %cst_79 : f32 to vector<256x512xf32>
    %212 = arith.mulf %211, %210 : vector<256x512xf32>
    %213 = arith.maximumf %210, %212 : vector<256x512xf32>
    %214 = arith.truncf %213 : vector<256x512xf32> to vector<256x512xbf16>
    %c0_80 = arith.constant 0 : index
    %c1920 = arith.constant 1920 : index
    %215 = vector.load %arg1[%c0_80, %c1920] : memref<512x2048xbf16, #tpu.memory_space<vmem>>, vector<512x128xbf16>
    %cst_81 = arith.constant dense<0.000000e+00> : vector<256x128xf32>
    %216 = tpu.matmul %214, %215, %cst_81 {dimension_numbers = #tpu.dot_dimension_numbers<[1], [0], [0], [1], [0, 0, 1, 1], [], []>} : vector<256x512xbf16>, vector<512x128xbf16>, vector<256x128xf32> -> vector<256x128xf32>
    %c0_82 = arith.constant 0 : index
    %c5376 = arith.constant 5376 : index
    %217 = vector.load %arg2[%c0_82, %c5376] : memref<1x5504xf32, #tpu.memory_space<vmem>>, vector<1x128xf32>
    %218 = vector.broadcast %217 : vector<1x128xf32> to vector<256x128xf32>
    %219 = arith.addf %216, %218 : vector<256x128xf32>
    %220 = math.tanh %219 : vector<256x128xf32>
    %c0_83 = arith.constant 0 : index
    %c0_84 = arith.constant 0 : index
    %221 = vector.load %arg4[%c0_83, %c0_84] : memref<256x128xf32, #tpu.memory_space<vmem>>, vector<256x128xf32>
    tpu.vector_store %arg4[%c0_83, %c0_84], %220 {strides = array<i32>} : memref<256x128xf32, #tpu.memory_space<vmem>>, vector<256x128xf32>,
    return
  }
}

</mosaic_0001>

<llo_original>
// kernel: ae_forward.1
$region0: #{ae_forward.1}
  #allocation0 [shape = 'u32[]', space=smem, size = 0x4, offset = 0x4, fixed_abs, tag = 'smem constant byte address 0x4 - core index']
  #allocation1 [shape = 'u32[72,128]{1,0:T(1,128)}', space=vmem, size = 0x9000, scoped, tag = 'internal scratch']
  %s0 = inlined_call_operand.vmem [shape: bf16[256,128], index: 0, kind: input, shape index: {}]
  %s1 = inlined_call_operand.vmem [shape: bf16[512,2048], index: 1, kind: input, shape index: {}]
  %s2 = inlined_call_operand.vmem [shape: f32[1,5504], index: 2, kind: input, shape index: {}]
  %s3 = inlined_call_operand.vmem [shape: f32[256,128], index: 3, kind: output, shape index: {0}]
  %s4 = inlined_call_operand.vmem [shape: f32[256,128], index: 4, kind: output, shape index: {1}]
  %5 = xla_tuple %s3, %s4
  %s6 = sld [smem:[#allocation0]]
  $region30: #{ae_forward.1} parent=0
    _
  %s8 = ssub.s32 1, %s6
  %s9 = scalar_select 0, %s8, %s6
  // Predicated region
  $region2: #{ae_forward.1} parent=0 // pred_check
    _
  $region3: #{ae_forward.1} parent=0 // pred_check_branch
    %11 = sbr.rel (0) target = $region5
  $region4: #{ae_forward.1} parent=0 // pred_region
    _
  $region5: #{ae_forward.1} parent=0 // pred_fallthru
    _
  // Predicated region
  $region6: #{ae_forward.1} parent=0 // pred_check
    _
  $region7: #{ae_forward.1} parent=0 // pred_check_branch
    %13 = sbr.rel (0) target = $region9
  $region8: #{ae_forward.1} parent=0 // pred_region
    _
  $region9: #{ae_forward.1} parent=0 // pred_fallthru
    _
  // Predicated region
  $region10: #{ae_forward.1} parent=0 // pred_check
    _
  $region11: #{ae_forward.1} parent=0 // pred_check_branch
    %15 = sbr.rel (0) target = $region13
  $region12: #{ae_forward.1} parent=0 // pred_region
    _
  $region13: #{ae_forward.1} parent=0 // pred_fallthru
    _
  %v16 = vld [vmem:[%s0] sm:$0xf]
  %v17 = vld [vmem:[%s0 + $0x4] sm:$0xf]
  %v18 = vld [vmem:[%s0 + $0x8] sm:$0xf]
  %v19 = vld [vmem:[%s0 + $0xc] sm:$0xf]
  %v20 = vld [vmem:[%s0 + $0x10] sm:$0xf]
  %v21 = vld [vmem:[%s0 + $0x14] sm:$0xf]
  %v22 = vld [vmem:[%s0 + $0x18] sm:$0xf]
  %v23 = vld [vmem:[%s0 + $0x1c] sm:$0xf]
  %v24 = vld [vmem:[%s0 + $0x20] sm:$0xf]
  %v25 = vld [vmem:[%s0 + $0x24] sm:$0xf]
  %v26 = vld [vmem:[%s0 + $0x28] sm:$0xf]
  %v27 = vld [vmem:[%s0 + $0x2c] sm:$0xf]
  %v28 = vld [vmem:[%s0 + $0x30] sm:$0xf]
  %v29 = vld [vmem:[%s0 + $0x34] sm:$0xf]
  %v30 = vld [vmem:[%s0 + $0x38] sm:$0xf]
  %v31 = vld [vmem:[%s0 + $0x3c] sm:$0xf]
  %v32 = vld [vmem:[%s0 + $0x40] sm:$0xf]
  %v33 = vld [vmem:[%s0 + $0x44] sm:$0xf]
  %v34 = vld [vmem:[%s0 + $0x48] sm:$0xf]
  %v35 = vld [vmem:[%s0 + $0x4c] sm:$0xf]
  %v36 = vld [vmem:[%s0 + $0x50] sm:$0xf]
  %v37 = vld [vmem:[%s0 + $0x54] sm:$0xf]
  %v38 = vld [vmem:[%s0 + $0x58] sm:$0xf]
  %v39 = vld [vmem:[%s0 + $0x5c] sm:$0xf]
  %v40 = vld [vmem:[%s0 + $0x60] sm:$0xf]
  %v41 = vld [vmem:[%s0 + $0x64] sm:$0xf]
  %v42 = vld [vmem:[%s0 + $0x68] sm:$0xf]
  %v43 = vld [vmem:[%s0 + $0x6c] sm:$0xf]
  %v44 = vld [vmem:[%s0 + $0x70] sm:$0xf]
  %v45 = vld [vmem:[%s0 + $0x74] sm:$0xf]
  %v46 = vld [vmem:[%s0 + $0x78] sm:$0xf]
  %v47 = vld [vmem:[%s0 + $0x7c] sm:$0xf]
  %v48 = vld [vmem:[%s1] sm:$0xff]
  %v49 = vld [vmem:[%s1 + $0x8] sm:$0xff]
  %v50 = vld [vmem:[%s1 + $0x40] sm:$0xff]
  %v51 = vld [vmem:[%s1 + $0x48] sm:$0xff]
  %v52 = vld [vmem:[%s1 + $0x80] sm:$0xff]
  %v53 = vld [vmem:[%s1 + $0x88] sm:$0xff]
  %v54 = vld [vmem:[%s1 + $0xc0] sm:$0xff]
  %v55 = vld [vmem:[%s1 + $0xc8] sm:$0xff]
  %v56 = vld [vmem:[%s1 + $0x100] sm:$0xff]
  %v57 = vld [vmem:[%s1 + $0x108] sm:$0xff]
  %v58 = vld [vmem:[%s1 + $0x140] sm:$0xff]
  %v59 = vld [vmem:[%s1 + $0x148] sm:$0xff]
  %v60 = vld [vmem:[%s1 + $0x180] sm:$0xff]
  %v61 = vld [vmem:[%s1 + $0x188] sm:$0xff]
  %v62 = vld [vmem:[%s1 + $0x1c0] sm:$0xff]
  %v63 = vld [vmem:[%s1 + $0x1c8] sm:$0xff]
  %v64 = vld [vmem:[%s1 + $0x200] sm:$0xff]
  %v65 = vld [vmem:[%s1 + $0x208] sm:$0xff]
  %v66 = vld [vmem:[%s1 + $0x240] sm:$0xff]
  %v67 = vld [vmem:[%s1 + $0x248] sm:$0xff]
  %v68 = vld [vmem:[%s1 + $0x280] sm:$0xff]
  %v69 = vld [vmem:[%s1 + $0x288] sm:$0xff]
  %v70 = vld [vmem:[%s1 + $0x2c0] sm:$0xff]
  %v71 = vld [vmem:[%s1 + $0x2c8] sm:$0xff]
  %v72 = vld [vmem:[%s1 + $0x300] sm:$0xff]
  %v73 = vld [vmem:[%s1 + $0x308] sm:$0xff]
  %v74 = vld [vmem:[%s1 + $0x340] sm:$0xff]
  %v75 = vld [vmem:[%s1 + $0x348] sm:$0xff]
  %v76 = vld [vmem:[%s1 + $0x380] sm:$0xff]
  %v77 = vld [vmem:[%s1 + $0x388] sm:$0xff]
  %v78 = vld [vmem:[%s1 + $0x3c0] sm:$0xff]
  %v79 = vld [vmem:[%s1 + $0x3c8] sm:$0xff]
  %v80 = vld [vmem:[%s2] sm:$0xf]
  %v82 = vperm.slane %v80, 0
  %v83 = vperm.slane %v80, 1
  %v84 = vperm.slane %v80, 2
  %v85 = vperm.slane %v80, 3
  %v122 = vunpack.c.l.b16 %v16
  %v123 = vunpack.c.l.b16 %v17
  %v124 = vunpack.c.l.b16 %v18
  %v125 = vunpack.c.l.b16 %v19
  %v126 = vunpack.c.l.b16 %v20
  %v127 = vunpack.c.l.b16 %v21
  %v128 = vunpack.c.l.b16 %v22
  %v129 = vunpack.c.l.b16 %v23
  %v130 = vunpack.c.l.b16 %v24
  %v131 = vunpack.c.l.b16 %v25
  %v132 = vunpack.c.l.b16 %v26
  %v133 = vunpack.c.l.b16 %v27
  %v134 = vunpack.c.l.b16 %v28
  %v135 = vunpack.c.l.b16 %v29
  %v136 = vunpack.c.l.b16 %v30
  %v137 = vunpack.c.l.b16 %v31
  %v138 = vunpack.c.l.b16 %v32
  %v139 = vunpack.c.l.b16 %v33
  %v140 = vunpack.c.l.b16 %v34
  %v141 = vunpack.c.l.b16 %v35
  %v142 = vunpack.c.l.b16 %v36
  %v143 = vunpack.c.l.b16 %v37
  %v144 = vunpack.c.l.b16 %v38
  %v145 = vunpack.c.l.b16 %v39
  %v146 = vunpack.c.l.b16 %v40
  %v147 = vunpack.c.l.b16 %v41
  %v148 = vunpack.c.l.b16 %v42
  %v149 = vunpack.c.l.b16 %v43
  %v150 = vunpack.c.l.b16 %v44
  %v151 = vunpack.c.l.b16 %v45
  %v152 = vunpack.c.l.b16 %v46
  %v153 = vunpack.c.l.b16 %v47
  %v154 = vpack.c.b16 %v123, %v122
  %v155 = vpack.c.b16 %v125, %v124
  %v156 = vpack.c.b16 %v127, %v126
  %v157 = vpack.c.b16 %v129, %v128
  %v158 = vpack.c.b16 %v131, %v130
  %v159 = vpack.c.b16 %v133, %v132
  %v160 = vpack.c.b16 %v135, %v134
  %v161 = vpack.c.b16 %v137, %v136
  %v162 = vpack.c.b16 %v139, %v138
  %v163 = vpack.c.b16 %v141, %v140
  %v164 = vpack.c.b16 %v143, %v142
  %v165 = vpack.c.b16 %v145, %v144
  %v166 = vpack.c.b16 %v147, %v146
  %v167 = vpack.c.b16 %v149, %v148
  %v168 = vpack.c.b16 %v151, %v150
  %v169 = vpack.c.b16 %v153, %v152
  %v218 = vunpack.c.l.b16 %v48
  %v219 = vunpack.c.h.b16 %v48
  %v220 = vunpack.c.l.b16 %v49
  %v221 = vunpack.c.h.b16 %v49
  %v222 = vunpack.c.l.b16 %v50
  %v223 = vunpack.c.h.b16 %v50
  %v224 = vunpack.c.l.b16 %v51
  %v225 = vunpack.c.h.b16 %v51
  %v226 = vunpack.c.l.b16 %v52
  %v227 = vunpack.c.h.b16 %v52
  %v228 = vunpack.c.l.b16 %v53
  %v229 = vunpack.c.h.b16 %v53
  %v230 = vunpack.c.l.b16 %v54
  %v231 = vunpack.c.h.b16 %v54
  %v232 = vunpack.c.l.b16 %v55
  %v233 = vunpack.c.h.b16 %v55
  %v234 = vunpack.c.l.b16 %v56
  %v235 = vunpack.c.h.b16 %v56
  %v236 = vunpack.c.l.b16 %v57
  %v237 = vunpack.c.h.b16 %v57
  %v238 = vunpack.c.l.b16 %v58
  %v239 = vunpack.c.h.b16 %v58
  %v240 = vunpack.c.l.b16 %v59
  %v241 = vunpack.c.h.b16 %v59
  %v242 = vunpack.c.l.b16 %v60
  %v243 = vunpack.c.h.b16 %v60
  %v244 = vunpack.c.l.b16 %v61
  %v245 = vunpack.c.h.b16 %v61
  %v246 = vunpack.c.l.b16 %v62
  %v247 = vunpack.c.h.b16 %v62
  %v248 = vunpack.c.l.b16 %v63
  %v249 = vunpack.c.h.b16 %v63
  %v250 = vunpack.c.l.b16 %v64
  %v251 = vunpack.c.h.b16 %v64
  %v252 = vunpack.c.l.b16 %v65
  %v253 = vunpack.c.h.b16 %v65
  %v254 = vunpack.c.l.b16 %v66
  %v255 = vunpack.c.h.b16 %v66
  %v256 = vunpack.c.l.b16 %v67
  %v257 = vunpack.c.h.b16 %v67
  %v258 = vunpack.c.l.b16 %v68
  %v259 = vunpack.c.h.b16 %v68
  %v260 = vunpack.c.l.b16 %v69
  %v261 = vunpack.c.h.b16 %v69
  %v262 = vunpack.c.l.b16 %v70
  %v263 = vunpack.c.h.b16 %v70
  %v264 = vunpack.c.l.b16 %v71
  %v265 = vunpack.c.h.b16 %v71
  %v266 = vunpack.c.l.b16 %v72
  %v267 = vunpack.c.h.b16 %v72
  %v268 = vunpack.c.l.b16 %v73
  %v269 = vunpack.c.h.b16 %v73
  %v270 = vunpack.c.l.b16 %v74
  %v271 = vunpack.c.h.b16 %v74
  %v272 = vunpack.c.l.b16 %v75
  %v273 = vunpack.c.h.b16 %v75
  %v274 = vunpack.c.l.b16 %v76
  %v275 = vunpack.c.h.b16 %v76
  %v276 = vunpack.c.l.b16 %v77
  %v277 = vunpack.c.h.b16 %v77
  %v278 = vunpack.c.l.b16 %v78
  %v279 = vunpack.c.h.b16 %v78
  %v280 = vunpack.c.l.b16 %v79
  %v281 = vunpack.c.h.b16 %v79
  %v282 = vpack.c.b16 %v222, %v218
  %v283 = vpack.c.b16 %v223, %v219
  %v284 = vpack.c.b16 %v224, %v220
  %v285 = vpack.c.b16 %v225, %v221
  %v286 = vpack.c.b16 %v230, %v226
  %v287 = vpack.c.b16 %v231, %v227
  %v288 = vpack.c.b16 %v232, %v228
  %v289 = vpack.c.b16 %v233, %v229
  %v290 = vpack.c.b16 %v238, %v234
  %v291 = vpack.c.b16 %v239, %v235
  %v292 = vpack.c.b16 %v240, %v236
  %v293 = vpack.c.b16 %v241, %v237
  %v294 = vpack.c.b16 %v246, %v242
  %v295 = vpack.c.b16 %v247, %v243
  %v296 = vpack.c.b16 %v248, %v244
  %v297 = vpack.c.b16 %v249, %v245
  %v298 = vpack.c.b16 %v254, %v250
  %v299 = vpack.c.b16 %v255, %v251
  %v300 = vpack.c.b16 %v256, %v252
  %v301 = vpack.c.b16 %v257, %v253
  %v302 = vpack.c.b16 %v262, %v258
  %v303 = vpack.c.b16 %v263, %v259
  %v304 = vpack.c.b16 %v264, %v260
  %v305 = vpack.c.b16 %v265, %v261
  %v306 = vpack.c.b16 %v270, %v266
  %v307 = vpack.c.b16 %v271, %v267
  %v308 = vpack.c.b16 %v272, %v268
  %v309 = vpack.c.b16 %v273, %v269
  %v310 = vpack.c.b16 %v278, %v274
  %v311 = vpack.c.b16 %v279, %v275
  %v312 = vpack.c.b16 %v280, %v276
  %v313 = vpack.c.b16 %v281, %v277
  %346 = vmatpush.bf16.msra.mxu0 %v310
  %347 = vmatpush.bf16.msra.mxu0 %v306
  %348 = vmatpush.bf16.msra.mxu0 %v302
  %349 = vmatpush.bf16.msra.mxu0 %v298
  %350 = vmatpush.bf16.msra.mxu0 %v294
  %351 = vmatpush.bf16.msra.mxu0 %v290
  %352 = vmatpush.bf16.msra.mxu0 %v286
  %353 = vmatpush.bf16.msra.mxu0 %v282
  %354 = vmatmul.bf16.gmra.mxu0 %v154
  %v355 = vpop.f32.mrf.mxu0
  %v356 = vadd.f32 %v82, %v355
  %v357 = vpop.f32.mrf.mxu0
  %v358 = vadd.f32 %v82, %v357
  %359 = vmatmul.bf16.gmra.mxu0 %v155
  %v360 = vpop.f32.mrf.mxu0
  %v361 = vadd.f32 %v82, %v360
  %v362 = vpop.f32.mrf.mxu0
  %v363 = vadd.f32 %v82, %v362
  %364 = vmatmul.bf16.gmra.mxu0 %v156
  %v365 = vpop.f32.mrf.mxu0
  %v366 = vadd.f32 %v82, %v365
  %v367 = vpop.f32.mrf.mxu0
  %v368 = vadd.f32 %v82, %v367
  %369 = vmatmul.bf16.gmra.mxu0 %v157
  %v370 = vpop.f32.mrf.mxu0
  %v371 = vadd.f32 %v82, %v370
  %v372 = vpop.f32.mrf.mxu0
  %v373 = vadd.f32 %v82, %v372
  %374 = vmatmul.bf16.gmra.mxu0 %v158
  %v375 = vpop.f32.mrf.mxu0
  %v376 = vadd.f32 %v82, %v375
  %v377 = vpop.f32.mrf.mxu0
  %v378 = vadd.f32 %v82, %v377
  %379 = vmatmul.bf16.gmra.mxu0 %v159
  %v380 = vpop.f32.mrf.mxu0
  %v381 = vadd.f32 %v82, %v380
  %v382 = vpop.f32.mrf.mxu0
  %v383 = vadd.f32 %v82, %v382
  %384 = vmatmul.bf16.gmra.mxu0 %v160
  %v385 = vpop.f32.mrf.mxu0
  %v386 = vadd.f32 %v82, %v385
  %v387 = vpop.f32.mrf.mxu0
  %v388 = vadd.f32 %v82, %v387
  %389 = vmatmul.bf16.gmra.mxu0 %v161
  %v390 = vpop.f32.mrf.mxu0
  %v391 = vadd.f32 %v82, %v390
  %v392 = vpop.f32.mrf.mxu0
  %v393 = vadd.f32 %v82, %v392
  %394 = vmatmul.bf16.gmra.mxu0 %v162
  %v395 = vpop.f32.mrf.mxu0
  %v396 = vadd.f32 %v82, %v395
  %v397 = vpop.f32.mrf.mxu0
  %v398 = vadd.f32 %v82, %v397
  %399 = vmatmul.bf16.gmra.mxu0 %v163
  %v400 = vpop.f32.mrf.mxu0
  %v401 = vadd.f32 %v82, %v400
  %v402 = vpop.f32.mrf.mxu0
  %v403 = vadd.f32 %v82, %v402
  %404 = vmatmul.bf16.gmra.mxu0 %v164
  %v405 = vpop.f32.mrf.mxu0
  %v406 = vadd.f32 %v82, %v405
  %v407 = vpop.f32.mrf.mxu0
  %v408 = vadd.f32 %v82, %v407
  %409 = vmatmul.bf16.gmra.mxu0 %v165
  %v410 = vpop.f32.mrf.mxu0
  %v411 = vadd.f32 %v82, %v410
  %v412 = vpop.f32.mrf.mxu0
  %v413 = vadd.f32 %v82, %v412
  %414 = vmatmul.bf16.gmra.mxu0 %v166
  %v415 = vpop.f32.mrf.mxu0
  %v416 = vadd.f32 %v82, %v415
  %v417 = vpop.f32.mrf.mxu0
  %v418 = vadd.f32 %v82, %v417
  %419 = vmatmul.bf16.gmra.mxu0 %v167
  %v420 = vpop.f32.mrf.mxu0
  %v421 = vadd.f32 %v82, %v420
  %v422 = vpop.f32.mrf.mxu0
  %v423 = vadd.f32 %v82, %v422
  %424 = vmatmul.bf16.gmra.mxu0 %v168
  %v425 = vpop.f32.mrf.mxu0
  %v426 = vadd.f32 %v82, %v425
  %v427 = vpop.f32.mrf.mxu0
  %v428 = vadd.f32 %v82, %v427
  %429 = vmatmul.bf16.gmra.mxu0 %v169
  %v430 = vpop.f32.mrf.mxu0
  %v431 = vadd.f32 %v82, %v430
  %v432 = vpop.f32.mrf.mxu0
  %v433 = vadd.f32 %v82, %v432
  %434 = vdwg.mxu0
  %435 = vmatpush.bf16.msra.mxu0 %v311
  %436 = vmatpush.bf16.msra.mxu0 %v307
  %437 = vmatpush.bf16.msra.mxu0 %v303
  %438 = vmatpush.bf16.msra.mxu0 %v299
  %439 = vmatpush.bf16.msra.mxu0 %v295
  %440 = vmatpush.bf16.msra.mxu0 %v291
  %441 = vmatpush.bf16.msra.mxu0 %v287
  %442 = vmatpush.bf16.msra.mxu0 %v283
  %443 = vmatmul.bf16.gmra.mxu0 %v154
  %v444 = vpop.f32.mrf.mxu0
  %v445 = vadd.f32 %v83, %v444
  %v446 = vpop.f32.mrf.mxu0
  %v447 = vadd.f32 %v83, %v446
  %448 = vmatmul.bf16.gmra.mxu0 %v155
  %v449 = vpop.f32.mrf.mxu0
  %v450 = vadd.f32 %v83, %v449
  %v451 = vpop.f32.mrf.mxu0
  %v452 = vadd.f32 %v83, %v451
  %453 = vmatmul.bf16.gmra.mxu0 %v156
  %v454 = vpop.f32.mrf.mxu0
  %v455 = vadd.f32 %v83, %v454
  %v456 = vpop.f32.mrf.mxu0
  %v457 = vadd.f32 %v83, %v456
  %458 = vmatmul.bf16.gmra.mxu0 %v157
  %v459 = vpop.f32.mrf.mxu0
  %v460 = vadd.f32 %v83, %v459
  %v461 = vpop.f32.mrf.mxu0
  %v462 = vadd.f32 %v83, %v461
  %463 = vmatmul.bf16.gmra.mxu0 %v158
  %v464 = vpop.f32.mrf.mxu0
  %v465 = vadd.f32 %v83, %v464
  %v466 = vpop.f32.mrf.mxu0
  %v467 = vadd.f32 %v83, %v466
  %468 = vmatmul.bf16.gmra.mxu0 %v159
  %v469 = vpop.f32.mrf.mxu0
  %v470 = vadd.f32 %v83, %v469
  %v471 = vpop.f32.mrf.mxu0
  %v472 = vadd.f32 %v83, %v471
  %473 = vmatmul.bf16.gmra.mxu0 %v160
  %v474 = vpop.f32.mrf.mxu0
  %v475 = vadd.f32 %v83, %v474
  %v476 = vpop.f32.mrf.mxu0
  %v477 = vadd.f32 %v83, %v476
  %478 = vmatmul.bf16.gmra.mxu0 %v161
  %v479 = vpop.f32.mrf.mxu0
  %v480 = vadd.f32 %v83, %v479
  %v481 = vpop.f32.mrf.mxu0
  %v482 = vadd.f32 %v83, %v481
  %483 = vmatmul.bf16.gmra.mxu0 %v162
  %v484 = vpop.f32.mrf.mxu0
  %v485 = vadd.f32 %v83, %v484
  %v486 = vpop.f32.mrf.mxu0
  %v487 = vadd.f32 %v83, %v486
  %488 = vmatmul.bf16.gmra.mxu0 %v163
  %v489 = vpop.f32.mrf.mxu0
  %v490 = vadd.f32 %v83, %v489
  %v491 = vpop.f32.mrf.mxu0
  %v492 = vadd.f32 %v83, %v491
  %493 = vmatmul.bf16.gmra.mxu0 %v164
  %v494 = vpop.f32.mrf.mxu0
  %v495 = vadd.f32 %v83, %v494
  %v496 = vpop.f32.mrf.mxu0
  %v497 = vadd.f32 %v83, %v496
  %498 = vmatmul.bf16.gmra.mxu0 %v165
  %v499 = vpop.f32.mrf.mxu0
  %v500 = vadd.f32 %v83, %v499
  %v501 = vpop.f32.mrf.mxu0
  %v502 = vadd.f32 %v83, %v501
  %503 = vmatmul.bf16.gmra.mxu0 %v166
  %v504 = vpop.f32.mrf.mxu0
  %v505 = vadd.f32 %v83, %v504
  %v506 = vpop.f32.mrf.mxu0
  %v507 = vadd.f32 %v83, %v506
  %508 = vmatmul.bf16.gmra.mxu0 %v167
  %v509 = vpop.f32.mrf.mxu0
  %v510 = vadd.f32 %v83, %v509
  %v511 = vpop.f32.mrf.mxu0
  %v512 = vadd.f32 %v83, %v511
  %513 = vmatmul.bf16.gmra.mxu0 %v168
  %v514 = vpop.f32.mrf.mxu0
  %v515 = vadd.f32 %v83, %v514
  %v516 = vpop.f32.mrf.mxu0
  %v517 = vadd.f32 %v83, %v516
  %518 = vmatmul.bf16.gmra.mxu0 %v169
  %v519 = vpop.f32.mrf.mxu0
  %v520 = vadd.f32 %v83, %v519
  %v521 = vpop.f32.mrf.mxu0
  %v522 = vadd.f32 %v83, %v521
  %523 = vdwg.mxu0
  %524 = vmatpush.bf16.msra.mxu0 %v312
  %525 = vmatpush.bf16.msra.mxu0 %v308
  %526 = vmatpush.bf16.msra.mxu0 %v304
  %527 = vmatpush.bf16.msra.mxu0 %v300
  %528 = vmatpush.bf16.msra.mxu0 %v296
  %529 = vmatpush.bf16.msra.mxu0 %v292
  %530 = vmatpush.bf16.msra.mxu0 %v288
  %531 = vmatpush.bf16.msra.mxu0 %v284
  %532 = vmatmul.bf16.gmra.mxu0 %v154
  %v533 = vpop.f32.mrf.mxu0
  %v534 = vadd.f32 %v84, %v533
  %v535 = vpop.f32.mrf.mxu0
  %v536 = vadd.f32 %v84, %v535
  %537 = vmatmul.bf16.gmra.mxu0 %v155
  %v538 = vpop.f32.mrf.mxu0
  %v539 = vadd.f32 %v84, %v538
  %v540 = vpop.f32.mrf.mxu0
  %v541 = vadd.f32 %v84, %v540
  %542 = vmatmul.bf16.gmra.mxu0 %v156
  %v543 = vpop.f32.mrf.mxu0
  %v544 = vadd.f32 %v84, %v543
  %v545 = vpop.f32.mrf.mxu0
  %v546 = vadd.f32 %v84, %v545
  %547 = vmatmul.bf16.gmra.mxu0 %v157
  %v548 = vpop.f32.mrf.mxu0
  %v549 = vadd.f32 %v84, %v548
  %v550 = vpop.f32.mrf.mxu0
  %v551 = vadd.f32 %v84, %v550
  %552 = vmatmul.bf16.gmra.mxu0 %v158
  %v553 = vpop.f32.mrf.mxu0
  %v554 = vadd.f32 %v84, %v553
  %v555 = vpop.f32.mrf.mxu0
  %v556 = vadd.f32 %v84, %v555
  %557 = vmatmul.bf16.gmra.mxu0 %v159
  %v558 = vpop.f32.mrf.mxu0
  %v559 = vadd.f32 %v84, %v558
  %v560 = vpop.f32.mrf.mxu0
  %v561 = vadd.f32 %v84, %v560
  %562 = vmatmul.bf16.gmra.mxu0 %v160
  %v563 = vpop.f32.mrf.mxu0
  %v564 = vadd.f32 %v84, %v563
  %v565 = vpop.f32.mrf.mxu0
  %v566 = vadd.f32 %v84, %v565
  %567 = vmatmul.bf16.gmra.mxu0 %v161
  %v568 = vpop.f32.mrf.mxu0
  %v569 = vadd.f32 %v84, %v568
  %v570 = vpop.f32.mrf.mxu0
  %v571 = vadd.f32 %v84, %v570
  %572 = vmatmul.bf16.gmra.mxu0 %v162
  %v573 = vpop.f32.mrf.mxu0
  %v574 = vadd.f32 %v84, %v573
  %v575 = vpop.f32.mrf.mxu0
  %v576 = vadd.f32 %v84, %v575
  %577 = vmatmul.bf16.gmra.mxu0 %v163
  %v578 = vpop.f32.mrf.mxu0
  %v579 = vadd.f32 %v84, %v578
  %v580 = vpop.f32.mrf.mxu0
  %v581 = vadd.f32 %v84, %v580
  %582 = vmatmul.bf16.gmra.mxu0 %v164
  %v583 = vpop.f32.mrf.mxu0
  %v584 = vadd.f32 %v84, %v583
  %v585 = vpop.f32.mrf.mxu0
  %v586 = vadd.f32 %v84, %v585
  %587 = vmatmul.bf16.gmra.mxu0 %v165
  %v588 = vpop.f32.mrf.mxu0
  %v589 = vadd.f32 %v84, %v588
  %v590 = vpop.f32.mrf.mxu0
  %v591 = vadd.f32 %v84, %v590
  %592 = vmatmul.bf16.gmra.mxu0 %v166
  %v593 = vpop.f32.mrf.mxu0
  %v594 = vadd.f32 %v84, %v593
  %v595 = vpop.f32.mrf.mxu0
  %v596 = vadd.f32 %v84, %v595
  %597 = vmatmul.bf16.gmra.mxu0 %v167
  %v598 = vpop.f32.mrf.mxu0
  %v599 = vadd.f32 %v84, %v598
  %v600 = vpop.f32.mrf.mxu0
  %v601 = vadd.f32 %v84, %v600
  %602 = vmatmul.bf16.gmra.mxu0 %v168
  %v603 = vpop.f32.mrf.mxu0
  %v604 = vadd.f32 %v84, %v603
  %v605 = vpop.f32.mrf.mxu0
  %v606 = vadd.f32 %v84, %v605
  %607 = vmatmul.bf16.gmra.mxu0 %v169
  %v608 = vpop.f32.mrf.mxu0
  %v609 = vadd.f32 %v84, %v608
  %v610 = vpop.f32.mrf.mxu0
  %v611 = vadd.f32 %v84, %v610
  %612 = vdwg.mxu0
  %613 = vmatpush.bf16.msra.mxu0 %v313
  %614 = vmatpush.bf16.msra.mxu0 %v309
  %615 = vmatpush.bf16.msra.mxu0 %v305
  %616 = vmatpush.bf16.msra.mxu0 %v301
  %617 = vmatpush.bf16.msra.mxu0 %v297
  %618 = vmatpush.bf16.msra.mxu0 %v293
  %619 = vmatpush.bf16.msra.mxu0 %v289
  %620 = vmatpush.bf16.msra.mxu0 %v285
  %621 = vmatmul.bf16.gmra.mxu0 %v154
  %v622 = vpop.f32.mrf.mxu0
  %v623 = vadd.f32 %v85, %v622
  %v624 = vpop.f32.mrf.mxu0
  %v625 = vadd.f32 %v85, %v624
  %626 = vmatmul.bf16.gmra.mxu0 %v155
  %v627 = vpop.f32.mrf.mxu0
  %v628 = vadd.f32 %v85, %v627
  %v629 = vpop.f32.mrf.mxu0
  %v630 = vadd.f32 %v85, %v629
  %631 = vmatmul.bf16.gmra.mxu0 %v156
  %v632 = vpop.f32.mrf.mxu0
  %v633 = vadd.f32 %v85, %v632
  %v634 = vpop.f32.mrf.mxu0
  %v635 = vadd.f32 %v85, %v634
  %636 = vmatmul.bf16.gmra.mxu0 %v157
  %v637 = vpop.f32.mrf.mxu0
  %v638 = vadd.f32 %v85, %v637
  %v639 = vpop.f32.mrf.mxu0
  %v640 = vadd.f32 %v85, %v639
  %641 = vmatmul.bf16.gmra.mxu0 %v158
  %v642 = vpop.f32.mrf.mxu0
  %v643 = vadd.f32 %v85, %v642
  %v644 = vpop.f32.mrf.mxu0
  %v645 = vadd.f32 %v85, %v644
  %646 = vmatmul.bf16.gmra.mxu0 %v159
  %v647 = vpop.f32.mrf.mxu0
  %v648 = vadd.f32 %v85, %v647
  %v649 = vpop.f32.mrf.mxu0
  %v650 = vadd.f32 %v85, %v649
  %651 = vmatmul.bf16.gmra.mxu0 %v160
  %v652 = vpop.f32.mrf.mxu0
  %v653 = vadd.f32 %v85, %v652
  %v654 = vpop.f32.mrf.mxu0
  %v655 = vadd.f32 %v85, %v654
  %656 = vmatmul.bf16.gmra.mxu0 %v161
  %v657 = vpop.f32.mrf.mxu0
  %v658 = vadd.f32 %v85, %v657
  %v659 = vpop.f32.mrf.mxu0
  %v660 = vadd.f32 %v85, %v659
  %661 = vmatmul.bf16.gmra.mxu0 %v162
  %v662 = vpop.f32.mrf.mxu0
  %v663 = vadd.f32 %v85, %v662
  %v664 = vpop.f32.mrf.mxu0
  %v665 = vadd.f32 %v85, %v664
  %666 = vmatmul.bf16.gmra.mxu0 %v163
  %v667 = vpop.f32.mrf.mxu0
  %v668 = vadd.f32 %v85, %v667
  %v669 = vpop.f32.mrf.mxu0
  %v670 = vadd.f32 %v85, %v669
  %671 = vmatmul.bf16.gmra.mxu0 %v164
  %v672 = vpop.f32.mrf.mxu0
  %v673 = vadd.f32 %v85, %v672
  %v674 = vpop.f32.mrf.mxu0
  %v675 = vadd.f32 %v85, %v674
  %676 = vmatmul.bf16.gmra.mxu0 %v165
  %v677 = vpop.f32.mrf.mxu0
  %v678 = vadd.f32 %v85, %v677
  %v679 = vpop.f32.mrf.mxu0
  %v680 = vadd.f32 %v85, %v679
  %681 = vmatmul.bf16.gmra.mxu0 %v166
  %v682 = vpop.f32.mrf.mxu0
  %v683 = vadd.f32 %v85, %v682
  %v684 = vpop.f32.mrf.mxu0
  %v685 = vadd.f32 %v85, %v684
  %686 = vmatmul.bf16.gmra.mxu0 %v167
  %v687 = vpop.f32.mrf.mxu0
  %v688 = vadd.f32 %v85, %v687
  %v689 = vpop.f32.mrf.mxu0
  %v690 = vadd.f32 %v85, %v689
  %691 = vmatmul.bf16.gmra.mxu0 %v168
  %v692 = vpop.f32.mrf.mxu0
  %v693 = vadd.f32 %v85, %v692
  %v694 = vpop.f32.mrf.mxu0
  %v695 = vadd.f32 %v85, %v694
  %696 = vmatmul.bf16.gmra.mxu0 %v169
  %v697 = vpop.f32.mrf.mxu0
  %v698 = vadd.f32 %v85, %v697
  %v699 = vpop.f32.mrf.mxu0
  %v700 = vadd.f32 %v85, %v699
  %701 = vdwg.mxu0
  %v702 = vadd.f32 %v356, %v358
  %v703 = vadd.f32 %v702, %v361
  %v704 = vadd.f32 %v703, %v363
  %v705 = vadd.f32 %v704, %v366
  %v706 = vadd.f32 %v705, %v368
  %v707 = vadd.f32 %v706, %v371
  %v708 = vadd.f32 %v707, %v373
  %v709 = vadd.f32 %v708, %v376
  %v710 = vadd.f32 %v709, %v378
  %v711 = vadd.f32 %v710, %v381
  %v712 = vadd.f32 %v711, %v383
  %v713 = vadd.f32 %v712, %v386
  %v714 = vadd.f32 %v713, %v388
  %v715 = vadd.f32 %v714, %v391
  %v716 = vadd.f32 %v715, %v393
  %v717 = vadd.f32 %v716, %v396
  %v718 = vadd.f32 %v717, %v398
  %v719 = vadd.f32 %v718, %v401
  %v720 = vadd.f32 %v719, %v403
  %v721 = vadd.f32 %v720, %v406
  %v722 = vadd.f32 %v721, %v408
  %v723 = vadd.f32 %v722, %v411
  %v724 = vadd.f32 %v723, %v413
  %v725 = vadd.f32 %v724, %v416
  %v726 = vadd.f32 %v725, %v418
  %v727 = vadd.f32 %v726, %v421
  %v728 = vadd.f32 %v727, %v423
  %v729 = vadd.f32 %v728, %v426
  %v730 = vadd.f32 %v729, %v428
  %v731 = vadd.f32 %v730, %v431
  %v732 = vadd.f32 %v731, %v433
  %v733 = vrot.slane %v732, 4
  %v734 = vadd.f32 %v732, %v733
  %v735 = vrot.slane %v734, 2
  %v736 = vadd.f32 %v734, %v735
  %v737 = vrot.slane %v736, 1
  %v738 = vadd.f32 %v736, %v737
  %v739 = vadd.f32 %v445, %v447
  %v740 = vadd.f32 %v739, %v450
  %v741 = vadd.f32 %v740, %v452
  %v742 = vadd.f32 %v741, %v455
  %v743 = vadd.f32 %v742, %v457
  %v744 = vadd.f32 %v743, %v460
  %v745 = vadd.f32 %v744, %v462
  %v746 = vadd.f32 %v745, %v465
  %v747 = vadd.f32 %v746, %v467
  %v748 = vadd.f32 %v747, %v470
  %v749 = vadd.f32 %v748, %v472
  %v750 = vadd.f32 %v749, %v475
  %v751 = vadd.f32 %v750, %v477
  %v752 = vadd.f32 %v751, %v480
  %v753 = vadd.f32 %v752, %v482
  %v754 = vadd.f32 %v753, %v485
  %v755 = vadd.f32 %v754, %v487
  %v756 = vadd.f32 %v755, %v490
  %v757 = vadd.f32 %v756, %v492
  %v758 = vadd.f32 %v757, %v495
  %v759 = vadd.f32 %v758, %v497
  %v760 = vadd.f32 %v759, %v500
  %v761 = vadd.f32 %v760, %v502
  %v762 = vadd.f32 %v761, %v505
  %v763 = vadd.f32 %v762, %v507
  %v764 = vadd.f32 %v763, %v510
  %v765 = vadd.f32 %v764, %v512
  %v766 = vadd.f32 %v765, %v515
  %v767 = vadd.f32 %v766, %v517
  %v768 = vadd.f32 %v767, %v520
  %v769 = vadd.f32 %v768, %v522
  %v770 = vrot.slane %v769, 4
  %v771 = vadd.f32 %v769, %v770
  %v772 = vrot.slane %v771, 2
  %v773 = vadd.f32 %v771, %v772
  %v774 = vrot.slane %v773, 1
  %v775 = vadd.f32 %v773, %v774
  %v776 = vadd.f32 %v534, %v536
  %v777 = vadd.f32 %v776, %v539
  %v778 = vadd.f32 %v777, %v541
  %v779 = vadd.f32 %v778, %v544
  %v780 = vadd.f32 %v779, %v546
  %v781 = vadd.f32 %v780, %v549
  %v782 = vadd.f32 %v781, %v551
  %v783 = vadd.f32 %v782, %v554
  %v784 = vadd.f32 %v783, %v556
  %v785 = vadd.f32 %v784, %v559
  %v786 = vadd.f32 %v785, %v561
  %v787 = vadd.f32 %v786, %v564
  %v788 = vadd.f32 %v787, %v566
  %v789 = vadd.f32 %v788, %v569
  %v790 = vadd.f32 %v789, %v571
  %v791 = vadd.f32 %v790, %v574
  %v792 = vadd.f32 %v791, %v576
  %v793 = vadd.f32 %v792, %v579
  %v794 = vadd.f32 %v793, %v581
  %v795 = vadd.f32 %v794, %v584
  %v796 = vadd.f32 %v795, %v586
  %v797 = vadd.f32 %v796, %v589
  %v798 = vadd.f32 %v797, %v591
  %v799 = vadd.f32 %v798, %v594
  %v800 = vadd.f32 %v799, %v596
  %v801 = vadd.f32 %v800, %v599
  %v802 = vadd.f32 %v801, %v601
  %v803 = vadd.f32 %v802, %v604
  %v804 = vadd.f32 %v803, %v606
  %v805 = vadd.f32 %v804, %v609
  %v806 = vadd.f32 %v805, %v611
  %v807 = vrot.slane %v806, 4
  %v808 = vadd.f32 %v806, %v807
  %v809 = vrot.slane %v808, 2
  %v810 = vadd.f32 %v808, %v809
  %v811 = vrot.slane %v810, 1
  %v812 = vadd.f32 %v810, %v811
  %v813 = vadd.f32 %v623, %v625
  %v814 = vadd.f32 %v813, %v628
  %v815 = vadd.f32 %v814, %v630
  %v816 = vadd.f32 %v815, %v633
  %v817 = vadd.f32 %v816, %v635
  %v818 = vadd.f32 %v817, %v638
  %v819 = vadd.f32 %v818, %v640
  %v820 = vadd.f32 %v819, %v643
  %v821 = vadd.f32 %v820, %v645
  %v822 = vadd.f32 %v821, %v648
  %v823 = vadd.f32 %v822, %v650
  %v824 = vadd.f32 %v823, %v653
  %v825 = vadd.f32 %v824, %v655
  %v826 = vadd.f32 %v825, %v658
  %v827 = vadd.f32 %v826, %v660
  %v828 = vadd.f32 %v827, %v663
  %v829 = vadd.f32 %v828, %v665
  %v830 = vadd.f32 %v829, %v668
  %v831 = vadd.f32 %v830, %v670
  %v832 = vadd.f32 %v831, %v673
  %v833 = vadd.f32 %v832, %v675
  %v834 = vadd.f32 %v833, %v678
  %v835 = vadd.f32 %v834, %v680
  %v836 = vadd.f32 %v835, %v683
  %v837 = vadd.f32 %v836, %v685
  %v838 = vadd.f32 %v837, %v688
  %v839 = vadd.f32 %v838, %v690
  %v840 = vadd.f32 %v839, %v693
  %v841 = vadd.f32 %v840, %v695
  %v842 = vadd.f32 %v841, %v698
  %v843 = vadd.f32 %v842, %v700
  %v844 = vrot.slane %v843, 4
  %v845 = vadd.f32 %v843, %v844
  %v846 = vrot.slane %v845, 2
  %v847 = vadd.f32 %v845, %v846
  %v848 = vrot.slane %v847, 1
  %v849 = vadd.f32 %v847, %v848
  %v850 = vrcp.pop 256.0
  %v851 = vmul.f32 256.0, %v850
  %v852 = vsub.f32 1.0, %v851
  %v853 = vmul.f32 %v850, %v852
  %v854 = vadd.f32 %v850, %v853
  %vm855 = vweird.f32 %v850
  %v856 = vsel %vm855, %v850, %v854
  %v857 = vmul.f32 %v738, %v856
  %v858 = vmul.f32 %v775, %v856
  %v859 = vmul.f32 %v812, %v856
  %v860 = vmul.f32 %v849, %v856
  %v861 = vmul.f32 %v356, %v356
  %v862 = vmul.f32 %v445, %v445
  %v863 = vmul.f32 %v534, %v534
  %v864 = vmul.f32 %v623, %v623
  %v865 = vmul.f32 %v358, %v358
  %v866 = vmul.f32 %v447, %v447
  %v867 = vmul.f32 %v536, %v536
  %v868 = vmul.f32 %v625, %v625
  %v869 = vmul.f32 %v361, %v361
  %v870 = vmul.f32 %v450, %v450
  %v871 = vmul.f32 %v539, %v539
  %v872 = vmul.f32 %v628, %v628
  %v873 = vmul.f32 %v363, %v363
  %v874 = vmul.f32 %v452, %v452
  %v875 = vmul.f32 %v541, %v541
  %v876 = vmul.f32 %v630, %v630
  %v877 = vmul.f32 %v366, %v366
  %v878 = vmul.f32 %v455, %v455
  %v879 = vmul.f32 %v544, %v544
  %v880 = vmul.f32 %v633, %v633
  %v881 = vmul.f32 %v368, %v368
  %v882 = vmul.f32 %v457, %v457
  %v883 = vmul.f32 %v546, %v546
  %v884 = vmul.f32 %v635, %v635
  %v885 = vmul.f32 %v371, %v371
  %v886 = vmul.f32 %v460, %v460
  %v887 = vmul.f32 %v549, %v549
  %v888 = vmul.f32 %v638, %v638
  %v889 = vmul.f32 %v373, %v373
  %v890 = vmul.f32 %v462, %v462
  %v891 = vmul.f32 %v551, %v551
  %v892 = vmul.f32 %v640, %v640
  %v893 = vmul.f32 %v376, %v376
  %v894 = vmul.f32 %v465, %v465
  %v895 = vmul.f32 %v554, %v554
  %v896 = vmul.f32 %v643, %v643
  %v897 = vmul.f32 %v378, %v378
  %v898 = vmul.f32 %v467, %v467
  %v899 = vmul.f32 %v556, %v556
  %v900 = vmul.f32 %v645, %v645
  %v901 = vmul.f32 %v381, %v381
  %v902 = vmul.f32 %v470, %v470
  %v903 = vmul.f32 %v559, %v559
  %v904 = vmul.f32 %v648, %v648
  %v905 = vmul.f32 %v383, %v383
  %v906 = vmul.f32 %v472, %v472
  %v907 = vmul.f32 %v561, %v561
  %v908 = vmul.f32 %v650, %v650
  %v909 = vmul.f32 %v386, %v386
  %v910 = vmul.f32 %v475, %v475
  %v911 = vmul.f32 %v564, %v564
  %v912 = vmul.f32 %v653, %v653
  %v913 = vmul.f32 %v388, %v388
  %v914 = vmul.f32 %v477, %v477
  %v915 = vmul.f32 %v566, %v566
  %v916 = vmul.f32 %v655, %v655
  %v917 = vmul.f32 %v391, %v391
  %v918 = vmul.f32 %v480, %v480
  %v919 = vmul.f32 %v569, %v569
  %v920 = vmul.f32 %v658, %v658
  %v921 = vmul.f32 %v393, %v393
  %v922 = vmul.f32 %v482, %v482
  %v923 = vmul.f32 %v571, %v571
  %v924 = vmul.f32 %v660, %v660
  %v925 = vmul.f32 %v396, %v396
  %v926 = vmul.f32 %v485, %v485
  %v927 = vmul.f32 %v574, %v574
  %v928 = vmul.f32 %v663, %v663
  %v929 = vmul.f32 %v398, %v398
  %v930 = vmul.f32 %v487, %v487
  %v931 = vmul.f32 %v576, %v576
  %v932 = vmul.f32 %v665, %v665
  %v933 = vmul.f32 %v401, %v401
  %v934 = vmul.f32 %v490, %v490
  %v935 = vmul.f32 %v579, %v579
  %v936 = vmul.f32 %v668, %v668
  %v937 = vmul.f32 %v403, %v403
  %v938 = vmul.f32 %v492, %v492
  %v939 = vmul.f32 %v581, %v581
  %v940 = vmul.f32 %v670, %v670
  %v941 = vmul.f32 %v406, %v406
  %v942 = vmul.f32 %v495, %v495
  %v943 = vmul.f32 %v584, %v584
  %v944 = vmul.f32 %v673, %v673
  %v945 = vmul.f32 %v408, %v408
  %v946 = vmul.f32 %v497, %v497
  %v947 = vmul.f32 %v586, %v586
  %v948 = vmul.f32 %v675, %v675
  %v949 = vmul.f32 %v411, %v411
  %v950 = vmul.f32 %v500, %v500
  %v951 = vmul.f32 %v589, %v589
  %v952 = vmul.f32 %v678, %v678
  %v953 = vmul.f32 %v413, %v413
  %v954 = vmul.f32 %v502, %v502
  %v955 = vmul.f32 %v591, %v591
  %v956 = vmul.f32 %v680, %v680
  %v957 = vmul.f32 %v416, %v416
  %v958 = vmul.f32 %v505, %v505
  %v959 = vmul.f32 %v594, %v594
  %v960 = vmul.f32 %v683, %v683
  %v961 = vmul.f32 %v418, %v418
  %v962 = vmul.f32 %v507, %v507
  %v963 = vmul.f32 %v596, %v596
  %v964 = vmul.f32 %v685, %v685
  %v965 = vmul.f32 %v421, %v421
  %v966 = vmul.f32 %v510, %v510
  %v967 = vmul.f32 %v599, %v599
  %v968 = vmul.f32 %v688, %v688
  %v969 = vmul.f32 %v423, %v423
  %v970 = vmul.f32 %v512, %v512
  %v971 = vmul.f32 %v601, %v601
  %v972 = vmul.f32 %v690, %v690
  %v973 = vmul.f32 %v426, %v426
  %v974 = vmul.f32 %v515, %v515
  %v975 = vmul.f32 %v604, %v604
  %v976 = vmul.f32 %v693, %v693
  %v977 = vmul.f32 %v428, %v428
  %v978 = vmul.f32 %v517, %v517
  %v979 = vmul.f32 %v606, %v606
  %v980 = vmul.f32 %v695, %v695
  %v981 = vmul.f32 %v431, %v431
  %v982 = vmul.f32 %v520, %v520
  %v983 = vmul.f32 %v609, %v609
  %v984 = vmul.f32 %v698, %v698
  %v985 = vmul.f32 %v433, %v433
  %v986 = vmul.f32 %v522, %v522
  %v987 = vmul.f32 %v611, %v611
  %v988 = vmul.f32 %v700, %v700
  %v989 = vadd.f32 %v861, %v865
  %v990 = vadd.f32 %v989, %v869
  %v991 = vadd.f32 %v990, %v873
  %v992 = vadd.f32 %v991, %v877
  %v993 = vadd.f32 %v992, %v881
  %v994 = vadd.f32 %v993, %v885
  %v995 = vadd.f32 %v994, %v889
  %v996 = vadd.f32 %v995, %v893
  %v997 = vadd.f32 %v996, %v897
  %v998 = vadd.f32 %v997, %v901
  %v999 = vadd.f32 %v998, %v905
  %v1000 = vadd.f32 %v999, %v909
  %v1001 = vadd.f32 %v1000, %v913
  %v1002 = vadd.f32 %v1001, %v917
  %v1003 = vadd.f32 %v1002, %v921
  %v1004 = vadd.f32 %v1003, %v925
  %v1005 = vadd.f32 %v1004, %v929
  %v1006 = vadd.f32 %v1005, %v933
  %v1007 = vadd.f32 %v1006, %v937
  %v1008 = vadd.f32 %v1007, %v941
  %v1009 = vadd.f32 %v1008, %v945
  %v1010 = vadd.f32 %v1009, %v949
  %v1011 = vadd.f32 %v1010, %v953
  %v1012 = vadd.f32 %v1011, %v957
  %v1013 = vadd.f32 %v1012, %v961
  %v1014 = vadd.f32 %v1013, %v965
  %v1015 = vadd.f32 %v1014, %v969
  %v1016 = vadd.f32 %v1015, %v973
  %v1017 = vadd.f32 %v1016, %v977
  %v1018 = vadd.f32 %v1017, %v981
  %v1019 = vadd.f32 %v1018, %v985
  %v1020 = vrot.slane %v1019, 4
  %v1021 = vadd.f32 %v1019, %v1020
  %v1022 = vrot.slane %v1021, 2
  %v1023 = vadd.f32 %v1021, %v1022
  %v1024 = vrot.slane %v1023, 1
  %v1025 = vadd.f32 %v1023, %v1024
  %v1026 = vadd.f32 %v862, %v866
  %v1027 = vadd.f32 %v1026, %v870
  %v1028 = vadd.f32 %v1027, %v874
  %v1029 = vadd.f32 %v1028, %v878
  %v1030 = vadd.f32 %v1029, %v882
  %v1031 = vadd.f32 %v1030, %v886
  %v1032 = vadd.f32 %v1031, %v890
  %v1033 = vadd.f32 %v1032, %v894
  %v1034 = vadd.f32 %v1033, %v898
  %v1035 = vadd.f32 %v1034, %v902
  %v1036 = vadd.f32 %v1035, %v906
  %v1037 = vadd.f32 %v1036, %v910
  %v1038 = vadd.f32 %v1037, %v914
  %v1039 = vadd.f32 %v1038, %v918
  %v1040 = vadd.f32 %v1039, %v922
  %v1041 = vadd.f32 %v1040, %v926
  %v1042 = vadd.f32 %v1041, %v930
  %v1043 = vadd.f32 %v1042, %v934
  %v1044 = vadd.f32 %v1043, %v938
  %v1045 = vadd.f32 %v1044, %v942
  %v1046 = vadd.f32 %v1045, %v946
  %v1047 = vadd.f32 %v1046, %v950
  %v1048 = vadd.f32 %v1047, %v954
  %v1049 = vadd.f32 %v1048, %v958
  %v1050 = vadd.f32 %v1049, %v962
  %v1051 = vadd.f32 %v1050, %v966
  %v1052 = vadd.f32 %v1051, %v970
  %v1053 = vadd.f32 %v1052, %v974
  %v1054 = vadd.f32 %v1053, %v978
  %v1055 = vadd.f32 %v1054, %v982
  %v1056 = vadd.f32 %v1055, %v986
  %v1057 = vrot.slane %v1056, 4
  %v1058 = vadd.f32 %v1056, %v1057
  %v1059 = vrot.slane %v1058, 2
  %v1060 = vadd.f32 %v1058, %v1059
  %v1061 = vrot.slane %v1060, 1
  %v1062 = vadd.f32 %v1060, %v1061
  %v1063 = vadd.f32 %v863, %v867
  %v1064 = vadd.f32 %v1063, %v871
  %v1065 = vadd.f32 %v1064, %v875
  %v1066 = vadd.f32 %v1065, %v879
  %v1067 = vadd.f32 %v1066, %v883
  %v1068 = vadd.f32 %v1067, %v887
  %v1069 = vadd.f32 %v1068, %v891
  %v1070 = vadd.f32 %v1069, %v895
  %v1071 = vadd.f32 %v1070, %v899
  %v1072 = vadd.f32 %v1071, %v903
  %v1073 = vadd.f32 %v1072, %v907
  %v1074 = vadd.f32 %v1073, %v911
  %v1075 = vadd.f32 %v1074, %v915
  %v1076 = vadd.f32 %v1075, %v919
  %v1077 = vadd.f32 %v1076, %v923
  %v1078 = vadd.f32 %v1077, %v927
  %v1079 = vadd.f32 %v1078, %v931
  %v1080 = vadd.f32 %v1079, %v935
  %v1081 = vadd.f32 %v1080, %v939
  %v1082 = vadd.f32 %v1081, %v943
  %v1083 = vadd.f32 %v1082, %v947
  %v1084 = vadd.f32 %v1083, %v951
  %v1085 = vadd.f32 %v1084, %v955
  %v1086 = vadd.f32 %v1085, %v959
  %v1087 = vadd.f32 %v1086, %v963
  %v1088 = vadd.f32 %v1087, %v967
  %v1089 = vadd.f32 %v1088, %v971
  %v1090 = vadd.f32 %v1089, %v975
  %v1091 = vadd.f32 %v1090, %v979
  %v1092 = vadd.f32 %v1091, %v983
  %v1093 = vadd.f32 %v1092, %v987
  %v1094 = vrot.slane %v1093, 4
  %v1095 = vadd.f32 %v1093, %v1094
  %v1096 = vrot.slane %v1095, 2
  %v1097 = vadd.f32 %v1095, %v1096
  %v1098 = vrot.slane %v1097, 1
  %v1099 = vadd.f32 %v1097, %v1098
  %v1100 = vadd.f32 %v864, %v868
  %v1101 = vadd.f32 %v1100, %v872
  %v1102 = vadd.f32 %v1101, %v876
  %v1103 = vadd.f32 %v1102, %v880
  %v1104 = vadd.f32 %v1103, %v884
  %v1105 = vadd.f32 %v1104, %v888
  %v1106 = vadd.f32 %v1105, %v892
  %v1107 = vadd.f32 %v1106, %v896
  %v1108 = vadd.f32 %v1107, %v900
  %v1109 = vadd.f32 %v1108, %v904
  %v1110 = vadd.f32 %v1109, %v908
  %v1111 = vadd.f32 %v1110, %v912
  %v1112 = vadd.f32 %v1111, %v916
  %v1113 = vadd.f32 %v1112, %v920
  %v1114 = vadd.f32 %v1113, %v924
  %v1115 = vadd.f32 %v1114, %v928
  %v1116 = vadd.f32 %v1115, %v932
  %v1117 = vadd.f32 %v1116, %v936
  %v1118 = vadd.f32 %v1117, %v940
  %v1119 = vadd.f32 %v1118, %v944
  %v1120 = vadd.f32 %v1119, %v948
  %v1121 = vadd.f32 %v1120, %v952
  %v1122 = vadd.f32 %v1121, %v956
  %v1123 = vadd.f32 %v1122, %v960
  %v1124 = vadd.f32 %v1123, %v964
  %v1125 = vadd.f32 %v1124, %v968
  %v1126 = vadd.f32 %v1125, %v972
  %v1127 = vadd.f32 %v1126, %v976
  %v1128 = vadd.f32 %v1127, %v980
  %v1129 = vadd.f32 %v1128, %v984
  %v1130 = vadd.f32 %v1129, %v988
  %v1131 = vrot.slane %v1130, 4
  %v1132 = vadd.f32 %v1130, %v1131
  %v1133 = vrot.slane %v1132, 2
  %v1134 = vadd.f32 %v1132, %v1133
  %v1135 = vrot.slane %v1134, 1
  %v1136 = vadd.f32 %v1134, %v1135
  %v1137 = vmul.f32 %v1025, %v856
  %v1138 = vmul.f32 %v1062, %v856
  %v1139 = vmul.f32 %v1099, %v856
  %v1140 = vmul.f32 %v1136, %v856
  %v1141 = vmul.f32 %v857, %v857
  %v1142 = vmul.f32 %v858, %v858
  %v1143 = vmul.f32 %v859, %v859
  %v1144 = vmul.f32 %v860, %v860
  %v1145 = vsub.f32 %v1137, %v1141
  %v1146 = vsub.f32 %v1138, %v1142
  %v1147 = vsub.f32 %v1139, %v1143
  %v1148 = vsub.f32 %v1140, %v1144
  %v1149 = vmax.f32 %v1145, 0.0
  %v1150 = vmax.f32 %v1146, 0.0
  %v1151 = vmax.f32 %v1147, 0.0
  %v1152 = vmax.f32 %v1148, 0.0
  %v1153 = vsub.f32 %v356, %v857
  %v1154 = vsub.f32 %v445, %v858
  %v1155 = vsub.f32 %v534, %v859
  %v1156 = vsub.f32 %v623, %v860
  %v1157 = vsub.f32 %v358, %v857
  %v1158 = vsub.f32 %v447, %v858
  %v1159 = vsub.f32 %v536, %v859
  %v1160 = vsub.f32 %v625, %v860
  %v1161 = vsub.f32 %v361, %v857
  %v1162 = vsub.f32 %v450, %v858
  %v1163 = vsub.f32 %v539, %v859
  %v1164 = vsub.f32 %v628, %v860
  %v1165 = vsub.f32 %v363, %v857
  %v1166 = vsub.f32 %v452, %v858
  %v1167 = vsub.f32 %v541, %v859
  %v1168 = vsub.f32 %v630, %v860
  %v1169 = vsub.f32 %v366, %v857
  %v1170 = vsub.f32 %v455, %v858
  %v1171 = vsub.f32 %v544, %v859
  %v1172 = vsub.f32 %v633, %v860
  %v1173 = vsub.f32 %v368, %v857
  %v1174 = vsub.f32 %v457, %v858
  %v1175 = vsub.f32 %v546, %v859
  %v1176 = vsub.f32 %v635, %v860
  %v1177 = vsub.f32 %v371, %v857
  %v1178 = vsub.f32 %v460, %v858
  %v1179 = vsub.f32 %v549, %v859
  %v1180 = vsub.f32 %v638, %v860
  %v1181 = vsub.f32 %v373, %v857
  %v1182 = vsub.f32 %v462, %v858
  %v1183 = vsub.f32 %v551, %v859
  %v1184 = vsub.f32 %v640, %v860
  %v1185 = vsub.f32 %v376, %v857
  %v1186 = vsub.f32 %v465, %v858
  %v1187 = vsub.f32 %v554, %v859
  %v1188 = vsub.f32 %v643, %v860
  %v1189 = vsub.f32 %v378, %v857
  %v1190 = vsub.f32 %v467, %v858
  %v1191 = vsub.f32 %v556, %v859
  %v1192 = vsub.f32 %v645, %v860
  %v1193 = vsub.f32 %v381, %v857
  %v1194 = vsub.f32 %v470, %v858
  %v1195 = vsub.f32 %v559, %v859
  %v1196 = vsub.f32 %v648, %v860
  %v1197 = vsub.f32 %v383, %v857
  %v1198 = vsub.f32 %v472, %v858
  %v1199 = vsub.f32 %v561, %v859
  %v1200 = vsub.f32 %v650, %v860
  %v1201 = vsub.f32 %v386, %v857
  %v1202 = vsub.f32 %v475, %v858
  %v1203 = vsub.f32 %v564, %v859
  %v1204 = vsub.f32 %v653, %v860
  %v1205 = vsub.f32 %v388, %v857
  %v1206 = vsub.f32 %v477, %v858
  %v1207 = vsub.f32 %v566, %v859
  %v1208 = vsub.f32 %v655, %v860
  %v1209 = vsub.f32 %v391, %v857
  %v1210 = vsub.f32 %v480, %v858
  %v1211 = vsub.f32 %v569, %v859
  %v1212 = vsub.f32 %v658, %v860
  %v1213 = vsub.f32 %v393, %v857
  %v1214 = vsub.f32 %v482, %v858
  %v1215 = vsub.f32 %v571, %v859
  %v1216 = vsub.f32 %v660, %v860
  %v1217 = vsub.f32 %v396, %v857
  %v1218 = vsub.f32 %v485, %v858
  %v1219 = vsub.f32 %v574, %v859
  %v1220 = vsub.f32 %v663, %v860
  %v1221 = vsub.f32 %v398, %v857
  %v1222 = vsub.f32 %v487, %v858
  %v1223 = vsub.f32 %v576, %v859
  %v1224 = vsub.f32 %v665, %v860
  %v1225 = vsub.f32 %v401, %v857
  %v1226 = vsub.f32 %v490, %v858
  %v1227 = vsub.f32 %v579, %v859
  %v1228 = vsub.f32 %v668, %v860
  %v1229 = vsub.f32 %v403, %v857
  %v1230 = vsub.f32 %v492, %v858
  %v1231 = vsub.f32 %v581, %v859
  %v1232 = vsub.f32 %v670, %v860
  %v1233 = vsub.f32 %v406, %v857
  %v1234 = vsub.f32 %v495, %v858
  %v1235 = vsub.f32 %v584, %v859
  %v1236 = vsub.f32 %v673, %v860
  %v1237 = vsub.f32 %v408, %v857
  %v1238 = vsub.f32 %v497, %v858
  %v1239 = vsub.f32 %v586, %v859
  %v1240 = vsub.f32 %v675, %v860
  %v1241 = vsub.f32 %v411, %v857
  %v1242 = vsub.f32 %v500, %v858
  %v1243 = vsub.f32 %v589, %v859
  %v1244 = vsub.f32 %v678, %v860
  %v1245 = vsub.f32 %v413, %v857
  %v1246 = vsub.f32 %v502, %v858
  %v1247 = vsub.f32 %v591, %v859
  %v1248 = vsub.f32 %v680, %v860
  %v1249 = vsub.f32 %v416, %v857
  %v1250 = vsub.f32 %v505, %v858
  %v1251 = vsub.f32 %v594, %v859
  %v1252 = vsub.f32 %v683, %v860
  %v1253 = vsub.f32 %v418, %v857
  %v1254 = vsub.f32 %v507, %v858
  %v1255 = vsub.f32 %v596, %v859
  %v1256 = vsub.f32 %v685, %v860
  %v1257 = vsub.f32 %v421, %v857
  %v1258 = vsub.f32 %v510, %v858
  %v1259 = vsub.f32 %v599, %v859
  %v1260 = vsub.f32 %v688, %v860
  %v1261 = vsub.f32 %v423, %v857
  %v1262 = vsub.f32 %v512, %v858
  %v1263 = vsub.f32 %v601, %v859
  %v1264 = vsub.f32 %v690, %v860
  %v1265 = vsub.f32 %v426, %v857
  %v1266 = vsub.f32 %v515, %v858
  %v1267 = vsub.f32 %v604, %v859
  %v1268 = vsub.f32 %v693, %v860
  %v1269 = vsub.f32 %v428, %v857
  %v1270 = vsub.f32 %v517, %v858
  %v1271 = vsub.f32 %v606, %v859
  %v1272 = vsub.f32 %v695, %v860
  %v1273 = vsub.f32 %v431, %v857
  %v1274 = vsub.f32 %v520, %v858
  %v1275 = vsub.f32 %v609, %v859
  %v1276 = vsub.f32 %v698, %v860
  %v1277 = vsub.f32 %v433, %v857
  %v1278 = vsub.f32 %v522, %v858
  %v1279 = vsub.f32 %v611, %v859
  %v1280 = vsub.f32 %v700, %v860
  %v1281 = vadd.f32 %v1149, 1e-05
  %v1282 = vadd.f32 %v1150, 1e-05
  %v1283 = vadd.f32 %v1151, 1e-05
  %v1284 = vadd.f32 %v1152, 1e-05
  %v1285 = vrsqrt.pop %v1281
  %v1286 = vmul.f32 %v1285, %v1281
  %v1287 = vmul.f32 %v1286, %v1285
  %v1288 = vmul.f32 0.5, %v1287
  %v1289 = vsub.f32 1.5, %v1288
  %v1290 = vmul.f32 %v1285, %v1289
  %vm1291 = vweird.f32 %v1281
  %vm1292 = vweird.f32 %v1285
  %vm1293 = vmor %vm1291, %vm1292
  %v1294 = vsel %vm1293, %v1285, %v1290
  %v1295 = vrsqrt.pop %v1282
  %v1296 = vmul.f32 %v1295, %v1282
  %v1297 = vmul.f32 %v1296, %v1295
  %v1298 = vmul.f32 0.5, %v1297
  %v1299 = vsub.f32 1.5, %v1298
  %v1300 = vmul.f32 %v1295, %v1299
  %vm1301 = vweird.f32 %v1282
  %vm1302 = vweird.f32 %v1295
  %vm1303 = vmor %vm1301, %vm1302
  %v1304 = vsel %vm1303, %v1295, %v1300
  %v1305 = vrsqrt.pop %v1283
  %v1306 = vmul.f32 %v1305, %v1283
  %v1307 = vmul.f32 %v1306, %v1305
  %v1308 = vmul.f32 0.5, %v1307
  %v1309 = vsub.f32 1.5, %v1308
  %v1310 = vmul.f32 %v1305, %v1309
  %vm1311 = vweird.f32 %v1283
  %vm1312 = vweird.f32 %v1305
  %vm1313 = vmor %vm1311, %vm1312
  %v1314 = vsel %vm1313, %v1305, %v1310
  %v1315 = vrsqrt.pop %v1284
  %v1316 = vmul.f32 %v1315, %v1284
  %v1317 = vmul.f32 %v1316, %v1315
  %v1318 = vmul.f32 0.5, %v1317
  %v1319 = vsub.f32 1.5, %v1318
  %v1320 = vmul.f32 %v1315, %v1319
  %vm1321 = vweird.f32 %v1284
  %vm1322 = vweird.f32 %v1315
  %vm1323 = vmor %vm1321, %vm1322
  %v1324 = vsel %vm1323, %v1315, %v1320
  %v1325 = vmul.f32 %v1153, %v1294
  %v1326 = vmul.f32 %v1154, %v1304
  %v1327 = vmul.f32 %v1155, %v1314
  %v1328 = vmul.f32 %v1156, %v1324
  %v1329 = vmul.f32 %v1157, %v1294
  %v1330 = vmul.f32 %v1158, %v1304
  %v1331 = vmul.f32 %v1159, %v1314
  %v1332 = vmul.f32 %v1160, %v1324
  %v1333 = vmul.f32 %v1161, %v1294
  %v1334 = vmul.f32 %v1162, %v1304
  %v1335 = vmul.f32 %v1163, %v1314
  %v1336 = vmul.f32 %v1164, %v1324
  %v1337 = vmul.f32 %v1165, %v1294
  %v1338 = vmul.f32 %v1166, %v1304
  %v1339 = vmul.f32 %v1167, %v1314
  %v1340 = vmul.f32 %v1168, %v1324
  %v1341 = vmul.f32 %v1169, %v1294
  %v1342 = vmul.f32 %v1170, %v1304
  %v1343 = vmul.f32 %v1171, %v1314
  %v1344 = vmul.f32 %v1172, %v1324
  %v1345 = vmul.f32 %v1173, %v1294
  %v1346 = vmul.f32 %v1174, %v1304
  %v1347 = vmul.f32 %v1175, %v1314
  %v1348 = vmul.f32 %v1176, %v1324
  %v1349 = vmul.f32 %v1177, %v1294
  %v1350 = vmul.f32 %v1178, %v1304
  %v1351 = vmul.f32 %v1179, %v1314
  %v1352 = vmul.f32 %v1180, %v1324
  %v1353 = vmul.f32 %v1181, %v1294
  %v1354 = vmul.f32 %v1182, %v1304
  %v1355 = vmul.f32 %v1183, %v1314
  %v1356 = vmul.f32 %v1184, %v1324
  %v1357 = vmul.f32 %v1185, %v1294
  %v1358 = vmul.f32 %v1186, %v1304
  %v1359 = vmul.f32 %v1187, %v1314
  %v1360 = vmul.f32 %v1188, %v1324
  %v1361 = vmul.f32 %v1189, %v1294
  %v1362 = vmul.f32 %v1190, %v1304
  %v1363 = vmul.f32 %v1191, %v1314
  %v1364 = vmul.f32 %v1192, %v1324
  %v1365 = vmul.f32 %v1193, %v1294
  %v1366 = vmul.f32 %v1194, %v1304
  %v1367 = vmul.f32 %v1195, %v1314
  %v1368 = vmul.f32 %v1196, %v1324
  %v1369 = vmul.f32 %v1197, %v1294
  %v1370 = vmul.f32 %v1198, %v1304
  %v1371 = vmul.f32 %v1199, %v1314
  %v1372 = vmul.f32 %v1200, %v1324
  %v1373 = vmul.f32 %v1201, %v1294
  %v1374 = vmul.f32 %v1202, %v1304
  %v1375 = vmul.f32 %v1203, %v1314
  %v1376 = vmul.f32 %v1204, %v1324
  %v1377 = vmul.f32 %v1205, %v1294
  %v1378 = vmul.f32 %v1206, %v1304
  %v1379 = vmul.f32 %v1207, %v1314
  %v1380 = vmul.f32 %v1208, %v1324
  %v1381 = vmul.f32 %v1209, %v1294
  %v1382 = vmul.f32 %v1210, %v1304
  %v1383 = vmul.f32 %v1211, %v1314
  %v1384 = vmul.f32 %v1212, %v1324
  %v1385 = vmul.f32 %v1213, %v1294
  %v1386 = vmul.f32 %v1214, %v1304
  %v1387 = vmul.f32 %v1215, %v1314
  %v1388 = vmul.f32 %v1216, %v1324
  %v1389 = vmul.f32 %v1217, %v1294
  %v1390 = vmul.f32 %v1218, %v1304
  %v1391 = vmul.f32 %v1219, %v1314
  %v1392 = vmul.f32 %v1220, %v1324
  %v1393 = vmul.f32 %v1221, %v1294
  %v1394 = vmul.f32 %v1222, %v1304
  %v1395 = vmul.f32 %v1223, %v1314
  %v1396 = vmul.f32 %v1224, %v1324
  %v1397 = vmul.f32 %v1225, %v1294
  %v1398 = vmul.f32 %v1226, %v1304
  %v1399 = vmul.f32 %v1227, %v1314
  %v1400 = vmul.f32 %v1228, %v1324
  %v1401 = vmul.f32 %v1229, %v1294
  %v1402 = vmul.f32 %v1230, %v1304
  %v1403 = vmul.f32 %v1231, %v1314
  %v1404 = vmul.f32 %v1232, %v1324
  %v1405 = vmul.f32 %v1233, %v1294
  %v1406 = vmul.f32 %v1234, %v1304
  %v1407 = vmul.f32 %v1235, %v1314
  %v1408 = vmul.f32 %v1236, %v1324
  %v1409 = vmul.f32 %v1237, %v1294
  %v1410 = vmul.f32 %v1238, %v1304
  %v1411 = vmul.f32 %v1239, %v1314
  %v1412 = vmul.f32 %v1240, %v1324
  %v1413 = vmul.f32 %v1241, %v1294
  %v1414 = vmul.f32 %v1242, %v1304
  %v1415 = vmul.f32 %v1243, %v1314
  %v1416 = vmul.f32 %v1244, %v1324
  %v1417 = vmul.f32 %v1245, %v1294
  %v1418 = vmul.f32 %v1246, %v1304
  %v1419 = vmul.f32 %v1247, %v1314
  %v1420 = vmul.f32 %v1248, %v1324
  %v1421 = vmul.f32 %v1249, %v1294
  %v1422 = vmul.f32 %v1250, %v1304
  %v1423 = vmul.f32 %v1251, %v1314
  %v1424 = vmul.f32 %v1252, %v1324
  %v1425 = vmul.f32 %v1253, %v1294
  %v1426 = vmul.f32 %v1254, %v1304
  %v1427 = vmul.f32 %v1255, %v1314
  %v1428 = vmul.f32 %v1256, %v1324
  %v1429 = vmul.f32 %v1257, %v1294
  %v1430 = vmul.f32 %v1258, %v1304
  %v1431 = vmul.f32 %v1259, %v1314
  %v1432 = vmul.f32 %v1260, %v1324
  %v1433 = vmul.f32 %v1261, %v1294
  %v1434 = vmul.f32 %v1262, %v1304
  %v1435 = vmul.f32 %v1263, %v1314
  %v1436 = vmul.f32 %v1264, %v1324
  %v1437 = vmul.f32 %v1265, %v1294
  %v1438 = vmul.f32 %v1266, %v1304
  %v1439 = vmul.f32 %v1267, %v1314
  %v1440 = vmul.f32 %v1268, %v1324
  %v1441 = vmul.f32 %v1269, %v1294
  %v1442 = vmul.f32 %v1270, %v1304
  %v1443 = vmul.f32 %v1271, %v1314
  %v1444 = vmul.f32 %v1272, %v1324
  %v1445 = vmul.f32 %v1273, %v1294
  %v1446 = vmul.f32 %v1274, %v1304
  %v1447 = vmul.f32 %v1275, %v1314
  %v1448 = vmul.f32 %v1276, %v1324
  %v1449 = vmul.f32 %v1277, %v1294
  %v1450 = vmul.f32 %v1278, %v1304
  %v1451 = vmul.f32 %v1279, %v1314
  %v1452 = vmul.f32 %v1280, %v1324
  %v1453 = vld [vmem:[%s2 + $0x4] sm:$0xf]
  %v1455 = vperm.slane %v1453, 0
  %v1456 = vperm.slane %v1453, 1
  %v1457 = vperm.slane %v1453, 2
  %v1458 = vperm.slane %v1453, 3
  %v1463 = vmul.f32 %v1325, %v1455
  %v1464 = vmul.f32 %v1326, %v1456
  %v1465 = vmul.f32 %v1327, %v1457
  %v1466 = vmul.f32 %v1328, %v1458
  %v1467 = vmul.f32 %v1329, %v1455
  %v1468 = vmul.f32 %v1330, %v1456
  %v1469 = vmul.f32 %v1331, %v1457
  %v1470 = vmul.f32 %v1332, %v1458
  %v1471 = vmul.f32 %v1333, %v1455
  %v1472 = vmul.f32 %v1334, %v1456
  %v1473 = vmul.f32 %v1335, %v1457
  %v1474 = vmul.f32 %v1336, %v1458
  %v1475 = vmul.f32 %v1337, %v1455
  %v1476 = vmul.f32 %v1338, %v1456
  %v1477 = vmul.f32 %v1339, %v1457
  %v1478 = vmul.f32 %v1340, %v1458
  %v1479 = vmul.f32 %v1341, %v1455
  %v1480 = vmul.f32 %v1342, %v1456
  %v1481 = vmul.f32 %v1343, %v1457
  %v1482 = vmul.f32 %v1344, %v1458
  %v1483 = vmul.f32 %v1345, %v1455
  %v1484 = vmul.f32 %v1346, %v1456
  %v1485 = vmul.f32 %v1347, %v1457
  %v1486 = vmul.f32 %v1348, %v1458
  %v1487 = vmul.f32 %v1349, %v1455
  %v1488 = vmul.f32 %v1350, %v1456
  %v1489 = vmul.f32 %v1351, %v1457
  %v1490 = vmul.f32 %v1352, %v1458
  %v1491 = vmul.f32 %v1353, %v1455
  %v1492 = vmul.f32 %v1354, %v1456
  %v1493 = vmul.f32 %v1355, %v1457
  %v1494 = vmul.f32 %v1356, %v1458
  %v1495 = vmul.f32 %v1357, %v1455
  %v1496 = vmul.f32 %v1358, %v1456
  %v1497 = vmul.f32 %v1359, %v1457
  %v1498 = vmul.f32 %v1360, %v1458
  %v1499 = vmul.f32 %v1361, %v1455
  %v1500 = vmul.f32 %v1362, %v1456
  %v1501 = vmul.f32 %v1363, %v1457
  %v1502 = vmul.f32 %v1364, %v1458
  %v1503 = vmul.f32 %v1365, %v1455
  %v1504 = vmul.f32 %v1366, %v1456
  %v1505 = vmul.f32 %v1367, %v1457
  %v1506 = vmul.f32 %v1368, %v1458
  %v1507 = vmul.f32 %v1369, %v1455
  %v1508 = vmul.f32 %v1370, %v1456
  %v1509 = vmul.f32 %v1371, %v1457
  %v1510 = vmul.f32 %v1372, %v1458
  %v1511 = vmul.f32 %v1373, %v1455
  %v1512 = vmul.f32 %v1374, %v1456
  %v1513 = vmul.f32 %v1375, %v1457
  %v1514 = vmul.f32 %v1376, %v1458
  %v1515 = vmul.f32 %v1377, %v1455
  %v1516 = vmul.f32 %v1378, %v1456
  %v1517 = vmul.f32 %v1379, %v1457
  %v1518 = vmul.f32 %v1380, %v1458
  %v1519 = vmul.f32 %v1381, %v1455
  %v1520 = vmul.f32 %v1382, %v1456
  %v1521 = vmul.f32 %v1383, %v1457
  %v1522 = vmul.f32 %v1384, %v1458
  %v1523 = vmul.f32 %v1385, %v1455
  %v1524 = vmul.f32 %v1386, %v1456
  %v1525 = vmul.f32 %v1387, %v1457
  %v1526 = vmul.f32 %v1388, %v1458
  %v1527 = vmul.f32 %v1389, %v1455
  %v1528 = vmul.f32 %v1390, %v1456
  %v1529 = vmul.f32 %v1391, %v1457
  %v1530 = vmul.f32 %v1392, %v1458
  %v1531 = vmul.f32 %v1393, %v1455
  %v1532 = vmul.f32 %v1394, %v1456
  %v1533 = vmul.f32 %v1395, %v1457
  %v1534 = vmul.f32 %v1396, %v1458
  %v1535 = vmul.f32 %v1397, %v1455
  %v1536 = vmul.f32 %v1398, %v1456
  %v1537 = vmul.f32 %v1399, %v1457
  %v1538 = vmul.f32 %v1400, %v1458
  %v1539 = vmul.f32 %v1401, %v1455
  %v1540 = vmul.f32 %v1402, %v1456
  %v1541 = vmul.f32 %v1403, %v1457
  %v1542 = vmul.f32 %v1404, %v1458
  %v1543 = vmul.f32 %v1405, %v1455
  %v1544 = vmul.f32 %v1406, %v1456
  %v1545 = vmul.f32 %v1407, %v1457
  %v1546 = vmul.f32 %v1408, %v1458
  %v1547 = vmul.f32 %v1409, %v1455
  %v1548 = vmul.f32 %v1410, %v1456
  %v1549 = vmul.f32 %v1411, %v1457
  %v1550 = vmul.f32 %v1412, %v1458
  %v1551 = vmul.f32 %v1413, %v1455
  %v1552 = vmul.f32 %v1414, %v1456
  %v1553 = vmul.f32 %v1415, %v1457
  %v1554 = vmul.f32 %v1416, %v1458
  %v1555 = vmul.f32 %v1417, %v1455
  %v1556 = vmul.f32 %v1418, %v1456
  %v1557 = vmul.f32 %v1419, %v1457
  %v1558 = vmul.f32 %v1420, %v1458
  %v1559 = vmul.f32 %v1421, %v1455
  %v1560 = vmul.f32 %v1422, %v1456
  %v1561 = vmul.f32 %v1423, %v1457
  %v1562 = vmul.f32 %v1424, %v1458
  %v1563 = vmul.f32 %v1425, %v1455
  %v1564 = vmul.f32 %v1426, %v1456
  %v1565 = vmul.f32 %v1427, %v1457
  %v1566 = vmul.f32 %v1428, %v1458
  %v1567 = vmul.f32 %v1429, %v1455
  %v1568 = vmul.f32 %v1430, %v1456
  %v1569 = vmul.f32 %v1431, %v1457
  %v1570 = vmul.f32 %v1432, %v1458
  %v1571 = vmul.f32 %v1433, %v1455
  %v1572 = vmul.f32 %v1434, %v1456
  %v1573 = vmul.f32 %v1435, %v1457
  %v1574 = vmul.f32 %v1436, %v1458
  %v1575 = vmul.f32 %v1437, %v1455
  %v1576 = vmul.f32 %v1438, %v1456
  %v1577 = vmul.f32 %v1439, %v1457
  %v1578 = vmul.f32 %v1440, %v1458
  %v1579 = vmul.f32 %v1441, %v1455
  %v1580 = vmul.f32 %v1442, %v1456
  %v1581 = vmul.f32 %v1443, %v1457
  %v1582 = vmul.f32 %v1444, %v1458
  %v1583 = vmul.f32 %v1445, %v1455
  %v1584 = vmul.f32 %v1446, %v1456
  %v1585 = vmul.f32 %v1447, %v1457
  %v1586 = vmul.f32 %v1448, %v1458
  %v1587 = vmul.f32 %v1449, %v1455
  %v1588 = vmul.f32 %v1450, %v1456
  %v1589 = vmul.f32 %v1451, %v1457
  %v1590 = vmul.f32 %v1452, %v1458
  %v1591 = vld [vmem:[%s2 + $0x8] sm:$0xf]
  %v1593 = vperm.slane %v1591, 0
  %v1594 = vperm.slane %v1591, 1
  %v1595 = vperm.slane %v1591, 2
  %v1596 = vperm.slane %v1591, 3
  %v1601 = vadd.f32 %v1463, %v1593
  %v1602 = vadd.f32 %v1464, %v1594
  %v1603 = vadd.f32 %v1465, %v1595
  %v1604 = vadd.f32 %v1466, %v1596
  %v1605 = vadd.f32 %v1467, %v1593
  %v1606 = vadd.f32 %v1468, %v1594
  %v1607 = vadd.f32 %v1469, %v1595
  %v1608 = vadd.f32 %v1470, %v1596
  %v1609 = vadd.f32 %v1471, %v1593
  %v1610 = vadd.f32 %v1472, %v1594
  %v1611 = vadd.f32 %v1473, %v1595
  %v1612 = vadd.f32 %v1474, %v1596
  %v1613 = vadd.f32 %v1475, %v1593
  %v1614 = vadd.f32 %v1476, %v1594
  %v1615 = vadd.f32 %v1477, %v1595
  %v1616 = vadd.f32 %v1478, %v1596
  %v1617 = vadd.f32 %v1479, %v1593
  %v1618 = vadd.f32 %v1480, %v1594
  %v1619 = vadd.f32 %v1481, %v1595
  %v1620 = vadd.f32 %v1482, %v1596
  %v1621 = vadd.f32 %v1483, %v1593
  %v1622 = vadd.f32 %v1484, %v1594
  %v1623 = vadd.f32 %v1485, %v1595
  %v1624 = vadd.f32 %v1486, %v1596
  %v1625 = vadd.f32 %v1487, %v1593
  %v1626 = vadd.f32 %v1488, %v1594
  %v1627 = vadd.f32 %v1489, %v1595
  %v1628 = vadd.f32 %v1490, %v1596
  %v1629 = vadd.f32 %v1491, %v1593
  %v1630 = vadd.f32 %v1492, %v1594
  %v1631 = vadd.f32 %v1493, %v1595
  %v1632 = vadd.f32 %v1494, %v1596
  %v1633 = vadd.f32 %v1495, %v1593
  %v1634 = vadd.f32 %v1496, %v1594
  %v1635 = vadd.f32 %v1497, %v1595
  %v1636 = vadd.f32 %v1498, %v1596
  %v1637 = vadd.f32 %v1499, %v1593
  %v1638 = vadd.f32 %v1500, %v1594
  %v1639 = vadd.f32 %v1501, %v1595
  %v1640 = vadd.f32 %v1502, %v1596
  %v1641 = vadd.f32 %v1503, %v1593
  %v1642 = vadd.f32 %v1504, %v1594
  %v1643 = vadd.f32 %v1505, %v1595
  %v1644 = vadd.f32 %v1506, %v1596
  %v1645 = vadd.f32 %v1507, %v1593
  %v1646 = vadd.f32 %v1508, %v1594
  %v1647 = vadd.f32 %v1509, %v1595
  %v1648 = vadd.f32 %v1510, %v1596
  %v1649 = vadd.f32 %v1511, %v1593
  %v1650 = vadd.f32 %v1512, %v1594
  %v1651 = vadd.f32 %v1513, %v1595
  %v1652 = vadd.f32 %v1514, %v1596
  %v1653 = vadd.f32 %v1515, %v1593
  %v1654 = vadd.f32 %v1516, %v1594
  %v1655 = vadd.f32 %v1517, %v1595
  %v1656 = vadd.f32 %v1518, %v1596
  %v1657 = vadd.f32 %v1519, %v1593
  %v1658 = vadd.f32 %v1520, %v1594
  %v1659 = vadd.f32 %v1521, %v1595
  %v1660 = vadd.f32 %v1522, %v1596
  %v1661 = vadd.f32 %v1523, %v1593
  %v1662 = vadd.f32 %v1524, %v1594
  %v1663 = vadd.f32 %v1525, %v1595
  %v1664 = vadd.f32 %v1526, %v1596
  %v1665 = vadd.f32 %v1527, %v1593
  %v1666 = vadd.f32 %v1528, %v1594
  %v1667 = vadd.f32 %v1529, %v1595
  %v1668 = vadd.f32 %v1530, %v1596
  %v1669 = vadd.f32 %v1531, %v1593
  %v1670 = vadd.f32 %v1532, %v1594
  %v1671 = vadd.f32 %v1533, %v1595
  %v1672 = vadd.f32 %v1534, %v1596
  %v1673 = vadd.f32 %v1535, %v1593
  %v1674 = vadd.f32 %v1536, %v1594
  %v1675 = vadd.f32 %v1537, %v1595
  %v1676 = vadd.f32 %v1538, %v1596
  %v1677 = vadd.f32 %v1539, %v1593
  %v1678 = vadd.f32 %v1540, %v1594
  %v1679 = vadd.f32 %v1541, %v1595
  %v1680 = vadd.f32 %v1542, %v1596
  %v1681 = vadd.f32 %v1543, %v1593
  %v1682 = vadd.f32 %v1544, %v1594
  %v1683 = vadd.f32 %v1545, %v1595
  %v1684 = vadd.f32 %v1546, %v1596
  %v1685 = vadd.f32 %v1547, %v1593
  %v1686 = vadd.f32 %v1548, %v1594
  %v1687 = vadd.f32 %v1549, %v1595
  %v1688 = vadd.f32 %v1550, %v1596
  %v1689 = vadd.f32 %v1551, %v1593
  %v1690 = vadd.f32 %v1552, %v1594
  %v1691 = vadd.f32 %v1553, %v1595
  %v1692 = vadd.f32 %v1554, %v1596
  %v1693 = vadd.f32 %v1555, %v1593
  %v1694 = vadd.f32 %v1556, %v1594
  %v1695 = vadd.f32 %v1557, %v1595
  %v1696 = vadd.f32 %v1558, %v1596
  %v1697 = vadd.f32 %v1559, %v1593
  %v1698 = vadd.f32 %v1560, %v1594
  %v1699 = vadd.f32 %v1561, %v1595
  %v1700 = vadd.f32 %v1562, %v1596
  %v1701 = vadd.f32 %v1563, %v1593
  %v1702 = vadd.f32 %v1564, %v1594
  %v1703 = vadd.f32 %v1565, %v1595
  %v1704 = vadd.f32 %v1566, %v1596
  %v1705 = vadd.f32 %v1567, %v1593
  %v1706 = vadd.f32 %v1568, %v1594
  %v1707 = vadd.f32 %v1569, %v1595
  %v1708 = vadd.f32 %v1570, %v1596
  %v1709 = vadd.f32 %v1571, %v1593
  %v1710 = vadd.f32 %v1572, %v1594
  %v1711 = vadd.f32 %v1573, %v1595
  %v1712 = vadd.f32 %v1574, %v1596
  %v1713 = vadd.f32 %v1575, %v1593
  %v1714 = vadd.f32 %v1576, %v1594
  %v1715 = vadd.f32 %v1577, %v1595
  %v1716 = vadd.f32 %v1578, %v1596
  %v1717 = vadd.f32 %v1579, %v1593
  %v1718 = vadd.f32 %v1580, %v1594
  %v1719 = vadd.f32 %v1581, %v1595
  %v1720 = vadd.f32 %v1582, %v1596
  %v1721 = vadd.f32 %v1583, %v1593
  %v1722 = vadd.f32 %v1584, %v1594
  %v1723 = vadd.f32 %v1585, %v1595
  %v1724 = vadd.f32 %v1586, %v1596
  %v1725 = vadd.f32 %v1587, %v1593
  %v1726 = vadd.f32 %v1588, %v1594
  %v1727 = vadd.f32 %v1589, %v1595
  %v1728 = vadd.f32 %v1590, %v1596
  %v1729 = vmul.f32 %v1601, 0.01
  %v1730 = vmul.f32 %v1602, 0.01
  %v1731 = vmul.f32 %v1603, 0.01
  %v1732 = vmul.f32 %v1604, 0.01
  %v1733 = vmul.f32 %v1605, 0.01
  %v1734 = vmul.f32 %v1606, 0.01
  %v1735 = vmul.f32 %v1607, 0.01
  %v1736 = vmul.f32 %v1608, 0.01
  %v1737 = vmul.f32 %v1609, 0.01
  %v1738 = vmul.f32 %v1610, 0.01
  %v1739 = vmul.f32 %v1611, 0.01
  %v1740 = vmul.f32 %v1612, 0.01
  %v1741 = vmul.f32 %v1613, 0.01
  %v1742 = vmul.f32 %v1614, 0.01
  %v1743 = vmul.f32 %v1615, 0.01
  %v1744 = vmul.f32 %v1616, 0.01
  %v1745 = vmul.f32 %v1617, 0.01
  %v1746 = vmul.f32 %v1618, 0.01
  %v1747 = vmul.f32 %v1619, 0.01
  %v1748 = vmul.f32 %v1620, 0.01
  %v1749 = vmul.f32 %v1621, 0.01
  %v1750 = vmul.f32 %v1622, 0.01
  %v1751 = vmul.f32 %v1623, 0.01
  %v1752 = vmul.f32 %v1624, 0.01
  %v1753 = vmul.f32 %v1625, 0.01
  %v1754 = vmul.f32 %v1626, 0.01
  %v1755 = vmul.f32 %v1627, 0.01
  %v1756 = vmul.f32 %v1628, 0.01
  %v1757 = vmul.f32 %v1629, 0.01
  %v1758 = vmul.f32 %v1630, 0.01
  %v1759 = vmul.f32 %v1631, 0.01
  %v1760 = vmul.f32 %v1632, 0.01
  %v1761 = vmul.f32 %v1633, 0.01
  %v1762 = vmul.f32 %v1634, 0.01
  %v1763 = vmul.f32 %v1635, 0.01
  %v1764 = vmul.f32 %v1636, 0.01
  %v1765 = vmul.f32 %v1637, 0.01
  %v1766 = vmul.f32 %v1638, 0.01
  %v1767 = vmul.f32 %v1639, 0.01
  %v1768 = vmul.f32 %v1640, 0.01
  %v1769 = vmul.f32 %v1641, 0.01
  %v1770 = vmul.f32 %v1642, 0.01
  %v1771 = vmul.f32 %v1643, 0.01
  %v1772 = vmul.f32 %v1644, 0.01
  %v1773 = vmul.f32 %v1645, 0.01
  %v1774 = vmul.f32 %v1646, 0.01
  %v1775 = vmul.f32 %v1647, 0.01
  %v1776 = vmul.f32 %v1648, 0.01
  %v1777 = vmul.f32 %v1649, 0.01
  %v1778 = vmul.f32 %v1650, 0.01
  %v1779 = vmul.f32 %v1651, 0.01
  %v1780 = vmul.f32 %v1652, 0.01
  %v1781 = vmul.f32 %v1653, 0.01
  %v1782 = vmul.f32 %v1654, 0.01
  %v1783 = vmul.f32 %v1655, 0.01
  %v1784 = vmul.f32 %v1656, 0.01
  %v1785 = vmul.f32 %v1657, 0.01
  %v1786 = vmul.f32 %v1658, 0.01
  %v1787 = vmul.f32 %v1659, 0.01
  %v1788 = vmul.f32 %v1660, 0.01
  %v1789 = vmul.f32 %v1661, 0.01
  %v1790 = vmul.f32 %v1662, 0.01
  %v1791 = vmul.f32 %v1663, 0.01
  %v1792 = vmul.f32 %v1664, 0.01
  %v1793 = vmul.f32 %v1665, 0.01
  %v1794 = vmul.f32 %v1666, 0.01
  %v1795 = vmul.f32 %v1667, 0.01
  %v1796 = vmul.f32 %v1668, 0.01
  %v1797 = vmul.f32 %v1669, 0.01
  %v1798 = vmul.f32 %v1670, 0.01
  %v1799 = vmul.f32 %v1671, 0.01
  %v1800 = vmul.f32 %v1672, 0.01
  %v1801 = vmul.f32 %v1673, 0.01
  %v1802 = vmul.f32 %v1674, 0.01
  %v1803 = vmul.f32 %v1675, 0.01
  %v1804 = vmul.f32 %v1676, 0.01
  %v1805 = vmul.f32 %v1677, 0.01
  %v1806 = vmul.f32 %v1678, 0.01
  %v1807 = vmul.f32 %v1679, 0.01
  %v1808 = vmul.f32 %v1680, 0.01
  %v1809 = vmul.f32 %v1681, 0.01
  %v1810 = vmul.f32 %v1682, 0.01
  %v1811 = vmul.f32 %v1683, 0.01
  %v1812 = vmul.f32 %v1684, 0.01
  %v1813 = vmul.f32 %v1685, 0.01
  %v1814 = vmul.f32 %v1686, 0.01
  %v1815 = vmul.f32 %v1687, 0.01
  %v1816 = vmul.f32 %v1688, 0.01
  %v1817 = vmul.f32 %v1689, 0.01
  %v1818 = vmul.f32 %v1690, 0.01
  %v1819 = vmul.f32 %v1691, 0.01
  %v1820 = vmul.f32 %v1692, 0.01
  %v1821 = vmul.f32 %v1693, 0.01
  %v1822 = vmul.f32 %v1694, 0.01
  %v1823 = vmul.f32 %v1695, 0.01
  %v1824 = vmul.f32 %v1696, 0.01
  %v1825 = vmul.f32 %v1697, 0.01
  %v1826 = vmul.f32 %v1698, 0.01
  %v1827 = vmul.f32 %v1699, 0.01
  %v1828 = vmul.f32 %v1700, 0.01
  %v1829 = vmul.f32 %v1701, 0.01
  %v1830 = vmul.f32 %v1702, 0.01
  %v1831 = vmul.f32 %v1703, 0.01
  %v1832 = vmul.f32 %v1704, 0.01
  %v1833 = vmul.f32 %v1705, 0.01
  %v1834 = vmul.f32 %v1706, 0.01
  %v1835 = vmul.f32 %v1707, 0.01
  %v1836 = vmul.f32 %v1708, 0.01
  %v1837 = vmul.f32 %v1709, 0.01
  %v1838 = vmul.f32 %v1710, 0.01
  %v1839 = vmul.f32 %v1711, 0.01
  %v1840 = vmul.f32 %v1712, 0.01
  %v1841 = vmul.f32 %v1713, 0.01
  %v1842 = vmul.f32 %v1714, 0.01
  %v1843 = vmul.f32 %v1715, 0.01
  %v1844 = vmul.f32 %v1716, 0.01
  %v1845 = vmul.f32 %v1717, 0.01
  %v1846 = vmul.f32 %v1718, 0.01
  %v1847 = vmul.f32 %v1719, 0.01
  %v1848 = vmul.f32 %v1720, 0.01
  %v1849 = vmul.f32 %v1721, 0.01
  %v1850 = vmul.f32 %v1722, 0.01
  %v1851 = vmul.f32 %v1723, 0.01
  %v1852 = vmul.f32 %v1724, 0.01
  %v1853 = vmul.f32 %v1725, 0.01
  %v1854 = vmul.f32 %v1726, 0.01
  %v1855 = vmul.f32 %v1727, 0.01
  %v1856 = vmul.f32 %v1728, 0.01
  %v1857 = vmax.f32 %v1601, %v1729
  %v1858 = vmax.f32 %v1602, %v1730
  %v1859 = vmax.f32 %v1603, %v1731
  %v1860 = vmax.f32 %v1604, %v1732
  %v1861 = vmax.f32 %v1605, %v1733
  %v1862 = vmax.f32 %v1606, %v1734
  %v1863 = vmax.f32 %v1607, %v1735
  %v1864 = vmax.f32 %v1608, %v1736
  %v1865 = vmax.f32 %v1609, %v1737
  %v1866 = vmax.f32 %v1610, %v1738
  %v1867 = vmax.f32 %v1611, %v1739
  %v1868 = vmax.f32 %v1612, %v1740
  %v1869 = vmax.f32 %v1613, %v1741
  %v1870 = vmax.f32 %v1614, %v1742
  %v1871 = vmax.f32 %v1615, %v1743
  %v1872 = vmax.f32 %v1616, %v1744
  %v1873 = vmax.f32 %v1617, %v1745
  %v1874 = vmax.f32 %v1618, %v1746
  %v1875 = vmax.f32 %v1619, %v1747
  %v1876 = vmax.f32 %v1620, %v1748
  %v1877 = vmax.f32 %v1621, %v1749
  %v1878 = vmax.f32 %v1622, %v1750
  %v1879 = vmax.f32 %v1623, %v1751
  %v1880 = vmax.f32 %v1624, %v1752
  %v1881 = vmax.f32 %v1625, %v1753
  %v1882 = vmax.f32 %v1626, %v1754
  %v1883 = vmax.f32 %v1627, %v1755
  %v1884 = vmax.f32 %v1628, %v1756
  %v1885 = vmax.f32 %v1629, %v1757
  %v1886 = vmax.f32 %v1630, %v1758
  %v1887 = vmax.f32 %v1631, %v1759
  %v1888 = vmax.f32 %v1632, %v1760
  %v1889 = vmax.f32 %v1633, %v1761
  %v1890 = vmax.f32 %v1634, %v1762
  %v1891 = vmax.f32 %v1635, %v1763
  %v1892 = vmax.f32 %v1636, %v1764
  %v1893 = vmax.f32 %v1637, %v1765
  %v1894 = vmax.f32 %v1638, %v1766
  %v1895 = vmax.f32 %v1639, %v1767
  %v1896 = vmax.f32 %v1640, %v1768
  %v1897 = vmax.f32 %v1641, %v1769
  %v1898 = vmax.f32 %v1642, %v1770
  %v1899 = vmax.f32 %v1643, %v1771
  %v1900 = vmax.f32 %v1644, %v1772
  %v1901 = vmax.f32 %v1645, %v1773
  %v1902 = vmax.f32 %v1646, %v1774
  %v1903 = vmax.f32 %v1647, %v1775
  %v1904 = vmax.f32 %v1648, %v1776
  %v1905 = vmax.f32 %v1649, %v1777
  %v1906 = vmax.f32 %v1650, %v1778
  %v1907 = vmax.f32 %v1651, %v1779
  %v1908 = vmax.f32 %v1652, %v1780
  %v1909 = vmax.f32 %v1653, %v1781
  %v1910 = vmax.f32 %v1654, %v1782
  %v1911 = vmax.f32 %v1655, %v1783
  %v1912 = vmax.f32 %v1656, %v1784
  %v1913 = vmax.f32 %v1657, %v1785
  %v1914 = vmax.f32 %v1658, %v1786
  %v1915 = vmax.f32 %v1659, %v1787
  %v1916 = vmax.f32 %v1660, %v1788
  %v1917 = vmax.f32 %v1661, %v1789
  %v1918 = vmax.f32 %v1662, %v1790
  %v1919 = vmax.f32 %v1663, %v1791
  %v1920 = vmax.f32 %v1664, %v1792
  %v1921 = vmax.f32 %v1665, %v1793
  %v1922 = vmax.f32 %v1666, %v1794
  %v1923 = vmax.f32 %v1667, %v1795
  %v1924 = vmax.f32 %v1668, %v1796
  %v1925 = vmax.f32 %v1669, %v1797
  %v1926 = vmax.f32 %v1670, %v1798
  %v1927 = vmax.f32 %v1671, %v1799
  %v1928 = vmax.f32 %v1672, %v1800
  %v1929 = vmax.f32 %v1673, %v1801
  %v1930 = vmax.f32 %v1674, %v1802
  %v1931 = vmax.f32 %v1675, %v1803
  %v1932 = vmax.f32 %v1676, %v1804
  %v1933 = vmax.f32 %v1677, %v1805
  %v1934 = vmax.f32 %v1678, %v1806
  %v1935 = vmax.f32 %v1679, %v1807
  %v1936 = vmax.f32 %v1680, %v1808
  %v1937 = vmax.f32 %v1681, %v1809
  %v1938 = vmax.f32 %v1682, %v1810
  %v1939 = vmax.f32 %v1683, %v1811
  %v1940 = vmax.f32 %v1684, %v1812
  %v1941 = vmax.f32 %v1685, %v1813
  %v1942 = vmax.f32 %v1686, %v1814
  %v1943 = vmax.f32 %v1687, %v1815
  %v1944 = vmax.f32 %v1688, %v1816
  %v1945 = vmax.f32 %v1689, %v1817
  %v1946 = vmax.f32 %v1690, %v1818
  %v1947 = vmax.f32 %v1691, %v1819
  %v1948 = vmax.f32 %v1692, %v1820
  %v1949 = vmax.f32 %v1693, %v1821
  %v1950 = vmax.f32 %v1694, %v1822
  %v1951 = vmax.f32 %v1695, %v1823
  %v1952 = vmax.f32 %v1696, %v1824
  %v1953 = vmax.f32 %v1697, %v1825
  %v1954 = vmax.f32 %v1698, %v1826
  %v1955 = vmax.f32 %v1699, %v1827
  %v1956 = vmax.f32 %v1700, %v1828
  %v1957 = vmax.f32 %v1701, %v1829
  %v1958 = vmax.f32 %v1702, %v1830
  %v1959 = vmax.f32 %v1703, %v1831
  %v1960 = vmax.f32 %v1704, %v1832
  %v1961 = vmax.f32 %v1705, %v1833
  %v1962 = vmax.f32 %v1706, %v1834
  %v1963 = vmax.f32 %v1707, %v1835
  %v1964 = vmax.f32 %v1708, %v1836
  %v1965 = vmax.f32 %v1709, %v1837
  %v1966 = vmax.f32 %v1710, %v1838
  %v1967 = vmax.f32 %v1711, %v1839
  %v1968 = vmax.f32 %v1712, %v1840
  %v1969 = vmax.f32 %v1713, %v1841
  %v1970 = vmax.f32 %v1714, %v1842
  %v1971 = vmax.f32 %v1715, %v1843
  %v1972 = vmax.f32 %v1716, %v1844
  %v1973 = vmax.f32 %v1717, %v1845
  %v1974 = vmax.f32 %v1718, %v1846
  %v1975 = vmax.f32 %v1719, %v1847
  %v1976 = vmax.f32 %v1720, %v1848
  %v1977 = vmax.f32 %v1721, %v1849
  %v1978 = vmax.f32 %v1722, %v1850
  %v1979 = vmax.f32 %v1723, %v1851
  %v1980 = vmax.f32 %v1724, %v1852
  %v1981 = vmax.f32 %v1725, %v1853
  %v1982 = vmax.f32 %v1726, %v1854
  %v1983 = vmax.f32 %v1727, %v1855
  %v1984 = vmax.f32 %v1728, %v1856
  %v1985 = vpack.c.bf16 %v1861, %v1857
  %v1986 = vpack.c.bf16 %v1862, %v1858
  %v1987 = vpack.c.bf16 %v1863, %v1859
  %v1988 = vpack.c.bf16 %v1864, %v1860
  %v1989 = vpack.c.bf16 %v1869, %v1865
  %v1990 = vpack.c.bf16 %v1870, %v1866
  %v1991 = vpack.c.bf16 %v1871, %v1867
  %v1992 = vpack.c.bf16 %v1872, %v1868
  %v1993 = vpack.c.bf16 %v1877, %v1873
  %v1994 = vpack.c.bf16 %v1878, %v1874
  %v1995 = vpack.c.bf16 %v1879, %v1875
  %v1996 = vpack.c.bf16 %v1880, %v1876
  %v1997 = vpack.c.bf16 %v1885, %v1881
  %v1998 = vpack.c.bf16 %v1886, %v1882
  %v1999 = vpack.c.bf16 %v1887, %v1883
  %v2000 = vpack.c.bf16 %v1888, %v1884
  %v2001 = vpack.c.bf16 %v1893, %v1889
  %v2002 = vpack.c.bf16 %v1894, %v1890
  %v2003 = vpack.c.bf16 %v1895, %v1891
  %v2004 = vpack.c.bf16 %v1896, %v1892
  %v2005 = vpack.c.bf16 %v1901, %v1897
  %v2006 = vpack.c.bf16 %v1902, %v1898
  %v2007 = vpack.c.bf16 %v1903, %v1899
  %v2008 = vpack.c.bf16 %v1904, %v1900
  %v2009 = vpack.c.bf16 %v1909, %v1905
  %v2010 = vpack.c.bf16 %v1910, %v1906
  %v2011 = vpack.c.bf16 %v1911, %v1907
  %v2012 = vpack.c.bf16 %v1912, %v1908
  %v2013 = vpack.c.bf16 %v1917, %v1913
  %v2014 = vpack.c.bf16 %v1918, %v1914
  %v2015 = vpack.c.bf16 %v1919, %v1915
  %v2016 = vpack.c.bf16 %v1920, %v1916
  %v2017 = vpack.c.bf16 %v1925, %v1921
  %v2018 = vpack.c.bf16 %v1926, %v1922
  %v2019 = vpack.c.bf16 %v1927, %v1923
  %v2020 = vpack.c.bf16 %v1928, %v1924
  %v2021 = vpack.c.bf16 %v1933, %v1929
  %v2022 = vpack.c.bf16 %v1934, %v1930
  %v2023 = vpack.c.bf16 %v1935, %v1931
  %v2024 = vpack.c.bf16 %v1936, %v1932
  %v2025 = vpack.c.bf16 %v1941, %v1937
  %v2026 = vpack.c.bf16 %v1942, %v1938
  %v2027 = vpack.c.bf16 %v1943, %v1939
  %v2028 = vpack.c.bf16 %v1944, %v1940
  %v2029 = vpack.c.bf16 %v1949, %v1945
  %v2030 = vpack.c.bf16 %v1950, %v1946
  %v2031 = vpack.c.bf16 %v1951, %v1947
  %v2032 = vpack.c.bf16 %v1952, %v1948
  %v2033 = vpack.c.bf16 %v1957, %v1953
  %v2034 = vpack.c.bf16 %v1958, %v1954
  %v2035 = vpack.c.bf16 %v1959, %v1955
  %v2036 = vpack.c.bf16 %v1960, %v1956
  %v2037 = vpack.c.bf16 %v1965, %v1961
  %v2038 = vpack.c.bf16 %v1966, %v1962
  %v2039 = vpack.c.bf16 %v1967, %v1963
  %v2040 = vpack.c.bf16 %v1968, %v1964
  %v2041 = vpack.c.bf16 %v1973, %v1969
  %v2042 = vpack.c.bf16 %v1974, %v1970
  %v2043 = vpack.c.bf16 %v1975, %v1971
  %v2044 = vpack.c.bf16 %v1976, %v1972
  %v2045 = vpack.c.bf16 %v1981, %v1977
  %v2046 = vpack.c.bf16 %v1982, %v1978
  %v2047 = vpack.c.bf16 %v1983, %v1979
  %v2048 = vpack.c.bf16 %v1984, %v1980
  %v2049 = vld [vmem:[%s1 + $0x10] sm:$0xff]
  %v2050 = vld [vmem:[%s1 + $0x50] sm:$0xff]
  %v2051 = vld [vmem:[%s1 + $0x90] sm:$0xff]
  %v2052 = vld [vmem:[%s1 + $0xd0] sm:$0xff]
  %v2053 = vld [vmem:[%s1 + $0x110] sm:$0xff]
  %v2054 = vld [vmem:[%s1 + $0x150] sm:$0xff]
  %v2055 = vld [vmem:[%s1 + $0x190] sm:$0xff]
  %v2056 = vld [vmem:[%s1 + $0x1d0] sm:$0xff]
  %v2057 = vld [vmem:[%s1 + $0x210] sm:$0xff]
  %v2058 = vld [vmem:[%s1 + $0x250] sm:$0xff]
  %v2059 = vld [vmem:[%s1 + $0x290] sm:$0xff]
  %v2060 = vld [vmem:[%s1 + $0x2d0] sm:$0xff]
  %v2061 = vld [vmem:[%s1 + $0x310] sm:$0xff]
  %v2062 = vld [vmem:[%s1 + $0x350] sm:$0xff]
  %v2063 = vld [vmem:[%s1 + $0x390] sm:$0xff]
  %v2064 = vld [vmem:[%s1 + $0x3d0] sm:$0xff]
  %v2065 = vld [vmem:[%s1 + $0x410] sm:$0xff]
  %v2066 = vld [vmem:[%s1 + $0x450] sm:$0xff]
  %v2067 = vld [vmem:[%s1 + $0x490] sm:$0xff]
  %v2068 = vld [vmem:[%s1 + $0x4d0] sm:$0xff]
  %v2069 = vld [vmem:[%s1 + $0x510] sm:$0xff]
  %v2070 = vld [vmem:[%s1 + $0x550] sm:$0xff]
  %v2071 = vld [vmem:[%s1 + $0x590] sm:$0xff]
  %v2072 = vld [vmem:[%s1 + $0x5d0] sm:$0xff]
  %v2073 = vld [vmem:[%s1 + $0x610] sm:$0xff]
  %v2074 = vld [vmem:[%s1 + $0x650] sm:$0xff]
  %v2075 = vld [vmem:[%s1 + $0x690] sm:$0xff]
  %v2076 = vld [vmem:[%s1 + $0x6d0] sm:$0xff]
  %v2077 = vld [vmem:[%s1 + $0x710] sm:$0xff]
  %v2078 = vld [vmem:[%s1 + $0x750] sm:$0xff]
  %v2079 = vld [vmem:[%s1 + $0x790] sm:$0xff]
  %v2080 = vld [vmem:[%s1 + $0x7d0] sm:$0xff]
  %v2081 = vld [vmem:[%s1 + $0x810] sm:$0xff]
  %v2082 = vld [vmem:[%s1 + $0x850] sm:$0xff]
  %v2083 = vld [vmem:[%s1 + $0x890] sm:$0xff]
  %v2084 = vld [vmem:[%s1 + $0x8d0] sm:$0xff]
  %v2085 = vld [vmem:[%s1 + $0x910] sm:$0xff]
  %v2086 = vld [vmem:[%s1 + $0x950] sm:$0xff]
  %v2087 = vld [vmem:[%s1 + $0x990] sm:$0xff]
  %v2088 = vld [vmem:[%s1 + $0x9d0] sm:$0xff]
  %v2089 = vld [vmem:[%s1 + $0xa10] sm:$0xff]
  %v2090 = vld [vmem:[%s1 + $0xa50] sm:$0xff]
  %v2091 = vld [vmem:[%s1 + $0xa90] sm:$0xff]
  %v2092 = vld [vmem:[%s1 + $0xad0] sm:$0xff]
  %v2093 = vld [vmem:[%s1 + $0xb10] sm:$0xff]
  %v2094 = vld [vmem:[%s1 + $0xb50] sm:$0xff]
  %v2095 = vld [vmem:[%s1 + $0xb90] sm:$0xff]
  %v2096 = vld [vmem:[%s1 + $0xbd0] sm:$0xff]
  %v2097 = vld [vmem:[%s1 + $0xc10] sm:$0xff]
  %v2098 = vld [vmem:[%s1 + $0xc50] sm:$0xff]
  %v2099 = vld [vmem:[%s1 + $0xc90] sm:$0xff]
  %v2100 = vld [vmem:[%s1 + $0xcd0] sm:$0xff]
  %v2101 = vld [vmem:[%s1 + $0xd10] sm:$0xff]
  %v2102 = vld [vmem:[%s1 + $0xd50] sm:$0xff]
  %v2103 = vld [vmem:[%s1 + $0xd90] sm:$0xff]
  %v2104 = vld [vmem:[%s1 + $0xdd0] sm:$0xff]
  %v2105 = vld [vmem:[%s1 + $0xe10] sm:$0xff]
  %v2106 = vld [vmem:[%s1 + $0xe50] sm:$0xff]
  %v2107 = vld [vmem:[%s1 + $0xe90] sm:$0xff]
  %v2108 = vld [vmem:[%s1 + $0xed0] sm:$0xff]
  %v2109 = vld [vmem:[%s1 + $0xf10] sm:$0xff]
  %v2110 = vld [vmem:[%s1 + $0xf50] sm:$0xff]
  %v2111 = vld [vmem:[%s1 + $0xf90] sm:$0xff]
  %v2112 = vld [vmem:[%s1 + $0xfd0] sm:$0xff]
  %v2113 = vld [vmem:[%s2 + $0xc] sm:$0x3]
  %v2115 = vperm.slane %v2113, 0
  %v2116 = vperm.slane %v2113, 1
  %v2183 = vunpack.c.l.b16 %v2049
  %v2184 = vunpack.c.h.b16 %v2049
  %v2185 = vunpack.c.l.b16 %v2050
  %v2186 = vunpack.c.h.b16 %v2050
  %v2187 = vunpack.c.l.b16 %v2051
  %v2188 = vunpack.c.h.b16 %v2051
  %v2189 = vunpack.c.l.b16 %v2052
  %v2190 = vunpack.c.h.b16 %v2052
  %v2191 = vunpack.c.l.b16 %v2053
  %v2192 = vunpack.c.h.b16 %v2053
  %v2193 = vunpack.c.l.b16 %v2054
  %v2194 = vunpack.c.h.b16 %v2054
  %v2195 = vunpack.c.l.b16 %v2055
  %v2196 = vunpack.c.h.b16 %v2055
  %v2197 = vunpack.c.l.b16 %v2056
  %v2198 = vunpack.c.h.b16 %v2056
  %v2199 = vunpack.c.l.b16 %v2057
  %v2200 = vunpack.c.h.b16 %v2057
  %v2201 = vunpack.c.l.b16 %v2058
  %v2202 = vunpack.c.h.b16 %v2058
  %v2203 = vunpack.c.l.b16 %v2059
  %v2204 = vunpack.c.h.b16 %v2059
  %v2205 = vunpack.c.l.b16 %v2060
  %v2206 = vunpack.c.h.b16 %v2060
  %v2207 = vunpack.c.l.b16 %v2061
  %v2208 = vunpack.c.h.b16 %v2061
  %v2209 = vunpack.c.l.b16 %v2062
  %v2210 = vunpack.c.h.b16 %v2062
  %v2211 = vunpack.c.l.b16 %v2063
  %v2212 = vunpack.c.h.b16 %v2063
  %v2213 = vunpack.c.l.b16 %v2064
  %v2214 = vunpack.c.h.b16 %v2064
  %v2215 = vunpack.c.l.b16 %v2065
  %v2216 = vunpack.c.h.b16 %v2065
  %v2217 = vunpack.c.l.b16 %v2066
  %v2218 = vunpack.c.h.b16 %v2066
  %v2219 = vunpack.c.l.b16 %v2067
  %v2220 = vunpack.c.h.b16 %v2067
  %v2221 = vunpack.c.l.b16 %v2068
  %v2222 = vunpack.c.h.b16 %v2068
  %v2223 = vunpack.c.l.b16 %v2069
  %v2224 = vunpack.c.h.b16 %v2069
  %v2225 = vunpack.c.l.b16 %v2070
  %v2226 = vunpack.c.h.b16 %v2070
  %v2227 = vunpack.c.l.b16 %v2071
  %v2228 = vunpack.c.h.b16 %v2071
  %v2229 = vunpack.c.l.b16 %v2072
  %v2230 = vunpack.c.h.b16 %v2072
  %v2231 = vunpack.c.l.b16 %v2073
  %v2232 = vunpack.c.h.b16 %v2073
  %v2233 = vunpack.c.l.b16 %v2074
  %v2234 = vunpack.c.h.b16 %v2074
  %v2235 = vunpack.c.l.b16 %v2075
  %v2236 = vunpack.c.h.b16 %v2075
  %v2237 = vunpack.c.l.b16 %v2076
  %v2238 = vunpack.c.h.b16 %v2076
  %v2239 = vunpack.c.l.b16 %v2077
  %v2240 = vunpack.c.h.b16 %v2077
  %v2241 = vunpack.c.l.b16 %v2078
  %v2242 = vunpack.c.h.b16 %v2078
  %v2243 = vunpack.c.l.b16 %v2079
  %v2244 = vunpack.c.h.b16 %v2079
  %v2245 = vunpack.c.l.b16 %v2080
  %v2246 = vunpack.c.h.b16 %v2080
  %v2247 = vunpack.c.l.b16 %v2081
  %v2248 = vunpack.c.h.b16 %v2081
  %v2249 = vunpack.c.l.b16 %v2082
  %v2250 = vunpack.c.h.b16 %v2082
  %v2251 = vunpack.c.l.b16 %v2083
  %v2252 = vunpack.c.h.b16 %v2083
  %v2253 = vunpack.c.l.b16 %v2084
  %v2254 = vunpack.c.h.b16 %v2084
  %v2255 = vunpack.c.l.b16 %v2085
  %v2256 = vunpack.c.h.b16 %v2085
  %v2257 = vunpack.c.l.b16 %v2086
  %v2258 = vunpack.c.h.b16 %v2086
  %v2259 = vunpack.c.l.b16 %v2087
  %v2260 = vunpack.c.h.b16 %v2087
  %v2261 = vunpack.c.l.b16 %v2088
  %v2262 = vunpack.c.h.b16 %v2088
  %v2263 = vunpack.c.l.b16 %v2089
  %v2264 = vunpack.c.h.b16 %v2089
  %v2265 = vunpack.c.l.b16 %v2090
  %v2266 = vunpack.c.h.b16 %v2090
  %v2267 = vunpack.c.l.b16 %v2091
  %v2268 = vunpack.c.h.b16 %v2091
  %v2269 = vunpack.c.l.b16 %v2092
  %v2270 = vunpack.c.h.b16 %v2092
  %v2271 = vunpack.c.l.b16 %v2093
  %v2272 = vunpack.c.h.b16 %v2093
  %v2273 = vunpack.c.l.b16 %v2094
  %v2274 = vunpack.c.h.b16 %v2094
  %v2275 = vunpack.c.l.b16 %v2095
  %v2276 = vunpack.c.h.b16 %v2095
  %v2277 = vunpack.c.l.b16 %v2096
  %v2278 = vunpack.c.h.b16 %v2096
  %v2279 = vunpack.c.l.b16 %v2097
  %v2280 = vunpack.c.h.b16 %v2097
  %v2281 = vunpack.c.l.b16 %v2098
  %v2282 = vunpack.c.h.b16 %v2098
  %v2283 = vunpack.c.l.b16 %v2099
  %v2284 = vunpack.c.h.b16 %v2099
  %v2285 = vunpack.c.l.b16 %v2100
  %v2286 = vunpack.c.h.b16 %v2100
  %v2287 = vunpack.c.l.b16 %v2101
  %v2288 = vunpack.c.h.b16 %v2101
  %v2289 = vunpack.c.l.b16 %v2102
  %v2290 = vunpack.c.h.b16 %v2102
  %v2291 = vunpack.c.l.b16 %v2103
  %v2292 = vunpack.c.h.b16 %v2103
  %v2293 = vunpack.c.l.b16 %v2104
  %v2294 = vunpack.c.h.b16 %v2104
  %v2295 = vunpack.c.l.b16 %v2105
  %v2296 = vunpack.c.h.b16 %v2105
  %v2297 = vunpack.c.l.b16 %v2106
  %v2298 = vunpack.c.h.b16 %v2106
  %v2299 = vunpack.c.l.b16 %v2107
  %v2300 = vunpack.c.h.b16 %v2107
  %v2301 = vunpack.c.l.b16 %v2108
  %v2302 = vunpack.c.h.b16 %v2108
  %v2303 = vunpack.c.l.b16 %v2109
  %v2304 = vunpack.c.h.b16 %v2109
  %v2305 = vunpack.c.l.b16 %v2110
  %v2306 = vunpack.c.h.b16 %v2110
  %v2307 = vunpack.c.l.b16 %v2111
  %v2308 = vunpack.c.h.b16 %v2111
  %v2309 = vunpack.c.l.b16 %v2112
  %v2310 = vunpack.c.h.b16 %v2112
  %v2311 = vpack.c.b16 %v2185, %v2183
  %v2312 = vpack.c.b16 %v2186, %v2184
  %v2313 = vpack.c.b16 %v2189, %v2187
  %v2314 = vpack.c.b16 %v2190, %v2188
  %v2315 = vpack.c.b16 %v2193, %v2191
  %v2316 = vpack.c.b16 %v2194, %v2192
  %v2317 = vpack.c.b16 %v2197, %v2195
  %v2318 = vpack.c.b16 %v2198, %v2196
  %v2319 = vpack.c.b16 %v2201, %v2199
  %v2320 = vpack.c.b16 %v2202, %v2200
  %v2321 = vpack.c.b16 %v2205, %v2203
  %v2322 = vpack.c.b16 %v2206, %v2204
  %v2323 = vpack.c.b16 %v2209, %v2207
  %v2324 = vpack.c.b16 %v2210, %v2208
  %v2325 = vpack.c.b16 %v2213, %v2211
  %v2326 = vpack.c.b16 %v2214, %v2212
  %v2327 = vpack.c.b16 %v2217, %v2215
  %v2328 = vpack.c.b16 %v2218, %v2216
  %v2329 = vpack.c.b16 %v2221, %v2219
  %v2330 = vpack.c.b16 %v2222, %v2220
  %v2331 = vpack.c.b16 %v2225, %v2223
  %v2332 = vpack.c.b16 %v2226, %v2224
  %v2333 = vpack.c.b16 %v2229, %v2227
  %v2334 = vpack.c.b16 %v2230, %v2228
  %v2335 = vpack.c.b16 %v2233, %v2231
  %v2336 = vpack.c.b16 %v2234, %v2232
  %v2337 = vpack.c.b16 %v2237, %v2235
  %v2338 = vpack.c.b16 %v2238, %v2236
  %v2339 = vpack.c.b16 %v2241, %v2239
  %v2340 = vpack.c.b16 %v2242, %v2240
  %v2341 = vpack.c.b16 %v2245, %v2243
  %v2342 = vpack.c.b16 %v2246, %v2244
  %v2343 = vpack.c.b16 %v2249, %v2247
  %v2344 = vpack.c.b16 %v2250, %v2248
  %v2345 = vpack.c.b16 %v2253, %v2251
  %v2346 = vpack.c.b16 %v2254, %v2252
  %v2347 = vpack.c.b16 %v2257, %v2255
  %v2348 = vpack.c.b16 %v2258, %v2256
  %v2349 = vpack.c.b16 %v2261, %v2259
  %v2350 = vpack.c.b16 %v2262, %v2260
  %v2351 = vpack.c.b16 %v2265, %v2263
  %v2352 = vpack.c.b16 %v2266, %v2264
  %v2353 = vpack.c.b16 %v2269, %v2267
  %v2354 = vpack.c.b16 %v2270, %v2268
  %v2355 = vpack.c.b16 %v2273, %v2271
  %v2356 = vpack.c.b16 %v2274, %v2272
  %v2357 = vpack.c.b16 %v2277, %v2275
  %v2358 = vpack.c.b16 %v2278, %v2276
  %v2359 = vpack.c.b16 %v2281, %v2279
  %v2360 = vpack.c.b16 %v2282, %v2280
  %v2361 = vpack.c.b16 %v2285, %v2283
  %v2362 = vpack.c.b16 %v2286, %v2284
  %v2363 = vpack.c.b16 %v2289, %v2287
  %v2364 = vpack.c.b16 %v2290, %v2288
  %v2365 = vpack.c.b16 %v2293, %v2291
  %v2366 = vpack.c.b16 %v2294, %v2292
  %v2367 = vpack.c.b16 %v2297, %v2295
  %v2368 = vpack.c.b16 %v2298, %v2296
  %v2369 = vpack.c.b16 %v2301, %v2299
  %v2370 = vpack.c.b16 %v2302, %v2300
  %v2371 = vpack.c.b16 %v2305, %v2303
  %v2372 = vpack.c.b16 %v2306, %v2304
  %v2373 = vpack.c.b16 %v2309, %v2307
  %v2374 = vpack.c.b16 %v2310, %v2308
  %2439 = vmatpush.bf16.msra.mxu0 %v2325
  %2440 = vmatpush.bf16.msra.mxu0 %v2323
  %2441 = vmatpush.bf16.msra.mxu0 %v2321
  %2442 = vmatpush.bf16.msra.mxu0 %v2319
  %2443 = vmatpush.bf16.msra.mxu0 %v2317
  %2444 = vmatpush.bf16.msra.mxu0 %v2315
  %2445 = vmatpush.bf16.msra.mxu0 %v2313
  %2446 = vmatpush.bf16.msra.mxu0 %v2311
  %2447 = vmatmul.bf16.gmra.mxu0 %v1985
  %v2448 = vpop.f32.mrf.mxu0
  %v2449 = vadd.f32 %v2115, %v2448
  %v2450 = vpop.f32.mrf.mxu0
  %v2451 = vadd.f32 %v2115, %v2450
  %2452 = vmatmul.bf16.gmra.mxu0 %v1989
  %v2453 = vpop.f32.mrf.mxu0
  %v2454 = vadd.f32 %v2115, %v2453
  %v2455 = vpop.f32.mrf.mxu0
  %v2456 = vadd.f32 %v2115, %v2455
  %2457 = vmatmul.bf16.gmra.mxu0 %v1993
  %v2458 = vpop.f32.mrf.mxu0
  %v2459 = vadd.f32 %v2115, %v2458
  %v2460 = vpop.f32.mrf.mxu0
  %v2461 = vadd.f32 %v2115, %v2460
  %2462 = vmatmul.bf16.gmra.mxu0 %v1997
  %v2463 = vpop.f32.mrf.mxu0
  %v2464 = vadd.f32 %v2115, %v2463
  %v2465 = vpop.f32.mrf.mxu0
  %v2466 = vadd.f32 %v2115, %v2465
  %2467 = vmatmul.bf16.gmra.mxu0 %v2001
  %v2468 = vpop.f32.mrf.mxu0
  %v2469 = vadd.f32 %v2115, %v2468
  %v2470 = vpop.f32.mrf.mxu0
  %v2471 = vadd.f32 %v2115, %v2470
  %2472 = vmatmul.bf16.gmra.mxu0 %v2005
  %v2473 = vpop.f32.mrf.mxu0
  %v2474 = vadd.f32 %v2115, %v2473
  %v2475 = vpop.f32.mrf.mxu0
  %v2476 = vadd.f32 %v2115, %v2475
  %2477 = vmatmul.bf16.gmra.mxu0 %v2009
  %v2478 = vpop.f32.mrf.mxu0
  %v2479 = vadd.f32 %v2115, %v2478
  %v2480 = vpop.f32.mrf.mxu0
  %v2481 = vadd.f32 %v2115, %v2480
  %2482 = vmatmul.bf16.gmra.mxu0 %v2013
  %v2483 = vpop.f32.mrf.mxu0
  %v2484 = vadd.f32 %v2115, %v2483
  %v2485 = vpop.f32.mrf.mxu0
  %v2486 = vadd.f32 %v2115, %v2485
  %2487 = vmatmul.bf16.gmra.mxu0 %v2017
  %v2488 = vpop.f32.mrf.mxu0
  %v2489 = vadd.f32 %v2115, %v2488
  %v2490 = vpop.f32.mrf.mxu0
  %v2491 = vadd.f32 %v2115, %v2490
  %2492 = vmatmul.bf16.gmra.mxu0 %v2021
  %v2493 = vpop.f32.mrf.mxu0
  %v2494 = vadd.f32 %v2115, %v2493
  %v2495 = vpop.f32.mrf.mxu0
  %v2496 = vadd.f32 %v2115, %v2495
  %2497 = vmatmul.bf16.gmra.mxu0 %v2025
  %v2498 = vpop.f32.mrf.mxu0
  %v2499 = vadd.f32 %v2115, %v2498
  %v2500 = vpop.f32.mrf.mxu0
  %v2501 = vadd.f32 %v2115, %v2500
  %2502 = vmatmul.bf16.gmra.mxu0 %v2029
  %v2503 = vpop.f32.mrf.mxu0
  %v2504 = vadd.f32 %v2115, %v2503
  %v2505 = vpop.f32.mrf.mxu0
  %v2506 = vadd.f32 %v2115, %v2505
  %2507 = vmatmul.bf16.gmra.mxu0 %v2033
  %v2508 = vpop.f32.mrf.mxu0
  %v2509 = vadd.f32 %v2115, %v2508
  %v2510 = vpop.f32.mrf.mxu0
  %v2511 = vadd.f32 %v2115, %v2510
  %2512 = vmatmul.bf16.gmra.mxu0 %v2037
  %v2513 = vpop.f32.mrf.mxu0
  %v2514 = vadd.f32 %v2115, %v2513
  %v2515 = vpop.f32.mrf.mxu0
  %v2516 = vadd.f32 %v2115, %v2515
  %2517 = vmatmul.bf16.gmra.mxu0 %v2041
  %v2518 = vpop.f32.mrf.mxu0
  %v2519 = vadd.f32 %v2115, %v2518
  %v2520 = vpop.f32.mrf.mxu0
  %v2521 = vadd.f32 %v2115, %v2520
  %2522 = vmatmul.bf16.gmra.mxu0 %v2045
  %v2523 = vpop.f32.mrf.mxu0
  %v2524 = vadd.f32 %v2115, %v2523
  %v2525 = vpop.f32.mrf.mxu0
  %v2526 = vadd.f32 %v2115, %v2525
  %2527 = vdwg.mxu0
  %2528 = vmatpush.bf16.msra.mxu0 %v2341
  %2529 = vmatpush.bf16.msra.mxu0 %v2339
  %2530 = vmatpush.bf16.msra.mxu0 %v2337
  %2531 = vmatpush.bf16.msra.mxu0 %v2335
  %2532 = vmatpush.bf16.msra.mxu0 %v2333
  %2533 = vmatpush.bf16.msra.mxu0 %v2331
  %2534 = vmatpush.bf16.msra.mxu0 %v2329
  %2535 = vmatpush.bf16.msra.mxu0 %v2327
  %2536 = vmatmul.bf16.gmra.mxu0 %v1986
  %v2537 = vpop.f32.mrf.mxu0
  %v2538 = vadd.f32 %v2449, %v2537
  %v2539 = vpop.f32.mrf.mxu0
  %v2540 = vadd.f32 %v2451, %v2539
  %2541 = vmatmul.bf16.gmra.mxu0 %v1990
  %v2542 = vpop.f32.mrf.mxu0
  %v2543 = vadd.f32 %v2454, %v2542
  %v2544 = vpop.f32.mrf.mxu0
  %v2545 = vadd.f32 %v2456, %v2544
  %2546 = vmatmul.bf16.gmra.mxu0 %v1994
  %v2547 = vpop.f32.mrf.mxu0
  %v2548 = vadd.f32 %v2459, %v2547
  %v2549 = vpop.f32.mrf.mxu0
  %v2550 = vadd.f32 %v2461, %v2549
  %2551 = vmatmul.bf16.gmra.mxu0 %v1998
  %v2552 = vpop.f32.mrf.mxu0
  %v2553 = vadd.f32 %v2464, %v2552
  %v2554 = vpop.f32.mrf.mxu0
  %v2555 = vadd.f32 %v2466, %v2554
  %2556 = vmatmul.bf16.gmra.mxu0 %v2002
  %v2557 = vpop.f32.mrf.mxu0
  %v2558 = vadd.f32 %v2469, %v2557
  %v2559 = vpop.f32.mrf.mxu0
  %v2560 = vadd.f32 %v2471, %v2559
  %2561 = vmatmul.bf16.gmra.mxu0 %v2006
  %v2562 = vpop.f32.mrf.mxu0
  %v2563 = vadd.f32 %v2474, %v2562
  %v2564 = vpop.f32.mrf.mxu0
  %v2565 = vadd.f32 %v2476, %v2564
  %2566 = vmatmul.bf16.gmra.mxu0 %v2010
  %v2567 = vpop.f32.mrf.mxu0
  %v2568 = vadd.f32 %v2479, %v2567
  %v2569 = vpop.f32.mrf.mxu0
  %v2570 = vadd.f32 %v2481, %v2569
  %2571 = vmatmul.bf16.gmra.mxu0 %v2014
  %v2572 = vpop.f32.mrf.mxu0
  %v2573 = vadd.f32 %v2484, %v2572
  %v2574 = vpop.f32.mrf.mxu0
  %v2575 = vadd.f32 %v2486, %v2574
  %2576 = vmatmul.bf16.gmra.mxu0 %v2018
  %v2577 = vpop.f32.mrf.mxu0
  %v2578 = vadd.f32 %v2489, %v2577
  %v2579 = vpop.f32.mrf.mxu0
  %v2580 = vadd.f32 %v2491, %v2579
  %2581 = vmatmul.bf16.gmra.mxu0 %v2022
  %v2582 = vpop.f32.mrf.mxu0
  %v2583 = vadd.f32 %v2494, %v2582
  %v2584 = vpop.f32.mrf.mxu0
  %v2585 = vadd.f32 %v2496, %v2584
  %2586 = vmatmul.bf16.gmra.mxu0 %v2026
  %v2587 = vpop.f32.mrf.mxu0
  %v2588 = vadd.f32 %v2499, %v2587
  %v2589 = vpop.f32.mrf.mxu0
  %v2590 = vadd.f32 %v2501, %v2589
  %2591 = vmatmul.bf16.gmra.mxu0 %v2030
  %v2592 = vpop.f32.mrf.mxu0
  %v2593 = vadd.f32 %v2504, %v2592
  %v2594 = vpop.f32.mrf.mxu0
  %v2595 = vadd.f32 %v2506, %v2594
  %2596 = vmatmul.bf16.gmra.mxu0 %v2034
  %v2597 = vpop.f32.mrf.mxu0
  %v2598 = vadd.f32 %v2509, %v2597
  %v2599 = vpop.f32.mrf.mxu0
  %v2600 = vadd.f32 %v2511, %v2599
  %2601 = vmatmul.bf16.gmra.mxu0 %v2038
  %v2602 = vpop.f32.mrf.mxu0
  %v2603 = vadd.f32 %v2514, %v2602
  %v2604 = vpop.f32.mrf.mxu0
  %v2605 = vadd.f32 %v2516, %v2604
  %2606 = vmatmul.bf16.gmra.mxu0 %v2042
  %v2607 = vpop.f32.mrf.mxu0
  %v2608 = vadd.f32 %v2519, %v2607
  %v2609 = vpop.f32.mrf.mxu0
  %v2610 = vadd.f32 %v2521, %v2609
  %2611 = vmatmul.bf16.gmra.mxu0 %v2046
  %v2612 = vpop.f32.mrf.mxu0
  %v2613 = vadd.f32 %v2524, %v2612
  %v2614 = vpop.f32.mrf.mxu0
  %v2615 = vadd.f32 %v2526, %v2614
  %2616 = vdwg.mxu0
  %2617 = vmatpush.bf16.msra.mxu0 %v2357
  %2618 = vmatpush.bf16.msra.mxu0 %v2355
  %2619 = vmatpush.bf16.msra.mxu0 %v2353
  %2620 = vmatpush.bf16.msra.mxu0 %v2351
  %2621 = vmatpush.bf16.msra.mxu0 %v2349
  %2622 = vmatpush.bf16.msra.mxu0 %v2347
  %2623 = vmatpush.bf16.msra.mxu0 %v2345
  %2624 = vmatpush.bf16.msra.mxu0 %v2343
  %2625 = vmatmul.bf16.gmra.mxu0 %v1987
  %v2626 = vpop.f32.mrf.mxu0
  %v2627 = vadd.f32 %v2538, %v2626
  %v2628 = vpop.f32.mrf.mxu0
  %v2629 = vadd.f32 %v2540, %v2628
  %2630 = vmatmul.bf16.gmra.mxu0 %v1991
  %v2631 = vpop.f32.mrf.mxu0
  %v2632 = vadd.f32 %v2543, %v2631
  %v2633 = vpop.f32.mrf.mxu0
  %v2634 = vadd.f32 %v2545, %v2633
  %2635 = vmatmul.bf16.gmra.mxu0 %v1995
  %v2636 = vpop.f32.mrf.mxu0
  %v2637 = vadd.f32 %v2548, %v2636
  %v2638 = vpop.f32.mrf.mxu0
  %v2639 = vadd.f32 %v2550, %v2638
  %2640 = vmatmul.bf16.gmra.mxu0 %v1999
  %v2641 = vpop.f32.mrf.mxu0
  %v2642 = vadd.f32 %v2553, %v2641
  %v2643 = vpop.f32.mrf.mxu0
  %v2644 = vadd.f32 %v2555, %v2643
  %2645 = vmatmul.bf16.gmra.mxu0 %v2003
  %v2646 = vpop.f32.mrf.mxu0
  %v2647 = vadd.f32 %v2558, %v2646
  %v2648 = vpop.f32.mrf.mxu0
  %v2649 = vadd.f32 %v2560, %v2648
  %2650 = vmatmul.bf16.gmra.mxu0 %v2007
  %v2651 = vpop.f32.mrf.mxu0
  %v2652 = vadd.f32 %v2563, %v2651
  %v2653 = vpop.f32.mrf.mxu0
  %v2654 = vadd.f32 %v2565, %v2653
  %2655 = vmatmul.bf16.gmra.mxu0 %v2011
  %v2656 = vpop.f32.mrf.mxu0
  %v2657 = vadd.f32 %v2568, %v2656
  %v2658 = vpop.f32.mrf.mxu0
  %v2659 = vadd.f32 %v2570, %v2658
  %2660 = vmatmul.bf16.gmra.mxu0 %v2015
  %v2661 = vpop.f32.mrf.mxu0
  %v2662 = vadd.f32 %v2573, %v2661
  %v2663 = vpop.f32.mrf.mxu0
  %v2664 = vadd.f32 %v2575, %v2663
  %2665 = vmatmul.bf16.gmra.mxu0 %v2019
  %v2666 = vpop.f32.mrf.mxu0
  %v2667 = vadd.f32 %v2578, %v2666
  %v2668 = vpop.f32.mrf.mxu0
  %v2669 = vadd.f32 %v2580, %v2668
  %2670 = vmatmul.bf16.gmra.mxu0 %v2023
  %v2671 = vpop.f32.mrf.mxu0
  %v2672 = vadd.f32 %v2583, %v2671
  %v2673 = vpop.f32.mrf.mxu0
  %v2674 = vadd.f32 %v2585, %v2673
  %2675 = vmatmul.bf16.gmra.mxu0 %v2027
  %v2676 = vpop.f32.mrf.mxu0
  %v2677 = vadd.f32 %v2588, %v2676
  %v2678 = vpop.f32.mrf.mxu0
  %v2679 = vadd.f32 %v2590, %v2678
  %2680 = vmatmul.bf16.gmra.mxu0 %v2031
  %v2681 = vpop.f32.mrf.mxu0
  %v2682 = vadd.f32 %v2593, %v2681
  %v2683 = vpop.f32.mrf.mxu0
  %v2684 = vadd.f32 %v2595, %v2683
  %2685 = vmatmul.bf16.gmra.mxu0 %v2035
  %v2686 = vpop.f32.mrf.mxu0
  %v2687 = vadd.f32 %v2598, %v2686
  %v2688 = vpop.f32.mrf.mxu0
  %v2689 = vadd.f32 %v2600, %v2688
  %2690 = vmatmul.bf16.gmra.mxu0 %v2039
  %v2691 = vpop.f32.mrf.mxu0
  %v2692 = vadd.f32 %v2603, %v2691
  %v2693 = vpop.f32.mrf.mxu0
  %v2694 = vadd.f32 %v2605, %v2693
  %2695 = vmatmul.bf16.gmra.mxu0 %v2043
  %v2696 = vpop.f32.mrf.mxu0
  %v2697 = vadd.f32 %v2608, %v2696
  %v2698 = vpop.f32.mrf.mxu0
  %v2699 = vadd.f32 %v2610, %v2698
  %2700 = vmatmul.bf16.gmra.mxu0 %v2047
  %v2701 = vpop.f32.mrf.mxu0
  %v2702 = vadd.f32 %v2613, %v2701
  %v2703 = vpop.f32.mrf.mxu0
  %v2704 = vadd.f32 %v2615, %v2703
  %2705 = vdwg.mxu0
  %2706 = vmatpush.bf16.msra.mxu0 %v2373
  %2707 = vmatpush.bf16.msra.mxu0 %v2371
  %2708 = vmatpush.bf16.msra.mxu0 %v2369
  %2709 = vmatpush.bf16.msra.mxu0 %v2367
  %2710 = vmatpush.bf16.msra.mxu0 %v2365
  %2711 = vmatpush.bf16.msra.mxu0 %v2363
  %2712 = vmatpush.bf16.msra.mxu0 %v2361
  %2713 = vmatpush.bf16.msra.mxu0 %v2359
  %2714 = vmatmul.bf16.gmra.mxu0 %v1988
  %v2715 = vpop.f32.mrf.mxu0
  %v2716 = vadd.f32 %v2627, %v2715
  %v2717 = vpop.f32.mrf.mxu0
  %v2718 = vadd.f32 %v2629, %v2717
  %2719 = vmatmul.bf16.gmra.mxu0 %v1992
  %v2720 = vpop.f32.mrf.mxu0
  %v2721 = vadd.f32 %v2632, %v2720
  %v2722 = vpop.f32.mrf.mxu0
  %v2723 = vadd.f32 %v2634, %v2722
  %2724 = vmatmul.bf16.gmra.mxu0 %v1996
  %v2725 = vpop.f32.mrf.mxu0
  %v2726 = vadd.f32 %v2637, %v2725
  %v2727 = vpop.f32.mrf.mxu0
  %v2728 = vadd.f32 %v2639, %v2727
  %2729 = vmatmul.bf16.gmra.mxu0 %v2000
  %v2730 = vpop.f32.mrf.mxu0
  %v2731 = vadd.f32 %v2642, %v2730
  %v2732 = vpop.f32.mrf.mxu0
  %v2733 = vadd.f32 %v2644, %v2732
  %2734 = vmatmul.bf16.gmra.mxu0 %v2004
  %v2735 = vpop.f32.mrf.mxu0
  %v2736 = vadd.f32 %v2647, %v2735
  %v2737 = vpop.f32.mrf.mxu0
  %v2738 = vadd.f32 %v2649, %v2737
  %2739 = vmatmul.bf16.gmra.mxu0 %v2008
  %v2740 = vpop.f32.mrf.mxu0
  %v2741 = vadd.f32 %v2652, %v2740
  %v2742 = vpop.f32.mrf.mxu0
  %v2743 = vadd.f32 %v2654, %v2742
  %2744 = vmatmul.bf16.gmra.mxu0 %v2012
  %v2745 = vpop.f32.mrf.mxu0
  %v2746 = vadd.f32 %v2657, %v2745
  %v2747 = vpop.f32.mrf.mxu0
  %v2748 = vadd.f32 %v2659, %v2747
  %2749 = vmatmul.bf16.gmra.mxu0 %v2016
  %v2750 = vpop.f32.mrf.mxu0
  %v2751 = vadd.f32 %v2662, %v2750
  %v2752 = vpop.f32.mrf.mxu0
  %v2753 = vadd.f32 %v2664, %v2752
  %2754 = vmatmul.bf16.gmra.mxu0 %v2020
  %v2755 = vpop.f32.mrf.mxu0
  %v2756 = vadd.f32 %v2667, %v2755
  %v2757 = vpop.f32.mrf.mxu0
  %v2758 = vadd.f32 %v2669, %v2757
  %2759 = vmatmul.bf16.gmra.mxu0 %v2024
  %v2760 = vpop.f32.mrf.mxu0
  %v2761 = vadd.f32 %v2672, %v2760
  %v2762 = vpop.f32.mrf.mxu0
  %v2763 = vadd.f32 %v2674, %v2762
  %2764 = vmatmul.bf16.gmra.mxu0 %v2028
  %v2765 = vpop.f32.mrf.mxu0
  %v2766 = vadd.f32 %v2677, %v2765
  %v2767 = vpop.f32.mrf.mxu0
  %v2768 = vadd.f32 %v2679, %v2767
  %2769 = vmatmul.bf16.gmra.mxu0 %v2032
  %v2770 = vpop.f32.mrf.mxu0
  %v2771 = vadd.f32 %v2682, %v2770
  %v2772 = vpop.f32.mrf.mxu0
  %v2773 = vadd.f32 %v2684, %v2772
  %2774 = vmatmul.bf16.gmra.mxu0 %v2036
  %v2775 = vpop.f32.mrf.mxu0
  %v2776 = vadd.f32 %v2687, %v2775
  %v2777 = vpop.f32.mrf.mxu0
  %v2778 = vadd.f32 %v2689, %v2777
  %2779 = vmatmul.bf16.gmra.mxu0 %v2040
  %v2780 = vpop.f32.mrf.mxu0
  %v2781 = vadd.f32 %v2692, %v2780
  %v2782 = vpop.f32.mrf.mxu0
  %v2783 = vadd.f32 %v2694, %v2782
  %2784 = vmatmul.bf16.gmra.mxu0 %v2044
  %v2785 = vpop.f32.mrf.mxu0
  %v2786 = vadd.f32 %v2697, %v2785
  %v2787 = vpop.f32.mrf.mxu0
  %v2788 = vadd.f32 %v2699, %v2787
  %2789 = vmatmul.bf16.gmra.mxu0 %v2048
  %v2790 = vpop.f32.mrf.mxu0
  %v2791 = vadd.f32 %v2702, %v2790
  %v2792 = vpop.f32.mrf.mxu0
  %v2793 = vadd.f32 %v2704, %v2792
  %2794 = vdwg.mxu0
  %2795 = vmatpush.bf16.msra.mxu0 %v2326
  %2796 = vmatpush.bf16.msra.mxu0 %v2324
  %2797 = vmatpush.bf16.msra.mxu0 %v2322
  %2798 = vmatpush.bf16.msra.mxu0 %v2320
  %2799 = vmatpush.bf16.msra.mxu0 %v2318
  %2800 = vmatpush.bf16.msra.mxu0 %v2316
  %2801 = vmatpush.bf16.msra.mxu0 %v2314
  %2802 = vmatpush.bf16.msra.mxu0 %v2312
  %2803 = vmatmul.bf16.gmra.mxu0 %v1985
  %v2804 = vpop.f32.mrf.mxu0
  %v2805 = vadd.f32 %v2116, %v2804
  %v2806 = vpop.f32.mrf.mxu0
  %v2807 = vadd.f32 %v2116, %v2806
  %2808 = vmatmul.bf16.gmra.mxu0 %v1989
  %v2809 = vpop.f32.mrf.mxu0
  %v2810 = vadd.f32 %v2116, %v2809
  %v2811 = vpop.f32.mrf.mxu0
  %v2812 = vadd.f32 %v2116, %v2811
  %2813 = vmatmul.bf16.gmra.mxu0 %v1993
  %v2814 = vpop.f32.mrf.mxu0
  %v2815 = vadd.f32 %v2116, %v2814
  %v2816 = vpop.f32.mrf.mxu0
  %v2817 = vadd.f32 %v2116, %v2816
  %2818 = vmatmul.bf16.gmra.mxu0 %v1997
  %v2819 = vpop.f32.mrf.mxu0
  %v2820 = vadd.f32 %v2116, %v2819
  %v2821 = vpop.f32.mrf.mxu0
  %v2822 = vadd.f32 %v2116, %v2821
  %2823 = vmatmul.bf16.gmra.mxu0 %v2001
  %v2824 = vpop.f32.mrf.mxu0
  %v2825 = vadd.f32 %v2116, %v2824
  %v2826 = vpop.f32.mrf.mxu0
  %v2827 = vadd.f32 %v2116, %v2826
  %2828 = vmatmul.bf16.gmra.mxu0 %v2005
  %v2829 = vpop.f32.mrf.mxu0
  %v2830 = vadd.f32 %v2116, %v2829
  %v2831 = vpop.f32.mrf.mxu0
  %v2832 = vadd.f32 %v2116, %v2831
  %2833 = vmatmul.bf16.gmra.mxu0 %v2009
  %v2834 = vpop.f32.mrf.mxu0
  %v2835 = vadd.f32 %v2116, %v2834
  %v2836 = vpop.f32.mrf.mxu0
  %v2837 = vadd.f32 %v2116, %v2836
  %2838 = vmatmul.bf16.gmra.mxu0 %v2013
  %v2839 = vpop.f32.mrf.mxu0
  %v2840 = vadd.f32 %v2116, %v2839
  %v2841 = vpop.f32.mrf.mxu0
  %v2842 = vadd.f32 %v2116, %v2841
  %2843 = vmatmul.bf16.gmra.mxu0 %v2017
  %v2844 = vpop.f32.mrf.mxu0
  %v2845 = vadd.f32 %v2116, %v2844
  %v2846 = vpop.f32.mrf.mxu0
  %v2847 = vadd.f32 %v2116, %v2846
  %2848 = vmatmul.bf16.gmra.mxu0 %v2021
  %v2849 = vpop.f32.mrf.mxu0
  %v2850 = vadd.f32 %v2116, %v2849
  %v2851 = vpop.f32.mrf.mxu0
  %v2852 = vadd.f32 %v2116, %v2851
  %2853 = vmatmul.bf16.gmra.mxu0 %v2025
  %v2854 = vpop.f32.mrf.mxu0
  %v2855 = vadd.f32 %v2116, %v2854
  %v2856 = vpop.f32.mrf.mxu0
  %v2857 = vadd.f32 %v2116, %v2856
  %2858 = vmatmul.bf16.gmra.mxu0 %v2029
  %v2859 = vpop.f32.mrf.mxu0
  %v2860 = vadd.f32 %v2116, %v2859
  %v2861 = vpop.f32.mrf.mxu0
  %v2862 = vadd.f32 %v2116, %v2861
  %2863 = vmatmul.bf16.gmra.mxu0 %v2033
  %v2864 = vpop.f32.mrf.mxu0
  %v2865 = vadd.f32 %v2116, %v2864
  %v2866 = vpop.f32.mrf.mxu0
  %v2867 = vadd.f32 %v2116, %v2866
  %2868 = vmatmul.bf16.gmra.mxu0 %v2037
  %v2869 = vpop.f32.mrf.mxu0
  %v2870 = vadd.f32 %v2116, %v2869
  %v2871 = vpop.f32.mrf.mxu0
  %v2872 = vadd.f32 %v2116, %v2871
  %2873 = vmatmul.bf16.gmra.mxu0 %v2041
  %v2874 = vpop.f32.mrf.mxu0
  %v2875 = vadd.f32 %v2116, %v2874
  %v2876 = vpop.f32.mrf.mxu0
  %v2877 = vadd.f32 %v2116, %v2876
  %2878 = vmatmul.bf16.gmra.mxu0 %v2045
  %v2879 = vpop.f32.mrf.mxu0
  %v2880 = vadd.f32 %v2116, %v2879
  %v2881 = vpop.f32.mrf.mxu0
  %v2882 = vadd.f32 %v2116, %v2881
  %2883 = vdwg.mxu0
  %2884 = vmatpush.bf16.msra.mxu0 %v2342
  %2885 = vmatpush.bf16.msra.mxu0 %v2340
  %2886 = vmatpush.bf16.msra.mxu0 %v2338
  %2887 = vmatpush.bf16.msra.mxu0 %v2336
  %2888 = vmatpush.bf16.msra.mxu0 %v2334
  %2889 = vmatpush.bf16.msra.mxu0 %v2332
  %2890 = vmatpush.bf16.msra.mxu0 %v2330
  %2891 = vmatpush.bf16.msra.mxu0 %v2328
  %2892 = vmatmul.bf16.gmra.mxu0 %v1986
  %v2893 = vpop.f32.mrf.mxu0
  %v2894 = vadd.f32 %v2805, %v2893
  %v2895 = vpop.f32.mrf.mxu0
  %v2896 = vadd.f32 %v2807, %v2895
  %2897 = vmatmul.bf16.gmra.mxu0 %v1990
  %v2898 = vpop.f32.mrf.mxu0
  %v2899 = vadd.f32 %v2810, %v2898
  %v2900 = vpop.f32.mrf.mxu0
  %v2901 = vadd.f32 %v2812, %v2900
  %2902 = vmatmul.bf16.gmra.mxu0 %v1994
  %v2903 = vpop.f32.mrf.mxu0
  %v2904 = vadd.f32 %v2815, %v2903
  %v2905 = vpop.f32.mrf.mxu0
  %v2906 = vadd.f32 %v2817, %v2905
  %2907 = vmatmul.bf16.gmra.mxu0 %v1998
  %v2908 = vpop.f32.mrf.mxu0
  %v2909 = vadd.f32 %v2820, %v2908
  %v2910 = vpop.f32.mrf.mxu0
  %v2911 = vadd.f32 %v2822, %v2910
  %2912 = vmatmul.bf16.gmra.mxu0 %v2002
  %v2913 = vpop.f32.mrf.mxu0
  %v2914 = vadd.f32 %v2825, %v2913
  %v2915 = vpop.f32.mrf.mxu0
  %v2916 = vadd.f32 %v2827, %v2915
  %2917 = vmatmul.bf16.gmra.mxu0 %v2006
  %v2918 = vpop.f32.mrf.mxu0
  %v2919 = vadd.f32 %v2830, %v2918
  %v2920 = vpop.f32.mrf.mxu0
  %v2921 = vadd.f32 %v2832, %v2920
  %2922 = vmatmul.bf16.gmra.mxu0 %v2010
  %v2923 = vpop.f32.mrf.mxu0
  %v2924 = vadd.f32 %v2835, %v2923
  %v2925 = vpop.f32.mrf.mxu0
  %v2926 = vadd.f32 %v2837, %v2925
  %2927 = vmatmul.bf16.gmra.mxu0 %v2014
  %v2928 = vpop.f32.mrf.mxu0
  %v2929 = vadd.f32 %v2840, %v2928
  %v2930 = vpop.f32.mrf.mxu0
  %v2931 = vadd.f32 %v2842, %v2930
  %2932 = vmatmul.bf16.gmra.mxu0 %v2018
  %v2933 = vpop.f32.mrf.mxu0
  %v2934 = vadd.f32 %v2845, %v2933
  %v2935 = vpop.f32.mrf.mxu0
  %v2936 = vadd.f32 %v2847, %v2935
  %2937 = vmatmul.bf16.gmra.mxu0 %v2022
  %v2938 = vpop.f32.mrf.mxu0
  %v2939 = vadd.f32 %v2850, %v2938
  %v2940 = vpop.f32.mrf.mxu0
  %v2941 = vadd.f32 %v2852, %v2940
  %2942 = vmatmul.bf16.gmra.mxu0 %v2026
  %v2943 = vpop.f32.mrf.mxu0
  %v2944 = vadd.f32 %v2855, %v2943
  %v2945 = vpop.f32.mrf.mxu0
  %v2946 = vadd.f32 %v2857, %v2945
  %2947 = vmatmul.bf16.gmra.mxu0 %v2030
  %v2948 = vpop.f32.mrf.mxu0
  %v2949 = vadd.f32 %v2860, %v2948
  %v2950 = vpop.f32.mrf.mxu0
  %v2951 = vadd.f32 %v2862, %v2950
  %2952 = vmatmul.bf16.gmra.mxu0 %v2034
  %v2953 = vpop.f32.mrf.mxu0
  %v2954 = vadd.f32 %v2865, %v2953
  %v2955 = vpop.f32.mrf.mxu0
  %v2956 = vadd.f32 %v2867, %v2955
  %2957 = vmatmul.bf16.gmra.mxu0 %v2038
  %v2958 = vpop.f32.mrf.mxu0
  %v2959 = vadd.f32 %v2870, %v2958
  %v2960 = vpop.f32.mrf.mxu0
  %v2961 = vadd.f32 %v2872, %v2960
  %2962 = vmatmul.bf16.gmra.mxu0 %v2042
  %v2963 = vpop.f32.mrf.mxu0
  %v2964 = vadd.f32 %v2875, %v2963
  %v2965 = vpop.f32.mrf.mxu0
  %v2966 = vadd.f32 %v2877, %v2965
  %2967 = vmatmul.bf16.gmra.mxu0 %v2046
  %v2968 = vpop.f32.mrf.mxu0
  %v2969 = vadd.f32 %v2880, %v2968
  %v2970 = vpop.f32.mrf.mxu0
  %v2971 = vadd.f32 %v2882, %v2970
  %2972 = vdwg.mxu0
  %2973 = vmatpush.bf16.msra.mxu0 %v2358
  %2974 = vmatpush.bf16.msra.mxu0 %v2356
  %2975 = vmatpush.bf16.msra.mxu0 %v2354
  %2976 = vmatpush.bf16.msra.mxu0 %v2352
  %2977 = vmatpush.bf16.msra.mxu0 %v2350
  %2978 = vmatpush.bf16.msra.mxu0 %v2348
  %2979 = vmatpush.bf16.msra.mxu0 %v2346
  %2980 = vmatpush.bf16.msra.mxu0 %v2344
  %2981 = vmatmul.bf16.gmra.mxu0 %v1987
  %v2982 = vpop.f32.mrf.mxu0
  %v2983 = vadd.f32 %v2894, %v2982
  %v2984 = vpop.f32.mrf.mxu0
  %v2985 = vadd.f32 %v2896, %v2984
  %2986 = vmatmul.bf16.gmra.mxu0 %v1991
  %v2987 = vpop.f32.mrf.mxu0
  %v2988 = vadd.f32 %v2899, %v2987
  %v2989 = vpop.f32.mrf.mxu0
  %v2990 = vadd.f32 %v2901, %v2989
  %2991 = vmatmul.bf16.gmra.mxu0 %v1995
  %v2992 = vpop.f32.mrf.mxu0
  %v2993 = vadd.f32 %v2904, %v2992
  %v2994 = vpop.f32.mrf.mxu0
  %v2995 = vadd.f32 %v2906, %v2994
  %2996 = vmatmul.bf16.gmra.mxu0 %v1999
  %v2997 = vpop.f32.mrf.mxu0
  %v2998 = vadd.f32 %v2909, %v2997
  %v2999 = vpop.f32.mrf.mxu0
  %v3000 = vadd.f32 %v2911, %v2999
  %3001 = vmatmul.bf16.gmra.mxu0 %v2003
  %v3002 = vpop.f32.mrf.mxu0
  %v3003 = vadd.f32 %v2914, %v3002
  %v3004 = vpop.f32.mrf.mxu0
  %v3005 = vadd.f32 %v2916, %v3004
  %3006 = vmatmul.bf16.gmra.mxu0 %v2007
  %v3007 = vpop.f32.mrf.mxu0
  %v3008 = vadd.f32 %v2919, %v3007
  %v3009 = vpop.f32.mrf.mxu0
  %v3010 = vadd.f32 %v2921, %v3009
  %3011 = vmatmul.bf16.gmra.mxu0 %v2011
  %v3012 = vpop.f32.mrf.mxu0
  %v3013 = vadd.f32 %v2924, %v3012
  %v3014 = vpop.f32.mrf.mxu0
  %v3015 = vadd.f32 %v2926, %v3014
  %3016 = vmatmul.bf16.gmra.mxu0 %v2015
  %v3017 = vpop.f32.mrf.mxu0
  %v3018 = vadd.f32 %v2929, %v3017
  %v3019 = vpop.f32.mrf.mxu0
  %v3020 = vadd.f32 %v2931, %v3019
  %3021 = vmatmul.bf16.gmra.mxu0 %v2019
  %v3022 = vpop.f32.mrf.mxu0
  %v3023 = vadd.f32 %v2934, %v3022
  %v3024 = vpop.f32.mrf.mxu0
  %v3025 = vadd.f32 %v2936, %v3024
  %3026 = vmatmul.bf16.gmra.mxu0 %v2023
  %v3027 = vpop.f32.mrf.mxu0
  %v3028 = vadd.f32 %v2939, %v3027
  %v3029 = vpop.f32.mrf.mxu0
  %v3030 = vadd.f32 %v2941, %v3029
  %3031 = vmatmul.bf16.gmra.mxu0 %v2027
  %v3032 = vpop.f32.mrf.mxu0
  %v3033 = vadd.f32 %v2944, %v3032
  %v3034 = vpop.f32.mrf.mxu0
  %v3035 = vadd.f32 %v2946, %v3034
  %3036 = vmatmul.bf16.gmra.mxu0 %v2031
  %v3037 = vpop.f32.mrf.mxu0
  %v3038 = vadd.f32 %v2949, %v3037
  %v3039 = vpop.f32.mrf.mxu0
  %v3040 = vadd.f32 %v2951, %v3039
  %3041 = vmatmul.bf16.gmra.mxu0 %v2035
  %v3042 = vpop.f32.mrf.mxu0
  %v3043 = vadd.f32 %v2954, %v3042
  %v3044 = vpop.f32.mrf.mxu0
  %v3045 = vadd.f32 %v2956, %v3044
  %3046 = vmatmul.bf16.gmra.mxu0 %v2039
  %v3047 = vpop.f32.mrf.mxu0
  %v3048 = vadd.f32 %v2959, %v3047
  %v3049 = vpop.f32.mrf.mxu0
  %v3050 = vadd.f32 %v2961, %v3049
  %3051 = vmatmul.bf16.gmra.mxu0 %v2043
  %v3052 = vpop.f32.mrf.mxu0
  %v3053 = vadd.f32 %v2964, %v3052
  %v3054 = vpop.f32.mrf.mxu0
  %v3055 = vadd.f32 %v2966, %v3054
  %3056 = vmatmul.bf16.gmra.mxu0 %v2047
  %v3057 = vpop.f32.mrf.mxu0
  %v3058 = vadd.f32 %v2969, %v3057
  %v3059 = vpop.f32.mrf.mxu0
  %v3060 = vadd.f32 %v2971, %v3059
  %3061 = vdwg.mxu0
  %3062 = vmatpush.bf16.msra.mxu0 %v2374
  %3063 = vmatpush.bf16.msra.mxu0 %v2372
  %3064 = vmatpush.bf16.msra.mxu0 %v2370
  %3065 = vmatpush.bf16.msra.mxu0 %v2368
  %3066 = vmatpush.bf16.msra.mxu0 %v2366
  %3067 = vmatpush.bf16.msra.mxu0 %v2364
  %3068 = vmatpush.bf16.msra.mxu0 %v2362
  %3069 = vmatpush.bf16.msra.mxu0 %v2360
  %3070 = vmatmul.bf16.gmra.mxu0 %v1988
  %v3071 = vpop.f32.mrf.mxu0
  %v3072 = vadd.f32 %v2983, %v3071
  %v3073 = vpop.f32.mrf.mxu0
  %v3074 = vadd.f32 %v2985, %v3073
  %3075 = vmatmul.bf16.gmra.mxu0 %v1992
  %v3076 = vpop.f32.mrf.mxu0
  %v3077 = vadd.f32 %v2988, %v3076
  %v3078 = vpop.f32.mrf.mxu0
  %v3079 = vadd.f32 %v2990, %v3078
  %3080 = vmatmul.bf16.gmra.mxu0 %v1996
  %v3081 = vpop.f32.mrf.mxu0
  %v3082 = vadd.f32 %v2993, %v3081
  %v3083 = vpop.f32.mrf.mxu0
  %v3084 = vadd.f32 %v2995, %v3083
  %3085 = vmatmul.bf16.gmra.mxu0 %v2000
  %v3086 = vpop.f32.mrf.mxu0
  %v3087 = vadd.f32 %v2998, %v3086
  %v3088 = vpop.f32.mrf.mxu0
  %v3089 = vadd.f32 %v3000, %v3088
  %3090 = vmatmul.bf16.gmra.mxu0 %v2004
  %v3091 = vpop.f32.mrf.mxu0
  %v3092 = vadd.f32 %v3003, %v3091
  %v3093 = vpop.f32.mrf.mxu0
  %v3094 = vadd.f32 %v3005, %v3093
  %3095 = vmatmul.bf16.gmra.mxu0 %v2008
  %v3096 = vpop.f32.mrf.mxu0
  %v3097 = vadd.f32 %v3008, %v3096
  %v3098 = vpop.f32.mrf.mxu0
  %v3099 = vadd.f32 %v3010, %v3098
  %3100 = vmatmul.bf16.gmra.mxu0 %v2012
  %v3101 = vpop.f32.mrf.mxu0
  %v3102 = vadd.f32 %v3013, %v3101
  %v3103 = vpop.f32.mrf.mxu0
  %v3104 = vadd.f32 %v3015, %v3103
  %3105 = vmatmul.bf16.gmra.mxu0 %v2016
  %v3106 = vpop.f32.mrf.mxu0
  %v3107 = vadd.f32 %v3018, %v3106
  %v3108 = vpop.f32.mrf.mxu0
  %v3109 = vadd.f32 %v3020, %v3108
  %3110 = vmatmul.bf16.gmra.mxu0 %v2020
  %v3111 = vpop.f32.mrf.mxu0
  %v3112 = vadd.f32 %v3023, %v3111
  %v3113 = vpop.f32.mrf.mxu0
  %v3114 = vadd.f32 %v3025, %v3113
  %3115 = vmatmul.bf16.gmra.mxu0 %v2024
  %v3116 = vpop.f32.mrf.mxu0
  %v3117 = vadd.f32 %v3028, %v3116
  %v3118 = vpop.f32.mrf.mxu0
  %v3119 = vadd.f32 %v3030, %v3118
  %3120 = vmatmul.bf16.gmra.mxu0 %v2028
  %v3121 = vpop.f32.mrf.mxu0
  %v3122 = vadd.f32 %v3033, %v3121
  %v3123 = vpop.f32.mrf.mxu0
  %v3124 = vadd.f32 %v3035, %v3123
  %3125 = vmatmul.bf16.gmra.mxu0 %v2032
  %v3126 = vpop.f32.mrf.mxu0
  %v3127 = vadd.f32 %v3038, %v3126
  %v3128 = vpop.f32.mrf.mxu0
  %v3129 = vadd.f32 %v3040, %v3128
  %3130 = vmatmul.bf16.gmra.mxu0 %v2036
  %v3131 = vpop.f32.mrf.mxu0
  %v3132 = vadd.f32 %v3043, %v3131
  %v3133 = vpop.f32.mrf.mxu0
  %v3134 = vadd.f32 %v3045, %v3133
  %3135 = vmatmul.bf16.gmra.mxu0 %v2040
  %v3136 = vpop.f32.mrf.mxu0
  %v3137 = vadd.f32 %v3048, %v3136
  %v3138 = vpop.f32.mrf.mxu0
  %v3139 = vadd.f32 %v3050, %v3138
  %3140 = vmatmul.bf16.gmra.mxu0 %v2044
  %v3141 = vpop.f32.mrf.mxu0
  %v3142 = vadd.f32 %v3053, %v3141
  %v3143 = vpop.f32.mrf.mxu0
  %v3144 = vadd.f32 %v3055, %v3143
  %3145 = vmatmul.bf16.gmra.mxu0 %v2048
  %v3146 = vpop.f32.mrf.mxu0
  %v3147 = vadd.f32 %v3058, %v3146
  %v3148 = vpop.f32.mrf.mxu0
  %v3149 = vadd.f32 %v3060, %v3148
  %3150 = vdwg.mxu0
  %v3151 = vadd.f32 %v2716, %v2718
  %v3152 = vadd.f32 %v3151, %v2721
  %v3153 = vadd.f32 %v3152, %v2723
  %v3154 = vadd.f32 %v3153, %v2726
  %v3155 = vadd.f32 %v3154, %v2728
  %v3156 = vadd.f32 %v3155, %v2731
  %v3157 = vadd.f32 %v3156, %v2733
  %v3158 = vadd.f32 %v3157, %v2736
  %v3159 = vadd.f32 %v3158, %v2738
  %v3160 = vadd.f32 %v3159, %v2741
  %v3161 = vadd.f32 %v3160, %v2743
  %v3162 = vadd.f32 %v3161, %v2746
  %v3163 = vadd.f32 %v3162, %v2748
  %v3164 = vadd.f32 %v3163, %v2751
  %v3165 = vadd.f32 %v3164, %v2753
  %v3166 = vadd.f32 %v3165, %v2756
  %v3167 = vadd.f32 %v3166, %v2758
  %v3168 = vadd.f32 %v3167, %v2761
  %v3169 = vadd.f32 %v3168, %v2763
  %v3170 = vadd.f32 %v3169, %v2766
  %v3171 = vadd.f32 %v3170, %v2768
  %v3172 = vadd.f32 %v3171, %v2771
  %v3173 = vadd.f32 %v3172, %v2773
  %v3174 = vadd.f32 %v3173, %v2776
  %v3175 = vadd.f32 %v3174, %v2778
  %v3176 = vadd.f32 %v3175, %v2781
  %v3177 = vadd.f32 %v3176, %v2783
  %v3178 = vadd.f32 %v3177, %v2786
  %v3179 = vadd.f32 %v3178, %v2788
  %v3180 = vadd.f32 %v3179, %v2791
  %v3181 = vadd.f32 %v3180, %v2793
  %v3182 = vrot.slane %v3181, 4
  %v3183 = vadd.f32 %v3181, %v3182
  %v3184 = vrot.slane %v3183, 2
  %v3185 = vadd.f32 %v3183, %v3184
  %v3186 = vrot.slane %v3185, 1
  %v3187 = vadd.f32 %v3185, %v3186
  %v3188 = vadd.f32 %v3072, %v3074
  %v3189 = vadd.f32 %v3188, %v3077
  %v3190 = vadd.f32 %v3189, %v3079
  %v3191 = vadd.f32 %v3190, %v3082
  %v3192 = vadd.f32 %v3191, %v3084
  %v3193 = vadd.f32 %v3192, %v3087
  %v3194 = vadd.f32 %v3193, %v3089
  %v3195 = vadd.f32 %v3194, %v3092
  %v3196 = vadd.f32 %v3195, %v3094
  %v3197 = vadd.f32 %v3196, %v3097
  %v3198 = vadd.f32 %v3197, %v3099
  %v3199 = vadd.f32 %v3198, %v3102
  %v3200 = vadd.f32 %v3199, %v3104
  %v3201 = vadd.f32 %v3200, %v3107
  %v3202 = vadd.f32 %v3201, %v3109
  %v3203 = vadd.f32 %v3202, %v3112
  %v3204 = vadd.f32 %v3203, %v3114
  %v3205 = vadd.f32 %v3204, %v3117
  %v3206 = vadd.f32 %v3205, %v3119
  %v3207 = vadd.f32 %v3206, %v3122
  %v3208 = vadd.f32 %v3207, %v3124
  %v3209 = vadd.f32 %v3208, %v3127
  %v3210 = vadd.f32 %v3209, %v3129
  %v3211 = vadd.f32 %v3210, %v3132
  %v3212 = vadd.f32 %v3211, %v3134
  %v3213 = vadd.f32 %v3212, %v3137
  %v3214 = vadd.f32 %v3213, %v3139
  %v3215 = vadd.f32 %v3214, %v3142
  %v3216 = vadd.f32 %v3215, %v3144
  %v3217 = vadd.f32 %v3216, %v3147
  %v3218 = vadd.f32 %v3217, %v3149
  %v3219 = vrot.slane %v3218, 4
  %v3220 = vadd.f32 %v3218, %v3219
  %v3221 = vrot.slane %v3220, 2
  %v3222 = vadd.f32 %v3220, %v3221
  %v3223 = vrot.slane %v3222, 1
  %v3224 = vadd.f32 %v3222, %v3223
  %v3225 = vmul.f32 %v3187, %v856
  %v3226 = vmul.f32 %v3224, %v856
  %v3227 = vmul.f32 %v2716, %v2716
  %v3228 = vmul.f32 %v3072, %v3072
  %v3229 = vmul.f32 %v2718, %v2718
  %v3230 = vmul.f32 %v3074, %v3074
  %v3231 = vmul.f32 %v2721, %v2721
  %v3232 = vmul.f32 %v3077, %v3077
  %v3233 = vmul.f32 %v2723, %v2723
  %v3234 = vmul.f32 %v3079, %v3079
  %v3235 = vmul.f32 %v2726, %v2726
  %v3236 = vmul.f32 %v3082, %v3082
  %v3237 = vmul.f32 %v2728, %v2728
  %v3238 = vmul.f32 %v3084, %v3084
  %v3239 = vmul.f32 %v2731, %v2731
  %v3240 = vmul.f32 %v3087, %v3087
  %v3241 = vmul.f32 %v2733, %v2733
  %v3242 = vmul.f32 %v3089, %v3089
  %v3243 = vmul.f32 %v2736, %v2736
  %v3244 = vmul.f32 %v3092, %v3092
  %v3245 = vmul.f32 %v2738, %v2738
  %v3246 = vmul.f32 %v3094, %v3094
  %v3247 = vmul.f32 %v2741, %v2741
  %v3248 = vmul.f32 %v3097, %v3097
  %v3249 = vmul.f32 %v2743, %v2743
  %v3250 = vmul.f32 %v3099, %v3099
  %v3251 = vmul.f32 %v2746, %v2746
  %v3252 = vmul.f32 %v3102, %v3102
  %v3253 = vmul.f32 %v2748, %v2748
  %v3254 = vmul.f32 %v3104, %v3104
  %v3255 = vmul.f32 %v2751, %v2751
  %v3256 = vmul.f32 %v3107, %v3107
  %v3257 = vmul.f32 %v2753, %v2753
  %v3258 = vmul.f32 %v3109, %v3109
  %v3259 = vmul.f32 %v2756, %v2756
  %v3260 = vmul.f32 %v3112, %v3112
  %v3261 = vmul.f32 %v2758, %v2758
  %v3262 = vmul.f32 %v3114, %v3114
  %v3263 = vmul.f32 %v2761, %v2761
  %v3264 = vmul.f32 %v3117, %v3117
  %v3265 = vmul.f32 %v2763, %v2763
  %v3266 = vmul.f32 %v3119, %v3119
  %v3267 = vmul.f32 %v2766, %v2766
  %v3268 = vmul.f32 %v3122, %v3122
  %v3269 = vmul.f32 %v2768, %v2768
  %v3270 = vmul.f32 %v3124, %v3124
  %v3271 = vmul.f32 %v2771, %v2771
  %v3272 = vmul.f32 %v3127, %v3127
  %v3273 = vmul.f32 %v2773, %v2773
  %v3274 = vmul.f32 %v3129, %v3129
  %v3275 = vmul.f32 %v2776, %v2776
  %v3276 = vmul.f32 %v3132, %v3132
  %v3277 = vmul.f32 %v2778, %v2778
  %v3278 = vmul.f32 %v3134, %v3134
  %v3279 = vmul.f32 %v2781, %v2781
  %v3280 = vmul.f32 %v3137, %v3137
  %v3281 = vmul.f32 %v2783, %v2783
  %v3282 = vmul.f32 %v3139, %v3139
  %v3283 = vmul.f32 %v2786, %v2786
  %v3284 = vmul.f32 %v3142, %v3142
  %v3285 = vmul.f32 %v2788, %v2788
  %v3286 = vmul.f32 %v3144, %v3144
  %v3287 = vmul.f32 %v2791, %v2791
  %v3288 = vmul.f32 %v3147, %v3147
  %v3289 = vmul.f32 %v2793, %v2793
  %v3290 = vmul.f32 %v3149, %v3149
  %v3291 = vadd.f32 %v3227, %v3229
  %v3292 = vadd.f32 %v3291, %v3231
  %v3293 = vadd.f32 %v3292, %v3233
  %v3294 = vadd.f32 %v3293, %v3235
  %v3295 = vadd.f32 %v3294, %v3237
  %v3296 = vadd.f32 %v3295, %v3239
  %v3297 = vadd.f32 %v3296, %v3241
  %v3298 = vadd.f32 %v3297, %v3243
  %v3299 = vadd.f32 %v3298, %v3245
  %v3300 = vadd.f32 %v3299, %v3247
  %v3301 = vadd.f32 %v3300, %v3249
  %v3302 = vadd.f32 %v3301, %v3251
  %v3303 = vadd.f32 %v3302, %v3253
  %v3304 = vadd.f32 %v3303, %v3255
  %v3305 = vadd.f32 %v3304, %v3257
  %v3306 = vadd.f32 %v3305, %v3259
  %v3307 = vadd.f32 %v3306, %v3261
  %v3308 = vadd.f32 %v3307, %v3263
  %v3309 = vadd.f32 %v3308, %v3265
  %v3310 = vadd.f32 %v3309, %v3267
  %v3311 = vadd.f32 %v3310, %v3269
  %v3312 = vadd.f32 %v3311, %v3271
  %v3313 = vadd.f32 %v3312, %v3273
  %v3314 = vadd.f32 %v3313, %v3275
  %v3315 = vadd.f32 %v3314, %v3277
  %v3316 = vadd.f32 %v3315, %v3279
  %v3317 = vadd.f32 %v3316, %v3281
  %v3318 = vadd.f32 %v3317, %v3283
  %v3319 = vadd.f32 %v3318, %v3285
  %v3320 = vadd.f32 %v3319, %v3287
  %v3321 = vadd.f32 %v3320, %v3289
  %v3322 = vrot.slane %v3321, 4
  %v3323 = vadd.f32 %v3321, %v3322
  %v3324 = vrot.slane %v3323, 2
  %v3325 = vadd.f32 %v3323, %v3324
  %v3326 = vrot.slane %v3325, 1
  %v3327 = vadd.f32 %v3325, %v3326
  %v3328 = vadd.f32 %v3228, %v3230
  %v3329 = vadd.f32 %v3328, %v3232
  %v3330 = vadd.f32 %v3329, %v3234
  %v3331 = vadd.f32 %v3330, %v3236
  %v3332 = vadd.f32 %v3331, %v3238
  %v3333 = vadd.f32 %v3332, %v3240
  %v3334 = vadd.f32 %v3333, %v3242
  %v3335 = vadd.f32 %v3334, %v3244
  %v3336 = vadd.f32 %v3335, %v3246
  %v3337 = vadd.f32 %v3336, %v3248
  %v3338 = vadd.f32 %v3337, %v3250
  %v3339 = vadd.f32 %v3338, %v3252
  %v3340 = vadd.f32 %v3339, %v3254
  %v3341 = vadd.f32 %v3340, %v3256
  %v3342 = vadd.f32 %v3341, %v3258
  %v3343 = vadd.f32 %v3342, %v3260
  %v3344 = vadd.f32 %v3343, %v3262
  %v3345 = vadd.f32 %v3344, %v3264
  %v3346 = vadd.f32 %v3345, %v3266
  %v3347 = vadd.f32 %v3346, %v3268
  %v3348 = vadd.f32 %v3347, %v3270
  %v3349 = vadd.f32 %v3348, %v3272
  %v3350 = vadd.f32 %v3349, %v3274
  %v3351 = vadd.f32 %v3350, %v3276
  %v3352 = vadd.f32 %v3351, %v3278
  %v3353 = vadd.f32 %v3352, %v3280
  %v3354 = vadd.f32 %v3353, %v3282
  %v3355 = vadd.f32 %v3354, %v3284
  %v3356 = vadd.f32 %v3355, %v3286
  %v3357 = vadd.f32 %v3356, %v3288
  %v3358 = vadd.f32 %v3357, %v3290
  %v3359 = vrot.slane %v3358, 4
  %v3360 = vadd.f32 %v3358, %v3359
  %v3361 = vrot.slane %v3360, 2
  %v3362 = vadd.f32 %v3360, %v3361
  %v3363 = vrot.slane %v3362, 1
  %v3364 = vadd.f32 %v3362, %v3363
  %v3365 = vmul.f32 %v3327, %v856
  %v3366 = vmul.f32 %v3364, %v856
  %v3367 = vmul.f32 %v3225, %v3225
  %v3368 = vmul.f32 %v3226, %v3226
  %v3369 = vsub.f32 %v3365, %v3367
  %v3370 = vsub.f32 %v3366, %v3368
  %v3371 = vmax.f32 %v3369, 0.0
  %v3372 = vmax.f32 %v3370, 0.0
  %v3373 = vsub.f32 %v2716, %v3225
  %v3374 = vsub.f32 %v3072, %v3226
  %v3375 = vsub.f32 %v2718, %v3225
  %v3376 = vsub.f32 %v3074, %v3226
  %v3377 = vsub.f32 %v2721, %v3225
  %v3378 = vsub.f32 %v3077, %v3226
  %v3379 = vsub.f32 %v2723, %v3225
  %v3380 = vsub.f32 %v3079, %v3226
  %v3381 = vsub.f32 %v2726, %v3225
  %v3382 = vsub.f32 %v3082, %v3226
  %v3383 = vsub.f32 %v2728, %v3225
  %v3384 = vsub.f32 %v3084, %v3226
  %v3385 = vsub.f32 %v2731, %v3225
  %v3386 = vsub.f32 %v3087, %v3226
  %v3387 = vsub.f32 %v2733, %v3225
  %v3388 = vsub.f32 %v3089, %v3226
  %v3389 = vsub.f32 %v2736, %v3225
  %v3390 = vsub.f32 %v3092, %v3226
  %v3391 = vsub.f32 %v2738, %v3225
  %v3392 = vsub.f32 %v3094, %v3226
  %v3393 = vsub.f32 %v2741, %v3225
  %v3394 = vsub.f32 %v3097, %v3226
  %v3395 = vsub.f32 %v2743, %v3225
  %v3396 = vsub.f32 %v3099, %v3226
  %v3397 = vsub.f32 %v2746, %v3225
  %v3398 = vsub.f32 %v3102, %v3226
  %v3399 = vsub.f32 %v2748, %v3225
  %v3400 = vsub.f32 %v3104, %v3226
  %v3401 = vsub.f32 %v2751, %v3225
  %v3402 = vsub.f32 %v3107, %v3226
  %v3403 = vsub.f32 %v2753, %v3225
  %v3404 = vsub.f32 %v3109, %v3226
  %v3405 = vsub.f32 %v2756, %v3225
  %v3406 = vsub.f32 %v3112, %v3226
  %v3407 = vsub.f32 %v2758, %v3225
  %v3408 = vsub.f32 %v3114, %v3226
  %v3409 = vsub.f32 %v2761, %v3225
  %v3410 = vsub.f32 %v3117, %v3226
  %v3411 = vsub.f32 %v2763, %v3225
  %v3412 = vsub.f32 %v3119, %v3226
  %v3413 = vsub.f32 %v2766, %v3225
  %v3414 = vsub.f32 %v3122, %v3226
  %v3415 = vsub.f32 %v2768, %v3225
  %v3416 = vsub.f32 %v3124, %v3226
  %v3417 = vsub.f32 %v2771, %v3225
  %v3418 = vsub.f32 %v3127, %v3226
  %v3419 = vsub.f32 %v2773, %v3225
  %v3420 = vsub.f32 %v3129, %v3226
  %v3421 = vsub.f32 %v2776, %v3225
  %v3422 = vsub.f32 %v3132, %v3226
  %v3423 = vsub.f32 %v2778, %v3225
  %v3424 = vsub.f32 %v3134, %v3226
  %v3425 = vsub.f32 %v2781, %v3225
  %v3426 = vsub.f32 %v3137, %v3226
  %v3427 = vsub.f32 %v2783, %v3225
  %v3428 = vsub.f32 %v3139, %v3226
  %v3429 = vsub.f32 %v2786, %v3225
  %v3430 = vsub.f32 %v3142, %v3226
  %v3431 = vsub.f32 %v2788, %v3225
  %v3432 = vsub.f32 %v3144, %v3226
  %v3433 = vsub.f32 %v2791, %v3225
  %v3434 = vsub.f32 %v3147, %v3226
  %v3435 = vsub.f32 %v2793, %v3225
  %v3436 = vsub.f32 %v3149, %v3226
  %v3437 = vadd.f32 %v3371, 1e-05
  %v3438 = vadd.f32 %v3372, 1e-05
  %v3439 = vrsqrt.pop %v3437
  %v3440 = vmul.f32 %v3439, %v3437
  %v3441 = vmul.f32 %v3440, %v3439
  %v3442 = vmul.f32 0.5, %v3441
  %v3443 = vsub.f32 1.5, %v3442
  %v3444 = vmul.f32 %v3439, %v3443
  %vm3445 = vweird.f32 %v3437
  %vm3446 = vweird.f32 %v3439
  %vm3447 = vmor %vm3445, %vm3446
  %v3448 = vsel %vm3447, %v3439, %v3444
  %v3449 = vrsqrt.pop %v3438
  %v3450 = vmul.f32 %v3449, %v3438
  %v3451 = vmul.f32 %v3450, %v3449
  %v3452 = vmul.f32 0.5, %v3451
  %v3453 = vsub.f32 1.5, %v3452
  %v3454 = vmul.f32 %v3449, %v3453
  %vm3455 = vweird.f32 %v3438
  %vm3456 = vweird.f32 %v3449
  %vm3457 = vmor %vm3455, %vm3456
  %v3458 = vsel %vm3457, %v3449, %v3454
  %v3459 = vmul.f32 %v3373, %v3448
  %v3460 = vmul.f32 %v3374, %v3458
  %v3461 = vmul.f32 %v3375, %v3448
  %v3462 = vmul.f32 %v3376, %v3458
  %v3463 = vmul.f32 %v3377, %v3448
  %v3464 = vmul.f32 %v3378, %v3458
  %v3465 = vmul.f32 %v3379, %v3448
  %v3466 = vmul.f32 %v3380, %v3458
  %v3467 = vmul.f32 %v3381, %v3448
  %v3468 = vmul.f32 %v3382, %v3458
  %v3469 = vmul.f32 %v3383, %v3448
  %v3470 = vmul.f32 %v3384, %v3458
  %v3471 = vmul.f32 %v3385, %v3448
  %v3472 = vmul.f32 %v3386, %v3458
  %v3473 = vmul.f32 %v3387, %v3448
  %v3474 = vmul.f32 %v3388, %v3458
  %v3475 = vmul.f32 %v3389, %v3448
  %v3476 = vmul.f32 %v3390, %v3458
  %v3477 = vmul.f32 %v3391, %v3448
  %v3478 = vmul.f32 %v3392, %v3458
  %v3479 = vmul.f32 %v3393, %v3448
  %v3480 = vmul.f32 %v3394, %v3458
  %v3481 = vmul.f32 %v3395, %v3448
  %v3482 = vmul.f32 %v3396, %v3458
  %v3483 = vmul.f32 %v3397, %v3448
  %v3484 = vmul.f32 %v3398, %v3458
  %v3485 = vmul.f32 %v3399, %v3448
  %v3486 = vmul.f32 %v3400, %v3458
  %v3487 = vmul.f32 %v3401, %v3448
  %v3488 = vmul.f32 %v3402, %v3458
  %v3489 = vmul.f32 %v3403, %v3448
  %v3490 = vmul.f32 %v3404, %v3458
  %v3491 = vmul.f32 %v3405, %v3448
  %v3492 = vmul.f32 %v3406, %v3458
  %v3493 = vmul.f32 %v3407, %v3448
  %v3494 = vmul.f32 %v3408, %v3458
  %v3495 = vmul.f32 %v3409, %v3448
  %v3496 = vmul.f32 %v3410, %v3458
  %v3497 = vmul.f32 %v3411, %v3448
  %v3498 = vmul.f32 %v3412, %v3458
  %v3499 = vmul.f32 %v3413, %v3448
  %v3500 = vmul.f32 %v3414, %v3458
  %v3501 = vmul.f32 %v3415, %v3448
  %v3502 = vmul.f32 %v3416, %v3458
  %v3503 = vmul.f32 %v3417, %v3448
  %v3504 = vmul.f32 %v3418, %v3458
  %v3505 = vmul.f32 %v3419, %v3448
  %v3506 = vmul.f32 %v3420, %v3458
  %v3507 = vmul.f32 %v3421, %v3448
  %v3508 = vmul.f32 %v3422, %v3458
  %v3509 = vmul.f32 %v3423, %v3448
  %v3510 = vmul.f32 %v3424, %v3458
  %v3511 = vmul.f32 %v3425, %v3448
  %v3512 = vmul.f32 %v3426, %v3458
  %v3513 = vmul.f32 %v3427, %v3448
  %v3514 = vmul.f32 %v3428, %v3458
  %v3515 = vmul.f32 %v3429, %v3448
  %v3516 = vmul.f32 %v3430, %v3458
  %v3517 = vmul.f32 %v3431, %v3448
  %v3518 = vmul.f32 %v3432, %v3458
  %v3519 = vmul.f32 %v3433, %v3448
  %v3520 = vmul.f32 %v3434, %v3458
  %v3521 = vmul.f32 %v3435, %v3448
  %v3522 = vmul.f32 %v3436, %v3458
  %v3523 = vld [vmem:[%s2 + $0xe] sm:$0x3]
  %v3525 = vperm.slane %v3523, 0
  %v3526 = vperm.slane %v3523, 1
  %v3529 = vmul.f32 %v3459, %v3525
  %v3530 = vmul.f32 %v3460, %v3526
  %v3531 = vmul.f32 %v3461, %v3525
  %v3532 = vmul.f32 %v3462, %v3526
  %v3533 = vmul.f32 %v3463, %v3525
  %v3534 = vmul.f32 %v3464, %v3526
  %v3535 = vmul.f32 %v3465, %v3525
  %v3536 = vmul.f32 %v3466, %v3526
  %v3537 = vmul.f32 %v3467, %v3525
  %v3538 = vmul.f32 %v3468, %v3526
  %v3539 = vmul.f32 %v3469, %v3525
  %v3540 = vmul.f32 %v3470, %v3526
  %v3541 = vmul.f32 %v3471, %v3525
  %v3542 = vmul.f32 %v3472, %v3526
  %v3543 = vmul.f32 %v3473, %v3525
  %v3544 = vmul.f32 %v3474, %v3526
  %v3545 = vmul.f32 %v3475, %v3525
  %v3546 = vmul.f32 %v3476, %v3526
  %v3547 = vmul.f32 %v3477, %v3525
  %v3548 = vmul.f32 %v3478, %v3526
  %v3549 = vmul.f32 %v3479, %v3525
  %v3550 = vmul.f32 %v3480, %v3526
  %v3551 = vmul.f32 %v3481, %v3525
  %v3552 = vmul.f32 %v3482, %v3526
  %v3553 = vmul.f32 %v3483, %v3525
  %v3554 = vmul.f32 %v3484, %v3526
  %v3555 = vmul.f32 %v3485, %v3525
  %v3556 = vmul.f32 %v3486, %v3526
  %v3557 = vmul.f32 %v3487, %v3525
  %v3558 = vmul.f32 %v3488, %v3526
  %v3559 = vmul.f32 %v3489, %v3525
  %v3560 = vmul.f32 %v3490, %v3526
  %v3561 = vmul.f32 %v3491, %v3525
  %v3562 = vmul.f32 %v3492, %v3526
  %v3563 = vmul.f32 %v3493, %v3525
  %v3564 = vmul.f32 %v3494, %v3526
  %v3565 = vmul.f32 %v3495, %v3525
  %v3566 = vmul.f32 %v3496, %v3526
  %v3567 = vmul.f32 %v3497, %v3525
  %v3568 = vmul.f32 %v3498, %v3526
  %v3569 = vmul.f32 %v3499, %v3525
  %v3570 = vmul.f32 %v3500, %v3526
  %v3571 = vmul.f32 %v3501, %v3525
  %v3572 = vmul.f32 %v3502, %v3526
  %v3573 = vmul.f32 %v3503, %v3525
  %v3574 = vmul.f32 %v3504, %v3526
  %v3575 = vmul.f32 %v3505, %v3525
  %v3576 = vmul.f32 %v3506, %v3526
  %v3577 = vmul.f32 %v3507, %v3525
  %v3578 = vmul.f32 %v3508, %v3526
  %v3579 = vmul.f32 %v3509, %v3525
  %v3580 = vmul.f32 %v3510, %v3526
  %v3581 = vmul.f32 %v3511, %v3525
  %v3582 = vmul.f32 %v3512, %v3526
  %v3583 = vmul.f32 %v3513, %v3525
  %v3584 = vmul.f32 %v3514, %v3526
  %v3585 = vmul.f32 %v3515, %v3525
  %v3586 = vmul.f32 %v3516, %v3526
  %v3587 = vmul.f32 %v3517, %v3525
  %v3588 = vmul.f32 %v3518, %v3526
  %v3589 = vmul.f32 %v3519, %v3525
  %v3590 = vmul.f32 %v3520, %v3526
  %v3591 = vmul.f32 %v3521, %v3525
  %v3592 = vmul.f32 %v3522, %v3526
  %v3593 = vld [vmem:[%s2 + $0x10] sm:$0x3]
  %v3595 = vperm.slane %v3593, 0
  %v3596 = vperm.slane %v3593, 1
  %v3599 = vadd.f32 %v3529, %v3595
  %v3600 = vadd.f32 %v3530, %v3596
  %v3601 = vadd.f32 %v3531, %v3595
  %v3602 = vadd.f32 %v3532, %v3596
  %v3603 = vadd.f32 %v3533, %v3595
  %v3604 = vadd.f32 %v3534, %v3596
  %v3605 = vadd.f32 %v3535, %v3595
  %v3606 = vadd.f32 %v3536, %v3596
  %v3607 = vadd.f32 %v3537, %v3595
  %v3608 = vadd.f32 %v3538, %v3596
  %v3609 = vadd.f32 %v3539, %v3595
  %v3610 = vadd.f32 %v3540, %v3596
  %v3611 = vadd.f32 %v3541, %v3595
  %v3612 = vadd.f32 %v3542, %v3596
  %v3613 = vadd.f32 %v3543, %v3595
  %v3614 = vadd.f32 %v3544, %v3596
  %v3615 = vadd.f32 %v3545, %v3595
  %v3616 = vadd.f32 %v3546, %v3596
  %v3617 = vadd.f32 %v3547, %v3595
  %v3618 = vadd.f32 %v3548, %v3596
  %v3619 = vadd.f32 %v3549, %v3595
  %v3620 = vadd.f32 %v3550, %v3596
  %v3621 = vadd.f32 %v3551, %v3595
  %v3622 = vadd.f32 %v3552, %v3596
  %v3623 = vadd.f32 %v3553, %v3595
  %v3624 = vadd.f32 %v3554, %v3596
  %v3625 = vadd.f32 %v3555, %v3595
  %v3626 = vadd.f32 %v3556, %v3596
  %v3627 = vadd.f32 %v3557, %v3595
  %v3628 = vadd.f32 %v3558, %v3596
  %v3629 = vadd.f32 %v3559, %v3595
  %v3630 = vadd.f32 %v3560, %v3596
  %v3631 = vadd.f32 %v3561, %v3595
  %v3632 = vadd.f32 %v3562, %v3596
  %v3633 = vadd.f32 %v3563, %v3595
  %v3634 = vadd.f32 %v3564, %v3596
  %v3635 = vadd.f32 %v3565, %v3595
  %v3636 = vadd.f32 %v3566, %v3596
  %v3637 = vadd.f32 %v3567, %v3595
  %v3638 = vadd.f32 %v3568, %v3596
  %v3639 = vadd.f32 %v3569, %v3595
  %v3640 = vadd.f32 %v3570, %v3596
  %v3641 = vadd.f32 %v3571, %v3595
  %v3642 = vadd.f32 %v3572, %v3596
  %v3643 = vadd.f32 %v3573, %v3595
  %v3644 = vadd.f32 %v3574, %v3596
  %v3645 = vadd.f32 %v3575, %v3595
  %v3646 = vadd.f32 %v3576, %v3596
  %v3647 = vadd.f32 %v3577, %v3595
  %v3648 = vadd.f32 %v3578, %v3596
  %v3649 = vadd.f32 %v3579, %v3595
  %v3650 = vadd.f32 %v3580, %v3596
  %v3651 = vadd.f32 %v3581, %v3595
  %v3652 = vadd.f32 %v3582, %v3596
  %v3653 = vadd.f32 %v3583, %v3595
  %v3654 = vadd.f32 %v3584, %v3596
  %v3655 = vadd.f32 %v3585, %v3595
  %v3656 = vadd.f32 %v3586, %v3596
  %v3657 = vadd.f32 %v3587, %v3595
  %v3658 = vadd.f32 %v3588, %v3596
  %v3659 = vadd.f32 %v3589, %v3595
  %v3660 = vadd.f32 %v3590, %v3596
  %v3661 = vadd.f32 %v3591, %v3595
  %v3662 = vadd.f32 %v3592, %v3596
  %v3663 = vmul.f32 %v3599, 0.01
  %v3664 = vmul.f32 %v3600, 0.01
  %v3665 = vmul.f32 %v3601, 0.01
  %v3666 = vmul.f32 %v3602, 0.01
  %v3667 = vmul.f32 %v3603, 0.01
  %v3668 = vmul.f32 %v3604, 0.01
  %v3669 = vmul.f32 %v3605, 0.01
  %v3670 = vmul.f32 %v3606, 0.01
  %v3671 = vmul.f32 %v3607, 0.01
  %v3672 = vmul.f32 %v3608, 0.01
  %v3673 = vmul.f32 %v3609, 0.01
  %v3674 = vmul.f32 %v3610, 0.01
  %v3675 = vmul.f32 %v3611, 0.01
  %v3676 = vmul.f32 %v3612, 0.01
  %v3677 = vmul.f32 %v3613, 0.01
  %v3678 = vmul.f32 %v3614, 0.01
  %v3679 = vmul.f32 %v3615, 0.01
  %v3680 = vmul.f32 %v3616, 0.01
  %v3681 = vmul.f32 %v3617, 0.01
  %v3682 = vmul.f32 %v3618, 0.01
  %v3683 = vmul.f32 %v3619, 0.01
  %v3684 = vmul.f32 %v3620, 0.01
  %v3685 = vmul.f32 %v3621, 0.01
  %v3686 = vmul.f32 %v3622, 0.01
  %v3687 = vmul.f32 %v3623, 0.01
  %v3688 = vmul.f32 %v3624, 0.01
  %v3689 = vmul.f32 %v3625, 0.01
  %v3690 = vmul.f32 %v3626, 0.01
  %v3691 = vmul.f32 %v3627, 0.01
  %v3692 = vmul.f32 %v3628, 0.01
  %v3693 = vmul.f32 %v3629, 0.01
  %v3694 = vmul.f32 %v3630, 0.01
  %v3695 = vmul.f32 %v3631, 0.01
  %v3696 = vmul.f32 %v3632, 0.01
  %v3697 = vmul.f32 %v3633, 0.01
  %v3698 = vmul.f32 %v3634, 0.01
  %v3699 = vmul.f32 %v3635, 0.01
  %v3700 = vmul.f32 %v3636, 0.01
  %v3701 = vmul.f32 %v3637, 0.01
  %v3702 = vmul.f32 %v3638, 0.01
  %v3703 = vmul.f32 %v3639, 0.01
  %v3704 = vmul.f32 %v3640, 0.01
  %v3705 = vmul.f32 %v3641, 0.01
  %v3706 = vmul.f32 %v3642, 0.01
  %v3707 = vmul.f32 %v3643, 0.01
  %v3708 = vmul.f32 %v3644, 0.01
  %v3709 = vmul.f32 %v3645, 0.01
  %v3710 = vmul.f32 %v3646, 0.01
  %v3711 = vmul.f32 %v3647, 0.01
  %v3712 = vmul.f32 %v3648, 0.01
  %v3713 = vmul.f32 %v3649, 0.01
  %v3714 = vmul.f32 %v3650, 0.01
  %v3715 = vmul.f32 %v3651, 0.01
  %v3716 = vmul.f32 %v3652, 0.01
  %v3717 = vmul.f32 %v3653, 0.01
  %v3718 = vmul.f32 %v3654, 0.01
  %v3719 = vmul.f32 %v3655, 0.01
  %v3720 = vmul.f32 %v3656, 0.01
  %v3721 = vmul.f32 %v3657, 0.01
  %v3722 = vmul.f32 %v3658, 0.01
  %v3723 = vmul.f32 %v3659, 0.01
  %v3724 = vmul.f32 %v3660, 0.01
  %v3725 = vmul.f32 %v3661, 0.01
  %v3726 = vmul.f32 %v3662, 0.01
  %v3727 = vmax.f32 %v3599, %v3663
  %v3728 = vmax.f32 %v3600, %v3664
  %v3729 = vmax.f32 %v3601, %v3665
  %v3730 = vmax.f32 %v3602, %v3666
  %v3731 = vmax.f32 %v3603, %v3667
  %v3732 = vmax.f32 %v3604, %v3668
  %v3733 = vmax.f32 %v3605, %v3669
  %v3734 = vmax.f32 %v3606, %v3670
  %v3735 = vmax.f32 %v3607, %v3671
  %v3736 = vmax.f32 %v3608, %v3672
  %v3737 = vmax.f32 %v3609, %v3673
  %v3738 = vmax.f32 %v3610, %v3674
  %v3739 = vmax.f32 %v3611, %v3675
  %v3740 = vmax.f32 %v3612, %v3676
  %v3741 = vmax.f32 %v3613, %v3677
  %v3742 = vmax.f32 %v3614, %v3678
  %v3743 = vmax.f32 %v3615, %v3679
  %v3744 = vmax.f32 %v3616, %v3680
  %v3745 = vmax.f32 %v3617, %v3681
  %v3746 = vmax.f32 %v3618, %v3682
  %v3747 = vmax.f32 %v3619, %v3683
  %v3748 = vmax.f32 %v3620, %v3684
  %v3749 = vmax.f32 %v3621, %v3685
  %v3750 = vmax.f32 %v3622, %v3686
  %v3751 = vmax.f32 %v3623, %v3687
  %v3752 = vmax.f32 %v3624, %v3688
  %v3753 = vmax.f32 %v3625, %v3689
  %v3754 = vmax.f32 %v3626, %v3690
  %v3755 = vmax.f32 %v3627, %v3691
  %v3756 = vmax.f32 %v3628, %v3692
  %v3757 = vmax.f32 %v3629, %v3693
  %v3758 = vmax.f32 %v3630, %v3694
  %v3759 = vmax.f32 %v3631, %v3695
  %v3760 = vmax.f32 %v3632, %v3696
  %v3761 = vmax.f32 %v3633, %v3697
  %v3762 = vmax.f32 %v3634, %v3698
  %v3763 = vmax.f32 %v3635, %v3699
  %v3764 = vmax.f32 %v3636, %v3700
  %v3765 = vmax.f32 %v3637, %v3701
  %v3766 = vmax.f32 %v3638, %v3702
  %v3767 = vmax.f32 %v3639, %v3703
  %v3768 = vmax.f32 %v3640, %v3704
  %v3769 = vmax.f32 %v3641, %v3705
  %v3770 = vmax.f32 %v3642, %v3706
  %v3771 = vmax.f32 %v3643, %v3707
  %v3772 = vmax.f32 %v3644, %v3708
  %v3773 = vmax.f32 %v3645, %v3709
  %v3774 = vmax.f32 %v3646, %v3710
  %v3775 = vmax.f32 %v3647, %v3711
  %v3776 = vmax.f32 %v3648, %v3712
  %v3777 = vmax.f32 %v3649, %v3713
  %v3778 = vmax.f32 %v3650, %v3714
  %v3779 = vmax.f32 %v3651, %v3715
  %v3780 = vmax.f32 %v3652, %v3716
  %v3781 = vmax.f32 %v3653, %v3717
  %v3782 = vmax.f32 %v3654, %v3718
  %v3783 = vmax.f32 %v3655, %v3719
  %v3784 = vmax.f32 %v3656, %v3720
  %v3785 = vmax.f32 %v3657, %v3721
  %v3786 = vmax.f32 %v3658, %v3722
  %v3787 = vmax.f32 %v3659, %v3723
  %v3788 = vmax.f32 %v3660, %v3724
  %v3789 = vmax.f32 %v3661, %v3725
  %v3790 = vmax.f32 %v3662, %v3726
  %v3791 = vpack.c.bf16 %v3729, %v3727
  %v3792 = vpack.c.bf16 %v3730, %v3728
  %v3793 = vpack.c.bf16 %v3733, %v3731
  %v3794 = vpack.c.bf16 %v3734, %v3732
  %v3795 = vpack.c.bf16 %v3737, %v3735
  %v3796 = vpack.c.bf16 %v3738, %v3736
  %v3797 = vpack.c.bf16 %v3741, %v3739
  %v3798 = vpack.c.bf16 %v3742, %v3740
  %v3799 = vpack.c.bf16 %v3745, %v3743
  %v3800 = vpack.c.bf16 %v3746, %v3744
  %v3801 = vpack.c.bf16 %v3749, %v3747
  %v3802 = vpack.c.bf16 %v3750, %v3748
  %v3803 = vpack.c.bf16 %v3753, %v3751
  %v3804 = vpack.c.bf16 %v3754, %v3752
  %v3805 = vpack.c.bf16 %v3757, %v3755
  %v3806 = vpack.c.bf16 %v3758, %v3756
  %v3807 = vpack.c.bf16 %v3761, %v3759
  %v3808 = vpack.c.bf16 %v3762, %v3760
  %v3809 = vpack.c.bf16 %v3765, %v3763
  %v3810 = vpack.c.bf16 %v3766, %v3764
  %v3811 = vpack.c.bf16 %v3769, %v3767
  %v3812 = vpack.c.bf16 %v3770, %v3768
  %v3813 = vpack.c.bf16 %v3773, %v3771
  %v3814 = vpack.c.bf16 %v3774, %v3772
  %v3815 = vpack.c.bf16 %v3777, %v3775
  %v3816 = vpack.c.bf16 %v3778, %v3776
  %v3817 = vpack.c.bf16 %v3781, %v3779
  %v3818 = vpack.c.bf16 %v3782, %v3780
  %v3819 = vpack.c.bf16 %v3785, %v3783
  %v3820 = vpack.c.bf16 %v3786, %v3784
  %v3821 = vpack.c.bf16 %v3789, %v3787
  %v3822 = vpack.c.bf16 %v3790, %v3788
  %v3823 = vld [vmem:[%s1 + $0x18] sm:$0xf]
  %v3824 = vld [vmem:[%s1 + $0x58] sm:$0xf]
  %v3825 = vld [vmem:[%s1 + $0x98] sm:$0xf]
  %v3826 = vld [vmem:[%s1 + $0xd8] sm:$0xf]
  %v3827 = vld [vmem:[%s1 + $0x118] sm:$0xf]
  %v3828 = vld [vmem:[%s1 + $0x158] sm:$0xf]
  %v3829 = vld [vmem:[%s1 + $0x198] sm:$0xf]
  %v3830 = vld [vmem:[%s1 + $0x1d8] sm:$0xf]
  %v3831 = vld [vmem:[%s1 + $0x218] sm:$0xf]
  %v3832 = vld [vmem:[%s1 + $0x258] sm:$0xf]
  %v3833 = vld [vmem:[%s1 + $0x298] sm:$0xf]
  %v3834 = vld [vmem:[%s1 + $0x2d8] sm:$0xf]
  %v3835 = vld [vmem:[%s1 + $0x318] sm:$0xf]
  %v3836 = vld [vmem:[%s1 + $0x358] sm:$0xf]
  %v3837 = vld [vmem:[%s1 + $0x398] sm:$0xf]
  %v3838 = vld [vmem:[%s1 + $0x3d8] sm:$0xf]
  %v3839 = vld [vmem:[%s1 + $0x418] sm:$0xf]
  %v3840 = vld [vmem:[%s1 + $0x458] sm:$0xf]
  %v3841 = vld [vmem:[%s1 + $0x498] sm:$0xf]
  %v3842 = vld [vmem:[%s1 + $0x4d8] sm:$0xf]
  %v3843 = vld [vmem:[%s1 + $0x518] sm:$0xf]
  %v3844 = vld [vmem:[%s1 + $0x558] sm:$0xf]
  %v3845 = vld [vmem:[%s1 + $0x598] sm:$0xf]
  %v3846 = vld [vmem:[%s1 + $0x5d8] sm:$0xf]
  %v3847 = vld [vmem:[%s1 + $0x618] sm:$0xf]
  %v3848 = vld [vmem:[%s1 + $0x658] sm:$0xf]
  %v3849 = vld [vmem:[%s1 + $0x698] sm:$0xf]
  %v3850 = vld [vmem:[%s1 + $0x6d8] sm:$0xf]
  %v3851 = vld [vmem:[%s1 + $0x718] sm:$0xf]
  %v3852 = vld [vmem:[%s1 + $0x758] sm:$0xf]
  %v3853 = vld [vmem:[%s1 + $0x798] sm:$0xf]
  %v3854 = vld [vmem:[%s1 + $0x7d8] sm:$0xf]
  %v3855 = vld [vmem:[%s2 + $0x12] sm:$0x1]
  %v3857 = vperm.slane %v3855, 0
  %v3891 = vunpack.c.l.b16 %v3823
  %v3892 = vunpack.c.l.b16 %v3824
  %v3893 = vunpack.c.l.b16 %v3825
  %v3894 = vunpack.c.l.b16 %v3826
  %v3895 = vunpack.c.l.b16 %v3827
  %v3896 = vunpack.c.l.b16 %v3828
  %v3897 = vunpack.c.l.b16 %v3829
  %v3898 = vunpack.c.l.b16 %v3830
  %v3899 = vunpack.c.l.b16 %v3831
  %v3900 = vunpack.c.l.b16 %v3832
  %v3901 = vunpack.c.l.b16 %v3833
  %v3902 = vunpack.c.l.b16 %v3834
  %v3903 = vunpack.c.l.b16 %v3835
  %v3904 = vunpack.c.l.b16 %v3836
  %v3905 = vunpack.c.l.b16 %v3837
  %v3906 = vunpack.c.l.b16 %v3838
  %v3907 = vunpack.c.l.b16 %v3839
  %v3908 = vunpack.c.l.b16 %v3840
  %v3909 = vunpack.c.l.b16 %v3841
  %v3910 = vunpack.c.l.b16 %v3842
  %v3911 = vunpack.c.l.b16 %v3843
  %v3912 = vunpack.c.l.b16 %v3844
  %v3913 = vunpack.c.l.b16 %v3845
  %v3914 = vunpack.c.l.b16 %v3846
  %v3915 = vunpack.c.l.b16 %v3847
  %v3916 = vunpack.c.l.b16 %v3848
  %v3917 = vunpack.c.l.b16 %v3849
  %v3918 = vunpack.c.l.b16 %v3850
  %v3919 = vunpack.c.l.b16 %v3851
  %v3920 = vunpack.c.l.b16 %v3852
  %v3921 = vunpack.c.l.b16 %v3853
  %v3922 = vunpack.c.l.b16 %v3854
  %v3923 = vpack.c.b16 %v3892, %v3891
  %v3924 = vpack.c.b16 %v3894, %v3893
  %v3925 = vpack.c.b16 %v3896, %v3895
  %v3926 = vpack.c.b16 %v3898, %v3897
  %v3927 = vpack.c.b16 %v3900, %v3899
  %v3928 = vpack.c.b16 %v3902, %v3901
  %v3929 = vpack.c.b16 %v3904, %v3903
  %v3930 = vpack.c.b16 %v3906, %v3905
  %v3931 = vpack.c.b16 %v3908, %v3907
  %v3932 = vpack.c.b16 %v3910, %v3909
  %v3933 = vpack.c.b16 %v3912, %v3911
  %v3934 = vpack.c.b16 %v3914, %v3913
  %v3935 = vpack.c.b16 %v3916, %v3915
  %v3936 = vpack.c.b16 %v3918, %v3917
  %v3937 = vpack.c.b16 %v3920, %v3919
  %v3938 = vpack.c.b16 %v3922, %v3921
  %3955 = vmatpush.bf16.msra.mxu0 %v3930
  %3956 = vmatpush.bf16.msra.mxu0 %v3929
  %3957 = vmatpush.bf16.msra.mxu0 %v3928
  %3958 = vmatpush.bf16.msra.mxu0 %v3927
  %3959 = vmatpush.bf16.msra.mxu0 %v3926
  %3960 = vmatpush.bf16.msra.mxu0 %v3925
  %3961 = vmatpush.bf16.msra.mxu0 %v3924
  %3962 = vmatpush.bf16.msra.mxu0 %v3923
  %3963 = vmatmul.bf16.gmra.mxu0 %v3791
  %v3964 = vpop.f32.mrf.mxu0
  %v3965 = vadd.f32 %v3857, %v3964
  %v3966 = vpop.f32.mrf.mxu0
  %v3967 = vadd.f32 %v3857, %v3966
  %3968 = vmatmul.bf16.gmra.mxu0 %v3793
  %v3969 = vpop.f32.mrf.mxu0
  %v3970 = vadd.f32 %v3857, %v3969
  %v3971 = vpop.f32.mrf.mxu0
  %v3972 = vadd.f32 %v3857, %v3971
  %3973 = vmatmul.bf16.gmra.mxu0 %v3795
  %v3974 = vpop.f32.mrf.mxu0
  %v3975 = vadd.f32 %v3857, %v3974
  %v3976 = vpop.f32.mrf.mxu0
  %v3977 = vadd.f32 %v3857, %v3976
  %3978 = vmatmul.bf16.gmra.mxu0 %v3797
  %v3979 = vpop.f32.mrf.mxu0
  %v3980 = vadd.f32 %v3857, %v3979
  %v3981 = vpop.f32.mrf.mxu0
  %v3982 = vadd.f32 %v3857, %v3981
  %3983 = vmatmul.bf16.gmra.mxu0 %v3799
  %v3984 = vpop.f32.mrf.mxu0
  %v3985 = vadd.f32 %v3857, %v3984
  %v3986 = vpop.f32.mrf.mxu0
  %v3987 = vadd.f32 %v3857, %v3986
  %3988 = vmatmul.bf16.gmra.mxu0 %v3801
  %v3989 = vpop.f32.mrf.mxu0
  %v3990 = vadd.f32 %v3857, %v3989
  %v3991 = vpop.f32.mrf.mxu0
  %v3992 = vadd.f32 %v3857, %v3991
  %3993 = vmatmul.bf16.gmra.mxu0 %v3803
  %v3994 = vpop.f32.mrf.mxu0
  %v3995 = vadd.f32 %v3857, %v3994
  %v3996 = vpop.f32.mrf.mxu0
  %v3997 = vadd.f32 %v3857, %v3996
  %3998 = vmatmul.bf16.gmra.mxu0 %v3805
  %v3999 = vpop.f32.mrf.mxu0
  %v4000 = vadd.f32 %v3857, %v3999
  %v4001 = vpop.f32.mrf.mxu0
  %v4002 = vadd.f32 %v3857, %v4001
  %4003 = vmatmul.bf16.gmra.mxu0 %v3807
  %v4004 = vpop.f32.mrf.mxu0
  %v4005 = vadd.f32 %v3857, %v4004
  %v4006 = vpop.f32.mrf.mxu0
  %v4007 = vadd.f32 %v3857, %v4006
  %4008 = vmatmul.bf16.gmra.mxu0 %v3809
  %v4009 = vpop.f32.mrf.mxu0
  %v4010 = vadd.f32 %v3857, %v4009
  %v4011 = vpop.f32.mrf.mxu0
  %v4012 = vadd.f32 %v3857, %v4011
  %4013 = vmatmul.bf16.gmra.mxu0 %v3811
  %v4014 = vpop.f32.mrf.mxu0
  %v4015 = vadd.f32 %v3857, %v4014
  %v4016 = vpop.f32.mrf.mxu0
  %v4017 = vadd.f32 %v3857, %v4016
  %4018 = vmatmul.bf16.gmra.mxu0 %v3813
  %v4019 = vpop.f32.mrf.mxu0
  %v4020 = vadd.f32 %v3857, %v4019
  %v4021 = vpop.f32.mrf.mxu0
  %v4022 = vadd.f32 %v3857, %v4021
  %4023 = vmatmul.bf16.gmra.mxu0 %v3815
  %v4024 = vpop.f32.mrf.mxu0
  %v4025 = vadd.f32 %v3857, %v4024
  %v4026 = vpop.f32.mrf.mxu0
  %v4027 = vadd.f32 %v3857, %v4026
  %4028 = vmatmul.bf16.gmra.mxu0 %v3817
  %v4029 = vpop.f32.mrf.mxu0
  %v4030 = vadd.f32 %v3857, %v4029
  %v4031 = vpop.f32.mrf.mxu0
  %v4032 = vadd.f32 %v3857, %v4031
  %4033 = vmatmul.bf16.gmra.mxu0 %v3819
  %v4034 = vpop.f32.mrf.mxu0
  %v4035 = vadd.f32 %v3857, %v4034
  %v4036 = vpop.f32.mrf.mxu0
  %v4037 = vadd.f32 %v3857, %v4036
  %4038 = vmatmul.bf16.gmra.mxu0 %v3821
  %v4039 = vpop.f32.mrf.mxu0
  %v4040 = vadd.f32 %v3857, %v4039
  %v4041 = vpop.f32.mrf.mxu0
  %v4042 = vadd.f32 %v3857, %v4041
  %4043 = vdwg.mxu0
  %4044 = vmatpush.bf16.msra.mxu0 %v3938
  %4045 = vmatpush.bf16.msra.mxu0 %v3937
  %4046 = vmatpush.bf16.msra.mxu0 %v3936
  %4047 = vmatpush.bf16.msra.mxu0 %v3935
  %4048 = vmatpush.bf16.msra.mxu0 %v3934
  %4049 = vmatpush.bf16.msra.mxu0 %v3933
  %4050 = vmatpush.bf16.msra.mxu0 %v3932
  %4051 = vmatpush.bf16.msra.mxu0 %v3931
  %4052 = vmatmul.bf16.gmra.mxu0 %v3792
  %v4053 = vpop.f32.mrf.mxu0
  %v4054 = vadd.f32 %v3965, %v4053
  %v4055 = vpop.f32.mrf.mxu0
  %v4056 = vadd.f32 %v3967, %v4055
  %4057 = vmatmul.bf16.gmra.mxu0 %v3794
  %v4058 = vpop.f32.mrf.mxu0
  %v4059 = vadd.f32 %v3970, %v4058
  %v4060 = vpop.f32.mrf.mxu0
  %v4061 = vadd.f32 %v3972, %v4060
  %4062 = vmatmul.bf16.gmra.mxu0 %v3796
  %v4063 = vpop.f32.mrf.mxu0
  %v4064 = vadd.f32 %v3975, %v4063
  %v4065 = vpop.f32.mrf.mxu0
  %v4066 = vadd.f32 %v3977, %v4065
  %4067 = vmatmul.bf16.gmra.mxu0 %v3798
  %v4068 = vpop.f32.mrf.mxu0
  %v4069 = vadd.f32 %v3980, %v4068
  %v4070 = vpop.f32.mrf.mxu0
  %v4071 = vadd.f32 %v3982, %v4070
  %4072 = vmatmul.bf16.gmra.mxu0 %v3800
  %v4073 = vpop.f32.mrf.mxu0
  %v4074 = vadd.f32 %v3985, %v4073
  %v4075 = vpop.f32.mrf.mxu0
  %v4076 = vadd.f32 %v3987, %v4075
  %4077 = vmatmul.bf16.gmra.mxu0 %v3802
  %v4078 = vpop.f32.mrf.mxu0
  %v4079 = vadd.f32 %v3990, %v4078
  %v4080 = vpop.f32.mrf.mxu0
  %v4081 = vadd.f32 %v3992, %v4080
  %4082 = vmatmul.bf16.gmra.mxu0 %v3804
  %v4083 = vpop.f32.mrf.mxu0
  %v4084 = vadd.f32 %v3995, %v4083
  %v4085 = vpop.f32.mrf.mxu0
  %v4086 = vadd.f32 %v3997, %v4085
  %4087 = vmatmul.bf16.gmra.mxu0 %v3806
  %v4088 = vpop.f32.mrf.mxu0
  %v4089 = vadd.f32 %v4000, %v4088
  %v4090 = vpop.f32.mrf.mxu0
  %v4091 = vadd.f32 %v4002, %v4090
  %4092 = vmatmul.bf16.gmra.mxu0 %v3808
  %v4093 = vpop.f32.mrf.mxu0
  %v4094 = vadd.f32 %v4005, %v4093
  %v4095 = vpop.f32.mrf.mxu0
  %v4096 = vadd.f32 %v4007, %v4095
  %4097 = vmatmul.bf16.gmra.mxu0 %v3810
  %v4098 = vpop.f32.mrf.mxu0
  %v4099 = vadd.f32 %v4010, %v4098
  %v4100 = vpop.f32.mrf.mxu0
  %v4101 = vadd.f32 %v4012, %v4100
  %4102 = vmatmul.bf16.gmra.mxu0 %v3812
  %v4103 = vpop.f32.mrf.mxu0
  %v4104 = vadd.f32 %v4015, %v4103
  %v4105 = vpop.f32.mrf.mxu0
  %v4106 = vadd.f32 %v4017, %v4105
  %4107 = vmatmul.bf16.gmra.mxu0 %v3814
  %v4108 = vpop.f32.mrf.mxu0
  %v4109 = vadd.f32 %v4020, %v4108
  %v4110 = vpop.f32.mrf.mxu0
  %v4111 = vadd.f32 %v4022, %v4110
  %4112 = vmatmul.bf16.gmra.mxu0 %v3816
  %v4113 = vpop.f32.mrf.mxu0
  %v4114 = vadd.f32 %v4025, %v4113
  %v4115 = vpop.f32.mrf.mxu0
  %v4116 = vadd.f32 %v4027, %v4115
  %4117 = vmatmul.bf16.gmra.mxu0 %v3818
  %v4118 = vpop.f32.mrf.mxu0
  %v4119 = vadd.f32 %v4030, %v4118
  %v4120 = vpop.f32.mrf.mxu0
  %v4121 = vadd.f32 %v4032, %v4120
  %4122 = vmatmul.bf16.gmra.mxu0 %v3820
  %v4123 = vpop.f32.mrf.mxu0
  %v4124 = vadd.f32 %v4035, %v4123
  %v4125 = vpop.f32.mrf.mxu0
  %v4126 = vadd.f32 %v4037, %v4125
  %4127 = vmatmul.bf16.gmra.mxu0 %v3822
  %v4128 = vpop.f32.mrf.mxu0
  %v4129 = vadd.f32 %v4040, %v4128
  %v4130 = vpop.f32.mrf.mxu0
  %v4131 = vadd.f32 %v4042, %v4130
  %4132 = vdwg.mxu0
  %v4133 = vadd.f32 %v4054, %v4056
  %v4134 = vadd.f32 %v4133, %v4059
  %v4135 = vadd.f32 %v4134, %v4061
  %v4136 = vadd.f32 %v4135, %v4064
  %v4137 = vadd.f32 %v4136, %v4066
  %v4138 = vadd.f32 %v4137, %v4069
  %v4139 = vadd.f32 %v4138, %v4071
  %v4140 = vadd.f32 %v4139, %v4074
  %v4141 = vadd.f32 %v4140, %v4076
  %v4142 = vadd.f32 %v4141, %v4079
  %v4143 = vadd.f32 %v4142, %v4081
  %v4144 = vadd.f32 %v4143, %v4084
  %v4145 = vadd.f32 %v4144, %v4086
  %v4146 = vadd.f32 %v4145, %v4089
  %v4147 = vadd.f32 %v4146, %v4091
  %v4148 = vadd.f32 %v4147, %v4094
  %v4149 = vadd.f32 %v4148, %v4096
  %v4150 = vadd.f32 %v4149, %v4099
  %v4151 = vadd.f32 %v4150, %v4101
  %v4152 = vadd.f32 %v4151, %v4104
  %v4153 = vadd.f32 %v4152, %v4106
  %v4154 = vadd.f32 %v4153, %v4109
  %v4155 = vadd.f32 %v4154, %v4111
  %v4156 = vadd.f32 %v4155, %v4114
  %v4157 = vadd.f32 %v4156, %v4116
  %v4158 = vadd.f32 %v4157, %v4119
  %v4159 = vadd.f32 %v4158, %v4121
  %v4160 = vadd.f32 %v4159, %v4124
  %v4161 = vadd.f32 %v4160, %v4126
  %v4162 = vadd.f32 %v4161, %v4129
  %v4163 = vadd.f32 %v4162, %v4131
  %v4164 = vrot.slane %v4163, 4
  %v4165 = vadd.f32 %v4163, %v4164
  %v4166 = vrot.slane %v4165, 2
  %v4167 = vadd.f32 %v4165, %v4166
  %v4168 = vrot.slane %v4167, 1
  %v4169 = vadd.f32 %v4167, %v4168
  %v4170 = vmul.f32 %v4169, %v856
  %v4171 = vmul.f32 %v4054, %v4054
  %v4172 = vmul.f32 %v4056, %v4056
  %v4173 = vmul.f32 %v4059, %v4059
  %v4174 = vmul.f32 %v4061, %v4061
  %v4175 = vmul.f32 %v4064, %v4064
  %v4176 = vmul.f32 %v4066, %v4066
  %v4177 = vmul.f32 %v4069, %v4069
  %v4178 = vmul.f32 %v4071, %v4071
  %v4179 = vmul.f32 %v4074, %v4074
  %v4180 = vmul.f32 %v4076, %v4076
  %v4181 = vmul.f32 %v4079, %v4079
  %v4182 = vmul.f32 %v4081, %v4081
  %v4183 = vmul.f32 %v4084, %v4084
  %v4184 = vmul.f32 %v4086, %v4086
  %v4185 = vmul.f32 %v4089, %v4089
  %v4186 = vmul.f32 %v4091, %v4091
  %v4187 = vmul.f32 %v4094, %v4094
  %v4188 = vmul.f32 %v4096, %v4096
  %v4189 = vmul.f32 %v4099, %v4099
  %v4190 = vmul.f32 %v4101, %v4101
  %v4191 = vmul.f32 %v4104, %v4104
  %v4192 = vmul.f32 %v4106, %v4106
  %v4193 = vmul.f32 %v4109, %v4109
  %v4194 = vmul.f32 %v4111, %v4111
  %v4195 = vmul.f32 %v4114, %v4114
  %v4196 = vmul.f32 %v4116, %v4116
  %v4197 = vmul.f32 %v4119, %v4119
  %v4198 = vmul.f32 %v4121, %v4121
  %v4199 = vmul.f32 %v4124, %v4124
  %v4200 = vmul.f32 %v4126, %v4126
  %v4201 = vmul.f32 %v4129, %v4129
  %v4202 = vmul.f32 %v4131, %v4131
  %v4203 = vadd.f32 %v4171, %v4172
  %v4204 = vadd.f32 %v4203, %v4173
  %v4205 = vadd.f32 %v4204, %v4174
  %v4206 = vadd.f32 %v4205, %v4175
  %v4207 = vadd.f32 %v4206, %v4176
  %v4208 = vadd.f32 %v4207, %v4177
  %v4209 = vadd.f32 %v4208, %v4178
  %v4210 = vadd.f32 %v4209, %v4179
  %v4211 = vadd.f32 %v4210, %v4180
  %v4212 = vadd.f32 %v4211, %v4181
  %v4213 = vadd.f32 %v4212, %v4182
  %v4214 = vadd.f32 %v4213, %v4183
  %v4215 = vadd.f32 %v4214, %v4184
  %v4216 = vadd.f32 %v4215, %v4185
  %v4217 = vadd.f32 %v4216, %v4186
  %v4218 = vadd.f32 %v4217, %v4187
  %v4219 = vadd.f32 %v4218, %v4188
  %v4220 = vadd.f32 %v4219, %v4189
  %v4221 = vadd.f32 %v4220, %v4190
  %v4222 = vadd.f32 %v4221, %v4191
  %v4223 = vadd.f32 %v4222, %v4192
  %v4224 = vadd.f32 %v4223, %v4193
  %v4225 = vadd.f32 %v4224, %v4194
  %v4226 = vadd.f32 %v4225, %v4195
  %v4227 = vadd.f32 %v4226, %v4196
  %v4228 = vadd.f32 %v4227, %v4197
  %v4229 = vadd.f32 %v4228, %v4198
  %v4230 = vadd.f32 %v4229, %v4199
  %v4231 = vadd.f32 %v4230, %v4200
  %v4232 = vadd.f32 %v4231, %v4201
  %v4233 = vadd.f32 %v4232, %v4202
  %v4234 = vrot.slane %v4233, 4
  %v4235 = vadd.f32 %v4233, %v4234
  %v4236 = vrot.slane %v4235, 2
  %v4237 = vadd.f32 %v4235, %v4236
  %v4238 = vrot.slane %v4237, 1
  %v4239 = vadd.f32 %v4237, %v4238
  %v4240 = vmul.f32 %v4239, %v856
  %v4241 = vmul.f32 %v4170, %v4170
  %v4242 = vsub.f32 %v4240, %v4241
  %v4243 = vmax.f32 %v4242, 0.0
  %v4244 = vsub.f32 %v4054, %v4170
  %v4245 = vsub.f32 %v4056, %v4170
  %v4246 = vsub.f32 %v4059, %v4170
  %v4247 = vsub.f32 %v4061, %v4170
  %v4248 = vsub.f32 %v4064, %v4170
  %v4249 = vsub.f32 %v4066, %v4170
  %v4250 = vsub.f32 %v4069, %v4170
  %v4251 = vsub.f32 %v4071, %v4170
  %v4252 = vsub.f32 %v4074, %v4170
  %v4253 = vsub.f32 %v4076, %v4170
  %v4254 = vsub.f32 %v4079, %v4170
  %v4255 = vsub.f32 %v4081, %v4170
  %v4256 = vsub.f32 %v4084, %v4170
  %v4257 = vsub.f32 %v4086, %v4170
  %v4258 = vsub.f32 %v4089, %v4170
  %v4259 = vsub.f32 %v4091, %v4170
  %v4260 = vsub.f32 %v4094, %v4170
  %v4261 = vsub.f32 %v4096, %v4170
  %v4262 = vsub.f32 %v4099, %v4170
  %v4263 = vsub.f32 %v4101, %v4170
  %v4264 = vsub.f32 %v4104, %v4170
  %v4265 = vsub.f32 %v4106, %v4170
  %v4266 = vsub.f32 %v4109, %v4170
  %v4267 = vsub.f32 %v4111, %v4170
  %v4268 = vsub.f32 %v4114, %v4170
  %v4269 = vsub.f32 %v4116, %v4170
  %v4270 = vsub.f32 %v4119, %v4170
  %v4271 = vsub.f32 %v4121, %v4170
  %v4272 = vsub.f32 %v4124, %v4170
  %v4273 = vsub.f32 %v4126, %v4170
  %v4274 = vsub.f32 %v4129, %v4170
  %v4275 = vsub.f32 %v4131, %v4170
  %v4276 = vadd.f32 %v4243, 1e-05
  %v4277 = vrsqrt.pop %v4276
  %v4278 = vmul.f32 %v4277, %v4276
  %v4279 = vmul.f32 %v4278, %v4277
  %v4280 = vmul.f32 0.5, %v4279
  %v4281 = vsub.f32 1.5, %v4280
  %v4282 = vmul.f32 %v4277, %v4281
  %vm4283 = vweird.f32 %v4276
  %vm4284 = vweird.f32 %v4277
  %vm4285 = vmor %vm4283, %vm4284
  %v4286 = vsel %vm4285, %v4277, %v4282
  %v4287 = vmul.f32 %v4244, %v4286
  %v4288 = vmul.f32 %v4245, %v4286
  %v4289 = vmul.f32 %v4246, %v4286
  %v4290 = vmul.f32 %v4247, %v4286
  %v4291 = vmul.f32 %v4248, %v4286
  %v4292 = vmul.f32 %v4249, %v4286
  %v4293 = vmul.f32 %v4250, %v4286
  %v4294 = vmul.f32 %v4251, %v4286
  %v4295 = vmul.f32 %v4252, %v4286
  %v4296 = vmul.f32 %v4253, %v4286
  %v4297 = vmul.f32 %v4254, %v4286
  %v4298 = vmul.f32 %v4255, %v4286
  %v4299 = vmul.f32 %v4256, %v4286
  %v4300 = vmul.f32 %v4257, %v4286
  %v4301 = vmul.f32 %v4258, %v4286
  %v4302 = vmul.f32 %v4259, %v4286
  %v4303 = vmul.f32 %v4260, %v4286
  %v4304 = vmul.f32 %v4261, %v4286
  %v4305 = vmul.f32 %v4262, %v4286
  %v4306 = vmul.f32 %v4263, %v4286
  %v4307 = vmul.f32 %v4264, %v4286
  %v4308 = vmul.f32 %v4265, %v4286
  %v4309 = vmul.f32 %v4266, %v4286
  %v4310 = vmul.f32 %v4267, %v4286
  %v4311 = vmul.f32 %v4268, %v4286
  %v4312 = vmul.f32 %v4269, %v4286
  %v4313 = vmul.f32 %v4270, %v4286
  %v4314 = vmul.f32 %v4271, %v4286
  %v4315 = vmul.f32 %v4272, %v4286
  %v4316 = vmul.f32 %v4273, %v4286
  %v4317 = vmul.f32 %v4274, %v4286
  %v4318 = vmul.f32 %v4275, %v4286
  %v4319 = vld [vmem:[%s2 + $0x13] sm:$0x1]
  %v4321 = vperm.slane %v4319, 0
  %v4323 = vmul.f32 %v4287, %v4321
  %v4324 = vmul.f32 %v4288, %v4321
  %v4325 = vmul.f32 %v4289, %v4321
  %v4326 = vmul.f32 %v4290, %v4321
  %v4327 = vmul.f32 %v4291, %v4321
  %v4328 = vmul.f32 %v4292, %v4321
  %v4329 = vmul.f32 %v4293, %v4321
  %v4330 = vmul.f32 %v4294, %v4321
  %v4331 = vmul.f32 %v4295, %v4321
  %v4332 = vmul.f32 %v4296, %v4321
  %v4333 = vmul.f32 %v4297, %v4321
  %v4334 = vmul.f32 %v4298, %v4321
  %v4335 = vmul.f32 %v4299, %v4321
  %v4336 = vmul.f32 %v4300, %v4321
  %v4337 = vmul.f32 %v4301, %v4321
  %v4338 = vmul.f32 %v4302, %v4321
  %v4339 = vmul.f32 %v4303, %v4321
  %v4340 = vmul.f32 %v4304, %v4321
  %v4341 = vmul.f32 %v4305, %v4321
  %v4342 = vmul.f32 %v4306, %v4321
  %v4343 = vmul.f32 %v4307, %v4321
  %v4344 = vmul.f32 %v4308, %v4321
  %v4345 = vmul.f32 %v4309, %v4321
  %v4346 = vmul.f32 %v4310, %v4321
  %v4347 = vmul.f32 %v4311, %v4321
  %v4348 = vmul.f32 %v4312, %v4321
  %v4349 = vmul.f32 %v4313, %v4321
  %v4350 = vmul.f32 %v4314, %v4321
  %v4351 = vmul.f32 %v4315, %v4321
  %v4352 = vmul.f32 %v4316, %v4321
  %v4353 = vmul.f32 %v4317, %v4321
  %v4354 = vmul.f32 %v4318, %v4321
  %v4355 = vld [vmem:[%s2 + $0x14] sm:$0x1]
  %v4357 = vperm.slane %v4355, 0
  %v4359 = vadd.f32 %v4323, %v4357
  %v4360 = vadd.f32 %v4324, %v4357
  %v4361 = vadd.f32 %v4325, %v4357
  %v4362 = vadd.f32 %v4326, %v4357
  %v4363 = vadd.f32 %v4327, %v4357
  %v4364 = vadd.f32 %v4328, %v4357
  %v4365 = vadd.f32 %v4329, %v4357
  %v4366 = vadd.f32 %v4330, %v4357
  %v4367 = vadd.f32 %v4331, %v4357
  %v4368 = vadd.f32 %v4332, %v4357
  %v4369 = vadd.f32 %v4333, %v4357
  %v4370 = vadd.f32 %v4334, %v4357
  %v4371 = vadd.f32 %v4335, %v4357
  %v4372 = vadd.f32 %v4336, %v4357
  %v4373 = vadd.f32 %v4337, %v4357
  %v4374 = vadd.f32 %v4338, %v4357
  %v4375 = vadd.f32 %v4339, %v4357
  %v4376 = vadd.f32 %v4340, %v4357
  %v4377 = vadd.f32 %v4341, %v4357
  %v4378 = vadd.f32 %v4342, %v4357
  %v4379 = vadd.f32 %v4343, %v4357
  %v4380 = vadd.f32 %v4344, %v4357
  %v4381 = vadd.f32 %v4345, %v4357
  %v4382 = vadd.f32 %v4346, %v4357
  %v4383 = vadd.f32 %v4347, %v4357
  %v4384 = vadd.f32 %v4348, %v4357
  %v4385 = vadd.f32 %v4349, %v4357
  %v4386 = vadd.f32 %v4350, %v4357
  %v4387 = vadd.f32 %v4351, %v4357
  %v4388 = vadd.f32 %v4352, %v4357
  %v4389 = vadd.f32 %v4353, %v4357
  %v4390 = vadd.f32 %v4354, %v4357
  %v4391 = vmul.f32 %v4359, 0.01
  %v4392 = vmul.f32 %v4360, 0.01
  %v4393 = vmul.f32 %v4361, 0.01
  %v4394 = vmul.f32 %v4362, 0.01
  %v4395 = vmul.f32 %v4363, 0.01
  %v4396 = vmul.f32 %v4364, 0.01
  %v4397 = vmul.f32 %v4365, 0.01
  %v4398 = vmul.f32 %v4366, 0.01
  %v4399 = vmul.f32 %v4367, 0.01
  %v4400 = vmul.f32 %v4368, 0.01
  %v4401 = vmul.f32 %v4369, 0.01
  %v4402 = vmul.f32 %v4370, 0.01
  %v4403 = vmul.f32 %v4371, 0.01
  %v4404 = vmul.f32 %v4372, 0.01
  %v4405 = vmul.f32 %v4373, 0.01
  %v4406 = vmul.f32 %v4374, 0.01
  %v4407 = vmul.f32 %v4375, 0.01
  %v4408 = vmul.f32 %v4376, 0.01
  %v4409 = vmul.f32 %v4377, 0.01
  %v4410 = vmul.f32 %v4378, 0.01
  %v4411 = vmul.f32 %v4379, 0.01
  %v4412 = vmul.f32 %v4380, 0.01
  %v4413 = vmul.f32 %v4381, 0.01
  %v4414 = vmul.f32 %v4382, 0.01
  %v4415 = vmul.f32 %v4383, 0.01
  %v4416 = vmul.f32 %v4384, 0.01
  %v4417 = vmul.f32 %v4385, 0.01
  %v4418 = vmul.f32 %v4386, 0.01
  %v4419 = vmul.f32 %v4387, 0.01
  %v4420 = vmul.f32 %v4388, 0.01
  %v4421 = vmul.f32 %v4389, 0.01
  %v4422 = vmul.f32 %v4390, 0.01
  %v4423 = vmax.f32 %v4359, %v4391
  %v4424 = vmax.f32 %v4360, %v4392
  %v4425 = vmax.f32 %v4361, %v4393
  %v4426 = vmax.f32 %v4362, %v4394
  %v4427 = vmax.f32 %v4363, %v4395
  %v4428 = vmax.f32 %v4364, %v4396
  %v4429 = vmax.f32 %v4365, %v4397
  %v4430 = vmax.f32 %v4366, %v4398
  %v4431 = vmax.f32 %v4367, %v4399
  %v4432 = vmax.f32 %v4368, %v4400
  %v4433 = vmax.f32 %v4369, %v4401
  %v4434 = vmax.f32 %v4370, %v4402
  %v4435 = vmax.f32 %v4371, %v4403
  %v4436 = vmax.f32 %v4372, %v4404
  %v4437 = vmax.f32 %v4373, %v4405
  %v4438 = vmax.f32 %v4374, %v4406
  %v4439 = vmax.f32 %v4375, %v4407
  %v4440 = vmax.f32 %v4376, %v4408
  %v4441 = vmax.f32 %v4377, %v4409
  %v4442 = vmax.f32 %v4378, %v4410
  %v4443 = vmax.f32 %v4379, %v4411
  %v4444 = vmax.f32 %v4380, %v4412
  %v4445 = vmax.f32 %v4381, %v4413
  %v4446 = vmax.f32 %v4382, %v4414
  %v4447 = vmax.f32 %v4383, %v4415
  %v4448 = vmax.f32 %v4384, %v4416
  %v4449 = vmax.f32 %v4385, %v4417
  %v4450 = vmax.f32 %v4386, %v4418
  %v4451 = vmax.f32 %v4387, %v4419
  %v4452 = vmax.f32 %v4388, %v4420
  %v4453 = vmax.f32 %v4389, %v4421
  %v4454 = vmax.f32 %v4390, %v4422
  %v4455 = vpack.c.bf16 %v4424, %v4423
  %v4456 = vpack.c.bf16 %v4426, %v4425
  %v4457 = vpack.c.bf16 %v4428, %v4427
  %v4458 = vpack.c.bf16 %v4430, %v4429
  %v4459 = vpack.c.bf16 %v4432, %v4431
  %v4460 = vpack.c.bf16 %v4434, %v4433
  %v4461 = vpack.c.bf16 %v4436, %v4435
  %v4462 = vpack.c.bf16 %v4438, %v4437
  %v4463 = vpack.c.bf16 %v4440, %v4439
  %v4464 = vpack.c.bf16 %v4442, %v4441
  %v4465 = vpack.c.bf16 %v4444, %v4443
  %v4466 = vpack.c.bf16 %v4446, %v4445
  %v4467 = vpack.c.bf16 %v4448, %v4447
  %v4468 = vpack.c.bf16 %v4450, %v4449
  %v4469 = vpack.c.bf16 %v4452, %v4451
  %v4470 = vpack.c.bf16 %v4454, %v4453
  %v4471 = vld [vmem:[%s1 + $0x1c] sm:$0xf]
  %v4472 = vld [vmem:[%s1 + $0x5c] sm:$0xf]
  %v4473 = vld [vmem:[%s1 + $0x9c] sm:$0xf]
  %v4474 = vld [vmem:[%s1 + $0xdc] sm:$0xf]
  %v4475 = vld [vmem:[%s1 + $0x11c] sm:$0xf]
  %v4476 = vld [vmem:[%s1 + $0x15c] sm:$0xf]
  %v4477 = vld [vmem:[%s1 + $0x19c] sm:$0xf]
  %v4478 = vld [vmem:[%s1 + $0x1dc] sm:$0xf]
  %v4479 = vld [vmem:[%s1 + $0x21c] sm:$0xf]
  %v4480 = vld [vmem:[%s1 + $0x25c] sm:$0xf]
  %v4481 = vld [vmem:[%s1 + $0x29c] sm:$0xf]
  %v4482 = vld [vmem:[%s1 + $0x2dc] sm:$0xf]
  %v4483 = vld [vmem:[%s1 + $0x31c] sm:$0xf]
  %v4484 = vld [vmem:[%s1 + $0x35c] sm:$0xf]
  %v4485 = vld [vmem:[%s1 + $0x39c] sm:$0xf]
  %v4486 = vld [vmem:[%s1 + $0x3dc] sm:$0xf]
  %v4503 = vunpack.c.l.b16 %v4471
  %v4504 = vunpack.c.l.b16 %v4472
  %v4505 = vunpack.c.l.b16 %v4473
  %v4506 = vunpack.c.l.b16 %v4474
  %v4507 = vunpack.c.l.b16 %v4475
  %v4508 = vunpack.c.l.b16 %v4476
  %v4509 = vunpack.c.l.b16 %v4477
  %v4510 = vunpack.c.l.b16 %v4478
  %v4511 = vunpack.c.l.b16 %v4479
  %v4512 = vunpack.c.l.b16 %v4480
  %v4513 = vunpack.c.l.b16 %v4481
  %v4514 = vunpack.c.l.b16 %v4482
  %v4515 = vunpack.c.l.b16 %v4483
  %v4516 = vunpack.c.l.b16 %v4484
  %v4517 = vunpack.c.l.b16 %v4485
  %v4518 = vunpack.c.l.b16 %v4486
  %v4519 = vpack.c.b16 %v4504, %v4503
  %v4520 = vpack.c.b16 %v4506, %v4505
  %v4521 = vpack.c.b16 %v4508, %v4507
  %v4522 = vpack.c.b16 %v4510, %v4509
  %v4523 = vpack.c.b16 %v4512, %v4511
  %v4524 = vpack.c.b16 %v4514, %v4513
  %v4525 = vpack.c.b16 %v4516, %v4515
  %v4526 = vpack.c.b16 %v4518, %v4517
  %4535 = vmatpush.bf16.msra.mxu0 %v4526
  %4536 = vmatpush.bf16.msra.mxu0 %v4525
  %4537 = vmatpush.bf16.msra.mxu0 %v4524
  %4538 = vmatpush.bf16.msra.mxu0 %v4523
  %4539 = vmatpush.bf16.msra.mxu0 %v4522
  %4540 = vmatpush.bf16.msra.mxu0 %v4521
  %4541 = vmatpush.bf16.msra.mxu0 %v4520
  %4542 = vmatpush.bf16.msra.mxu0 %v4519
  %4543 = vmatmul.bf16.gmra.mxu0 %v4455
  %v4544 = vpop.f32.mrf.mxu0
  %v4545 = vadd.f32 0.0, %v4544
  %v4546 = vpop.f32.mrf.mxu0
  %v4547 = vadd.f32 0.0, %v4546
  %4548 = vmatmul.bf16.gmra.mxu0 %v4456
  %v4549 = vpop.f32.mrf.mxu0
  %v4550 = vadd.f32 0.0, %v4549
  %v4551 = vpop.f32.mrf.mxu0
  %v4552 = vadd.f32 0.0, %v4551
  %4553 = vmatmul.bf16.gmra.mxu0 %v4457
  %v4554 = vpop.f32.mrf.mxu0
  %v4555 = vadd.f32 0.0, %v4554
  %v4556 = vpop.f32.mrf.mxu0
  %v4557 = vadd.f32 0.0, %v4556
  %4558 = vmatmul.bf16.gmra.mxu0 %v4458
  %v4559 = vpop.f32.mrf.mxu0
  %v4560 = vadd.f32 0.0, %v4559
  %v4561 = vpop.f32.mrf.mxu0
  %v4562 = vadd.f32 0.0, %v4561
  %4563 = vmatmul.bf16.gmra.mxu0 %v4459
  %v4564 = vpop.f32.mrf.mxu0
  %v4565 = vadd.f32 0.0, %v4564
  %v4566 = vpop.f32.mrf.mxu0
  %v4567 = vadd.f32 0.0, %v4566
  %4568 = vmatmul.bf16.gmra.mxu0 %v4460
  %v4569 = vpop.f32.mrf.mxu0
  %v4570 = vadd.f32 0.0, %v4569
  %v4571 = vpop.f32.mrf.mxu0
  %v4572 = vadd.f32 0.0, %v4571
  %4573 = vmatmul.bf16.gmra.mxu0 %v4461
  %v4574 = vpop.f32.mrf.mxu0
  %v4575 = vadd.f32 0.0, %v4574
  %v4576 = vpop.f32.mrf.mxu0
  %v4577 = vadd.f32 0.0, %v4576
  %4578 = vmatmul.bf16.gmra.mxu0 %v4462
  %v4579 = vpop.f32.mrf.mxu0
  %v4580 = vadd.f32 0.0, %v4579
  %v4581 = vpop.f32.mrf.mxu0
  %v4582 = vadd.f32 0.0, %v4581
  %4583 = vmatmul.bf16.gmra.mxu0 %v4463
  %v4584 = vpop.f32.mrf.mxu0
  %v4585 = vadd.f32 0.0, %v4584
  %v4586 = vpop.f32.mrf.mxu0
  %v4587 = vadd.f32 0.0, %v4586
  %4588 = vmatmul.bf16.gmra.mxu0 %v4464
  %v4589 = vpop.f32.mrf.mxu0
  %v4590 = vadd.f32 0.0, %v4589
  %v4591 = vpop.f32.mrf.mxu0
  %v4592 = vadd.f32 0.0, %v4591
  %4593 = vmatmul.bf16.gmra.mxu0 %v4465
  %v4594 = vpop.f32.mrf.mxu0
  %v4595 = vadd.f32 0.0, %v4594
  %v4596 = vpop.f32.mrf.mxu0
  %v4597 = vadd.f32 0.0, %v4596
  %4598 = vmatmul.bf16.gmra.mxu0 %v4466
  %v4599 = vpop.f32.mrf.mxu0
  %v4600 = vadd.f32 0.0, %v4599
  %v4601 = vpop.f32.mrf.mxu0
  %v4602 = vadd.f32 0.0, %v4601
  %4603 = vmatmul.bf16.gmra.mxu0 %v4467
  %v4604 = vpop.f32.mrf.mxu0
  %v4605 = vadd.f32 0.0, %v4604
  %v4606 = vpop.f32.mrf.mxu0
  %v4607 = vadd.f32 0.0, %v4606
  %4608 = vmatmul.bf16.gmra.mxu0 %v4468
  %v4609 = vpop.f32.mrf.mxu0
  %v4610 = vadd.f32 0.0, %v4609
  %v4611 = vpop.f32.mrf.mxu0
  %v4612 = vadd.f32 0.0, %v4611
  %4613 = vmatmul.bf16.gmra.mxu0 %v4469
  %v4614 = vpop.f32.mrf.mxu0
  %v4615 = vadd.f32 0.0, %v4614
  %v4616 = vpop.f32.mrf.mxu0
  %v4617 = vadd.f32 0.0, %v4616
  %4618 = vmatmul.bf16.gmra.mxu0 %v4470
  %v4619 = vpop.f32.mrf.mxu0
  %v4620 = vadd.f32 0.0, %v4619
  %v4621 = vpop.f32.mrf.mxu0
  %v4622 = vadd.f32 0.0, %v4621
  %4623 = vdwg.mxu0
  %4624 = vst [vmem:[%s3] sm:$0xff] %v4545
  %4625 = vst [vmem:[%s3 + $0x8] sm:$0xff] %v4547
  %4626 = vst [vmem:[%s3 + $0x10] sm:$0xff] %v4550
  %4627 = vst [vmem:[%s3 + $0x18] sm:$0xff] %v4552
  %4628 = vst [vmem:[%s3 + $0x20] sm:$0xff] %v4555
  %4629 = vst [vmem:[%s3 + $0x28] sm:$0xff] %v4557
  %4630 = vst [vmem:[%s3 + $0x30] sm:$0xff] %v4560
  %4631 = vst [vmem:[%s3 + $0x38] sm:$0xff] %v4562
  %4632 = vst [vmem:[%s3 + $0x40] sm:$0xff] %v4565
  %4633 = vst [vmem:[%s3 + $0x48] sm:$0xff] %v4567
  %4634 = vst [vmem:[%s3 + $0x50] sm:$0xff] %v4570
  %4635 = vst [vmem:[%s3 + $0x58] sm:$0xff] %v4572
  %4636 = vst [vmem:[%s3 + $0x60] sm:$0xff] %v4575
  %4637 = vst [vmem:[%s3 + $0x68] sm:$0xff] %v4577
  %4638 = vst [vmem:[%s3 + $0x70] sm:$0xff] %v4580
  %4639 = vst [vmem:[%s3 + $0x78] sm:$0xff] %v4582
  %4640 = vst [vmem:[%s3 + $0x80] sm:$0xff] %v4585
  %4641 = vst [vmem:[%s3 + $0x88] sm:$0xff] %v4587
  %4642 = vst [vmem:[%s3 + $0x90] sm:$0xff] %v4590
  %4643 = vst [vmem:[%s3 + $0x98] sm:$0xff] %v4592
  %4644 = vst [vmem:[%s3 + $0xa0] sm:$0xff] %v4595
  %4645 = vst [vmem:[%s3 + $0xa8] sm:$0xff] %v4597
  %4646 = vst [vmem:[%s3 + $0xb0] sm:$0xff] %v4600
  %4647 = vst [vmem:[%s3 + $0xb8] sm:$0xff] %v4602
  %4648 = vst [vmem:[%s3 + $0xc0] sm:$0xff] %v4605
  %4649 = vst [vmem:[%s3 + $0xc8] sm:$0xff] %v4607
  %4650 = vst [vmem:[%s3 + $0xd0] sm:$0xff] %v4610
  %4651 = vst [vmem:[%s3 + $0xd8] sm:$0xff] %v4612
  %4652 = vst [vmem:[%s3 + $0xe0] sm:$0xff] %v4615
  %4653 = vst [vmem:[%s3 + $0xe8] sm:$0xff] %v4617
  %4654 = vst [vmem:[%s3 + $0xf0] sm:$0xff] %v4620
  %4655 = vst [vmem:[%s3 + $0xf8] sm:$0xff] %v4622
  %v4656 = vpack.c.bf16 %v4547, %v4545
  %v4657 = vpack.c.bf16 %v4552, %v4550
  %v4658 = vpack.c.bf16 %v4557, %v4555
  %v4659 = vpack.c.bf16 %v4562, %v4560
  %v4660 = vpack.c.bf16 %v4567, %v4565
  %v4661 = vpack.c.bf16 %v4572, %v4570
  %v4662 = vpack.c.bf16 %v4577, %v4575
  %v4663 = vpack.c.bf16 %v4582, %v4580
  %v4664 = vpack.c.bf16 %v4587, %v4585
  %v4665 = vpack.c.bf16 %v4592, %v4590
  %v4666 = vpack.c.bf16 %v4597, %v4595
  %v4667 = vpack.c.bf16 %v4602, %v4600
  %v4668 = vpack.c.bf16 %v4607, %v4605
  %v4669 = vpack.c.bf16 %v4612, %v4610
  %v4670 = vpack.c.bf16 %v4617, %v4615
  %v4671 = vpack.c.bf16 %v4622, %v4620
  %v4672 = vld [vmem:[%s1 + $0x20] sm:$0xf]
  %v4673 = vld [vmem:[%s1 + $0x60] sm:$0xf]
  %v4674 = vld [vmem:[%s1 + $0xa0] sm:$0xf]
  %v4675 = vld [vmem:[%s1 + $0xe0] sm:$0xf]
  %v4676 = vld [vmem:[%s1 + $0x120] sm:$0xf]
  %v4677 = vld [vmem:[%s1 + $0x160] sm:$0xf]
  %v4678 = vld [vmem:[%s1 + $0x1a0] sm:$0xf]
  %v4679 = vld [vmem:[%s1 + $0x1e0] sm:$0xf]
  %v4680 = vld [vmem:[%s1 + $0x220] sm:$0xf]
  %v4681 = vld [vmem:[%s1 + $0x260] sm:$0xf]
  %v4682 = vld [vmem:[%s1 + $0x2a0] sm:$0xf]
  %v4683 = vld [vmem:[%s1 + $0x2e0] sm:$0xf]
  %v4684 = vld [vmem:[%s1 + $0x320] sm:$0xf]
  %v4685 = vld [vmem:[%s1 + $0x360] sm:$0xf]
  %v4686 = vld [vmem:[%s1 + $0x3a0] sm:$0xf]
  %v4687 = vld [vmem:[%s1 + $0x3e0] sm:$0xf]
  %v4688 = vld [vmem:[%s2 + $0x15] sm:$0x1]
  %v4690 = vperm.slane %v4688, 0
  %v4708 = vunpack.c.l.b16 %v4672
  %v4709 = vunpack.c.l.b16 %v4673
  %v4710 = vunpack.c.l.b16 %v4674
  %v4711 = vunpack.c.l.b16 %v4675
  %v4712 = vunpack.c.l.b16 %v4676
  %v4713 = vunpack.c.l.b16 %v4677
  %v4714 = vunpack.c.l.b16 %v4678
  %v4715 = vunpack.c.l.b16 %v4679
  %v4716 = vunpack.c.l.b16 %v4680
  %v4717 = vunpack.c.l.b16 %v4681
  %v4718 = vunpack.c.l.b16 %v4682
  %v4719 = vunpack.c.l.b16 %v4683
  %v4720 = vunpack.c.l.b16 %v4684
  %v4721 = vunpack.c.l.b16 %v4685
  %v4722 = vunpack.c.l.b16 %v4686
  %v4723 = vunpack.c.l.b16 %v4687
  %v4724 = vpack.c.b16 %v4709, %v4708
  %v4725 = vpack.c.b16 %v4711, %v4710
  %v4726 = vpack.c.b16 %v4713, %v4712
  %v4727 = vpack.c.b16 %v4715, %v4714
  %v4728 = vpack.c.b16 %v4717, %v4716
  %v4729 = vpack.c.b16 %v4719, %v4718
  %v4730 = vpack.c.b16 %v4721, %v4720
  %v4731 = vpack.c.b16 %v4723, %v4722
  %4740 = vmatpush.bf16.msra.mxu0 %v4731
  %4741 = vmatpush.bf16.msra.mxu0 %v4730
  %4742 = vmatpush.bf16.msra.mxu0 %v4729
  %4743 = vmatpush.bf16.msra.mxu0 %v4728
  %4744 = vmatpush.bf16.msra.mxu0 %v4727
  %4745 = vmatpush.bf16.msra.mxu0 %v4726
  %4746 = vmatpush.bf16.msra.mxu0 %v4725
  %4747 = vmatpush.bf16.msra.mxu0 %v4724
  %4748 = vmatmul.bf16.gmra.mxu0 %v4656
  %v4749 = vpop.f32.mrf.mxu0
  %v4750 = vadd.f32 %v4690, %v4749
  %v4751 = vpop.f32.mrf.mxu0
  %v4752 = vadd.f32 %v4690, %v4751
  %4753 = vmatmul.bf16.gmra.mxu0 %v4657
  %v4754 = vpop.f32.mrf.mxu0
  %v4755 = vadd.f32 %v4690, %v4754
  %v4756 = vpop.f32.mrf.mxu0
  %v4757 = vadd.f32 %v4690, %v4756
  %4758 = vmatmul.bf16.gmra.mxu0 %v4658
  %v4759 = vpop.f32.mrf.mxu0
  %v4760 = vadd.f32 %v4690, %v4759
  %v4761 = vpop.f32.mrf.mxu0
  %v4762 = vadd.f32 %v4690, %v4761
  %4763 = vmatmul.bf16.gmra.mxu0 %v4659
  %v4764 = vpop.f32.mrf.mxu0
  %v4765 = vadd.f32 %v4690, %v4764
  %v4766 = vpop.f32.mrf.mxu0
  %v4767 = vadd.f32 %v4690, %v4766
  %4768 = vmatmul.bf16.gmra.mxu0 %v4660
  %v4769 = vpop.f32.mrf.mxu0
  %v4770 = vadd.f32 %v4690, %v4769
  %v4771 = vpop.f32.mrf.mxu0
  %v4772 = vadd.f32 %v4690, %v4771
  %4773 = vmatmul.bf16.gmra.mxu0 %v4661
  %v4774 = vpop.f32.mrf.mxu0
  %v4775 = vadd.f32 %v4690, %v4774
  %v4776 = vpop.f32.mrf.mxu0
  %v4777 = vadd.f32 %v4690, %v4776
  %4778 = vmatmul.bf16.gmra.mxu0 %v4662
  %v4779 = vpop.f32.mrf.mxu0
  %v4780 = vadd.f32 %v4690, %v4779
  %v4781 = vpop.f32.mrf.mxu0
  %v4782 = vadd.f32 %v4690, %v4781
  %4783 = vmatmul.bf16.gmra.mxu0 %v4663
  %v4784 = vpop.f32.mrf.mxu0
  %v4785 = vadd.f32 %v4690, %v4784
  %v4786 = vpop.f32.mrf.mxu0
  %v4787 = vadd.f32 %v4690, %v4786
  %4788 = vmatmul.bf16.gmra.mxu0 %v4664
  %v4789 = vpop.f32.mrf.mxu0
  %v4790 = vadd.f32 %v4690, %v4789
  %v4791 = vpop.f32.mrf.mxu0
  %v4792 = vadd.f32 %v4690, %v4791
  %4793 = vmatmul.bf16.gmra.mxu0 %v4665
  %v4794 = vpop.f32.mrf.mxu0
  %v4795 = vadd.f32 %v4690, %v4794
  %v4796 = vpop.f32.mrf.mxu0
  %v4797 = vadd.f32 %v4690, %v4796
  %4798 = vmatmul.bf16.gmra.mxu0 %v4666
  %v4799 = vpop.f32.mrf.mxu0
  %v4800 = vadd.f32 %v4690, %v4799
  %v4801 = vpop.f32.mrf.mxu0
  %v4802 = vadd.f32 %v4690, %v4801
  %4803 = vmatmul.bf16.gmra.mxu0 %v4667
  %v4804 = vpop.f32.mrf.mxu0
  %v4805 = vadd.f32 %v4690, %v4804
  %v4806 = vpop.f32.mrf.mxu0
  %v4807 = vadd.f32 %v4690, %v4806
  %4808 = vmatmul.bf16.gmra.mxu0 %v4668
  %v4809 = vpop.f32.mrf.mxu0
  %v4810 = vadd.f32 %v4690, %v4809
  %v4811 = vpop.f32.mrf.mxu0
  %v4812 = vadd.f32 %v4690, %v4811
  %4813 = vmatmul.bf16.gmra.mxu0 %v4669
  %v4814 = vpop.f32.mrf.mxu0
  %v4815 = vadd.f32 %v4690, %v4814
  %v4816 = vpop.f32.mrf.mxu0
  %v4817 = vadd.f32 %v4690, %v4816
  %4818 = vmatmul.bf16.gmra.mxu0 %v4670
  %v4819 = vpop.f32.mrf.mxu0
  %v4820 = vadd.f32 %v4690, %v4819
  %v4821 = vpop.f32.mrf.mxu0
  %v4822 = vadd.f32 %v4690, %v4821
  %4823 = vmatmul.bf16.gmra.mxu0 %v4671
  %v4824 = vpop.f32.mrf.mxu0
  %v4825 = vadd.f32 %v4690, %v4824
  %v4826 = vpop.f32.mrf.mxu0
  %v4827 = vadd.f32 %v4690, %v4826
  %4828 = vdwg.mxu0
  %v4829 = vadd.f32 %v4750, %v4752
  %v4830 = vadd.f32 %v4829, %v4755
  %v4831 = vadd.f32 %v4830, %v4757
  %v4832 = vadd.f32 %v4831, %v4760
  %v4833 = vadd.f32 %v4832, %v4762
  %v4834 = vadd.f32 %v4833, %v4765
  %v4835 = vadd.f32 %v4834, %v4767
  %v4836 = vadd.f32 %v4835, %v4770
  %v4837 = vadd.f32 %v4836, %v4772
  %v4838 = vadd.f32 %v4837, %v4775
  %v4839 = vadd.f32 %v4838, %v4777
  %v4840 = vadd.f32 %v4839, %v4780
  %v4841 = vadd.f32 %v4840, %v4782
  %v4842 = vadd.f32 %v4841, %v4785
  %v4843 = vadd.f32 %v4842, %v4787
  %v4844 = vadd.f32 %v4843, %v4790
  %v4845 = vadd.f32 %v4844, %v4792
  %v4846 = vadd.f32 %v4845, %v4795
  %v4847 = vadd.f32 %v4846, %v4797
  %v4848 = vadd.f32 %v4847, %v4800
  %v4849 = vadd.f32 %v4848, %v4802
  %v4850 = vadd.f32 %v4849, %v4805
  %v4851 = vadd.f32 %v4850, %v4807
  %v4852 = vadd.f32 %v4851, %v4810
  %v4853 = vadd.f32 %v4852, %v4812
  %v4854 = vadd.f32 %v4853, %v4815
  %v4855 = vadd.f32 %v4854, %v4817
  %v4856 = vadd.f32 %v4855, %v4820
  %v4857 = vadd.f32 %v4856, %v4822
  %v4858 = vadd.f32 %v4857, %v4825
  %v4859 = vadd.f32 %v4858, %v4827
  %v4860 = vrot.slane %v4859, 4
  %v4861 = vadd.f32 %v4859, %v4860
  %v4862 = vrot.slane %v4861, 2
  %v4863 = vadd.f32 %v4861, %v4862
  %v4864 = vrot.slane %v4863, 1
  %v4865 = vadd.f32 %v4863, %v4864
  %v4866 = vmul.f32 %v4865, %v856
  %v4867 = vmul.f32 %v4750, %v4750
  %v4868 = vmul.f32 %v4752, %v4752
  %v4869 = vmul.f32 %v4755, %v4755
  %v4870 = vmul.f32 %v4757, %v4757
  %v4871 = vmul.f32 %v4760, %v4760
  %v4872 = vmul.f32 %v4762, %v4762
  %v4873 = vmul.f32 %v4765, %v4765
  %v4874 = vmul.f32 %v4767, %v4767
  %v4875 = vmul.f32 %v4770, %v4770
  %v4876 = vmul.f32 %v4772, %v4772
  %v4877 = vmul.f32 %v4775, %v4775
  %v4878 = vmul.f32 %v4777, %v4777
  %v4879 = vmul.f32 %v4780, %v4780
  %v4880 = vmul.f32 %v4782, %v4782
  %v4881 = vmul.f32 %v4785, %v4785
  %v4882 = vmul.f32 %v4787, %v4787
  %v4883 = vmul.f32 %v4790, %v4790
  %v4884 = vmul.f32 %v4792, %v4792
  %v4885 = vmul.f32 %v4795, %v4795
  %v4886 = vmul.f32 %v4797, %v4797
  %v4887 = vmul.f32 %v4800, %v4800
  %v4888 = vmul.f32 %v4802, %v4802
  %v4889 = vmul.f32 %v4805, %v4805
  %v4890 = vmul.f32 %v4807, %v4807
  %v4891 = vmul.f32 %v4810, %v4810
  %v4892 = vmul.f32 %v4812, %v4812
  %v4893 = vmul.f32 %v4815, %v4815
  %v4894 = vmul.f32 %v4817, %v4817
  %v4895 = vmul.f32 %v4820, %v4820
  %v4896 = vmul.f32 %v4822, %v4822
  %v4897 = vmul.f32 %v4825, %v4825
  %v4898 = vmul.f32 %v4827, %v4827
  %v4899 = vadd.f32 %v4867, %v4868
  %v4900 = vadd.f32 %v4899, %v4869
  %v4901 = vadd.f32 %v4900, %v4870
  %v4902 = vadd.f32 %v4901, %v4871
  %v4903 = vadd.f32 %v4902, %v4872
  %v4904 = vadd.f32 %v4903, %v4873
  %v4905 = vadd.f32 %v4904, %v4874
  %v4906 = vadd.f32 %v4905, %v4875
  %v4907 = vadd.f32 %v4906, %v4876
  %v4908 = vadd.f32 %v4907, %v4877
  %v4909 = vadd.f32 %v4908, %v4878
  %v4910 = vadd.f32 %v4909, %v4879
  %v4911 = vadd.f32 %v4910, %v4880
  %v4912 = vadd.f32 %v4911, %v4881
  %v4913 = vadd.f32 %v4912, %v4882
  %v4914 = vadd.f32 %v4913, %v4883
  %v4915 = vadd.f32 %v4914, %v4884
  %v4916 = vadd.f32 %v4915, %v4885
  %v4917 = vadd.f32 %v4916, %v4886
  %v4918 = vadd.f32 %v4917, %v4887
  %v4919 = vadd.f32 %v4918, %v4888
  %v4920 = vadd.f32 %v4919, %v4889
  %v4921 = vadd.f32 %v4920, %v4890
  %v4922 = vadd.f32 %v4921, %v4891
  %v4923 = vadd.f32 %v4922, %v4892
  %v4924 = vadd.f32 %v4923, %v4893
  %v4925 = vadd.f32 %v4924, %v4894
  %v4926 = vadd.f32 %v4925, %v4895
  %v4927 = vadd.f32 %v4926, %v4896
  %v4928 = vadd.f32 %v4927, %v4897
  %v4929 = vadd.f32 %v4928, %v4898
  %v4930 = vrot.slane %v4929, 4
  %v4931 = vadd.f32 %v4929, %v4930
  %v4932 = vrot.slane %v4931, 2
  %v4933 = vadd.f32 %v4931, %v4932
  %v4934 = vrot.slane %v4933, 1
  %v4935 = vadd.f32 %v4933, %v4934
  %v4936 = vmul.f32 %v4935, %v856
  %v4937 = vmul.f32 %v4866, %v4866
  %v4938 = vsub.f32 %v4936, %v4937
  %v4939 = vmax.f32 %v4938, 0.0
  %v4940 = vsub.f32 %v4750, %v4866
  %v4941 = vsub.f32 %v4752, %v4866
  %v4942 = vsub.f32 %v4755, %v4866
  %v4943 = vsub.f32 %v4757, %v4866
  %v4944 = vsub.f32 %v4760, %v4866
  %v4945 = vsub.f32 %v4762, %v4866
  %v4946 = vsub.f32 %v4765, %v4866
  %v4947 = vsub.f32 %v4767, %v4866
  %v4948 = vsub.f32 %v4770, %v4866
  %v4949 = vsub.f32 %v4772, %v4866
  %v4950 = vsub.f32 %v4775, %v4866
  %v4951 = vsub.f32 %v4777, %v4866
  %v4952 = vsub.f32 %v4780, %v4866
  %v4953 = vsub.f32 %v4782, %v4866
  %v4954 = vsub.f32 %v4785, %v4866
  %v4955 = vsub.f32 %v4787, %v4866
  %v4956 = vsub.f32 %v4790, %v4866
  %v4957 = vsub.f32 %v4792, %v4866
  %v4958 = vsub.f32 %v4795, %v4866
  %v4959 = vsub.f32 %v4797, %v4866
  %v4960 = vsub.f32 %v4800, %v4866
  %v4961 = vsub.f32 %v4802, %v4866
  %v4962 = vsub.f32 %v4805, %v4866
  %v4963 = vsub.f32 %v4807, %v4866
  %v4964 = vsub.f32 %v4810, %v4866
  %v4965 = vsub.f32 %v4812, %v4866
  %v4966 = vsub.f32 %v4815, %v4866
  %v4967 = vsub.f32 %v4817, %v4866
  %v4968 = vsub.f32 %v4820, %v4866
  %v4969 = vsub.f32 %v4822, %v4866
  %v4970 = vsub.f32 %v4825, %v4866
  %v4971 = vsub.f32 %v4827, %v4866
  %v4972 = vadd.f32 %v4939, 1e-05
  %v4973 = vrsqrt.pop %v4972
  %v4974 = vmul.f32 %v4973, %v4972
  %v4975 = vmul.f32 %v4974, %v4973
  %v4976 = vmul.f32 0.5, %v4975
  %v4977 = vsub.f32 1.5, %v4976
  %v4978 = vmul.f32 %v4973, %v4977
  %vm4979 = vweird.f32 %v4972
  %vm4980 = vweird.f32 %v4973
  %vm4981 = vmor %vm4979, %vm4980
  %v4982 = vsel %vm4981, %v4973, %v4978
  %v4983 = vmul.f32 %v4940, %v4982
  %v4984 = vmul.f32 %v4941, %v4982
  %v4985 = vmul.f32 %v4942, %v4982
  %v4986 = vmul.f32 %v4943, %v4982
  %v4987 = vmul.f32 %v4944, %v4982
  %v4988 = vmul.f32 %v4945, %v4982
  %v4989 = vmul.f32 %v4946, %v4982
  %v4990 = vmul.f32 %v4947, %v4982
  %v4991 = vmul.f32 %v4948, %v4982
  %v4992 = vmul.f32 %v4949, %v4982
  %v4993 = vmul.f32 %v4950, %v4982
  %v4994 = vmul.f32 %v4951, %v4982
  %v4995 = vmul.f32 %v4952, %v4982
  %v4996 = vmul.f32 %v4953, %v4982
  %v4997 = vmul.f32 %v4954, %v4982
  %v4998 = vmul.f32 %v4955, %v4982
  %v4999 = vmul.f32 %v4956, %v4982
  %v5000 = vmul.f32 %v4957, %v4982
  %v5001 = vmul.f32 %v4958, %v4982
  %v5002 = vmul.f32 %v4959, %v4982
  %v5003 = vmul.f32 %v4960, %v4982
  %v5004 = vmul.f32 %v4961, %v4982
  %v5005 = vmul.f32 %v4962, %v4982
  %v5006 = vmul.f32 %v4963, %v4982
  %v5007 = vmul.f32 %v4964, %v4982
  %v5008 = vmul.f32 %v4965, %v4982
  %v5009 = vmul.f32 %v4966, %v4982
  %v5010 = vmul.f32 %v4967, %v4982
  %v5011 = vmul.f32 %v4968, %v4982
  %v5012 = vmul.f32 %v4969, %v4982
  %v5013 = vmul.f32 %v4970, %v4982
  %v5014 = vmul.f32 %v4971, %v4982
  %v5015 = vld [vmem:[%s2 + $0x16] sm:$0x1]
  %v5017 = vperm.slane %v5015, 0
  %v5019 = vmul.f32 %v4983, %v5017
  %v5020 = vmul.f32 %v4984, %v5017
  %v5021 = vmul.f32 %v4985, %v5017
  %v5022 = vmul.f32 %v4986, %v5017
  %v5023 = vmul.f32 %v4987, %v5017
  %v5024 = vmul.f32 %v4988, %v5017
  %v5025 = vmul.f32 %v4989, %v5017
  %v5026 = vmul.f32 %v4990, %v5017
  %v5027 = vmul.f32 %v4991, %v5017
  %v5028 = vmul.f32 %v4992, %v5017
  %v5029 = vmul.f32 %v4993, %v5017
  %v5030 = vmul.f32 %v4994, %v5017
  %v5031 = vmul.f32 %v4995, %v5017
  %v5032 = vmul.f32 %v4996, %v5017
  %v5033 = vmul.f32 %v4997, %v5017
  %v5034 = vmul.f32 %v4998, %v5017
  %v5035 = vmul.f32 %v4999, %v5017
  %v5036 = vmul.f32 %v5000, %v5017
  %v5037 = vmul.f32 %v5001, %v5017
  %v5038 = vmul.f32 %v5002, %v5017
  %v5039 = vmul.f32 %v5003, %v5017
  %v5040 = vmul.f32 %v5004, %v5017
  %v5041 = vmul.f32 %v5005, %v5017
  %v5042 = vmul.f32 %v5006, %v5017
  %v5043 = vmul.f32 %v5007, %v5017
  %v5044 = vmul.f32 %v5008, %v5017
  %v5045 = vmul.f32 %v5009, %v5017
  %v5046 = vmul.f32 %v5010, %v5017
  %v5047 = vmul.f32 %v5011, %v5017
  %v5048 = vmul.f32 %v5012, %v5017
  %v5049 = vmul.f32 %v5013, %v5017
  %v5050 = vmul.f32 %v5014, %v5017
  %v5051 = vld [vmem:[%s2 + $0x17] sm:$0x1]
  %v5053 = vperm.slane %v5051, 0
  %v5055 = vadd.f32 %v5019, %v5053
  %v5056 = vadd.f32 %v5020, %v5053
  %v5057 = vadd.f32 %v5021, %v5053
  %v5058 = vadd.f32 %v5022, %v5053
  %v5059 = vadd.f32 %v5023, %v5053
  %v5060 = vadd.f32 %v5024, %v5053
  %v5061 = vadd.f32 %v5025, %v5053
  %v5062 = vadd.f32 %v5026, %v5053
  %v5063 = vadd.f32 %v5027, %v5053
  %v5064 = vadd.f32 %v5028, %v5053
  %v5065 = vadd.f32 %v5029, %v5053
  %v5066 = vadd.f32 %v5030, %v5053
  %v5067 = vadd.f32 %v5031, %v5053
  %v5068 = vadd.f32 %v5032, %v5053
  %v5069 = vadd.f32 %v5033, %v5053
  %v5070 = vadd.f32 %v5034, %v5053
  %v5071 = vadd.f32 %v5035, %v5053
  %v5072 = vadd.f32 %v5036, %v5053
  %v5073 = vadd.f32 %v5037, %v5053
  %v5074 = vadd.f32 %v5038, %v5053
  %v5075 = vadd.f32 %v5039, %v5053
  %v5076 = vadd.f32 %v5040, %v5053
  %v5077 = vadd.f32 %v5041, %v5053
  %v5078 = vadd.f32 %v5042, %v5053
  %v5079 = vadd.f32 %v5043, %v5053
  %v5080 = vadd.f32 %v5044, %v5053
  %v5081 = vadd.f32 %v5045, %v5053
  %v5082 = vadd.f32 %v5046, %v5053
  %v5083 = vadd.f32 %v5047, %v5053
  %v5084 = vadd.f32 %v5048, %v5053
  %v5085 = vadd.f32 %v5049, %v5053
  %v5086 = vadd.f32 %v5050, %v5053
  %v5087 = vmul.f32 %v5055, 0.01
  %v5088 = vmul.f32 %v5056, 0.01
  %v5089 = vmul.f32 %v5057, 0.01
  %v5090 = vmul.f32 %v5058, 0.01
  %v5091 = vmul.f32 %v5059, 0.01
  %v5092 = vmul.f32 %v5060, 0.01
  %v5093 = vmul.f32 %v5061, 0.01
  %v5094 = vmul.f32 %v5062, 0.01
  %v5095 = vmul.f32 %v5063, 0.01
  %v5096 = vmul.f32 %v5064, 0.01
  %v5097 = vmul.f32 %v5065, 0.01
  %v5098 = vmul.f32 %v5066, 0.01
  %v5099 = vmul.f32 %v5067, 0.01
  %v5100 = vmul.f32 %v5068, 0.01
  %v5101 = vmul.f32 %v5069, 0.01
  %v5102 = vmul.f32 %v5070, 0.01
  %v5103 = vmul.f32 %v5071, 0.01
  %v5104 = vmul.f32 %v5072, 0.01
  %v5105 = vmul.f32 %v5073, 0.01
  %v5106 = vmul.f32 %v5074, 0.01
  %v5107 = vmul.f32 %v5075, 0.01
  %v5108 = vmul.f32 %v5076, 0.01
  %v5109 = vmul.f32 %v5077, 0.01
  %v5110 = vmul.f32 %v5078, 0.01
  %v5111 = vmul.f32 %v5079, 0.01
  %v5112 = vmul.f32 %v5080, 0.01
  %v5113 = vmul.f32 %v5081, 0.01
  %v5114 = vmul.f32 %v5082, 0.01
  %v5115 = vmul.f32 %v5083, 0.01
  %v5116 = vmul.f32 %v5084, 0.01
  %v5117 = vmul.f32 %v5085, 0.01
  %v5118 = vmul.f32 %v5086, 0.01
  %v5119 = vmax.f32 %v5055, %v5087
  %v5120 = vmax.f32 %v5056, %v5088
  %v5121 = vmax.f32 %v5057, %v5089
  %v5122 = vmax.f32 %v5058, %v5090
  %v5123 = vmax.f32 %v5059, %v5091
  %v5124 = vmax.f32 %v5060, %v5092
  %v5125 = vmax.f32 %v5061, %v5093
  %v5126 = vmax.f32 %v5062, %v5094
  %v5127 = vmax.f32 %v5063, %v5095
  %v5128 = vmax.f32 %v5064, %v5096
  %v5129 = vmax.f32 %v5065, %v5097
  %v5130 = vmax.f32 %v5066, %v5098
  %v5131 = vmax.f32 %v5067, %v5099
  %v5132 = vmax.f32 %v5068, %v5100
  %v5133 = vmax.f32 %v5069, %v5101
  %v5134 = vmax.f32 %v5070, %v5102
  %v5135 = vmax.f32 %v5071, %v5103
  %v5136 = vmax.f32 %v5072, %v5104
  %v5137 = vmax.f32 %v5073, %v5105
  %v5138 = vmax.f32 %v5074, %v5106
  %v5139 = vmax.f32 %v5075, %v5107
  %v5140 = vmax.f32 %v5076, %v5108
  %v5141 = vmax.f32 %v5077, %v5109
  %v5142 = vmax.f32 %v5078, %v5110
  %v5143 = vmax.f32 %v5079, %v5111
  %v5144 = vmax.f32 %v5080, %v5112
  %v5145 = vmax.f32 %v5081, %v5113
  %v5146 = vmax.f32 %v5082, %v5114
  %v5147 = vmax.f32 %v5083, %v5115
  %v5148 = vmax.f32 %v5084, %v5116
  %v5149 = vmax.f32 %v5085, %v5117
  %v5150 = vmax.f32 %v5086, %v5118
  %v5151 = vpack.c.bf16 %v5120, %v5119
  %v5152 = vpack.c.bf16 %v5122, %v5121
  %v5153 = vpack.c.bf16 %v5124, %v5123
  %v5154 = vpack.c.bf16 %v5126, %v5125
  %v5155 = vpack.c.bf16 %v5128, %v5127
  %v5156 = vpack.c.bf16 %v5130, %v5129
  %v5157 = vpack.c.bf16 %v5132, %v5131
  %v5158 = vpack.c.bf16 %v5134, %v5133
  %v5159 = vpack.c.bf16 %v5136, %v5135
  %v5160 = vpack.c.bf16 %v5138, %v5137
  %v5161 = vpack.c.bf16 %v5140, %v5139
  %v5162 = vpack.c.bf16 %v5142, %v5141
  %v5163 = vpack.c.bf16 %v5144, %v5143
  %v5164 = vpack.c.bf16 %v5146, %v5145
  %v5165 = vpack.c.bf16 %v5148, %v5147
  %v5166 = vpack.c.bf16 %v5150, %v5149
  %v5167 = vld [vmem:[%s1 + $0x24] sm:$0xff]
  %v5168 = vld [vmem:[%s1 + $0x64] sm:$0xff]
  %v5169 = vld [vmem:[%s1 + $0xa4] sm:$0xff]
  %v5170 = vld [vmem:[%s1 + $0xe4] sm:$0xff]
  %v5171 = vld [vmem:[%s1 + $0x124] sm:$0xff]
  %v5172 = vld [vmem:[%s1 + $0x164] sm:$0xff]
  %v5173 = vld [vmem:[%s1 + $0x1a4] sm:$0xff]
  %v5174 = vld [vmem:[%s1 + $0x1e4] sm:$0xff]
  %v5175 = vld [vmem:[%s1 + $0x224] sm:$0xff]
  %v5176 = vld [vmem:[%s1 + $0x264] sm:$0xff]
  %v5177 = vld [vmem:[%s1 + $0x2a4] sm:$0xff]
  %v5178 = vld [vmem:[%s1 + $0x2e4] sm:$0xff]
  %v5179 = vld [vmem:[%s1 + $0x324] sm:$0xff]
  %v5180 = vld [vmem:[%s1 + $0x364] sm:$0xff]
  %v5181 = vld [vmem:[%s1 + $0x3a4] sm:$0xff]
  %v5182 = vld [vmem:[%s1 + $0x3e4] sm:$0xff]
  %v5183 = vld [vmem:[%s2 + $0x18] sm:$0x3]
  %v5185 = vperm.slane %v5183, 0
  %v5186 = vperm.slane %v5183, 1
  %v5205 = vunpack.c.l.b16 %v5167
  %v5206 = vunpack.c.h.b16 %v5167
  %v5207 = vunpack.c.l.b16 %v5168
  %v5208 = vunpack.c.h.b16 %v5168
  %v5209 = vunpack.c.l.b16 %v5169
  %v5210 = vunpack.c.h.b16 %v5169
  %v5211 = vunpack.c.l.b16 %v5170
  %v5212 = vunpack.c.h.b16 %v5170
  %v5213 = vunpack.c.l.b16 %v5171
  %v5214 = vunpack.c.h.b16 %v5171
  %v5215 = vunpack.c.l.b16 %v5172
  %v5216 = vunpack.c.h.b16 %v5172
  %v5217 = vunpack.c.l.b16 %v5173
  %v5218 = vunpack.c.h.b16 %v5173
  %v5219 = vunpack.c.l.b16 %v5174
  %v5220 = vunpack.c.h.b16 %v5174
  %v5221 = vunpack.c.l.b16 %v5175
  %v5222 = vunpack.c.h.b16 %v5175
  %v5223 = vunpack.c.l.b16 %v5176
  %v5224 = vunpack.c.h.b16 %v5176
  %v5225 = vunpack.c.l.b16 %v5177
  %v5226 = vunpack.c.h.b16 %v5177
  %v5227 = vunpack.c.l.b16 %v5178
  %v5228 = vunpack.c.h.b16 %v5178
  %v5229 = vunpack.c.l.b16 %v5179
  %v5230 = vunpack.c.h.b16 %v5179
  %v5231 = vunpack.c.l.b16 %v5180
  %v5232 = vunpack.c.h.b16 %v5180
  %v5233 = vunpack.c.l.b16 %v5181
  %v5234 = vunpack.c.h.b16 %v5181
  %v5235 = vunpack.c.l.b16 %v5182
  %v5236 = vunpack.c.h.b16 %v5182
  %v5237 = vpack.c.b16 %v5207, %v5205
  %v5238 = vpack.c.b16 %v5208, %v5206
  %v5239 = vpack.c.b16 %v5211, %v5209
  %v5240 = vpack.c.b16 %v5212, %v5210
  %v5241 = vpack.c.b16 %v5215, %v5213
  %v5242 = vpack.c.b16 %v5216, %v5214
  %v5243 = vpack.c.b16 %v5219, %v5217
  %v5244 = vpack.c.b16 %v5220, %v5218
  %v5245 = vpack.c.b16 %v5223, %v5221
  %v5246 = vpack.c.b16 %v5224, %v5222
  %v5247 = vpack.c.b16 %v5227, %v5225
  %v5248 = vpack.c.b16 %v5228, %v5226
  %v5249 = vpack.c.b16 %v5231, %v5229
  %v5250 = vpack.c.b16 %v5232, %v5230
  %v5251 = vpack.c.b16 %v5235, %v5233
  %v5252 = vpack.c.b16 %v5236, %v5234
  %5269 = vmatpush.bf16.msra.mxu0 %v5251
  %5270 = vmatpush.bf16.msra.mxu0 %v5249
  %5271 = vmatpush.bf16.msra.mxu0 %v5247
  %5272 = vmatpush.bf16.msra.mxu0 %v5245
  %5273 = vmatpush.bf16.msra.mxu0 %v5243
  %5274 = vmatpush.bf16.msra.mxu0 %v5241
  %5275 = vmatpush.bf16.msra.mxu0 %v5239
  %5276 = vmatpush.bf16.msra.mxu0 %v5237
  %5277 = vmatmul.bf16.gmra.mxu0 %v5151
  %v5278 = vpop.f32.mrf.mxu0
  %v5279 = vadd.f32 %v5185, %v5278
  %v5280 = vpop.f32.mrf.mxu0
  %v5281 = vadd.f32 %v5185, %v5280
  %5282 = vmatmul.bf16.gmra.mxu0 %v5152
  %v5283 = vpop.f32.mrf.mxu0
  %v5284 = vadd.f32 %v5185, %v5283
  %v5285 = vpop.f32.mrf.mxu0
  %v5286 = vadd.f32 %v5185, %v5285
  %5287 = vmatmul.bf16.gmra.mxu0 %v5153
  %v5288 = vpop.f32.mrf.mxu0
  %v5289 = vadd.f32 %v5185, %v5288
  %v5290 = vpop.f32.mrf.mxu0
  %v5291 = vadd.f32 %v5185, %v5290
  %5292 = vmatmul.bf16.gmra.mxu0 %v5154
  %v5293 = vpop.f32.mrf.mxu0
  %v5294 = vadd.f32 %v5185, %v5293
  %v5295 = vpop.f32.mrf.mxu0
  %v5296 = vadd.f32 %v5185, %v5295
  %5297 = vmatmul.bf16.gmra.mxu0 %v5155
  %v5298 = vpop.f32.mrf.mxu0
  %v5299 = vadd.f32 %v5185, %v5298
  %v5300 = vpop.f32.mrf.mxu0
  %v5301 = vadd.f32 %v5185, %v5300
  %5302 = vmatmul.bf16.gmra.mxu0 %v5156
  %v5303 = vpop.f32.mrf.mxu0
  %v5304 = vadd.f32 %v5185, %v5303
  %v5305 = vpop.f32.mrf.mxu0
  %v5306 = vadd.f32 %v5185, %v5305
  %5307 = vmatmul.bf16.gmra.mxu0 %v5157
  %v5308 = vpop.f32.mrf.mxu0
  %v5309 = vadd.f32 %v5185, %v5308
  %v5310 = vpop.f32.mrf.mxu0
  %v5311 = vadd.f32 %v5185, %v5310
  %5312 = vmatmul.bf16.gmra.mxu0 %v5158
  %v5313 = vpop.f32.mrf.mxu0
  %v5314 = vadd.f32 %v5185, %v5313
  %v5315 = vpop.f32.mrf.mxu0
  %v5316 = vadd.f32 %v5185, %v5315
  %5317 = vmatmul.bf16.gmra.mxu0 %v5159
  %v5318 = vpop.f32.mrf.mxu0
  %v5319 = vadd.f32 %v5185, %v5318
  %v5320 = vpop.f32.mrf.mxu0
  %v5321 = vadd.f32 %v5185, %v5320
  %5322 = vmatmul.bf16.gmra.mxu0 %v5160
  %v5323 = vpop.f32.mrf.mxu0
  %v5324 = vadd.f32 %v5185, %v5323
  %v5325 = vpop.f32.mrf.mxu0
  %v5326 = vadd.f32 %v5185, %v5325
  %5327 = vmatmul.bf16.gmra.mxu0 %v5161
  %v5328 = vpop.f32.mrf.mxu0
  %v5329 = vadd.f32 %v5185, %v5328
  %v5330 = vpop.f32.mrf.mxu0
  %v5331 = vadd.f32 %v5185, %v5330
  %5332 = vmatmul.bf16.gmra.mxu0 %v5162
  %v5333 = vpop.f32.mrf.mxu0
  %v5334 = vadd.f32 %v5185, %v5333
  %v5335 = vpop.f32.mrf.mxu0
  %v5336 = vadd.f32 %v5185, %v5335
  %5337 = vmatmul.bf16.gmra.mxu0 %v5163
  %v5338 = vpop.f32.mrf.mxu0
  %v5339 = vadd.f32 %v5185, %v5338
  %v5340 = vpop.f32.mrf.mxu0
  %v5341 = vadd.f32 %v5185, %v5340
  %5342 = vmatmul.bf16.gmra.mxu0 %v5164
  %v5343 = vpop.f32.mrf.mxu0
  %v5344 = vadd.f32 %v5185, %v5343
  %v5345 = vpop.f32.mrf.mxu0
  %v5346 = vadd.f32 %v5185, %v5345
  %5347 = vmatmul.bf16.gmra.mxu0 %v5165
  %v5348 = vpop.f32.mrf.mxu0
  %v5349 = vadd.f32 %v5185, %v5348
  %v5350 = vpop.f32.mrf.mxu0
  %v5351 = vadd.f32 %v5185, %v5350
  %5352 = vmatmul.bf16.gmra.mxu0 %v5166
  %v5353 = vpop.f32.mrf.mxu0
  %v5354 = vadd.f32 %v5185, %v5353
  %v5355 = vpop.f32.mrf.mxu0
  %v5356 = vadd.f32 %v5185, %v5355
  %5357 = vdwg.mxu0
  %5358 = vmatpush.bf16.msra.mxu0 %v5252
  %5359 = vmatpush.bf16.msra.mxu0 %v5250
  %5360 = vmatpush.bf16.msra.mxu0 %v5248
  %5361 = vmatpush.bf16.msra.mxu0 %v5246
  %5362 = vmatpush.bf16.msra.mxu0 %v5244
  %5363 = vmatpush.bf16.msra.mxu0 %v5242
  %5364 = vmatpush.bf16.msra.mxu0 %v5240
  %5365 = vmatpush.bf16.msra.mxu0 %v5238
  %5366 = vmatmul.bf16.gmra.mxu0 %v5151
  %v5367 = vpop.f32.mrf.mxu0
  %v5368 = vadd.f32 %v5186, %v5367
  %v5369 = vpop.f32.mrf.mxu0
  %v5370 = vadd.f32 %v5186, %v5369
  %5371 = vmatmul.bf16.gmra.mxu0 %v5152
  %v5372 = vpop.f32.mrf.mxu0
  %v5373 = vadd.f32 %v5186, %v5372
  %v5374 = vpop.f32.mrf.mxu0
  %v5375 = vadd.f32 %v5186, %v5374
  %5376 = vmatmul.bf16.gmra.mxu0 %v5153
  %v5377 = vpop.f32.mrf.mxu0
  %v5378 = vadd.f32 %v5186, %v5377
  %v5379 = vpop.f32.mrf.mxu0
  %v5380 = vadd.f32 %v5186, %v5379
  %5381 = vmatmul.bf16.gmra.mxu0 %v5154
  %v5382 = vpop.f32.mrf.mxu0
  %v5383 = vadd.f32 %v5186, %v5382
  %v5384 = vpop.f32.mrf.mxu0
  %v5385 = vadd.f32 %v5186, %v5384
  %5386 = vmatmul.bf16.gmra.mxu0 %v5155
  %v5387 = vpop.f32.mrf.mxu0
  %v5388 = vadd.f32 %v5186, %v5387
  %v5389 = vpop.f32.mrf.mxu0
  %v5390 = vadd.f32 %v5186, %v5389
  %5391 = vmatmul.bf16.gmra.mxu0 %v5156
  %v5392 = vpop.f32.mrf.mxu0
  %v5393 = vadd.f32 %v5186, %v5392
  %v5394 = vpop.f32.mrf.mxu0
  %v5395 = vadd.f32 %v5186, %v5394
  %5396 = vmatmul.bf16.gmra.mxu0 %v5157
  %v5397 = vpop.f32.mrf.mxu0
  %v5398 = vadd.f32 %v5186, %v5397
  %v5399 = vpop.f32.mrf.mxu0
  %v5400 = vadd.f32 %v5186, %v5399
  %5401 = vmatmul.bf16.gmra.mxu0 %v5158
  %v5402 = vpop.f32.mrf.mxu0
  %v5403 = vadd.f32 %v5186, %v5402
  %v5404 = vpop.f32.mrf.mxu0
  %v5405 = vadd.f32 %v5186, %v5404
  %5406 = vmatmul.bf16.gmra.mxu0 %v5159
  %v5407 = vpop.f32.mrf.mxu0
  %v5408 = vadd.f32 %v5186, %v5407
  %v5409 = vpop.f32.mrf.mxu0
  %v5410 = vadd.f32 %v5186, %v5409
  %5411 = vmatmul.bf16.gmra.mxu0 %v5160
  %v5412 = vpop.f32.mrf.mxu0
  %v5413 = vadd.f32 %v5186, %v5412
  %v5414 = vpop.f32.mrf.mxu0
  %v5415 = vadd.f32 %v5186, %v5414
  %5416 = vmatmul.bf16.gmra.mxu0 %v5161
  %v5417 = vpop.f32.mrf.mxu0
  %v5418 = vadd.f32 %v5186, %v5417
  %v5419 = vpop.f32.mrf.mxu0
  %v5420 = vadd.f32 %v5186, %v5419
  %5421 = vmatmul.bf16.gmra.mxu0 %v5162
  %v5422 = vpop.f32.mrf.mxu0
  %v5423 = vadd.f32 %v5186, %v5422
  %v5424 = vpop.f32.mrf.mxu0
  %v5425 = vadd.f32 %v5186, %v5424
  %5426 = vmatmul.bf16.gmra.mxu0 %v5163
  %v5427 = vpop.f32.mrf.mxu0
  %v5428 = vadd.f32 %v5186, %v5427
  %v5429 = vpop.f32.mrf.mxu0
  %v5430 = vadd.f32 %v5186, %v5429
  %5431 = vmatmul.bf16.gmra.mxu0 %v5164
  %v5432 = vpop.f32.mrf.mxu0
  %v5433 = vadd.f32 %v5186, %v5432
  %v5434 = vpop.f32.mrf.mxu0
  %v5435 = vadd.f32 %v5186, %v5434
  %5436 = vmatmul.bf16.gmra.mxu0 %v5165
  %v5437 = vpop.f32.mrf.mxu0
  %v5438 = vadd.f32 %v5186, %v5437
  %v5439 = vpop.f32.mrf.mxu0
  %v5440 = vadd.f32 %v5186, %v5439
  %5441 = vmatmul.bf16.gmra.mxu0 %v5166
  %v5442 = vpop.f32.mrf.mxu0
  %v5443 = vadd.f32 %v5186, %v5442
  %v5444 = vpop.f32.mrf.mxu0
  %v5445 = vadd.f32 %v5186, %v5444
  %5446 = vdwg.mxu0
  %v5447 = vadd.f32 %v5279, %v5281
  %v5448 = vadd.f32 %v5447, %v5284
  %v5449 = vadd.f32 %v5448, %v5286
  %v5450 = vadd.f32 %v5449, %v5289
  %v5451 = vadd.f32 %v5450, %v5291
  %v5452 = vadd.f32 %v5451, %v5294
  %v5453 = vadd.f32 %v5452, %v5296
  %v5454 = vadd.f32 %v5453, %v5299
  %v5455 = vadd.f32 %v5454, %v5301
  %v5456 = vadd.f32 %v5455, %v5304
  %v5457 = vadd.f32 %v5456, %v5306
  %v5458 = vadd.f32 %v5457, %v5309
  %v5459 = vadd.f32 %v5458, %v5311
  %v5460 = vadd.f32 %v5459, %v5314
  %v5461 = vadd.f32 %v5460, %v5316
  %v5462 = vadd.f32 %v5461, %v5319
  %v5463 = vadd.f32 %v5462, %v5321
  %v5464 = vadd.f32 %v5463, %v5324
  %v5465 = vadd.f32 %v5464, %v5326
  %v5466 = vadd.f32 %v5465, %v5329
  %v5467 = vadd.f32 %v5466, %v5331
  %v5468 = vadd.f32 %v5467, %v5334
  %v5469 = vadd.f32 %v5468, %v5336
  %v5470 = vadd.f32 %v5469, %v5339
  %v5471 = vadd.f32 %v5470, %v5341
  %v5472 = vadd.f32 %v5471, %v5344
  %v5473 = vadd.f32 %v5472, %v5346
  %v5474 = vadd.f32 %v5473, %v5349
  %v5475 = vadd.f32 %v5474, %v5351
  %v5476 = vadd.f32 %v5475, %v5354
  %v5477 = vadd.f32 %v5476, %v5356
  %v5478 = vrot.slane %v5477, 4
  %v5479 = vadd.f32 %v5477, %v5478
  %v5480 = vrot.slane %v5479, 2
  %v5481 = vadd.f32 %v5479, %v5480
  %v5482 = vrot.slane %v5481, 1
  %v5483 = vadd.f32 %v5481, %v5482
  %v5484 = vadd.f32 %v5368, %v5370
  %v5485 = vadd.f32 %v5484, %v5373
  %v5486 = vadd.f32 %v5485, %v5375
  %v5487 = vadd.f32 %v5486, %v5378
  %v5488 = vadd.f32 %v5487, %v5380
  %v5489 = vadd.f32 %v5488, %v5383
  %v5490 = vadd.f32 %v5489, %v5385
  %v5491 = vadd.f32 %v5490, %v5388
  %v5492 = vadd.f32 %v5491, %v5390
  %v5493 = vadd.f32 %v5492, %v5393
  %v5494 = vadd.f32 %v5493, %v5395
  %v5495 = vadd.f32 %v5494, %v5398
  %v5496 = vadd.f32 %v5495, %v5400
  %v5497 = vadd.f32 %v5496, %v5403
  %v5498 = vadd.f32 %v5497, %v5405
  %v5499 = vadd.f32 %v5498, %v5408
  %v5500 = vadd.f32 %v5499, %v5410
  %v5501 = vadd.f32 %v5500, %v5413
  %v5502 = vadd.f32 %v5501, %v5415
  %v5503 = vadd.f32 %v5502, %v5418
  %v5504 = vadd.f32 %v5503, %v5420
  %v5505 = vadd.f32 %v5504, %v5423
  %v5506 = vadd.f32 %v5505, %v5425
  %v5507 = vadd.f32 %v5506, %v5428
  %v5508 = vadd.f32 %v5507, %v5430
  %v5509 = vadd.f32 %v5508, %v5433
  %v5510 = vadd.f32 %v5509, %v5435
  %v5511 = vadd.f32 %v5510, %v5438
  %v5512 = vadd.f32 %v5511, %v5440
  %v5513 = vadd.f32 %v5512, %v5443
  %v5514 = vadd.f32 %v5513, %v5445
  %v5515 = vrot.slane %v5514, 4
  %v5516 = vadd.f32 %v5514, %v5515
  %v5517 = vrot.slane %v5516, 2
  %v5518 = vadd.f32 %v5516, %v5517
  %v5519 = vrot.slane %v5518, 1
  %v5520 = vadd.f32 %v5518, %v5519
  %v5521 = vmul.f32 %v5483, %v856
  %v5522 = vmul.f32 %v5520, %v856
  %v5523 = vmul.f32 %v5279, %v5279
  %v5524 = vmul.f32 %v5368, %v5368
  %v5525 = vmul.f32 %v5281, %v5281
  %v5526 = vmul.f32 %v5370, %v5370
  %v5527 = vmul.f32 %v5284, %v5284
  %v5528 = vmul.f32 %v5373, %v5373
  %v5529 = vmul.f32 %v5286, %v5286
  %v5530 = vmul.f32 %v5375, %v5375
  %v5531 = vmul.f32 %v5289, %v5289
  %v5532 = vmul.f32 %v5378, %v5378
  %v5533 = vmul.f32 %v5291, %v5291
  %v5534 = vmul.f32 %v5380, %v5380
  %v5535 = vmul.f32 %v5294, %v5294
  %v5536 = vmul.f32 %v5383, %v5383
  %v5537 = vmul.f32 %v5296, %v5296
  %v5538 = vmul.f32 %v5385, %v5385
  %v5539 = vmul.f32 %v5299, %v5299
  %v5540 = vmul.f32 %v5388, %v5388
  %v5541 = vmul.f32 %v5301, %v5301
  %v5542 = vmul.f32 %v5390, %v5390
  %v5543 = vmul.f32 %v5304, %v5304
  %v5544 = vmul.f32 %v5393, %v5393
  %v5545 = vmul.f32 %v5306, %v5306
  %v5546 = vmul.f32 %v5395, %v5395
  %v5547 = vmul.f32 %v5309, %v5309
  %v5548 = vmul.f32 %v5398, %v5398
  %v5549 = vmul.f32 %v5311, %v5311
  %v5550 = vmul.f32 %v5400, %v5400
  %v5551 = vmul.f32 %v5314, %v5314
  %v5552 = vmul.f32 %v5403, %v5403
  %v5553 = vmul.f32 %v5316, %v5316
  %v5554 = vmul.f32 %v5405, %v5405
  %v5555 = vmul.f32 %v5319, %v5319
  %v5556 = vmul.f32 %v5408, %v5408
  %v5557 = vmul.f32 %v5321, %v5321
  %v5558 = vmul.f32 %v5410, %v5410
  %v5559 = vmul.f32 %v5324, %v5324
  %v5560 = vmul.f32 %v5413, %v5413
  %v5561 = vmul.f32 %v5326, %v5326
  %v5562 = vmul.f32 %v5415, %v5415
  %v5563 = vmul.f32 %v5329, %v5329
  %v5564 = vmul.f32 %v5418, %v5418
  %v5565 = vmul.f32 %v5331, %v5331
  %v5566 = vmul.f32 %v5420, %v5420
  %v5567 = vmul.f32 %v5334, %v5334
  %v5568 = vmul.f32 %v5423, %v5423
  %v5569 = vmul.f32 %v5336, %v5336
  %v5570 = vmul.f32 %v5425, %v5425
  %v5571 = vmul.f32 %v5339, %v5339
  %v5572 = vmul.f32 %v5428, %v5428
  %v5573 = vmul.f32 %v5341, %v5341
  %v5574 = vmul.f32 %v5430, %v5430
  %v5575 = vmul.f32 %v5344, %v5344
  %v5576 = vmul.f32 %v5433, %v5433
  %v5577 = vmul.f32 %v5346, %v5346
  %v5578 = vmul.f32 %v5435, %v5435
  %v5579 = vmul.f32 %v5349, %v5349
  %v5580 = vmul.f32 %v5438, %v5438
  %v5581 = vmul.f32 %v5351, %v5351
  %v5582 = vmul.f32 %v5440, %v5440
  %v5583 = vmul.f32 %v5354, %v5354
  %v5584 = vmul.f32 %v5443, %v5443
  %v5585 = vmul.f32 %v5356, %v5356
  %v5586 = vmul.f32 %v5445, %v5445
  %v5587 = vadd.f32 %v5523, %v5525
  %v5588 = vadd.f32 %v5587, %v5527
  %v5589 = vadd.f32 %v5588, %v5529
  %v5590 = vadd.f32 %v5589, %v5531
  %v5591 = vadd.f32 %v5590, %v5533
  %v5592 = vadd.f32 %v5591, %v5535
  %v5593 = vadd.f32 %v5592, %v5537
  %v5594 = vadd.f32 %v5593, %v5539
  %v5595 = vadd.f32 %v5594, %v5541
  %v5596 = vadd.f32 %v5595, %v5543
  %v5597 = vadd.f32 %v5596, %v5545
  %v5598 = vadd.f32 %v5597, %v5547
  %v5599 = vadd.f32 %v5598, %v5549
  %v5600 = vadd.f32 %v5599, %v5551
  %v5601 = vadd.f32 %v5600, %v5553
  %v5602 = vadd.f32 %v5601, %v5555
  %v5603 = vadd.f32 %v5602, %v5557
  %v5604 = vadd.f32 %v5603, %v5559
  %v5605 = vadd.f32 %v5604, %v5561
  %v5606 = vadd.f32 %v5605, %v5563
  %v5607 = vadd.f32 %v5606, %v5565
  %v5608 = vadd.f32 %v5607, %v5567
  %v5609 = vadd.f32 %v5608, %v5569
  %v5610 = vadd.f32 %v5609, %v5571
  %v5611 = vadd.f32 %v5610, %v5573
  %v5612 = vadd.f32 %v5611, %v5575
  %v5613 = vadd.f32 %v5612, %v5577
  %v5614 = vadd.f32 %v5613, %v5579
  %v5615 = vadd.f32 %v5614, %v5581
  %v5616 = vadd.f32 %v5615, %v5583
  %v5617 = vadd.f32 %v5616, %v5585
  %v5618 = vrot.slane %v5617, 4
  %v5619 = vadd.f32 %v5617, %v5618
  %v5620 = vrot.slane %v5619, 2
  %v5621 = vadd.f32 %v5619, %v5620
  %v5622 = vrot.slane %v5621, 1
  %v5623 = vadd.f32 %v5621, %v5622
  %v5624 = vadd.f32 %v5524, %v5526
  %v5625 = vadd.f32 %v5624, %v5528
  %v5626 = vadd.f32 %v5625, %v5530
  %v5627 = vadd.f32 %v5626, %v5532
  %v5628 = vadd.f32 %v5627, %v5534
  %v5629 = vadd.f32 %v5628, %v5536
  %v5630 = vadd.f32 %v5629, %v5538
  %v5631 = vadd.f32 %v5630, %v5540
  %v5632 = vadd.f32 %v5631, %v5542
  %v5633 = vadd.f32 %v5632, %v5544
  %v5634 = vadd.f32 %v5633, %v5546
  %v5635 = vadd.f32 %v5634, %v5548
  %v5636 = vadd.f32 %v5635, %v5550
  %v5637 = vadd.f32 %v5636, %v5552
  %v5638 = vadd.f32 %v5637, %v5554
  %v5639 = vadd.f32 %v5638, %v5556
  %v5640 = vadd.f32 %v5639, %v5558
  %v5641 = vadd.f32 %v5640, %v5560
  %v5642 = vadd.f32 %v5641, %v5562
  %v5643 = vadd.f32 %v5642, %v5564
  %v5644 = vadd.f32 %v5643, %v5566
  %v5645 = vadd.f32 %v5644, %v5568
  %v5646 = vadd.f32 %v5645, %v5570
  %v5647 = vadd.f32 %v5646, %v5572
  %v5648 = vadd.f32 %v5647, %v5574
  %v5649 = vadd.f32 %v5648, %v5576
  %v5650 = vadd.f32 %v5649, %v5578
  %v5651 = vadd.f32 %v5650, %v5580
  %v5652 = vadd.f32 %v5651, %v5582
  %v5653 = vadd.f32 %v5652, %v5584
  %v5654 = vadd.f32 %v5653, %v5586
  %v5655 = vrot.slane %v5654, 4
  %v5656 = vadd.f32 %v5654, %v5655
  %v5657 = vrot.slane %v5656, 2
  %v5658 = vadd.f32 %v5656, %v5657
  %v5659 = vrot.slane %v5658, 1
  %v5660 = vadd.f32 %v5658, %v5659
  %v5661 = vmul.f32 %v5623, %v856
  %v5662 = vmul.f32 %v5660, %v856
  %v5663 = vmul.f32 %v5521, %v5521
  %v5664 = vmul.f32 %v5522, %v5522
  %v5665 = vsub.f32 %v5661, %v5663
  %v5666 = vsub.f32 %v5662, %v5664
  %v5667 = vmax.f32 %v5665, 0.0
  %v5668 = vmax.f32 %v5666, 0.0
  %v5669 = vsub.f32 %v5279, %v5521
  %v5670 = vsub.f32 %v5368, %v5522
  %v5671 = vsub.f32 %v5281, %v5521
  %v5672 = vsub.f32 %v5370, %v5522
  %v5673 = vsub.f32 %v5284, %v5521
  %v5674 = vsub.f32 %v5373, %v5522
  %v5675 = vsub.f32 %v5286, %v5521
  %v5676 = vsub.f32 %v5375, %v5522
  %v5677 = vsub.f32 %v5289, %v5521
  %v5678 = vsub.f32 %v5378, %v5522
  %v5679 = vsub.f32 %v5291, %v5521
  %v5680 = vsub.f32 %v5380, %v5522
  %v5681 = vsub.f32 %v5294, %v5521
  %v5682 = vsub.f32 %v5383, %v5522
  %v5683 = vsub.f32 %v5296, %v5521
  %v5684 = vsub.f32 %v5385, %v5522
  %v5685 = vsub.f32 %v5299, %v5521
  %v5686 = vsub.f32 %v5388, %v5522
  %v5687 = vsub.f32 %v5301, %v5521
  %v5688 = vsub.f32 %v5390, %v5522
  %v5689 = vsub.f32 %v5304, %v5521
  %v5690 = vsub.f32 %v5393, %v5522
  %v5691 = vsub.f32 %v5306, %v5521
  %v5692 = vsub.f32 %v5395, %v5522
  %v5693 = vsub.f32 %v5309, %v5521
  %v5694 = vsub.f32 %v5398, %v5522
  %v5695 = vsub.f32 %v5311, %v5521
  %v5696 = vsub.f32 %v5400, %v5522
  %v5697 = vsub.f32 %v5314, %v5521
  %v5698 = vsub.f32 %v5403, %v5522
  %v5699 = vsub.f32 %v5316, %v5521
  %v5700 = vsub.f32 %v5405, %v5522
  %v5701 = vsub.f32 %v5319, %v5521
  %v5702 = vsub.f32 %v5408, %v5522
  %v5703 = vsub.f32 %v5321, %v5521
  %v5704 = vsub.f32 %v5410, %v5522
  %v5705 = vsub.f32 %v5324, %v5521
  %v5706 = vsub.f32 %v5413, %v5522
  %v5707 = vsub.f32 %v5326, %v5521
  %v5708 = vsub.f32 %v5415, %v5522
  %v5709 = vsub.f32 %v5329, %v5521
  %v5710 = vsub.f32 %v5418, %v5522
  %v5711 = vsub.f32 %v5331, %v5521
  %v5712 = vsub.f32 %v5420, %v5522
  %v5713 = vsub.f32 %v5334, %v5521
  %v5714 = vsub.f32 %v5423, %v5522
  %v5715 = vsub.f32 %v5336, %v5521
  %v5716 = vsub.f32 %v5425, %v5522
  %v5717 = vsub.f32 %v5339, %v5521
  %v5718 = vsub.f32 %v5428, %v5522
  %v5719 = vsub.f32 %v5341, %v5521
  %v5720 = vsub.f32 %v5430, %v5522
  %v5721 = vsub.f32 %v5344, %v5521
  %v5722 = vsub.f32 %v5433, %v5522
  %v5723 = vsub.f32 %v5346, %v5521
  %v5724 = vsub.f32 %v5435, %v5522
  %v5725 = vsub.f32 %v5349, %v5521
  %v5726 = vsub.f32 %v5438, %v5522
  %v5727 = vsub.f32 %v5351, %v5521
  %v5728 = vsub.f32 %v5440, %v5522
  %v5729 = vsub.f32 %v5354, %v5521
  %v5730 = vsub.f32 %v5443, %v5522
  %v5731 = vsub.f32 %v5356, %v5521
  %v5732 = vsub.f32 %v5445, %v5522
  %v5733 = vadd.f32 %v5667, 1e-05
  %v5734 = vadd.f32 %v5668, 1e-05
  %v5735 = vrsqrt.pop %v5733
  %v5736 = vmul.f32 %v5735, %v5733
  %v5737 = vmul.f32 %v5736, %v5735
  %v5738 = vmul.f32 0.5, %v5737
  %v5739 = vsub.f32 1.5, %v5738
  %v5740 = vmul.f32 %v5735, %v5739
  %vm5741 = vweird.f32 %v5733
  %vm5742 = vweird.f32 %v5735
  %vm5743 = vmor %vm5741, %vm5742
  %v5744 = vsel %vm5743, %v5735, %v5740
  %v5745 = vrsqrt.pop %v5734
  %v5746 = vmul.f32 %v5745, %v5734
  %v5747 = vmul.f32 %v5746, %v5745
  %v5748 = vmul.f32 0.5, %v5747
  %v5749 = vsub.f32 1.5, %v5748
  %v5750 = vmul.f32 %v5745, %v5749
  %vm5751 = vweird.f32 %v5734
  %vm5752 = vweird.f32 %v5745
  %vm5753 = vmor %vm5751, %vm5752
  %v5754 = vsel %vm5753, %v5745, %v5750
  %v5755 = vmul.f32 %v5669, %v5744
  %v5756 = vmul.f32 %v5670, %v5754
  %v5757 = vmul.f32 %v5671, %v5744
  %v5758 = vmul.f32 %v5672, %v5754
  %v5759 = vmul.f32 %v5673, %v5744
  %v5760 = vmul.f32 %v5674, %v5754
  %v5761 = vmul.f32 %v5675, %v5744
  %v5762 = vmul.f32 %v5676, %v5754
  %v5763 = vmul.f32 %v5677, %v5744
  %v5764 = vmul.f32 %v5678, %v5754
  %v5765 = vmul.f32 %v5679, %v5744
  %v5766 = vmul.f32 %v5680, %v5754
  %v5767 = vmul.f32 %v5681, %v5744
  %v5768 = vmul.f32 %v5682, %v5754
  %v5769 = vmul.f32 %v5683, %v5744
  %v5770 = vmul.f32 %v5684, %v5754
  %v5771 = vmul.f32 %v5685, %v5744
  %v5772 = vmul.f32 %v5686, %v5754
  %v5773 = vmul.f32 %v5687, %v5744
  %v5774 = vmul.f32 %v5688, %v5754
  %v5775 = vmul.f32 %v5689, %v5744
  %v5776 = vmul.f32 %v5690, %v5754
  %v5777 = vmul.f32 %v5691, %v5744
  %v5778 = vmul.f32 %v5692, %v5754
  %v5779 = vmul.f32 %v5693, %v5744
  %v5780 = vmul.f32 %v5694, %v5754
  %v5781 = vmul.f32 %v5695, %v5744
  %v5782 = vmul.f32 %v5696, %v5754
  %v5783 = vmul.f32 %v5697, %v5744
  %v5784 = vmul.f32 %v5698, %v5754
  %v5785 = vmul.f32 %v5699, %v5744
  %v5786 = vmul.f32 %v5700, %v5754
  %v5787 = vmul.f32 %v5701, %v5744
  %v5788 = vmul.f32 %v5702, %v5754
  %v5789 = vmul.f32 %v5703, %v5744
  %v5790 = vmul.f32 %v5704, %v5754
  %v5791 = vmul.f32 %v5705, %v5744
  %v5792 = vmul.f32 %v5706, %v5754
  %v5793 = vmul.f32 %v5707, %v5744
  %v5794 = vmul.f32 %v5708, %v5754
  %v5795 = vmul.f32 %v5709, %v5744
  %v5796 = vmul.f32 %v5710, %v5754
  %v5797 = vmul.f32 %v5711, %v5744
  %v5798 = vmul.f32 %v5712, %v5754
  %v5799 = vmul.f32 %v5713, %v5744
  %v5800 = vmul.f32 %v5714, %v5754
  %v5801 = vmul.f32 %v5715, %v5744
  %v5802 = vmul.f32 %v5716, %v5754
  %v5803 = vmul.f32 %v5717, %v5744
  %v5804 = vmul.f32 %v5718, %v5754
  %v5805 = vmul.f32 %v5719, %v5744
  %v5806 = vmul.f32 %v5720, %v5754
  %v5807 = vmul.f32 %v5721, %v5744
  %v5808 = vmul.f32 %v5722, %v5754
  %v5809 = vmul.f32 %v5723, %v5744
  %v5810 = vmul.f32 %v5724, %v5754
  %v5811 = vmul.f32 %v5725, %v5744
  %v5812 = vmul.f32 %v5726, %v5754
  %v5813 = vmul.f32 %v5727, %v5744
  %v5814 = vmul.f32 %v5728, %v5754
  %v5815 = vmul.f32 %v5729, %v5744
  %v5816 = vmul.f32 %v5730, %v5754
  %v5817 = vmul.f32 %v5731, %v5744
  %v5818 = vmul.f32 %v5732, %v5754
  %v5819 = vld [vmem:[%s2 + $0x1a] sm:$0x3]
  %v5821 = vperm.slane %v5819, 0
  %v5822 = vperm.slane %v5819, 1
  %v5825 = vmul.f32 %v5755, %v5821
  %v5826 = vmul.f32 %v5756, %v5822
  %v5827 = vmul.f32 %v5757, %v5821
  %v5828 = vmul.f32 %v5758, %v5822
  %v5829 = vmul.f32 %v5759, %v5821
  %v5830 = vmul.f32 %v5760, %v5822
  %v5831 = vmul.f32 %v5761, %v5821
  %v5832 = vmul.f32 %v5762, %v5822
  %v5833 = vmul.f32 %v5763, %v5821
  %v5834 = vmul.f32 %v5764, %v5822
  %v5835 = vmul.f32 %v5765, %v5821
  %v5836 = vmul.f32 %v5766, %v5822
  %v5837 = vmul.f32 %v5767, %v5821
  %v5838 = vmul.f32 %v5768, %v5822
  %v5839 = vmul.f32 %v5769, %v5821
  %v5840 = vmul.f32 %v5770, %v5822
  %v5841 = vmul.f32 %v5771, %v5821
  %v5842 = vmul.f32 %v5772, %v5822
  %v5843 = vmul.f32 %v5773, %v5821
  %v5844 = vmul.f32 %v5774, %v5822
  %v5845 = vmul.f32 %v5775, %v5821
  %v5846 = vmul.f32 %v5776, %v5822
  %v5847 = vmul.f32 %v5777, %v5821
  %v5848 = vmul.f32 %v5778, %v5822
  %v5849 = vmul.f32 %v5779, %v5821
  %v5850 = vmul.f32 %v5780, %v5822
  %v5851 = vmul.f32 %v5781, %v5821
  %v5852 = vmul.f32 %v5782, %v5822
  %v5853 = vmul.f32 %v5783, %v5821
  %v5854 = vmul.f32 %v5784, %v5822
  %v5855 = vmul.f32 %v5785, %v5821
  %v5856 = vmul.f32 %v5786, %v5822
  %v5857 = vmul.f32 %v5787, %v5821
  %v5858 = vmul.f32 %v5788, %v5822
  %v5859 = vmul.f32 %v5789, %v5821
  %v5860 = vmul.f32 %v5790, %v5822
  %v5861 = vmul.f32 %v5791, %v5821
  %v5862 = vmul.f32 %v5792, %v5822
  %v5863 = vmul.f32 %v5793, %v5821
  %v5864 = vmul.f32 %v5794, %v5822
  %v5865 = vmul.f32 %v5795, %v5821
  %v5866 = vmul.f32 %v5796, %v5822
  %v5867 = vmul.f32 %v5797, %v5821
  %v5868 = vmul.f32 %v5798, %v5822
  %v5869 = vmul.f32 %v5799, %v5821
  %v5870 = vmul.f32 %v5800, %v5822
  %v5871 = vmul.f32 %v5801, %v5821
  %v5872 = vmul.f32 %v5802, %v5822
  %v5873 = vmul.f32 %v5803, %v5821
  %v5874 = vmul.f32 %v5804, %v5822
  %v5875 = vmul.f32 %v5805, %v5821
  %v5876 = vmul.f32 %v5806, %v5822
  %v5877 = vmul.f32 %v5807, %v5821
  %v5878 = vmul.f32 %v5808, %v5822
  %v5879 = vmul.f32 %v5809, %v5821
  %v5880 = vmul.f32 %v5810, %v5822
  %v5881 = vmul.f32 %v5811, %v5821
  %v5882 = vmul.f32 %v5812, %v5822
  %v5883 = vmul.f32 %v5813, %v5821
  %v5884 = vmul.f32 %v5814, %v5822
  %v5885 = vmul.f32 %v5815, %v5821
  %v5886 = vmul.f32 %v5816, %v5822
  %v5887 = vmul.f32 %v5817, %v5821
  %v5888 = vmul.f32 %v5818, %v5822
  %v5889 = vld [vmem:[%s2 + $0x1c] sm:$0x3]
  %v5891 = vperm.slane %v5889, 0
  %v5892 = vperm.slane %v5889, 1
  %v5895 = vadd.f32 %v5825, %v5891
  %v5896 = vadd.f32 %v5826, %v5892
  %v5897 = vadd.f32 %v5827, %v5891
  %v5898 = vadd.f32 %v5828, %v5892
  %v5899 = vadd.f32 %v5829, %v5891
  %v5900 = vadd.f32 %v5830, %v5892
  %v5901 = vadd.f32 %v5831, %v5891
  %v5902 = vadd.f32 %v5832, %v5892
  %v5903 = vadd.f32 %v5833, %v5891
  %v5904 = vadd.f32 %v5834, %v5892
  %v5905 = vadd.f32 %v5835, %v5891
  %v5906 = vadd.f32 %v5836, %v5892
  %v5907 = vadd.f32 %v5837, %v5891
  %v5908 = vadd.f32 %v5838, %v5892
  %v5909 = vadd.f32 %v5839, %v5891
  %v5910 = vadd.f32 %v5840, %v5892
  %v5911 = vadd.f32 %v5841, %v5891
  %v5912 = vadd.f32 %v5842, %v5892
  %v5913 = vadd.f32 %v5843, %v5891
  %v5914 = vadd.f32 %v5844, %v5892
  %v5915 = vadd.f32 %v5845, %v5891
  %v5916 = vadd.f32 %v5846, %v5892
  %v5917 = vadd.f32 %v5847, %v5891
  %v5918 = vadd.f32 %v5848, %v5892
  %v5919 = vadd.f32 %v5849, %v5891
  %v5920 = vadd.f32 %v5850, %v5892
  %v5921 = vadd.f32 %v5851, %v5891
  %v5922 = vadd.f32 %v5852, %v5892
  %v5923 = vadd.f32 %v5853, %v5891
  %v5924 = vadd.f32 %v5854, %v5892
  %v5925 = vadd.f32 %v5855, %v5891
  %v5926 = vadd.f32 %v5856, %v5892
  %v5927 = vadd.f32 %v5857, %v5891
  %v5928 = vadd.f32 %v5858, %v5892
  %v5929 = vadd.f32 %v5859, %v5891
  %v5930 = vadd.f32 %v5860, %v5892
  %v5931 = vadd.f32 %v5861, %v5891
  %v5932 = vadd.f32 %v5862, %v5892
  %v5933 = vadd.f32 %v5863, %v5891
  %v5934 = vadd.f32 %v5864, %v5892
  %v5935 = vadd.f32 %v5865, %v5891
  %v5936 = vadd.f32 %v5866, %v5892
  %v5937 = vadd.f32 %v5867, %v5891
  %v5938 = vadd.f32 %v5868, %v5892
  %v5939 = vadd.f32 %v5869, %v5891
  %v5940 = vadd.f32 %v5870, %v5892
  %v5941 = vadd.f32 %v5871, %v5891
  %v5942 = vadd.f32 %v5872, %v5892
  %v5943 = vadd.f32 %v5873, %v5891
  %v5944 = vadd.f32 %v5874, %v5892
  %v5945 = vadd.f32 %v5875, %v5891
  %v5946 = vadd.f32 %v5876, %v5892
  %v5947 = vadd.f32 %v5877, %v5891
  %v5948 = vadd.f32 %v5878, %v5892
  %v5949 = vadd.f32 %v5879, %v5891
  %v5950 = vadd.f32 %v5880, %v5892
  %v5951 = vadd.f32 %v5881, %v5891
  %v5952 = vadd.f32 %v5882, %v5892
  %v5953 = vadd.f32 %v5883, %v5891
  %v5954 = vadd.f32 %v5884, %v5892
  %v5955 = vadd.f32 %v5885, %v5891
  %v5956 = vadd.f32 %v5886, %v5892
  %v5957 = vadd.f32 %v5887, %v5891
  %v5958 = vadd.f32 %v5888, %v5892
  %v5959 = vmul.f32 %v5895, 0.01
  %v5960 = vmul.f32 %v5896, 0.01
  %v5961 = vmul.f32 %v5897, 0.01
  %v5962 = vmul.f32 %v5898, 0.01
  %v5963 = vmul.f32 %v5899, 0.01
  %v5964 = vmul.f32 %v5900, 0.01
  %v5965 = vmul.f32 %v5901, 0.01
  %v5966 = vmul.f32 %v5902, 0.01
  %v5967 = vmul.f32 %v5903, 0.01
  %v5968 = vmul.f32 %v5904, 0.01
  %v5969 = vmul.f32 %v5905, 0.01
  %v5970 = vmul.f32 %v5906, 0.01
  %v5971 = vmul.f32 %v5907, 0.01
  %v5972 = vmul.f32 %v5908, 0.01
  %v5973 = vmul.f32 %v5909, 0.01
  %v5974 = vmul.f32 %v5910, 0.01
  %v5975 = vmul.f32 %v5911, 0.01
  %v5976 = vmul.f32 %v5912, 0.01
  %v5977 = vmul.f32 %v5913, 0.01
  %v5978 = vmul.f32 %v5914, 0.01
  %v5979 = vmul.f32 %v5915, 0.01
  %v5980 = vmul.f32 %v5916, 0.01
  %v5981 = vmul.f32 %v5917, 0.01
  %v5982 = vmul.f32 %v5918, 0.01
  %v5983 = vmul.f32 %v5919, 0.01
  %v5984 = vmul.f32 %v5920, 0.01
  %v5985 = vmul.f32 %v5921, 0.01
  %v5986 = vmul.f32 %v5922, 0.01
  %v5987 = vmul.f32 %v5923, 0.01
  %v5988 = vmul.f32 %v5924, 0.01
  %v5989 = vmul.f32 %v5925, 0.01
  %v5990 = vmul.f32 %v5926, 0.01
  %v5991 = vmul.f32 %v5927, 0.01
  %v5992 = vmul.f32 %v5928, 0.01
  %v5993 = vmul.f32 %v5929, 0.01
  %v5994 = vmul.f32 %v5930, 0.01
  %v5995 = vmul.f32 %v5931, 0.01
  %v5996 = vmul.f32 %v5932, 0.01
  %v5997 = vmul.f32 %v5933, 0.01
  %v5998 = vmul.f32 %v5934, 0.01
  %v5999 = vmul.f32 %v5935, 0.01
  %v6000 = vmul.f32 %v5936, 0.01
  %v6001 = vmul.f32 %v5937, 0.01
  %v6002 = vmul.f32 %v5938, 0.01
  %v6003 = vmul.f32 %v5939, 0.01
  %v6004 = vmul.f32 %v5940, 0.01
  %v6005 = vmul.f32 %v5941, 0.01
  %v6006 = vmul.f32 %v5942, 0.01
  %v6007 = vmul.f32 %v5943, 0.01
  %v6008 = vmul.f32 %v5944, 0.01
  %v6009 = vmul.f32 %v5945, 0.01
  %v6010 = vmul.f32 %v5946, 0.01
  %v6011 = vmul.f32 %v5947, 0.01
  %v6012 = vmul.f32 %v5948, 0.01
  %v6013 = vmul.f32 %v5949, 0.01
  %v6014 = vmul.f32 %v5950, 0.01
  %v6015 = vmul.f32 %v5951, 0.01
  %v6016 = vmul.f32 %v5952, 0.01
  %v6017 = vmul.f32 %v5953, 0.01
  %v6018 = vmul.f32 %v5954, 0.01
  %v6019 = vmul.f32 %v5955, 0.01
  %v6020 = vmul.f32 %v5956, 0.01
  %v6021 = vmul.f32 %v5957, 0.01
  %v6022 = vmul.f32 %v5958, 0.01
  %v6023 = vmax.f32 %v5895, %v5959
  %v6024 = vmax.f32 %v5896, %v5960
  %v6025 = vmax.f32 %v5897, %v5961
  %v6026 = vmax.f32 %v5898, %v5962
  %v6027 = vmax.f32 %v5899, %v5963
  %v6028 = vmax.f32 %v5900, %v5964
  %v6029 = vmax.f32 %v5901, %v5965
  %v6030 = vmax.f32 %v5902, %v5966
  %v6031 = vmax.f32 %v5903, %v5967
  %v6032 = vmax.f32 %v5904, %v5968
  %v6033 = vmax.f32 %v5905, %v5969
  %v6034 = vmax.f32 %v5906, %v5970
  %v6035 = vmax.f32 %v5907, %v5971
  %v6036 = vmax.f32 %v5908, %v5972
  %v6037 = vmax.f32 %v5909, %v5973
  %v6038 = vmax.f32 %v5910, %v5974
  %v6039 = vmax.f32 %v5911, %v5975
  %v6040 = vmax.f32 %v5912, %v5976
  %v6041 = vmax.f32 %v5913, %v5977
  %v6042 = vmax.f32 %v5914, %v5978
  %v6043 = vmax.f32 %v5915, %v5979
  %v6044 = vmax.f32 %v5916, %v5980
  %v6045 = vmax.f32 %v5917, %v5981
  %v6046 = vmax.f32 %v5918, %v5982
  %v6047 = vmax.f32 %v5919, %v5983
  %v6048 = vmax.f32 %v5920, %v5984
  %v6049 = vmax.f32 %v5921, %v5985
  %v6050 = vmax.f32 %v5922, %v5986
  %v6051 = vmax.f32 %v5923, %v5987
  %v6052 = vmax.f32 %v5924, %v5988
  %v6053 = vmax.f32 %v5925, %v5989
  %v6054 = vmax.f32 %v5926, %v5990
  %v6055 = vmax.f32 %v5927, %v5991
  %v6056 = vmax.f32 %v5928, %v5992
  %v6057 = vmax.f32 %v5929, %v5993
  %v6058 = vmax.f32 %v5930, %v5994
  %v6059 = vmax.f32 %v5931, %v5995
  %v6060 = vmax.f32 %v5932, %v5996
  %v6061 = vmax.f32 %v5933, %v5997
  %v6062 = vmax.f32 %v5934, %v5998
  %v6063 = vmax.f32 %v5935, %v5999
  %v6064 = vmax.f32 %v5936, %v6000
  %v6065 = vmax.f32 %v5937, %v6001
  %v6066 = vmax.f32 %v5938, %v6002
  %v6067 = vmax.f32 %v5939, %v6003
  %v6068 = vmax.f32 %v5940, %v6004
  %v6069 = vmax.f32 %v5941, %v6005
  %v6070 = vmax.f32 %v5942, %v6006
  %v6071 = vmax.f32 %v5943, %v6007
  %v6072 = vmax.f32 %v5944, %v6008
  %v6073 = vmax.f32 %v5945, %v6009
  %v6074 = vmax.f32 %v5946, %v6010
  %v6075 = vmax.f32 %v5947, %v6011
  %v6076 = vmax.f32 %v5948, %v6012
  %v6077 = vmax.f32 %v5949, %v6013
  %v6078 = vmax.f32 %v5950, %v6014
  %v6079 = vmax.f32 %v5951, %v6015
  %v6080 = vmax.f32 %v5952, %v6016
  %v6081 = vmax.f32 %v5953, %v6017
  %v6082 = vmax.f32 %v5954, %v6018
  %v6083 = vmax.f32 %v5955, %v6019
  %v6084 = vmax.f32 %v5956, %v6020
  %v6085 = vmax.f32 %v5957, %v6021
  %v6086 = vmax.f32 %v5958, %v6022
  %v6087 = vpack.c.bf16 %v6025, %v6023
  %v6088 = vpack.c.bf16 %v6026, %v6024
  %v6089 = vpack.c.bf16 %v6029, %v6027
  %v6090 = vpack.c.bf16 %v6030, %v6028
  %v6091 = vpack.c.bf16 %v6033, %v6031
  %v6092 = vpack.c.bf16 %v6034, %v6032
  %v6093 = vpack.c.bf16 %v6037, %v6035
  %v6094 = vpack.c.bf16 %v6038, %v6036
  %v6095 = vpack.c.bf16 %v6041, %v6039
  %v6096 = vpack.c.bf16 %v6042, %v6040
  %v6097 = vpack.c.bf16 %v6045, %v6043
  %v6098 = vpack.c.bf16 %v6046, %v6044
  %v6099 = vpack.c.bf16 %v6049, %v6047
  %v6100 = vpack.c.bf16 %v6050, %v6048
  %v6101 = vpack.c.bf16 %v6053, %v6051
  %v6102 = vpack.c.bf16 %v6054, %v6052
  %v6103 = vpack.c.bf16 %v6057, %v6055
  %v6104 = vpack.c.bf16 %v6058, %v6056
  %v6105 = vpack.c.bf16 %v6061, %v6059
  %v6106 = vpack.c.bf16 %v6062, %v6060
  %v6107 = vpack.c.bf16 %v6065, %v6063
  %v6108 = vpack.c.bf16 %v6066, %v6064
  %v6109 = vpack.c.bf16 %v6069, %v6067
  %v6110 = vpack.c.bf16 %v6070, %v6068
  %v6111 = vpack.c.bf16 %v6073, %v6071
  %v6112 = vpack.c.bf16 %v6074, %v6072
  %v6113 = vpack.c.bf16 %v6077, %v6075
  %v6114 = vpack.c.bf16 %v6078, %v6076
  %v6115 = vpack.c.bf16 %v6081, %v6079
  %v6116 = vpack.c.bf16 %v6082, %v6080
  %v6117 = vpack.c.bf16 %v6085, %v6083
  %v6118 = vpack.c.bf16 %v6086, %v6084
  %v6119 = vld [vmem:[%s1 + $0x2c] sm:$0xff]
  %v6120 = vld [vmem:[%s1 + $0x34] sm:$0xff]
  %v6121 = vld [vmem:[%s1 + $0x6c] sm:$0xff]
  %v6122 = vld [vmem:[%s1 + $0x74] sm:$0xff]
  %v6123 = vld [vmem:[%s1 + $0xac] sm:$0xff]
  %v6124 = vld [vmem:[%s1 + $0xb4] sm:$0xff]
  %v6125 = vld [vmem:[%s1 + $0xec] sm:$0xff]
  %v6126 = vld [vmem:[%s1 + $0xf4] sm:$0xff]
  %v6127 = vld [vmem:[%s1 + $0x12c] sm:$0xff]
  %v6128 = vld [vmem:[%s1 + $0x134] sm:$0xff]
  %v6129 = vld [vmem:[%s1 + $0x16c] sm:$0xff]
  %v6130 = vld [vmem:[%s1 + $0x174] sm:$0xff]
  %v6131 = vld [vmem:[%s1 + $0x1ac] sm:$0xff]
  %v6132 = vld [vmem:[%s1 + $0x1b4] sm:$0xff]
  %v6133 = vld [vmem:[%s1 + $0x1ec] sm:$0xff]
  %v6134 = vld [vmem:[%s1 + $0x1f4] sm:$0xff]
  %v6135 = vld [vmem:[%s1 + $0x22c] sm:$0xff]
  %v6136 = vld [vmem:[%s1 + $0x234] sm:$0xff]
  %v6137 = vld [vmem:[%s1 + $0x26c] sm:$0xff]
  %v6138 = vld [vmem:[%s1 + $0x274] sm:$0xff]
  %v6139 = vld [vmem:[%s1 + $0x2ac] sm:$0xff]
  %v6140 = vld [vmem:[%s1 + $0x2b4] sm:$0xff]
  %v6141 = vld [vmem:[%s1 + $0x2ec] sm:$0xff]
  %v6142 = vld [vmem:[%s1 + $0x2f4] sm:$0xff]
  %v6143 = vld [vmem:[%s1 + $0x32c] sm:$0xff]
  %v6144 = vld [vmem:[%s1 + $0x334] sm:$0xff]
  %v6145 = vld [vmem:[%s1 + $0x36c] sm:$0xff]
  %v6146 = vld [vmem:[%s1 + $0x374] sm:$0xff]
  %v6147 = vld [vmem:[%s1 + $0x3ac] sm:$0xff]
  %v6148 = vld [vmem:[%s1 + $0x3b4] sm:$0xff]
  %v6149 = vld [vmem:[%s1 + $0x3ec] sm:$0xff]
  %v6150 = vld [vmem:[%s1 + $0x3f4] sm:$0xff]
  %v6151 = vld [vmem:[%s1 + $0x42c] sm:$0xff]
  %v6152 = vld [vmem:[%s1 + $0x434] sm:$0xff]
  %v6153 = vld [vmem:[%s1 + $0x46c] sm:$0xff]
  %v6154 = vld [vmem:[%s1 + $0x474] sm:$0xff]
  %v6155 = vld [vmem:[%s1 + $0x4ac] sm:$0xff]
  %v6156 = vld [vmem:[%s1 + $0x4b4] sm:$0xff]
  %v6157 = vld [vmem:[%s1 + $0x4ec] sm:$0xff]
  %v6158 = vld [vmem:[%s1 + $0x4f4] sm:$0xff]
  %v6159 = vld [vmem:[%s1 + $0x52c] sm:$0xff]
  %v6160 = vld [vmem:[%s1 + $0x534] sm:$0xff]
  %v6161 = vld [vmem:[%s1 + $0x56c] sm:$0xff]
  %v6162 = vld [vmem:[%s1 + $0x574] sm:$0xff]
  %v6163 = vld [vmem:[%s1 + $0x5ac] sm:$0xff]
  %v6164 = vld [vmem:[%s1 + $0x5b4] sm:$0xff]
  %v6165 = vld [vmem:[%s1 + $0x5ec] sm:$0xff]
  %v6166 = vld [vmem:[%s1 + $0x5f4] sm:$0xff]
  %v6167 = vld [vmem:[%s1 + $0x62c] sm:$0xff]
  %v6168 = vld [vmem:[%s1 + $0x634] sm:$0xff]
  %v6169 = vld [vmem:[%s1 + $0x66c] sm:$0xff]
  %v6170 = vld [vmem:[%s1 + $0x674] sm:$0xff]
  %v6171 = vld [vmem:[%s1 + $0x6ac] sm:$0xff]
  %v6172 = vld [vmem:[%s1 + $0x6b4] sm:$0xff]
  %v6173 = vld [vmem:[%s1 + $0x6ec] sm:$0xff]
  %v6174 = vld [vmem:[%s1 + $0x6f4] sm:$0xff]
  %v6175 = vld [vmem:[%s1 + $0x72c] sm:$0xff]
  %v6176 = vld [vmem:[%s1 + $0x734] sm:$0xff]
  %v6177 = vld [vmem:[%s1 + $0x76c] sm:$0xff]
  %v6178 = vld [vmem:[%s1 + $0x774] sm:$0xff]
  %v6179 = vld [vmem:[%s1 + $0x7ac] sm:$0xff]
  %v6180 = vld [vmem:[%s1 + $0x7b4] sm:$0xff]
  %v6181 = vld [vmem:[%s1 + $0x7ec] sm:$0xff]
  %v6182 = vld [vmem:[%s1 + $0x7f4] sm:$0xff]
  %v6183 = vld [vmem:[%s2 + $0x1e] sm:$0xf]
  %v6185 = vperm.slane %v6183, 0
  %v6186 = vperm.slane %v6183, 1
  %v6187 = vperm.slane %v6183, 2
  %v6188 = vperm.slane %v6183, 3
  %v6257 = vunpack.c.l.b16 %v6119
  %v6258 = vunpack.c.h.b16 %v6119
  %v6259 = vunpack.c.l.b16 %v6120
  %v6260 = vunpack.c.h.b16 %v6120
  %v6261 = vunpack.c.l.b16 %v6121
  %v6262 = vunpack.c.h.b16 %v6121
  %v6263 = vunpack.c.l.b16 %v6122
  %v6264 = vunpack.c.h.b16 %v6122
  %v6265 = vunpack.c.l.b16 %v6123
  %v6266 = vunpack.c.h.b16 %v6123
  %v6267 = vunpack.c.l.b16 %v6124
  %v6268 = vunpack.c.h.b16 %v6124
  %v6269 = vunpack.c.l.b16 %v6125
  %v6270 = vunpack.c.h.b16 %v6125
  %v6271 = vunpack.c.l.b16 %v6126
  %v6272 = vunpack.c.h.b16 %v6126
  %v6273 = vunpack.c.l.b16 %v6127
  %v6274 = vunpack.c.h.b16 %v6127
  %v6275 = vunpack.c.l.b16 %v6128
  %v6276 = vunpack.c.h.b16 %v6128
  %v6277 = vunpack.c.l.b16 %v6129
  %v6278 = vunpack.c.h.b16 %v6129
  %v6279 = vunpack.c.l.b16 %v6130
  %v6280 = vunpack.c.h.b16 %v6130
  %v6281 = vunpack.c.l.b16 %v6131
  %v6282 = vunpack.c.h.b16 %v6131
  %v6283 = vunpack.c.l.b16 %v6132
  %v6284 = vunpack.c.h.b16 %v6132
  %v6285 = vunpack.c.l.b16 %v6133
  %v6286 = vunpack.c.h.b16 %v6133
  %v6287 = vunpack.c.l.b16 %v6134
  %v6288 = vunpack.c.h.b16 %v6134
  %v6289 = vunpack.c.l.b16 %v6135
  %v6290 = vunpack.c.h.b16 %v6135
  %v6291 = vunpack.c.l.b16 %v6136
  %v6292 = vunpack.c.h.b16 %v6136
  %v6293 = vunpack.c.l.b16 %v6137
  %v6294 = vunpack.c.h.b16 %v6137
  %v6295 = vunpack.c.l.b16 %v6138
  %v6296 = vunpack.c.h.b16 %v6138
  %v6297 = vunpack.c.l.b16 %v6139
  %v6298 = vunpack.c.h.b16 %v6139
  %v6299 = vunpack.c.l.b16 %v6140
  %v6300 = vunpack.c.h.b16 %v6140
  %v6301 = vunpack.c.l.b16 %v6141
  %v6302 = vunpack.c.h.b16 %v6141
  %v6303 = vunpack.c.l.b16 %v6142
  %v6304 = vunpack.c.h.b16 %v6142
  %v6305 = vunpack.c.l.b16 %v6143
  %v6306 = vunpack.c.h.b16 %v6143
  %v6307 = vunpack.c.l.b16 %v6144
  %v6308 = vunpack.c.h.b16 %v6144
  %v6309 = vunpack.c.l.b16 %v6145
  %v6310 = vunpack.c.h.b16 %v6145
  %v6311 = vunpack.c.l.b16 %v6146
  %v6312 = vunpack.c.h.b16 %v6146
  %v6313 = vunpack.c.l.b16 %v6147
  %v6314 = vunpack.c.h.b16 %v6147
  %v6315 = vunpack.c.l.b16 %v6148
  %v6316 = vunpack.c.h.b16 %v6148
  %v6317 = vunpack.c.l.b16 %v6149
  %v6318 = vunpack.c.h.b16 %v6149
  %v6319 = vunpack.c.l.b16 %v6150
  %v6320 = vunpack.c.h.b16 %v6150
  %v6321 = vunpack.c.l.b16 %v6151
  %v6322 = vunpack.c.h.b16 %v6151
  %v6323 = vunpack.c.l.b16 %v6152
  %v6324 = vunpack.c.h.b16 %v6152
  %v6325 = vunpack.c.l.b16 %v6153
  %v6326 = vunpack.c.h.b16 %v6153
  %v6327 = vunpack.c.l.b16 %v6154
  %v6328 = vunpack.c.h.b16 %v6154
  %v6329 = vunpack.c.l.b16 %v6155
  %v6330 = vunpack.c.h.b16 %v6155
  %v6331 = vunpack.c.l.b16 %v6156
  %v6332 = vunpack.c.h.b16 %v6156
  %v6333 = vunpack.c.l.b16 %v6157
  %v6334 = vunpack.c.h.b16 %v6157
  %v6335 = vunpack.c.l.b16 %v6158
  %v6336 = vunpack.c.h.b16 %v6158
  %v6337 = vunpack.c.l.b16 %v6159
  %v6338 = vunpack.c.h.b16 %v6159
  %v6339 = vunpack.c.l.b16 %v6160
  %v6340 = vunpack.c.h.b16 %v6160
  %v6341 = vunpack.c.l.b16 %v6161
  %v6342 = vunpack.c.h.b16 %v6161
  %v6343 = vunpack.c.l.b16 %v6162
  %v6344 = vunpack.c.h.b16 %v6162
  %v6345 = vunpack.c.l.b16 %v6163
  %v6346 = vunpack.c.h.b16 %v6163
  %v6347 = vunpack.c.l.b16 %v6164
  %v6348 = vunpack.c.h.b16 %v6164
  %v6349 = vunpack.c.l.b16 %v6165
  %v6350 = vunpack.c.h.b16 %v6165
  %v6351 = vunpack.c.l.b16 %v6166
  %v6352 = vunpack.c.h.b16 %v6166
  %v6353 = vunpack.c.l.b16 %v6167
  %v6354 = vunpack.c.h.b16 %v6167
  %v6355 = vunpack.c.l.b16 %v6168
  %v6356 = vunpack.c.h.b16 %v6168
  %v6357 = vunpack.c.l.b16 %v6169
  %v6358 = vunpack.c.h.b16 %v6169
  %v6359 = vunpack.c.l.b16 %v6170
  %v6360 = vunpack.c.h.b16 %v6170
  %v6361 = vunpack.c.l.b16 %v6171
  %v6362 = vunpack.c.h.b16 %v6171
  %v6363 = vunpack.c.l.b16 %v6172
  %v6364 = vunpack.c.h.b16 %v6172
  %v6365 = vunpack.c.l.b16 %v6173
  %v6366 = vunpack.c.h.b16 %v6173
  %v6367 = vunpack.c.l.b16 %v6174
  %v6368 = vunpack.c.h.b16 %v6174
  %v6369 = vunpack.c.l.b16 %v6175
  %v6370 = vunpack.c.h.b16 %v6175
  %v6371 = vunpack.c.l.b16 %v6176
  %v6372 = vunpack.c.h.b16 %v6176
  %v6373 = vunpack.c.l.b16 %v6177
  %v6374 = vunpack.c.h.b16 %v6177
  %v6375 = vunpack.c.l.b16 %v6178
  %v6376 = vunpack.c.h.b16 %v6178
  %v6377 = vunpack.c.l.b16 %v6179
  %v6378 = vunpack.c.h.b16 %v6179
  %v6379 = vunpack.c.l.b16 %v6180
  %v6380 = vunpack.c.h.b16 %v6180
  %v6381 = vunpack.c.l.b16 %v6181
  %v6382 = vunpack.c.h.b16 %v6181
  %v6383 = vunpack.c.l.b16 %v6182
  %v6384 = vunpack.c.h.b16 %v6182
  %v6385 = vpack.c.b16 %v6261, %v6257
  %v6386 = vpack.c.b16 %v6262, %v6258
  %v6387 = vpack.c.b16 %v6263, %v6259
  %v6388 = vpack.c.b16 %v6264, %v6260
  %v6389 = vpack.c.b16 %v6269, %v6265
  %v6390 = vpack.c.b16 %v6270, %v6266
  %v6391 = vpack.c.b16 %v6271, %v6267
  %v6392 = vpack.c.b16 %v6272, %v6268
  %v6393 = vpack.c.b16 %v6277, %v6273
  %v6394 = vpack.c.b16 %v6278, %v6274
  %v6395 = vpack.c.b16 %v6279, %v6275
  %v6396 = vpack.c.b16 %v6280, %v6276
  %v6397 = vpack.c.b16 %v6285, %v6281
  %v6398 = vpack.c.b16 %v6286, %v6282
  %v6399 = vpack.c.b16 %v6287, %v6283
  %v6400 = vpack.c.b16 %v6288, %v6284
  %v6401 = vpack.c.b16 %v6293, %v6289
  %v6402 = vpack.c.b16 %v6294, %v6290
  %v6403 = vpack.c.b16 %v6295, %v6291
  %v6404 = vpack.c.b16 %v6296, %v6292
  %v6405 = vpack.c.b16 %v6301, %v6297
  %v6406 = vpack.c.b16 %v6302, %v6298
  %v6407 = vpack.c.b16 %v6303, %v6299
  %v6408 = vpack.c.b16 %v6304, %v6300
  %v6409 = vpack.c.b16 %v6309, %v6305
  %v6410 = vpack.c.b16 %v6310, %v6306
  %v6411 = vpack.c.b16 %v6311, %v6307
  %v6412 = vpack.c.b16 %v6312, %v6308
  %v6413 = vpack.c.b16 %v6317, %v6313
  %v6414 = vpack.c.b16 %v6318, %v6314
  %v6415 = vpack.c.b16 %v6319, %v6315
  %v6416 = vpack.c.b16 %v6320, %v6316
  %v6417 = vpack.c.b16 %v6325, %v6321
  %v6418 = vpack.c.b16 %v6326, %v6322
  %v6419 = vpack.c.b16 %v6327, %v6323
  %v6420 = vpack.c.b16 %v6328, %v6324
  %v6421 = vpack.c.b16 %v6333, %v6329
  %v6422 = vpack.c.b16 %v6334, %v6330
  %v6423 = vpack.c.b16 %v6335, %v6331
  %v6424 = vpack.c.b16 %v6336, %v6332
  %v6425 = vpack.c.b16 %v6341, %v6337
  %v6426 = vpack.c.b16 %v6342, %v6338
  %v6427 = vpack.c.b16 %v6343, %v6339
  %v6428 = vpack.c.b16 %v6344, %v6340
  %v6429 = vpack.c.b16 %v6349, %v6345
  %v6430 = vpack.c.b16 %v6350, %v6346
  %v6431 = vpack.c.b16 %v6351, %v6347
  %v6432 = vpack.c.b16 %v6352, %v6348
  %v6433 = vpack.c.b16 %v6357, %v6353
  %v6434 = vpack.c.b16 %v6358, %v6354
  %v6435 = vpack.c.b16 %v6359, %v6355
  %v6436 = vpack.c.b16 %v6360, %v6356
  %v6437 = vpack.c.b16 %v6365, %v6361
  %v6438 = vpack.c.b16 %v6366, %v6362
  %v6439 = vpack.c.b16 %v6367, %v6363
  %v6440 = vpack.c.b16 %v6368, %v6364
  %v6441 = vpack.c.b16 %v6373, %v6369
  %v6442 = vpack.c.b16 %v6374, %v6370
  %v6443 = vpack.c.b16 %v6375, %v6371
  %v6444 = vpack.c.b16 %v6376, %v6372
  %v6445 = vpack.c.b16 %v6381, %v6377
  %v6446 = vpack.c.b16 %v6382, %v6378
  %v6447 = vpack.c.b16 %v6383, %v6379
  %v6448 = vpack.c.b16 %v6384, %v6380
  %6513 = vmatpush.bf16.msra.mxu0 %v6413
  %6514 = vmatpush.bf16.msra.mxu0 %v6409
  %6515 = vmatpush.bf16.msra.mxu0 %v6405
  %6516 = vmatpush.bf16.msra.mxu0 %v6401
  %6517 = vmatpush.bf16.msra.mxu0 %v6397
  %6518 = vmatpush.bf16.msra.mxu0 %v6393
  %6519 = vmatpush.bf16.msra.mxu0 %v6389
  %6520 = vmatpush.bf16.msra.mxu0 %v6385
  %6521 = vmatmul.bf16.gmra.mxu0 %v6087
  %v6522 = vpop.f32.mrf.mxu0
  %v6523 = vadd.f32 %v6185, %v6522
  %v6524 = vpop.f32.mrf.mxu0
  %v6525 = vadd.f32 %v6185, %v6524
  %6526 = vmatmul.bf16.gmra.mxu0 %v6089
  %v6527 = vpop.f32.mrf.mxu0
  %v6528 = vadd.f32 %v6185, %v6527
  %v6529 = vpop.f32.mrf.mxu0
  %v6530 = vadd.f32 %v6185, %v6529
  %6531 = vmatmul.bf16.gmra.mxu0 %v6091
  %v6532 = vpop.f32.mrf.mxu0
  %v6533 = vadd.f32 %v6185, %v6532
  %v6534 = vpop.f32.mrf.mxu0
  %v6535 = vadd.f32 %v6185, %v6534
  %6536 = vmatmul.bf16.gmra.mxu0 %v6093
  %v6537 = vpop.f32.mrf.mxu0
  %v6538 = vadd.f32 %v6185, %v6537
  %v6539 = vpop.f32.mrf.mxu0
  %v6540 = vadd.f32 %v6185, %v6539
  %6541 = vmatmul.bf16.gmra.mxu0 %v6095
  %v6542 = vpop.f32.mrf.mxu0
  %v6543 = vadd.f32 %v6185, %v6542
  %v6544 = vpop.f32.mrf.mxu0
  %v6545 = vadd.f32 %v6185, %v6544
  %6546 = vmatmul.bf16.gmra.mxu0 %v6097
  %v6547 = vpop.f32.mrf.mxu0
  %v6548 = vadd.f32 %v6185, %v6547
  %v6549 = vpop.f32.mrf.mxu0
  %v6550 = vadd.f32 %v6185, %v6549
  %6551 = vmatmul.bf16.gmra.mxu0 %v6099
  %v6552 = vpop.f32.mrf.mxu0
  %v6553 = vadd.f32 %v6185, %v6552
  %v6554 = vpop.f32.mrf.mxu0
  %v6555 = vadd.f32 %v6185, %v6554
  %6556 = vmatmul.bf16.gmra.mxu0 %v6101
  %v6557 = vpop.f32.mrf.mxu0
  %v6558 = vadd.f32 %v6185, %v6557
  %v6559 = vpop.f32.mrf.mxu0
  %v6560 = vadd.f32 %v6185, %v6559
  %6561 = vmatmul.bf16.gmra.mxu0 %v6103
  %v6562 = vpop.f32.mrf.mxu0
  %v6563 = vadd.f32 %v6185, %v6562
  %v6564 = vpop.f32.mrf.mxu0
  %v6565 = vadd.f32 %v6185, %v6564
  %6566 = vmatmul.bf16.gmra.mxu0 %v6105
  %v6567 = vpop.f32.mrf.mxu0
  %v6568 = vadd.f32 %v6185, %v6567
  %v6569 = vpop.f32.mrf.mxu0
  %v6570 = vadd.f32 %v6185, %v6569
  %6571 = vmatmul.bf16.gmra.mxu0 %v6107
  %v6572 = vpop.f32.mrf.mxu0
  %v6573 = vadd.f32 %v6185, %v6572
  %v6574 = vpop.f32.mrf.mxu0
  %v6575 = vadd.f32 %v6185, %v6574
  %6576 = vmatmul.bf16.gmra.mxu0 %v6109
  %v6577 = vpop.f32.mrf.mxu0
  %v6578 = vadd.f32 %v6185, %v6577
  %v6579 = vpop.f32.mrf.mxu0
  %v6580 = vadd.f32 %v6185, %v6579
  %6581 = vmatmul.bf16.gmra.mxu0 %v6111
  %v6582 = vpop.f32.mrf.mxu0
  %v6583 = vadd.f32 %v6185, %v6582
  %v6584 = vpop.f32.mrf.mxu0
  %v6585 = vadd.f32 %v6185, %v6584
  %6586 = vmatmul.bf16.gmra.mxu0 %v6113
  %v6587 = vpop.f32.mrf.mxu0
  %v6588 = vadd.f32 %v6185, %v6587
  %v6589 = vpop.f32.mrf.mxu0
  %v6590 = vadd.f32 %v6185, %v6589
  %6591 = vmatmul.bf16.gmra.mxu0 %v6115
  %v6592 = vpop.f32.mrf.mxu0
  %v6593 = vadd.f32 %v6185, %v6592
  %v6594 = vpop.f32.mrf.mxu0
  %v6595 = vadd.f32 %v6185, %v6594
  %6596 = vmatmul.bf16.gmra.mxu0 %v6117
  %v6597 = vpop.f32.mrf.mxu0
  %v6598 = vadd.f32 %v6185, %v6597
  %v6599 = vpop.f32.mrf.mxu0
  %v6600 = vadd.f32 %v6185, %v6599
  %6601 = vdwg.mxu0
  %6602 = vmatpush.bf16.msra.mxu0 %v6445
  %6603 = vmatpush.bf16.msra.mxu0 %v6441
  %6604 = vmatpush.bf16.msra.mxu0 %v6437
  %6605 = vmatpush.bf16.msra.mxu0 %v6433
  %6606 = vmatpush.bf16.msra.mxu0 %v6429
  %6607 = vmatpush.bf16.msra.mxu0 %v6425
  %6608 = vmatpush.bf16.msra.mxu0 %v6421
  %6609 = vmatpush.bf16.msra.mxu0 %v6417
  %6610 = vmatmul.bf16.gmra.mxu0 %v6088
  %v6611 = vpop.f32.mrf.mxu0
  %v6612 = vadd.f32 %v6523, %v6611
  %v6613 = vpop.f32.mrf.mxu0
  %v6614 = vadd.f32 %v6525, %v6613
  %6615 = vmatmul.bf16.gmra.mxu0 %v6090
  %v6616 = vpop.f32.mrf.mxu0
  %v6617 = vadd.f32 %v6528, %v6616
  %v6618 = vpop.f32.mrf.mxu0
  %v6619 = vadd.f32 %v6530, %v6618
  %6620 = vmatmul.bf16.gmra.mxu0 %v6092
  %v6621 = vpop.f32.mrf.mxu0
  %v6622 = vadd.f32 %v6533, %v6621
  %v6623 = vpop.f32.mrf.mxu0
  %v6624 = vadd.f32 %v6535, %v6623
  %6625 = vmatmul.bf16.gmra.mxu0 %v6094
  %v6626 = vpop.f32.mrf.mxu0
  %v6627 = vadd.f32 %v6538, %v6626
  %v6628 = vpop.f32.mrf.mxu0
  %v6629 = vadd.f32 %v6540, %v6628
  %6630 = vmatmul.bf16.gmra.mxu0 %v6096
  %v6631 = vpop.f32.mrf.mxu0
  %v6632 = vadd.f32 %v6543, %v6631
  %v6633 = vpop.f32.mrf.mxu0
  %v6634 = vadd.f32 %v6545, %v6633
  %6635 = vmatmul.bf16.gmra.mxu0 %v6098
  %v6636 = vpop.f32.mrf.mxu0
  %v6637 = vadd.f32 %v6548, %v6636
  %v6638 = vpop.f32.mrf.mxu0
  %v6639 = vadd.f32 %v6550, %v6638
  %6640 = vmatmul.bf16.gmra.mxu0 %v6100
  %v6641 = vpop.f32.mrf.mxu0
  %v6642 = vadd.f32 %v6553, %v6641
  %v6643 = vpop.f32.mrf.mxu0
  %v6644 = vadd.f32 %v6555, %v6643
  %6645 = vmatmul.bf16.gmra.mxu0 %v6102
  %v6646 = vpop.f32.mrf.mxu0
  %v6647 = vadd.f32 %v6558, %v6646
  %v6648 = vpop.f32.mrf.mxu0
  %v6649 = vadd.f32 %v6560, %v6648
  %6650 = vmatmul.bf16.gmra.mxu0 %v6104
  %v6651 = vpop.f32.mrf.mxu0
  %v6652 = vadd.f32 %v6563, %v6651
  %v6653 = vpop.f32.mrf.mxu0
  %v6654 = vadd.f32 %v6565, %v6653
  %6655 = vmatmul.bf16.gmra.mxu0 %v6106
  %v6656 = vpop.f32.mrf.mxu0
  %v6657 = vadd.f32 %v6568, %v6656
  %v6658 = vpop.f32.mrf.mxu0
  %v6659 = vadd.f32 %v6570, %v6658
  %6660 = vmatmul.bf16.gmra.mxu0 %v6108
  %v6661 = vpop.f32.mrf.mxu0
  %v6662 = vadd.f32 %v6573, %v6661
  %v6663 = vpop.f32.mrf.mxu0
  %v6664 = vadd.f32 %v6575, %v6663
  %6665 = vmatmul.bf16.gmra.mxu0 %v6110
  %v6666 = vpop.f32.mrf.mxu0
  %v6667 = vadd.f32 %v6578, %v6666
  %v6668 = vpop.f32.mrf.mxu0
  %v6669 = vadd.f32 %v6580, %v6668
  %6670 = vmatmul.bf16.gmra.mxu0 %v6112
  %v6671 = vpop.f32.mrf.mxu0
  %v6672 = vadd.f32 %v6583, %v6671
  %v6673 = vpop.f32.mrf.mxu0
  %v6674 = vadd.f32 %v6585, %v6673
  %6675 = vmatmul.bf16.gmra.mxu0 %v6114
  %v6676 = vpop.f32.mrf.mxu0
  %v6677 = vadd.f32 %v6588, %v6676
  %v6678 = vpop.f32.mrf.mxu0
  %v6679 = vadd.f32 %v6590, %v6678
  %6680 = vmatmul.bf16.gmra.mxu0 %v6116
  %v6681 = vpop.f32.mrf.mxu0
  %v6682 = vadd.f32 %v6593, %v6681
  %v6683 = vpop.f32.mrf.mxu0
  %v6684 = vadd.f32 %v6595, %v6683
  %6685 = vmatmul.bf16.gmra.mxu0 %v6118
  %v6686 = vpop.f32.mrf.mxu0
  %v6687 = vadd.f32 %v6598, %v6686
  %v6688 = vpop.f32.mrf.mxu0
  %v6689 = vadd.f32 %v6600, %v6688
  %6690 = vdwg.mxu0
  %6691 = vmatpush.bf16.msra.mxu0 %v6414
  %6692 = vmatpush.bf16.msra.mxu0 %v6410
  %6693 = vmatpush.bf16.msra.mxu0 %v6406
  %6694 = vmatpush.bf16.msra.mxu0 %v6402
  %6695 = vmatpush.bf16.msra.mxu0 %v6398
  %6696 = vmatpush.bf16.msra.mxu0 %v6394
  %6697 = vmatpush.bf16.msra.mxu0 %v6390
  %6698 = vmatpush.bf16.msra.mxu0 %v6386
  %6699 = vmatmul.bf16.gmra.mxu0 %v6087
  %v6700 = vpop.f32.mrf.mxu0
  %v6701 = vadd.f32 %v6186, %v6700
  %v6702 = vpop.f32.mrf.mxu0
  %v6703 = vadd.f32 %v6186, %v6702
  %6704 = vmatmul.bf16.gmra.mxu0 %v6089
  %v6705 = vpop.f32.mrf.mxu0
  %v6706 = vadd.f32 %v6186, %v6705
  %v6707 = vpop.f32.mrf.mxu0
  %v6708 = vadd.f32 %v6186, %v6707
  %6709 = vmatmul.bf16.gmra.mxu0 %v6091
  %v6710 = vpop.f32.mrf.mxu0
  %v6711 = vadd.f32 %v6186, %v6710
  %v6712 = vpop.f32.mrf.mxu0
  %v6713 = vadd.f32 %v6186, %v6712
  %6714 = vmatmul.bf16.gmra.mxu0 %v6093
  %v6715 = vpop.f32.mrf.mxu0
  %v6716 = vadd.f32 %v6186, %v6715
  %v6717 = vpop.f32.mrf.mxu0
  %v6718 = vadd.f32 %v6186, %v6717
  %6719 = vmatmul.bf16.gmra.mxu0 %v6095
  %v6720 = vpop.f32.mrf.mxu0
  %v6721 = vadd.f32 %v6186, %v6720
  %v6722 = vpop.f32.mrf.mxu0
  %v6723 = vadd.f32 %v6186, %v6722
  %6724 = vmatmul.bf16.gmra.mxu0 %v6097
  %v6725 = vpop.f32.mrf.mxu0
  %v6726 = vadd.f32 %v6186, %v6725
  %v6727 = vpop.f32.mrf.mxu0
  %v6728 = vadd.f32 %v6186, %v6727
  %6729 = vmatmul.bf16.gmra.mxu0 %v6099
  %v6730 = vpop.f32.mrf.mxu0
  %v6731 = vadd.f32 %v6186, %v6730
  %v6732 = vpop.f32.mrf.mxu0
  %v6733 = vadd.f32 %v6186, %v6732
  %6734 = vmatmul.bf16.gmra.mxu0 %v6101
  %v6735 = vpop.f32.mrf.mxu0
  %v6736 = vadd.f32 %v6186, %v6735
  %v6737 = vpop.f32.mrf.mxu0
  %v6738 = vadd.f32 %v6186, %v6737
  %6739 = vmatmul.bf16.gmra.mxu0 %v6103
  %v6740 = vpop.f32.mrf.mxu0
  %v6741 = vadd.f32 %v6186, %v6740
  %v6742 = vpop.f32.mrf.mxu0
  %v6743 = vadd.f32 %v6186, %v6742
  %6744 = vmatmul.bf16.gmra.mxu0 %v6105
  %v6745 = vpop.f32.mrf.mxu0
  %v6746 = vadd.f32 %v6186, %v6745
  %v6747 = vpop.f32.mrf.mxu0
  %v6748 = vadd.f32 %v6186, %v6747
  %6749 = vmatmul.bf16.gmra.mxu0 %v6107
  %v6750 = vpop.f32.mrf.mxu0
  %v6751 = vadd.f32 %v6186, %v6750
  %v6752 = vpop.f32.mrf.mxu0
  %v6753 = vadd.f32 %v6186, %v6752
  %6754 = vmatmul.bf16.gmra.mxu0 %v6109
  %v6755 = vpop.f32.mrf.mxu0
  %v6756 = vadd.f32 %v6186, %v6755
  %v6757 = vpop.f32.mrf.mxu0
  %v6758 = vadd.f32 %v6186, %v6757
  %6759 = vmatmul.bf16.gmra.mxu0 %v6111
  %v6760 = vpop.f32.mrf.mxu0
  %v6761 = vadd.f32 %v6186, %v6760
  %v6762 = vpop.f32.mrf.mxu0
  %v6763 = vadd.f32 %v6186, %v6762
  %6764 = vmatmul.bf16.gmra.mxu0 %v6113
  %v6765 = vpop.f32.mrf.mxu0
  %v6766 = vadd.f32 %v6186, %v6765
  %v6767 = vpop.f32.mrf.mxu0
  %v6768 = vadd.f32 %v6186, %v6767
  %6769 = vmatmul.bf16.gmra.mxu0 %v6115
  %v6770 = vpop.f32.mrf.mxu0
  %v6771 = vadd.f32 %v6186, %v6770
  %v6772 = vpop.f32.mrf.mxu0
  %v6773 = vadd.f32 %v6186, %v6772
  %6774 = vmatmul.bf16.gmra.mxu0 %v6117
  %v6775 = vpop.f32.mrf.mxu0
  %v6776 = vadd.f32 %v6186, %v6775
  %v6777 = vpop.f32.mrf.mxu0
  %v6778 = vadd.f32 %v6186, %v6777
  %6779 = vdwg.mxu0
  %6780 = vmatpush.bf16.msra.mxu0 %v6446
  %6781 = vmatpush.bf16.msra.mxu0 %v6442
  %6782 = vmatpush.bf16.msra.mxu0 %v6438
  %6783 = vmatpush.bf16.msra.mxu0 %v6434
  %6784 = vmatpush.bf16.msra.mxu0 %v6430
  %6785 = vmatpush.bf16.msra.mxu0 %v6426
  %6786 = vmatpush.bf16.msra.mxu0 %v6422
  %6787 = vmatpush.bf16.msra.mxu0 %v6418
  %6788 = vmatmul.bf16.gmra.mxu0 %v6088
  %v6789 = vpop.f32.mrf.mxu0
  %v6790 = vadd.f32 %v6701, %v6789
  %v6791 = vpop.f32.mrf.mxu0
  %v6792 = vadd.f32 %v6703, %v6791
  %6793 = vmatmul.bf16.gmra.mxu0 %v6090
  %v6794 = vpop.f32.mrf.mxu0
  %v6795 = vadd.f32 %v6706, %v6794
  %v6796 = vpop.f32.mrf.mxu0
  %v6797 = vadd.f32 %v6708, %v6796
  %6798 = vmatmul.bf16.gmra.mxu0 %v6092
  %v6799 = vpop.f32.mrf.mxu0
  %v6800 = vadd.f32 %v6711, %v6799
  %v6801 = vpop.f32.mrf.mxu0
  %v6802 = vadd.f32 %v6713, %v6801
  %6803 = vmatmul.bf16.gmra.mxu0 %v6094
  %v6804 = vpop.f32.mrf.mxu0
  %v6805 = vadd.f32 %v6716, %v6804
  %v6806 = vpop.f32.mrf.mxu0
  %v6807 = vadd.f32 %v6718, %v6806
  %6808 = vmatmul.bf16.gmra.mxu0 %v6096
  %v6809 = vpop.f32.mrf.mxu0
  %v6810 = vadd.f32 %v6721, %v6809
  %v6811 = vpop.f32.mrf.mxu0
  %v6812 = vadd.f32 %v6723, %v6811
  %6813 = vmatmul.bf16.gmra.mxu0 %v6098
  %v6814 = vpop.f32.mrf.mxu0
  %v6815 = vadd.f32 %v6726, %v6814
  %v6816 = vpop.f32.mrf.mxu0
  %v6817 = vadd.f32 %v6728, %v6816
  %6818 = vmatmul.bf16.gmra.mxu0 %v6100
  %v6819 = vpop.f32.mrf.mxu0
  %v6820 = vadd.f32 %v6731, %v6819
  %v6821 = vpop.f32.mrf.mxu0
  %v6822 = vadd.f32 %v6733, %v6821
  %6823 = vmatmul.bf16.gmra.mxu0 %v6102
  %v6824 = vpop.f32.mrf.mxu0
  %v6825 = vadd.f32 %v6736, %v6824
  %v6826 = vpop.f32.mrf.mxu0
  %v6827 = vadd.f32 %v6738, %v6826
  %6828 = vmatmul.bf16.gmra.mxu0 %v6104
  %v6829 = vpop.f32.mrf.mxu0
  %v6830 = vadd.f32 %v6741, %v6829
  %v6831 = vpop.f32.mrf.mxu0
  %v6832 = vadd.f32 %v6743, %v6831
  %6833 = vmatmul.bf16.gmra.mxu0 %v6106
  %v6834 = vpop.f32.mrf.mxu0
  %v6835 = vadd.f32 %v6746, %v6834
  %v6836 = vpop.f32.mrf.mxu0
  %v6837 = vadd.f32 %v6748, %v6836
  %6838 = vmatmul.bf16.gmra.mxu0 %v6108
  %v6839 = vpop.f32.mrf.mxu0
  %v6840 = vadd.f32 %v6751, %v6839
  %v6841 = vpop.f32.mrf.mxu0
  %v6842 = vadd.f32 %v6753, %v6841
  %6843 = vmatmul.bf16.gmra.mxu0 %v6110
  %v6844 = vpop.f32.mrf.mxu0
  %v6845 = vadd.f32 %v6756, %v6844
  %v6846 = vpop.f32.mrf.mxu0
  %v6847 = vadd.f32 %v6758, %v6846
  %6848 = vmatmul.bf16.gmra.mxu0 %v6112
  %v6849 = vpop.f32.mrf.mxu0
  %v6850 = vadd.f32 %v6761, %v6849
  %v6851 = vpop.f32.mrf.mxu0
  %v6852 = vadd.f32 %v6763, %v6851
  %6853 = vmatmul.bf16.gmra.mxu0 %v6114
  %v6854 = vpop.f32.mrf.mxu0
  %v6855 = vadd.f32 %v6766, %v6854
  %v6856 = vpop.f32.mrf.mxu0
  %v6857 = vadd.f32 %v6768, %v6856
  %6858 = vmatmul.bf16.gmra.mxu0 %v6116
  %v6859 = vpop.f32.mrf.mxu0
  %v6860 = vadd.f32 %v6771, %v6859
  %v6861 = vpop.f32.mrf.mxu0
  %v6862 = vadd.f32 %v6773, %v6861
  %6863 = vmatmul.bf16.gmra.mxu0 %v6118
  %v6864 = vpop.f32.mrf.mxu0
  %v6865 = vadd.f32 %v6776, %v6864
  %v6866 = vpop.f32.mrf.mxu0
  %v6867 = vadd.f32 %v6778, %v6866
  %6868 = vdwg.mxu0
  %6869 = vmatpush.bf16.msra.mxu0 %v6415
  %6870 = vmatpush.bf16.msra.mxu0 %v6411
  %6871 = vmatpush.bf16.msra.mxu0 %v6407
  %6872 = vmatpush.bf16.msra.mxu0 %v6403
  %6873 = vmatpush.bf16.msra.mxu0 %v6399
  %6874 = vmatpush.bf16.msra.mxu0 %v6395
  %6875 = vmatpush.bf16.msra.mxu0 %v6391
  %6876 = vmatpush.bf16.msra.mxu0 %v6387
  %6877 = vmatmul.bf16.gmra.mxu0 %v6087
  %v6878 = vpop.f32.mrf.mxu0
  %v6879 = vadd.f32 %v6187, %v6878
  %v6880 = vpop.f32.mrf.mxu0
  %v6881 = vadd.f32 %v6187, %v6880
  %6882 = vmatmul.bf16.gmra.mxu0 %v6089
  %v6883 = vpop.f32.mrf.mxu0
  %v6884 = vadd.f32 %v6187, %v6883
  %v6885 = vpop.f32.mrf.mxu0
  %v6886 = vadd.f32 %v6187, %v6885
  %6887 = vmatmul.bf16.gmra.mxu0 %v6091
  %v6888 = vpop.f32.mrf.mxu0
  %v6889 = vadd.f32 %v6187, %v6888
  %v6890 = vpop.f32.mrf.mxu0
  %v6891 = vadd.f32 %v6187, %v6890
  %6892 = vmatmul.bf16.gmra.mxu0 %v6093
  %v6893 = vpop.f32.mrf.mxu0
  %v6894 = vadd.f32 %v6187, %v6893
  %v6895 = vpop.f32.mrf.mxu0
  %v6896 = vadd.f32 %v6187, %v6895
  %6897 = vmatmul.bf16.gmra.mxu0 %v6095
  %v6898 = vpop.f32.mrf.mxu0
  %v6899 = vadd.f32 %v6187, %v6898
  %v6900 = vpop.f32.mrf.mxu0
  %v6901 = vadd.f32 %v6187, %v6900
  %6902 = vmatmul.bf16.gmra.mxu0 %v6097
  %v6903 = vpop.f32.mrf.mxu0
  %v6904 = vadd.f32 %v6187, %v6903
  %v6905 = vpop.f32.mrf.mxu0
  %v6906 = vadd.f32 %v6187, %v6905
  %6907 = vmatmul.bf16.gmra.mxu0 %v6099
  %v6908 = vpop.f32.mrf.mxu0
  %v6909 = vadd.f32 %v6187, %v6908
  %v6910 = vpop.f32.mrf.mxu0
  %v6911 = vadd.f32 %v6187, %v6910
  %6912 = vmatmul.bf16.gmra.mxu0 %v6101
  %v6913 = vpop.f32.mrf.mxu0
  %v6914 = vadd.f32 %v6187, %v6913
  %v6915 = vpop.f32.mrf.mxu0
  %v6916 = vadd.f32 %v6187, %v6915
  %6917 = vmatmul.bf16.gmra.mxu0 %v6103
  %v6918 = vpop.f32.mrf.mxu0
  %v6919 = vadd.f32 %v6187, %v6918
  %v6920 = vpop.f32.mrf.mxu0
  %v6921 = vadd.f32 %v6187, %v6920
  %6922 = vmatmul.bf16.gmra.mxu0 %v6105
  %v6923 = vpop.f32.mrf.mxu0
  %v6924 = vadd.f32 %v6187, %v6923
  %v6925 = vpop.f32.mrf.mxu0
  %v6926 = vadd.f32 %v6187, %v6925
  %6927 = vmatmul.bf16.gmra.mxu0 %v6107
  %v6928 = vpop.f32.mrf.mxu0
  %v6929 = vadd.f32 %v6187, %v6928
  %v6930 = vpop.f32.mrf.mxu0
  %v6931 = vadd.f32 %v6187, %v6930
  %6932 = vmatmul.bf16.gmra.mxu0 %v6109
  %v6933 = vpop.f32.mrf.mxu0
  %v6934 = vadd.f32 %v6187, %v6933
  %v6935 = vpop.f32.mrf.mxu0
  %v6936 = vadd.f32 %v6187, %v6935
  %6937 = vmatmul.bf16.gmra.mxu0 %v6111
  %v6938 = vpop.f32.mrf.mxu0
  %v6939 = vadd.f32 %v6187, %v6938
  %v6940 = vpop.f32.mrf.mxu0
  %v6941 = vadd.f32 %v6187, %v6940
  %6942 = vmatmul.bf16.gmra.mxu0 %v6113
  %v6943 = vpop.f32.mrf.mxu0
  %v6944 = vadd.f32 %v6187, %v6943
  %v6945 = vpop.f32.mrf.mxu0
  %v6946 = vadd.f32 %v6187, %v6945
  %6947 = vmatmul.bf16.gmra.mxu0 %v6115
  %v6948 = vpop.f32.mrf.mxu0
  %v6949 = vadd.f32 %v6187, %v6948
  %v6950 = vpop.f32.mrf.mxu0
  %v6951 = vadd.f32 %v6187, %v6950
  %6952 = vmatmul.bf16.gmra.mxu0 %v6117
  %v6953 = vpop.f32.mrf.mxu0
  %v6954 = vadd.f32 %v6187, %v6953
  %v6955 = vpop.f32.mrf.mxu0
  %v6956 = vadd.f32 %v6187, %v6955
  %6957 = vdwg.mxu0
  %6958 = vmatpush.bf16.msra.mxu0 %v6447
  %6959 = vmatpush.bf16.msra.mxu0 %v6443
  %6960 = vmatpush.bf16.msra.mxu0 %v6439
  %6961 = vmatpush.bf16.msra.mxu0 %v6435
  %6962 = vmatpush.bf16.msra.mxu0 %v6431
  %6963 = vmatpush.bf16.msra.mxu0 %v6427
  %6964 = vmatpush.bf16.msra.mxu0 %v6423
  %6965 = vmatpush.bf16.msra.mxu0 %v6419
  %6966 = vmatmul.bf16.gmra.mxu0 %v6088
  %v6967 = vpop.f32.mrf.mxu0
  %v6968 = vadd.f32 %v6879, %v6967
  %v6969 = vpop.f32.mrf.mxu0
  %v6970 = vadd.f32 %v6881, %v6969
  %6971 = vmatmul.bf16.gmra.mxu0 %v6090
  %v6972 = vpop.f32.mrf.mxu0
  %v6973 = vadd.f32 %v6884, %v6972
  %v6974 = vpop.f32.mrf.mxu0
  %v6975 = vadd.f32 %v6886, %v6974
  %6976 = vmatmul.bf16.gmra.mxu0 %v6092
  %v6977 = vpop.f32.mrf.mxu0
  %v6978 = vadd.f32 %v6889, %v6977
  %v6979 = vpop.f32.mrf.mxu0
  %v6980 = vadd.f32 %v6891, %v6979
  %6981 = vmatmul.bf16.gmra.mxu0 %v6094
  %v6982 = vpop.f32.mrf.mxu0
  %v6983 = vadd.f32 %v6894, %v6982
  %v6984 = vpop.f32.mrf.mxu0
  %v6985 = vadd.f32 %v6896, %v6984
  %6986 = vmatmul.bf16.gmra.mxu0 %v6096
  %v6987 = vpop.f32.mrf.mxu0
  %v6988 = vadd.f32 %v6899, %v6987
  %v6989 = vpop.f32.mrf.mxu0
  %v6990 = vadd.f32 %v6901, %v6989
  %6991 = vmatmul.bf16.gmra.mxu0 %v6098
  %v6992 = vpop.f32.mrf.mxu0
  %v6993 = vadd.f32 %v6904, %v6992
  %v6994 = vpop.f32.mrf.mxu0
  %v6995 = vadd.f32 %v6906, %v6994
  %6996 = vmatmul.bf16.gmra.mxu0 %v6100
  %v6997 = vpop.f32.mrf.mxu0
  %v6998 = vadd.f32 %v6909, %v6997
  %v6999 = vpop.f32.mrf.mxu0
  %v7000 = vadd.f32 %v6911, %v6999
  %7001 = vmatmul.bf16.gmra.mxu0 %v6102
  %v7002 = vpop.f32.mrf.mxu0
  %v7003 = vadd.f32 %v6914, %v7002
  %v7004 = vpop.f32.mrf.mxu0
  %v7005 = vadd.f32 %v6916, %v7004
  %7006 = vmatmul.bf16.gmra.mxu0 %v6104
  %v7007 = vpop.f32.mrf.mxu0
  %v7008 = vadd.f32 %v6919, %v7007
  %v7009 = vpop.f32.mrf.mxu0
  %v7010 = vadd.f32 %v6921, %v7009
  %7011 = vmatmul.bf16.gmra.mxu0 %v6106
  %v7012 = vpop.f32.mrf.mxu0
  %v7013 = vadd.f32 %v6924, %v7012
  %v7014 = vpop.f32.mrf.mxu0
  %v7015 = vadd.f32 %v6926, %v7014
  %7016 = vmatmul.bf16.gmra.mxu0 %v6108
  %v7017 = vpop.f32.mrf.mxu0
  %v7018 = vadd.f32 %v6929, %v7017
  %v7019 = vpop.f32.mrf.mxu0
  %v7020 = vadd.f32 %v6931, %v7019
  %7021 = vmatmul.bf16.gmra.mxu0 %v6110
  %v7022 = vpop.f32.mrf.mxu0
  %v7023 = vadd.f32 %v6934, %v7022
  %v7024 = vpop.f32.mrf.mxu0
  %v7025 = vadd.f32 %v6936, %v7024
  %7026 = vmatmul.bf16.gmra.mxu0 %v6112
  %v7027 = vpop.f32.mrf.mxu0
  %v7028 = vadd.f32 %v6939, %v7027
  %v7029 = vpop.f32.mrf.mxu0
  %v7030 = vadd.f32 %v6941, %v7029
  %7031 = vmatmul.bf16.gmra.mxu0 %v6114
  %v7032 = vpop.f32.mrf.mxu0
  %v7033 = vadd.f32 %v6944, %v7032
  %v7034 = vpop.f32.mrf.mxu0
  %v7035 = vadd.f32 %v6946, %v7034
  %7036 = vmatmul.bf16.gmra.mxu0 %v6116
  %v7037 = vpop.f32.mrf.mxu0
  %v7038 = vadd.f32 %v6949, %v7037
  %v7039 = vpop.f32.mrf.mxu0
  %v7040 = vadd.f32 %v6951, %v7039
  %7041 = vmatmul.bf16.gmra.mxu0 %v6118
  %v7042 = vpop.f32.mrf.mxu0
  %v7043 = vadd.f32 %v6954, %v7042
  %v7044 = vpop.f32.mrf.mxu0
  %v7045 = vadd.f32 %v6956, %v7044
  %7046 = vdwg.mxu0
  %7047 = vmatpush.bf16.msra.mxu0 %v6416
  %7048 = vmatpush.bf16.msra.mxu0 %v6412
  %7049 = vmatpush.bf16.msra.mxu0 %v6408
  %7050 = vmatpush.bf16.msra.mxu0 %v6404
  %7051 = vmatpush.bf16.msra.mxu0 %v6400
  %7052 = vmatpush.bf16.msra.mxu0 %v6396
  %7053 = vmatpush.bf16.msra.mxu0 %v6392
  %7054 = vmatpush.bf16.msra.mxu0 %v6388
  %7055 = vmatmul.bf16.gmra.mxu0 %v6087
  %v7056 = vpop.f32.mrf.mxu0
  %v7057 = vadd.f32 %v6188, %v7056
  %v7058 = vpop.f32.mrf.mxu0
  %v7059 = vadd.f32 %v6188, %v7058
  %7060 = vmatmul.bf16.gmra.mxu0 %v6089
  %v7061 = vpop.f32.mrf.mxu0
  %v7062 = vadd.f32 %v6188, %v7061
  %v7063 = vpop.f32.mrf.mxu0
  %v7064 = vadd.f32 %v6188, %v7063
  %7065 = vmatmul.bf16.gmra.mxu0 %v6091
  %v7066 = vpop.f32.mrf.mxu0
  %v7067 = vadd.f32 %v6188, %v7066
  %v7068 = vpop.f32.mrf.mxu0
  %v7069 = vadd.f32 %v6188, %v7068
  %7070 = vmatmul.bf16.gmra.mxu0 %v6093
  %v7071 = vpop.f32.mrf.mxu0
  %v7072 = vadd.f32 %v6188, %v7071
  %v7073 = vpop.f32.mrf.mxu0
  %v7074 = vadd.f32 %v6188, %v7073
  %7075 = vmatmul.bf16.gmra.mxu0 %v6095
  %v7076 = vpop.f32.mrf.mxu0
  %v7077 = vadd.f32 %v6188, %v7076
  %v7078 = vpop.f32.mrf.mxu0
  %v7079 = vadd.f32 %v6188, %v7078
  %7080 = vmatmul.bf16.gmra.mxu0 %v6097
  %v7081 = vpop.f32.mrf.mxu0
  %v7082 = vadd.f32 %v6188, %v7081
  %v7083 = vpop.f32.mrf.mxu0
  %v7084 = vadd.f32 %v6188, %v7083
  %7085 = vmatmul.bf16.gmra.mxu0 %v6099
  %v7086 = vpop.f32.mrf.mxu0
  %v7087 = vadd.f32 %v6188, %v7086
  %v7088 = vpop.f32.mrf.mxu0
  %v7089 = vadd.f32 %v6188, %v7088
  %7090 = vmatmul.bf16.gmra.mxu0 %v6101
  %v7091 = vpop.f32.mrf.mxu0
  %v7092 = vadd.f32 %v6188, %v7091
  %v7093 = vpop.f32.mrf.mxu0
  %v7094 = vadd.f32 %v6188, %v7093
  %7095 = vmatmul.bf16.gmra.mxu0 %v6103
  %v7096 = vpop.f32.mrf.mxu0
  %v7097 = vadd.f32 %v6188, %v7096
  %v7098 = vpop.f32.mrf.mxu0
  %v7099 = vadd.f32 %v6188, %v7098
  %7100 = vmatmul.bf16.gmra.mxu0 %v6105
  %v7101 = vpop.f32.mrf.mxu0
  %v7102 = vadd.f32 %v6188, %v7101
  %v7103 = vpop.f32.mrf.mxu0
  %v7104 = vadd.f32 %v6188, %v7103
  %7105 = vmatmul.bf16.gmra.mxu0 %v6107
  %v7106 = vpop.f32.mrf.mxu0
  %v7107 = vadd.f32 %v6188, %v7106
  %v7108 = vpop.f32.mrf.mxu0
  %v7109 = vadd.f32 %v6188, %v7108
  %7110 = vmatmul.bf16.gmra.mxu0 %v6109
  %v7111 = vpop.f32.mrf.mxu0
  %v7112 = vadd.f32 %v6188, %v7111
  %v7113 = vpop.f32.mrf.mxu0
  %v7114 = vadd.f32 %v6188, %v7113
  %7115 = vmatmul.bf16.gmra.mxu0 %v6111
  %v7116 = vpop.f32.mrf.mxu0
  %v7117 = vadd.f32 %v6188, %v7116
  %v7118 = vpop.f32.mrf.mxu0
  %v7119 = vadd.f32 %v6188, %v7118
  %7120 = vmatmul.bf16.gmra.mxu0 %v6113
  %v7121 = vpop.f32.mrf.mxu0
  %v7122 = vadd.f32 %v6188, %v7121
  %v7123 = vpop.f32.mrf.mxu0
  %v7124 = vadd.f32 %v6188, %v7123
  %7125 = vmatmul.bf16.gmra.mxu0 %v6115
  %v7126 = vpop.f32.mrf.mxu0
  %v7127 = vadd.f32 %v6188, %v7126
  %v7128 = vpop.f32.mrf.mxu0
  %v7129 = vadd.f32 %v6188, %v7128
  %7130 = vmatmul.bf16.gmra.mxu0 %v6117
  %v7131 = vpop.f32.mrf.mxu0
  %v7132 = vadd.f32 %v6188, %v7131
  %v7133 = vpop.f32.mrf.mxu0
  %v7134 = vadd.f32 %v6188, %v7133
  %7135 = vdwg.mxu0
  %7136 = vmatpush.bf16.msra.mxu0 %v6448
  %7137 = vmatpush.bf16.msra.mxu0 %v6444
  %7138 = vmatpush.bf16.msra.mxu0 %v6440
  %7139 = vmatpush.bf16.msra.mxu0 %v6436
  %7140 = vmatpush.bf16.msra.mxu0 %v6432
  %7141 = vmatpush.bf16.msra.mxu0 %v6428
  %7142 = vmatpush.bf16.msra.mxu0 %v6424
  %7143 = vmatpush.bf16.msra.mxu0 %v6420
  %7144 = vmatmul.bf16.gmra.mxu0 %v6088
  %v7145 = vpop.f32.mrf.mxu0
  %v7146 = vadd.f32 %v7057, %v7145
  %v7147 = vpop.f32.mrf.mxu0
  %v7148 = vadd.f32 %v7059, %v7147
  %7149 = vmatmul.bf16.gmra.mxu0 %v6090
  %v7150 = vpop.f32.mrf.mxu0
  %v7151 = vadd.f32 %v7062, %v7150
  %v7152 = vpop.f32.mrf.mxu0
  %v7153 = vadd.f32 %v7064, %v7152
  %7154 = vmatmul.bf16.gmra.mxu0 %v6092
  %v7155 = vpop.f32.mrf.mxu0
  %v7156 = vadd.f32 %v7067, %v7155
  %v7157 = vpop.f32.mrf.mxu0
  %v7158 = vadd.f32 %v7069, %v7157
  %7159 = vmatmul.bf16.gmra.mxu0 %v6094
  %v7160 = vpop.f32.mrf.mxu0
  %v7161 = vadd.f32 %v7072, %v7160
  %v7162 = vpop.f32.mrf.mxu0
  %v7163 = vadd.f32 %v7074, %v7162
  %7164 = vmatmul.bf16.gmra.mxu0 %v6096
  %v7165 = vpop.f32.mrf.mxu0
  %v7166 = vadd.f32 %v7077, %v7165
  %v7167 = vpop.f32.mrf.mxu0
  %v7168 = vadd.f32 %v7079, %v7167
  %7169 = vmatmul.bf16.gmra.mxu0 %v6098
  %v7170 = vpop.f32.mrf.mxu0
  %v7171 = vadd.f32 %v7082, %v7170
  %v7172 = vpop.f32.mrf.mxu0
  %v7173 = vadd.f32 %v7084, %v7172
  %7174 = vmatmul.bf16.gmra.mxu0 %v6100
  %v7175 = vpop.f32.mrf.mxu0
  %v7176 = vadd.f32 %v7087, %v7175
  %v7177 = vpop.f32.mrf.mxu0
  %v7178 = vadd.f32 %v7089, %v7177
  %7179 = vmatmul.bf16.gmra.mxu0 %v6102
  %v7180 = vpop.f32.mrf.mxu0
  %v7181 = vadd.f32 %v7092, %v7180
  %v7182 = vpop.f32.mrf.mxu0
  %v7183 = vadd.f32 %v7094, %v7182
  %7184 = vmatmul.bf16.gmra.mxu0 %v6104
  %v7185 = vpop.f32.mrf.mxu0
  %v7186 = vadd.f32 %v7097, %v7185
  %v7187 = vpop.f32.mrf.mxu0
  %v7188 = vadd.f32 %v7099, %v7187
  %7189 = vmatmul.bf16.gmra.mxu0 %v6106
  %v7190 = vpop.f32.mrf.mxu0
  %v7191 = vadd.f32 %v7102, %v7190
  %v7192 = vpop.f32.mrf.mxu0
  %v7193 = vadd.f32 %v7104, %v7192
  %7194 = vmatmul.bf16.gmra.mxu0 %v6108
  %v7195 = vpop.f32.mrf.mxu0
  %v7196 = vadd.f32 %v7107, %v7195
  %v7197 = vpop.f32.mrf.mxu0
  %v7198 = vadd.f32 %v7109, %v7197
  %7199 = vmatmul.bf16.gmra.mxu0 %v6110
  %v7200 = vpop.f32.mrf.mxu0
  %v7201 = vadd.f32 %v7112, %v7200
  %v7202 = vpop.f32.mrf.mxu0
  %v7203 = vadd.f32 %v7114, %v7202
  %7204 = vmatmul.bf16.gmra.mxu0 %v6112
  %v7205 = vpop.f32.mrf.mxu0
  %v7206 = vadd.f32 %v7117, %v7205
  %v7207 = vpop.f32.mrf.mxu0
  %v7208 = vadd.f32 %v7119, %v7207
  %7209 = vmatmul.bf16.gmra.mxu0 %v6114
  %v7210 = vpop.f32.mrf.mxu0
  %v7211 = vadd.f32 %v7122, %v7210
  %v7212 = vpop.f32.mrf.mxu0
  %v7213 = vadd.f32 %v7124, %v7212
  %7214 = vmatmul.bf16.gmra.mxu0 %v6116
  %v7215 = vpop.f32.mrf.mxu0
  %v7216 = vadd.f32 %v7127, %v7215
  %v7217 = vpop.f32.mrf.mxu0
  %v7218 = vadd.f32 %v7129, %v7217
  %7219 = vmatmul.bf16.gmra.mxu0 %v6118
  %v7220 = vpop.f32.mrf.mxu0
  %v7221 = vadd.f32 %v7132, %v7220
  %v7222 = vpop.f32.mrf.mxu0
  %v7223 = vadd.f32 %v7134, %v7222
  %7224 = vdwg.mxu0
  %v7225 = vadd.f32 %v6612, %v6614
  %v7226 = vadd.f32 %v7225, %v6617
  %v7227 = vadd.f32 %v7226, %v6619
  %v7228 = vadd.f32 %v7227, %v6622
  %v7229 = vadd.f32 %v7228, %v6624
  %v7230 = vadd.f32 %v7229, %v6627
  %v7231 = vadd.f32 %v7230, %v6629
  %v7232 = vadd.f32 %v7231, %v6632
  %v7233 = vadd.f32 %v7232, %v6634
  %v7234 = vadd.f32 %v7233, %v6637
  %v7235 = vadd.f32 %v7234, %v6639
  %v7236 = vadd.f32 %v7235, %v6642
  %v7237 = vadd.f32 %v7236, %v6644
  %v7238 = vadd.f32 %v7237, %v6647
  %v7239 = vadd.f32 %v7238, %v6649
  %v7240 = vadd.f32 %v7239, %v6652
  %v7241 = vadd.f32 %v7240, %v6654
  %v7242 = vadd.f32 %v7241, %v6657
  %v7243 = vadd.f32 %v7242, %v6659
  %v7244 = vadd.f32 %v7243, %v6662
  %v7245 = vadd.f32 %v7244, %v6664
  %v7246 = vadd.f32 %v7245, %v6667
  %v7247 = vadd.f32 %v7246, %v6669
  %v7248 = vadd.f32 %v7247, %v6672
  %v7249 = vadd.f32 %v7248, %v6674
  %v7250 = vadd.f32 %v7249, %v6677
  %v7251 = vadd.f32 %v7250, %v6679
  %v7252 = vadd.f32 %v7251, %v6682
  %v7253 = vadd.f32 %v7252, %v6684
  %v7254 = vadd.f32 %v7253, %v6687
  %v7255 = vadd.f32 %v7254, %v6689
  %v7256 = vrot.slane %v7255, 4
  %v7257 = vadd.f32 %v7255, %v7256
  %v7258 = vrot.slane %v7257, 2
  %v7259 = vadd.f32 %v7257, %v7258
  %v7260 = vrot.slane %v7259, 1
  %v7261 = vadd.f32 %v7259, %v7260
  %v7262 = vadd.f32 %v6790, %v6792
  %v7263 = vadd.f32 %v7262, %v6795
  %v7264 = vadd.f32 %v7263, %v6797
  %v7265 = vadd.f32 %v7264, %v6800
  %v7266 = vadd.f32 %v7265, %v6802
  %v7267 = vadd.f32 %v7266, %v6805
  %v7268 = vadd.f32 %v7267, %v6807
  %v7269 = vadd.f32 %v7268, %v6810
  %v7270 = vadd.f32 %v7269, %v6812
  %v7271 = vadd.f32 %v7270, %v6815
  %v7272 = vadd.f32 %v7271, %v6817
  %v7273 = vadd.f32 %v7272, %v6820
  %v7274 = vadd.f32 %v7273, %v6822
  %v7275 = vadd.f32 %v7274, %v6825
  %v7276 = vadd.f32 %v7275, %v6827
  %v7277 = vadd.f32 %v7276, %v6830
  %v7278 = vadd.f32 %v7277, %v6832
  %v7279 = vadd.f32 %v7278, %v6835
  %v7280 = vadd.f32 %v7279, %v6837
  %v7281 = vadd.f32 %v7280, %v6840
  %v7282 = vadd.f32 %v7281, %v6842
  %v7283 = vadd.f32 %v7282, %v6845
  %v7284 = vadd.f32 %v7283, %v6847
  %v7285 = vadd.f32 %v7284, %v6850
  %v7286 = vadd.f32 %v7285, %v6852
  %v7287 = vadd.f32 %v7286, %v6855
  %v7288 = vadd.f32 %v7287, %v6857
  %v7289 = vadd.f32 %v7288, %v6860
  %v7290 = vadd.f32 %v7289, %v6862
  %v7291 = vadd.f32 %v7290, %v6865
  %v7292 = vadd.f32 %v7291, %v6867
  %v7293 = vrot.slane %v7292, 4
  %v7294 = vadd.f32 %v7292, %v7293
  %v7295 = vrot.slane %v7294, 2
  %v7296 = vadd.f32 %v7294, %v7295
  %v7297 = vrot.slane %v7296, 1
  %v7298 = vadd.f32 %v7296, %v7297
  %v7299 = vadd.f32 %v6968, %v6970
  %v7300 = vadd.f32 %v7299, %v6973
  %v7301 = vadd.f32 %v7300, %v6975
  %v7302 = vadd.f32 %v7301, %v6978
  %v7303 = vadd.f32 %v7302, %v6980
  %v7304 = vadd.f32 %v7303, %v6983
  %v7305 = vadd.f32 %v7304, %v6985
  %v7306 = vadd.f32 %v7305, %v6988
  %v7307 = vadd.f32 %v7306, %v6990
  %v7308 = vadd.f32 %v7307, %v6993
  %v7309 = vadd.f32 %v7308, %v6995
  %v7310 = vadd.f32 %v7309, %v6998
  %v7311 = vadd.f32 %v7310, %v7000
  %v7312 = vadd.f32 %v7311, %v7003
  %v7313 = vadd.f32 %v7312, %v7005
  %v7314 = vadd.f32 %v7313, %v7008
  %v7315 = vadd.f32 %v7314, %v7010
  %v7316 = vadd.f32 %v7315, %v7013
  %v7317 = vadd.f32 %v7316, %v7015
  %v7318 = vadd.f32 %v7317, %v7018
  %v7319 = vadd.f32 %v7318, %v7020
  %v7320 = vadd.f32 %v7319, %v7023
  %v7321 = vadd.f32 %v7320, %v7025
  %v7322 = vadd.f32 %v7321, %v7028
  %v7323 = vadd.f32 %v7322, %v7030
  %v7324 = vadd.f32 %v7323, %v7033
  %v7325 = vadd.f32 %v7324, %v7035
  %v7326 = vadd.f32 %v7325, %v7038
  %v7327 = vadd.f32 %v7326, %v7040
  %v7328 = vadd.f32 %v7327, %v7043
  %v7329 = vadd.f32 %v7328, %v7045
  %v7330 = vrot.slane %v7329, 4
  %v7331 = vadd.f32 %v7329, %v7330
  %v7332 = vrot.slane %v7331, 2
  %v7333 = vadd.f32 %v7331, %v7332
  %v7334 = vrot.slane %v7333, 1
  %v7335 = vadd.f32 %v7333, %v7334
  %v7336 = vadd.f32 %v7146, %v7148
  %v7337 = vadd.f32 %v7336, %v7151
  %v7338 = vadd.f32 %v7337, %v7153
  %v7339 = vadd.f32 %v7338, %v7156
  %v7340 = vadd.f32 %v7339, %v7158
  %v7341 = vadd.f32 %v7340, %v7161
  %v7342 = vadd.f32 %v7341, %v7163
  %v7343 = vadd.f32 %v7342, %v7166
  %v7344 = vadd.f32 %v7343, %v7168
  %v7345 = vadd.f32 %v7344, %v7171
  %v7346 = vadd.f32 %v7345, %v7173
  %v7347 = vadd.f32 %v7346, %v7176
  %v7348 = vadd.f32 %v7347, %v7178
  %v7349 = vadd.f32 %v7348, %v7181
  %v7350 = vadd.f32 %v7349, %v7183
  %v7351 = vadd.f32 %v7350, %v7186
  %v7352 = vadd.f32 %v7351, %v7188
  %v7353 = vadd.f32 %v7352, %v7191
  %v7354 = vadd.f32 %v7353, %v7193
  %v7355 = vadd.f32 %v7354, %v7196
  %v7356 = vadd.f32 %v7355, %v7198
  %v7357 = vadd.f32 %v7356, %v7201
  %v7358 = vadd.f32 %v7357, %v7203
  %v7359 = vadd.f32 %v7358, %v7206
  %v7360 = vadd.f32 %v7359, %v7208
  %v7361 = vadd.f32 %v7360, %v7211
  %v7362 = vadd.f32 %v7361, %v7213
  %v7363 = vadd.f32 %v7362, %v7216
  %v7364 = vadd.f32 %v7363, %v7218
  %v7365 = vadd.f32 %v7364, %v7221
  %v7366 = vadd.f32 %v7365, %v7223
  %v7367 = vrot.slane %v7366, 4
  %v7368 = vadd.f32 %v7366, %v7367
  %v7369 = vrot.slane %v7368, 2
  %v7370 = vadd.f32 %v7368, %v7369
  %v7371 = vrot.slane %v7370, 1
  %v7372 = vadd.f32 %v7370, %v7371
  %v7373 = vmul.f32 %v7261, %v856
  %v7374 = vmul.f32 %v7298, %v856
  %v7375 = vmul.f32 %v7335, %v856
  %v7376 = vmul.f32 %v7372, %v856
  %v7377 = vmul.f32 %v6612, %v6612
  %v7378 = vmul.f32 %v6790, %v6790
  %v7379 = vmul.f32 %v6968, %v6968
  %v7380 = vmul.f32 %v7146, %v7146
  %v7381 = vmul.f32 %v6614, %v6614
  %v7382 = vmul.f32 %v6792, %v6792
  %v7383 = vmul.f32 %v6970, %v6970
  %v7384 = vmul.f32 %v7148, %v7148
  %v7385 = vmul.f32 %v6617, %v6617
  %v7386 = vmul.f32 %v6795, %v6795
  %v7387 = vmul.f32 %v6973, %v6973
  %v7388 = vmul.f32 %v7151, %v7151
  %v7389 = vmul.f32 %v6619, %v6619
  %v7390 = vmul.f32 %v6797, %v6797
  %v7391 = vmul.f32 %v6975, %v6975
  %v7392 = vmul.f32 %v7153, %v7153
  %v7393 = vmul.f32 %v6622, %v6622
  %v7394 = vmul.f32 %v6800, %v6800
  %v7395 = vmul.f32 %v6978, %v6978
  %v7396 = vmul.f32 %v7156, %v7156
  %v7397 = vmul.f32 %v6624, %v6624
  %v7398 = vmul.f32 %v6802, %v6802
  %v7399 = vmul.f32 %v6980, %v6980
  %v7400 = vmul.f32 %v7158, %v7158
  %v7401 = vmul.f32 %v6627, %v6627
  %v7402 = vmul.f32 %v6805, %v6805
  %v7403 = vmul.f32 %v6983, %v6983
  %v7404 = vmul.f32 %v7161, %v7161
  %v7405 = vmul.f32 %v6629, %v6629
  %v7406 = vmul.f32 %v6807, %v6807
  %v7407 = vmul.f32 %v6985, %v6985
  %v7408 = vmul.f32 %v7163, %v7163
  %v7409 = vmul.f32 %v6632, %v6632
  %v7410 = vmul.f32 %v6810, %v6810
  %v7411 = vmul.f32 %v6988, %v6988
  %v7412 = vmul.f32 %v7166, %v7166
  %v7413 = vmul.f32 %v6634, %v6634
  %v7414 = vmul.f32 %v6812, %v6812
  %v7415 = vmul.f32 %v6990, %v6990
  %v7416 = vmul.f32 %v7168, %v7168
  %v7417 = vmul.f32 %v6637, %v6637
  %v7418 = vmul.f32 %v6815, %v6815
  %v7419 = vmul.f32 %v6993, %v6993
  %v7420 = vmul.f32 %v7171, %v7171
  %v7421 = vmul.f32 %v6639, %v6639
  %v7422 = vmul.f32 %v6817, %v6817
  %v7423 = vmul.f32 %v6995, %v6995
  %v7424 = vmul.f32 %v7173, %v7173
  %v7425 = vmul.f32 %v6642, %v6642
  %v7426 = vmul.f32 %v6820, %v6820
  %v7427 = vmul.f32 %v6998, %v6998
  %v7428 = vmul.f32 %v7176, %v7176
  %v7429 = vmul.f32 %v6644, %v6644
  %v7430 = vmul.f32 %v6822, %v6822
  %v7431 = vmul.f32 %v7000, %v7000
  %v7432 = vmul.f32 %v7178, %v7178
  %v7433 = vmul.f32 %v6647, %v6647
  %v7434 = vmul.f32 %v6825, %v6825
  %v7435 = vmul.f32 %v7003, %v7003
  %v7436 = vmul.f32 %v7181, %v7181
  %v7437 = vmul.f32 %v6649, %v6649
  %v7438 = vmul.f32 %v6827, %v6827
  %v7439 = vmul.f32 %v7005, %v7005
  %v7440 = vmul.f32 %v7183, %v7183
  %v7441 = vmul.f32 %v6652, %v6652
  %v7442 = vmul.f32 %v6830, %v6830
  %v7443 = vmul.f32 %v7008, %v7008
  %v7444 = vmul.f32 %v7186, %v7186
  %v7445 = vmul.f32 %v6654, %v6654
  %v7446 = vmul.f32 %v6832, %v6832
  %v7447 = vmul.f32 %v7010, %v7010
  %v7448 = vmul.f32 %v7188, %v7188
  %v7449 = vmul.f32 %v6657, %v6657
  %v7450 = vmul.f32 %v6835, %v6835
  %v7451 = vmul.f32 %v7013, %v7013
  %v7452 = vmul.f32 %v7191, %v7191
  %v7453 = vmul.f32 %v6659, %v6659
  %v7454 = vmul.f32 %v6837, %v6837
  %v7455 = vmul.f32 %v7015, %v7015
  %v7456 = vmul.f32 %v7193, %v7193
  %v7457 = vmul.f32 %v6662, %v6662
  %v7458 = vmul.f32 %v6840, %v6840
  %v7459 = vmul.f32 %v7018, %v7018
  %v7460 = vmul.f32 %v7196, %v7196
  %v7461 = vmul.f32 %v6664, %v6664
  %v7462 = vmul.f32 %v6842, %v6842
  %v7463 = vmul.f32 %v7020, %v7020
  %v7464 = vmul.f32 %v7198, %v7198
  %v7465 = vmul.f32 %v6667, %v6667
  %v7466 = vmul.f32 %v6845, %v6845
  %v7467 = vmul.f32 %v7023, %v7023
  %v7468 = vmul.f32 %v7201, %v7201
  %v7469 = vmul.f32 %v6669, %v6669
  %v7470 = vmul.f32 %v6847, %v6847
  %v7471 = vmul.f32 %v7025, %v7025
  %v7472 = vmul.f32 %v7203, %v7203
  %v7473 = vmul.f32 %v6672, %v6672
  %v7474 = vmul.f32 %v6850, %v6850
  %v7475 = vmul.f32 %v7028, %v7028
  %v7476 = vmul.f32 %v7206, %v7206
  %v7477 = vmul.f32 %v6674, %v6674
  %v7478 = vmul.f32 %v6852, %v6852
  %v7479 = vmul.f32 %v7030, %v7030
  %v7480 = vmul.f32 %v7208, %v7208
  %v7481 = vmul.f32 %v6677, %v6677
  %v7482 = vmul.f32 %v6855, %v6855
  %v7483 = vmul.f32 %v7033, %v7033
  %v7484 = vmul.f32 %v7211, %v7211
  %v7485 = vmul.f32 %v6679, %v6679
  %v7486 = vmul.f32 %v6857, %v6857
  %v7487 = vmul.f32 %v7035, %v7035
  %v7488 = vmul.f32 %v7213, %v7213
  %v7489 = vmul.f32 %v6682, %v6682
  %v7490 = vmul.f32 %v6860, %v6860
  %v7491 = vmul.f32 %v7038, %v7038
  %v7492 = vmul.f32 %v7216, %v7216
  %v7493 = vmul.f32 %v6684, %v6684
  %v7494 = vmul.f32 %v6862, %v6862
  %v7495 = vmul.f32 %v7040, %v7040
  %v7496 = vmul.f32 %v7218, %v7218
  %v7497 = vmul.f32 %v6687, %v6687
  %v7498 = vmul.f32 %v6865, %v6865
  %v7499 = vmul.f32 %v7043, %v7043
  %v7500 = vmul.f32 %v7221, %v7221
  %v7501 = vmul.f32 %v6689, %v6689
  %v7502 = vmul.f32 %v6867, %v6867
  %v7503 = vmul.f32 %v7045, %v7045
  %v7504 = vmul.f32 %v7223, %v7223
  %v7505 = vadd.f32 %v7377, %v7381
  %v7506 = vadd.f32 %v7505, %v7385
  %v7507 = vadd.f32 %v7506, %v7389
  %v7508 = vadd.f32 %v7507, %v7393
  %v7509 = vadd.f32 %v7508, %v7397
  %v7510 = vadd.f32 %v7509, %v7401
  %v7511 = vadd.f32 %v7510, %v7405
  %v7512 = vadd.f32 %v7511, %v7409
  %v7513 = vadd.f32 %v7512, %v7413
  %v7514 = vadd.f32 %v7513, %v7417
  %v7515 = vadd.f32 %v7514, %v7421
  %v7516 = vadd.f32 %v7515, %v7425
  %v7517 = vadd.f32 %v7516, %v7429
  %v7518 = vadd.f32 %v7517, %v7433
  %v7519 = vadd.f32 %v7518, %v7437
  %v7520 = vadd.f32 %v7519, %v7441
  %v7521 = vadd.f32 %v7520, %v7445
  %v7522 = vadd.f32 %v7521, %v7449
  %v7523 = vadd.f32 %v7522, %v7453
  %v7524 = vadd.f32 %v7523, %v7457
  %v7525 = vadd.f32 %v7524, %v7461
  %v7526 = vadd.f32 %v7525, %v7465
  %v7527 = vadd.f32 %v7526, %v7469
  %v7528 = vadd.f32 %v7527, %v7473
  %v7529 = vadd.f32 %v7528, %v7477
  %v7530 = vadd.f32 %v7529, %v7481
  %v7531 = vadd.f32 %v7530, %v7485
  %v7532 = vadd.f32 %v7531, %v7489
  %v7533 = vadd.f32 %v7532, %v7493
  %v7534 = vadd.f32 %v7533, %v7497
  %v7535 = vadd.f32 %v7534, %v7501
  %v7536 = vrot.slane %v7535, 4
  %v7537 = vadd.f32 %v7535, %v7536
  %v7538 = vrot.slane %v7537, 2
  %v7539 = vadd.f32 %v7537, %v7538
  %v7540 = vrot.slane %v7539, 1
  %v7541 = vadd.f32 %v7539, %v7540
  %v7542 = vadd.f32 %v7378, %v7382
  %v7543 = vadd.f32 %v7542, %v7386
  %v7544 = vadd.f32 %v7543, %v7390
  %v7545 = vadd.f32 %v7544, %v7394
  %v7546 = vadd.f32 %v7545, %v7398
  %v7547 = vadd.f32 %v7546, %v7402
  %v7548 = vadd.f32 %v7547, %v7406
  %v7549 = vadd.f32 %v7548, %v7410
  %v7550 = vadd.f32 %v7549, %v7414
  %v7551 = vadd.f32 %v7550, %v7418
  %v7552 = vadd.f32 %v7551, %v7422
  %v7553 = vadd.f32 %v7552, %v7426
  %v7554 = vadd.f32 %v7553, %v7430
  %v7555 = vadd.f32 %v7554, %v7434
  %v7556 = vadd.f32 %v7555, %v7438
  %v7557 = vadd.f32 %v7556, %v7442
  %v7558 = vadd.f32 %v7557, %v7446
  %v7559 = vadd.f32 %v7558, %v7450
  %v7560 = vadd.f32 %v7559, %v7454
  %v7561 = vadd.f32 %v7560, %v7458
  %v7562 = vadd.f32 %v7561, %v7462
  %v7563 = vadd.f32 %v7562, %v7466
  %v7564 = vadd.f32 %v7563, %v7470
  %v7565 = vadd.f32 %v7564, %v7474
  %v7566 = vadd.f32 %v7565, %v7478
  %v7567 = vadd.f32 %v7566, %v7482
  %v7568 = vadd.f32 %v7567, %v7486
  %v7569 = vadd.f32 %v7568, %v7490
  %v7570 = vadd.f32 %v7569, %v7494
  %v7571 = vadd.f32 %v7570, %v7498
  %v7572 = vadd.f32 %v7571, %v7502
  %v7573 = vrot.slane %v7572, 4
  %v7574 = vadd.f32 %v7572, %v7573
  %v7575 = vrot.slane %v7574, 2
  %v7576 = vadd.f32 %v7574, %v7575
  %v7577 = vrot.slane %v7576, 1
  %v7578 = vadd.f32 %v7576, %v7577
  %v7579 = vadd.f32 %v7379, %v7383
  %v7580 = vadd.f32 %v7579, %v7387
  %v7581 = vadd.f32 %v7580, %v7391
  %v7582 = vadd.f32 %v7581, %v7395
  %v7583 = vadd.f32 %v7582, %v7399
  %v7584 = vadd.f32 %v7583, %v7403
  %v7585 = vadd.f32 %v7584, %v7407
  %v7586 = vadd.f32 %v7585, %v7411
  %v7587 = vadd.f32 %v7586, %v7415
  %v7588 = vadd.f32 %v7587, %v7419
  %v7589 = vadd.f32 %v7588, %v7423
  %v7590 = vadd.f32 %v7589, %v7427
  %v7591 = vadd.f32 %v7590, %v7431
  %v7592 = vadd.f32 %v7591, %v7435
  %v7593 = vadd.f32 %v7592, %v7439
  %v7594 = vadd.f32 %v7593, %v7443
  %v7595 = vadd.f32 %v7594, %v7447
  %v7596 = vadd.f32 %v7595, %v7451
  %v7597 = vadd.f32 %v7596, %v7455
  %v7598 = vadd.f32 %v7597, %v7459
  %v7599 = vadd.f32 %v7598, %v7463
  %v7600 = vadd.f32 %v7599, %v7467
  %v7601 = vadd.f32 %v7600, %v7471
  %v7602 = vadd.f32 %v7601, %v7475
  %v7603 = vadd.f32 %v7602, %v7479
  %v7604 = vadd.f32 %v7603, %v7483
  %v7605 = vadd.f32 %v7604, %v7487
  %v7606 = vadd.f32 %v7605, %v7491
  %v7607 = vadd.f32 %v7606, %v7495
  %v7608 = vadd.f32 %v7607, %v7499
  %v7609 = vadd.f32 %v7608, %v7503
  %v7610 = vrot.slane %v7609, 4
  %v7611 = vadd.f32 %v7609, %v7610
  %v7612 = vrot.slane %v7611, 2
  %v7613 = vadd.f32 %v7611, %v7612
  %v7614 = vrot.slane %v7613, 1
  %v7615 = vadd.f32 %v7613, %v7614
  %v7616 = vadd.f32 %v7380, %v7384
  %v7617 = vadd.f32 %v7616, %v7388
  %v7618 = vadd.f32 %v7617, %v7392
  %v7619 = vadd.f32 %v7618, %v7396
  %v7620 = vadd.f32 %v7619, %v7400
  %v7621 = vadd.f32 %v7620, %v7404
  %v7622 = vadd.f32 %v7621, %v7408
  %v7623 = vadd.f32 %v7622, %v7412
  %v7624 = vadd.f32 %v7623, %v7416
  %v7625 = vadd.f32 %v7624, %v7420
  %v7626 = vadd.f32 %v7625, %v7424
  %v7627 = vadd.f32 %v7626, %v7428
  %v7628 = vadd.f32 %v7627, %v7432
  %v7629 = vadd.f32 %v7628, %v7436
  %v7630 = vadd.f32 %v7629, %v7440
  %v7631 = vadd.f32 %v7630, %v7444
  %v7632 = vadd.f32 %v7631, %v7448
  %v7633 = vadd.f32 %v7632, %v7452
  %v7634 = vadd.f32 %v7633, %v7456
  %v7635 = vadd.f32 %v7634, %v7460
  %v7636 = vadd.f32 %v7635, %v7464
  %v7637 = vadd.f32 %v7636, %v7468
  %v7638 = vadd.f32 %v7637, %v7472
  %v7639 = vadd.f32 %v7638, %v7476
  %v7640 = vadd.f32 %v7639, %v7480
  %v7641 = vadd.f32 %v7640, %v7484
  %v7642 = vadd.f32 %v7641, %v7488
  %v7643 = vadd.f32 %v7642, %v7492
  %v7644 = vadd.f32 %v7643, %v7496
  %v7645 = vadd.f32 %v7644, %v7500
  %v7646 = vadd.f32 %v7645, %v7504
  %v7647 = vrot.slane %v7646, 4
  %v7648 = vadd.f32 %v7646, %v7647
  %v7649 = vrot.slane %v7648, 2
  %v7650 = vadd.f32 %v7648, %v7649
  %v7651 = vrot.slane %v7650, 1
  %v7652 = vadd.f32 %v7650, %v7651
  %v7653 = vmul.f32 %v7541, %v856
  %v7654 = vmul.f32 %v7578, %v856
  %v7655 = vmul.f32 %v7615, %v856
  %v7656 = vmul.f32 %v7652, %v856
  %v7657 = vmul.f32 %v7373, %v7373
  %v7658 = vmul.f32 %v7374, %v7374
  %v7659 = vmul.f32 %v7375, %v7375
  %v7660 = vmul.f32 %v7376, %v7376
  %v7661 = vsub.f32 %v7653, %v7657
  %v7662 = vsub.f32 %v7654, %v7658
  %v7663 = vsub.f32 %v7655, %v7659
  %v7664 = vsub.f32 %v7656, %v7660
  %v7665 = vmax.f32 %v7661, 0.0
  %v7666 = vmax.f32 %v7662, 0.0
  %v7667 = vmax.f32 %v7663, 0.0
  %v7668 = vmax.f32 %v7664, 0.0
  %v7669 = vsub.f32 %v6612, %v7373
  %v7670 = vsub.f32 %v6790, %v7374
  %v7671 = vsub.f32 %v6968, %v7375
  %v7672 = vsub.f32 %v7146, %v7376
  %v7673 = vsub.f32 %v6614, %v7373
  %v7674 = vsub.f32 %v6792, %v7374
  %v7675 = vsub.f32 %v6970, %v7375
  %v7676 = vsub.f32 %v7148, %v7376
  %v7677 = vsub.f32 %v6617, %v7373
  %v7678 = vsub.f32 %v6795, %v7374
  %v7679 = vsub.f32 %v6973, %v7375
  %v7680 = vsub.f32 %v7151, %v7376
  %v7681 = vsub.f32 %v6619, %v7373
  %v7682 = vsub.f32 %v6797, %v7374
  %v7683 = vsub.f32 %v6975, %v7375
  %v7684 = vsub.f32 %v7153, %v7376
  %v7685 = vsub.f32 %v6622, %v7373
  %v7686 = vsub.f32 %v6800, %v7374
  %v7687 = vsub.f32 %v6978, %v7375
  %v7688 = vsub.f32 %v7156, %v7376
  %v7689 = vsub.f32 %v6624, %v7373
  %v7690 = vsub.f32 %v6802, %v7374
  %v7691 = vsub.f32 %v6980, %v7375
  %v7692 = vsub.f32 %v7158, %v7376
  %v7693 = vsub.f32 %v6627, %v7373
  %v7694 = vsub.f32 %v6805, %v7374
  %v7695 = vsub.f32 %v6983, %v7375
  %v7696 = vsub.f32 %v7161, %v7376
  %v7697 = vsub.f32 %v6629, %v7373
  %v7698 = vsub.f32 %v6807, %v7374
  %v7699 = vsub.f32 %v6985, %v7375
  %v7700 = vsub.f32 %v7163, %v7376
  %v7701 = vsub.f32 %v6632, %v7373
  %v7702 = vsub.f32 %v6810, %v7374
  %v7703 = vsub.f32 %v6988, %v7375
  %v7704 = vsub.f32 %v7166, %v7376
  %v7705 = vsub.f32 %v6634, %v7373
  %v7706 = vsub.f32 %v6812, %v7374
  %v7707 = vsub.f32 %v6990, %v7375
  %v7708 = vsub.f32 %v7168, %v7376
  %v7709 = vsub.f32 %v6637, %v7373
  %v7710 = vsub.f32 %v6815, %v7374
  %v7711 = vsub.f32 %v6993, %v7375
  %v7712 = vsub.f32 %v7171, %v7376
  %v7713 = vsub.f32 %v6639, %v7373
  %v7714 = vsub.f32 %v6817, %v7374
  %v7715 = vsub.f32 %v6995, %v7375
  %v7716 = vsub.f32 %v7173, %v7376
  %v7717 = vsub.f32 %v6642, %v7373
  %v7718 = vsub.f32 %v6820, %v7374
  %v7719 = vsub.f32 %v6998, %v7375
  %v7720 = vsub.f32 %v7176, %v7376
  %v7721 = vsub.f32 %v6644, %v7373
  %v7722 = vsub.f32 %v6822, %v7374
  %v7723 = vsub.f32 %v7000, %v7375
  %v7724 = vsub.f32 %v7178, %v7376
  %v7725 = vsub.f32 %v6647, %v7373
  %v7726 = vsub.f32 %v6825, %v7374
  %v7727 = vsub.f32 %v7003, %v7375
  %v7728 = vsub.f32 %v7181, %v7376
  %v7729 = vsub.f32 %v6649, %v7373
  %v7730 = vsub.f32 %v6827, %v7374
  %v7731 = vsub.f32 %v7005, %v7375
  %v7732 = vsub.f32 %v7183, %v7376
  %v7733 = vsub.f32 %v6652, %v7373
  %v7734 = vsub.f32 %v6830, %v7374
  %v7735 = vsub.f32 %v7008, %v7375
  %v7736 = vsub.f32 %v7186, %v7376
  %v7737 = vsub.f32 %v6654, %v7373
  %v7738 = vsub.f32 %v6832, %v7374
  %v7739 = vsub.f32 %v7010, %v7375
  %v7740 = vsub.f32 %v7188, %v7376
  %v7741 = vsub.f32 %v6657, %v7373
  %v7742 = vsub.f32 %v6835, %v7374
  %v7743 = vsub.f32 %v7013, %v7375
  %v7744 = vsub.f32 %v7191, %v7376
  %v7745 = vsub.f32 %v6659, %v7373
  %v7746 = vsub.f32 %v6837, %v7374
  %v7747 = vsub.f32 %v7015, %v7375
  %v7748 = vsub.f32 %v7193, %v7376
  %v7749 = vsub.f32 %v6662, %v7373
  %v7750 = vsub.f32 %v6840, %v7374
  %v7751 = vsub.f32 %v7018, %v7375
  %v7752 = vsub.f32 %v7196, %v7376
  %v7753 = vsub.f32 %v6664, %v7373
  %v7754 = vsub.f32 %v6842, %v7374
  %v7755 = vsub.f32 %v7020, %v7375
  %v7756 = vsub.f32 %v7198, %v7376
  %v7757 = vsub.f32 %v6667, %v7373
  %v7758 = vsub.f32 %v6845, %v7374
  %v7759 = vsub.f32 %v7023, %v7375
  %v7760 = vsub.f32 %v7201, %v7376
  %v7761 = vsub.f32 %v6669, %v7373
  %v7762 = vsub.f32 %v6847, %v7374
  %v7763 = vsub.f32 %v7025, %v7375
  %v7764 = vsub.f32 %v7203, %v7376
  %v7765 = vsub.f32 %v6672, %v7373
  %v7766 = vsub.f32 %v6850, %v7374
  %v7767 = vsub.f32 %v7028, %v7375
  %v7768 = vsub.f32 %v7206, %v7376
  %v7769 = vsub.f32 %v6674, %v7373
  %v7770 = vsub.f32 %v6852, %v7374
  %v7771 = vsub.f32 %v7030, %v7375
  %v7772 = vsub.f32 %v7208, %v7376
  %v7773 = vsub.f32 %v6677, %v7373
  %v7774 = vsub.f32 %v6855, %v7374
  %v7775 = vsub.f32 %v7033, %v7375
  %v7776 = vsub.f32 %v7211, %v7376
  %v7777 = vsub.f32 %v6679, %v7373
  %v7778 = vsub.f32 %v6857, %v7374
  %v7779 = vsub.f32 %v7035, %v7375
  %v7780 = vsub.f32 %v7213, %v7376
  %v7781 = vsub.f32 %v6682, %v7373
  %v7782 = vsub.f32 %v6860, %v7374
  %v7783 = vsub.f32 %v7038, %v7375
  %v7784 = vsub.f32 %v7216, %v7376
  %v7785 = vsub.f32 %v6684, %v7373
  %v7786 = vsub.f32 %v6862, %v7374
  %v7787 = vsub.f32 %v7040, %v7375
  %v7788 = vsub.f32 %v7218, %v7376
  %v7789 = vsub.f32 %v6687, %v7373
  %v7790 = vsub.f32 %v6865, %v7374
  %v7791 = vsub.f32 %v7043, %v7375
  %v7792 = vsub.f32 %v7221, %v7376
  %v7793 = vsub.f32 %v6689, %v7373
  %v7794 = vsub.f32 %v6867, %v7374
  %v7795 = vsub.f32 %v7045, %v7375
  %v7796 = vsub.f32 %v7223, %v7376
  %v7797 = vadd.f32 %v7665, 1e-05
  %v7798 = vadd.f32 %v7666, 1e-05
  %v7799 = vadd.f32 %v7667, 1e-05
  %v7800 = vadd.f32 %v7668, 1e-05
  %v7801 = vrsqrt.pop %v7797
  %v7802 = vmul.f32 %v7801, %v7797
  %v7803 = vmul.f32 %v7802, %v7801
  %v7804 = vmul.f32 0.5, %v7803
  %v7805 = vsub.f32 1.5, %v7804
  %v7806 = vmul.f32 %v7801, %v7805
  %vm7807 = vweird.f32 %v7797
  %vm7808 = vweird.f32 %v7801
  %vm7809 = vmor %vm7807, %vm7808
  %v7810 = vsel %vm7809, %v7801, %v7806
  %v7811 = vrsqrt.pop %v7798
  %v7812 = vmul.f32 %v7811, %v7798
  %v7813 = vmul.f32 %v7812, %v7811
  %v7814 = vmul.f32 0.5, %v7813
  %v7815 = vsub.f32 1.5, %v7814
  %v7816 = vmul.f32 %v7811, %v7815
  %vm7817 = vweird.f32 %v7798
  %vm7818 = vweird.f32 %v7811
  %vm7819 = vmor %vm7817, %vm7818
  %v7820 = vsel %vm7819, %v7811, %v7816
  %v7821 = vrsqrt.pop %v7799
  %v7822 = vmul.f32 %v7821, %v7799
  %v7823 = vmul.f32 %v7822, %v7821
  %v7824 = vmul.f32 0.5, %v7823
  %v7825 = vsub.f32 1.5, %v7824
  %v7826 = vmul.f32 %v7821, %v7825
  %vm7827 = vweird.f32 %v7799
  %vm7828 = vweird.f32 %v7821
  %vm7829 = vmor %vm7827, %vm7828
  %v7830 = vsel %vm7829, %v7821, %v7826
  %v7831 = vrsqrt.pop %v7800
  %v7832 = vmul.f32 %v7831, %v7800
  %v7833 = vmul.f32 %v7832, %v7831
  %v7834 = vmul.f32 0.5, %v7833
  %v7835 = vsub.f32 1.5, %v7834
  %v7836 = vmul.f32 %v7831, %v7835
  %vm7837 = vweird.f32 %v7800
  %vm7838 = vweird.f32 %v7831
  %vm7839 = vmor %vm7837, %vm7838
  %v7840 = vsel %vm7839, %v7831, %v7836
  %v7841 = vmul.f32 %v7669, %v7810
  %v7842 = vmul.f32 %v7670, %v7820
  %v7843 = vmul.f32 %v7671, %v7830
  %v7844 = vmul.f32 %v7672, %v7840
  %v7845 = vmul.f32 %v7673, %v7810
  %v7846 = vmul.f32 %v7674, %v7820
  %v7847 = vmul.f32 %v7675, %v7830
  %v7848 = vmul.f32 %v7676, %v7840
  %v7849 = vmul.f32 %v7677, %v7810
  %v7850 = vmul.f32 %v7678, %v7820
  %v7851 = vmul.f32 %v7679, %v7830
  %v7852 = vmul.f32 %v7680, %v7840
  %v7853 = vmul.f32 %v7681, %v7810
  %v7854 = vmul.f32 %v7682, %v7820
  %v7855 = vmul.f32 %v7683, %v7830
  %v7856 = vmul.f32 %v7684, %v7840
  %v7857 = vmul.f32 %v7685, %v7810
  %v7858 = vmul.f32 %v7686, %v7820
  %v7859 = vmul.f32 %v7687, %v7830
  %v7860 = vmul.f32 %v7688, %v7840
  %v7861 = vmul.f32 %v7689, %v7810
  %v7862 = vmul.f32 %v7690, %v7820
  %v7863 = vmul.f32 %v7691, %v7830
  %v7864 = vmul.f32 %v7692, %v7840
  %v7865 = vmul.f32 %v7693, %v7810
  %v7866 = vmul.f32 %v7694, %v7820
  %v7867 = vmul.f32 %v7695, %v7830
  %v7868 = vmul.f32 %v7696, %v7840
  %v7869 = vmul.f32 %v7697, %v7810
  %v7870 = vmul.f32 %v7698, %v7820
  %v7871 = vmul.f32 %v7699, %v7830
  %v7872 = vmul.f32 %v7700, %v7840
  %v7873 = vmul.f32 %v7701, %v7810
  %v7874 = vmul.f32 %v7702, %v7820
  %v7875 = vmul.f32 %v7703, %v7830
  %v7876 = vmul.f32 %v7704, %v7840
  %v7877 = vmul.f32 %v7705, %v7810
  %v7878 = vmul.f32 %v7706, %v7820
  %v7879 = vmul.f32 %v7707, %v7830
  %v7880 = vmul.f32 %v7708, %v7840
  %v7881 = vmul.f32 %v7709, %v7810
  %v7882 = vmul.f32 %v7710, %v7820
  %v7883 = vmul.f32 %v7711, %v7830
  %v7884 = vmul.f32 %v7712, %v7840
  %v7885 = vmul.f32 %v7713, %v7810
  %v7886 = vmul.f32 %v7714, %v7820
  %v7887 = vmul.f32 %v7715, %v7830
  %v7888 = vmul.f32 %v7716, %v7840
  %v7889 = vmul.f32 %v7717, %v7810
  %v7890 = vmul.f32 %v7718, %v7820
  %v7891 = vmul.f32 %v7719, %v7830
  %v7892 = vmul.f32 %v7720, %v7840
  %v7893 = vmul.f32 %v7721, %v7810
  %v7894 = vmul.f32 %v7722, %v7820
  %v7895 = vmul.f32 %v7723, %v7830
  %v7896 = vmul.f32 %v7724, %v7840
  %v7897 = vmul.f32 %v7725, %v7810
  %v7898 = vmul.f32 %v7726, %v7820
  %v7899 = vmul.f32 %v7727, %v7830
  %v7900 = vmul.f32 %v7728, %v7840
  %v7901 = vmul.f32 %v7729, %v7810
  %v7902 = vmul.f32 %v7730, %v7820
  %v7903 = vmul.f32 %v7731, %v7830
  %v7904 = vmul.f32 %v7732, %v7840
  %v7905 = vmul.f32 %v7733, %v7810
  %v7906 = vmul.f32 %v7734, %v7820
  %v7907 = vmul.f32 %v7735, %v7830
  %v7908 = vmul.f32 %v7736, %v7840
  %v7909 = vmul.f32 %v7737, %v7810
  %v7910 = vmul.f32 %v7738, %v7820
  %v7911 = vmul.f32 %v7739, %v7830
  %v7912 = vmul.f32 %v7740, %v7840
  %v7913 = vmul.f32 %v7741, %v7810
  %v7914 = vmul.f32 %v7742, %v7820
  %v7915 = vmul.f32 %v7743, %v7830
  %v7916 = vmul.f32 %v7744, %v7840
  %v7917 = vmul.f32 %v7745, %v7810
  %v7918 = vmul.f32 %v7746, %v7820
  %v7919 = vmul.f32 %v7747, %v7830
  %v7920 = vmul.f32 %v7748, %v7840
  %v7921 = vmul.f32 %v7749, %v7810
  %v7922 = vmul.f32 %v7750, %v7820
  %v7923 = vmul.f32 %v7751, %v7830
  %v7924 = vmul.f32 %v7752, %v7840
  %v7925 = vmul.f32 %v7753, %v7810
  %v7926 = vmul.f32 %v7754, %v7820
  %v7927 = vmul.f32 %v7755, %v7830
  %v7928 = vmul.f32 %v7756, %v7840
  %v7929 = vmul.f32 %v7757, %v7810
  %v7930 = vmul.f32 %v7758, %v7820
  %v7931 = vmul.f32 %v7759, %v7830
  %v7932 = vmul.f32 %v7760, %v7840
  %v7933 = vmul.f32 %v7761, %v7810
  %v7934 = vmul.f32 %v7762, %v7820
  %v7935 = vmul.f32 %v7763, %v7830
  %v7936 = vmul.f32 %v7764, %v7840
  %v7937 = vmul.f32 %v7765, %v7810
  %v7938 = vmul.f32 %v7766, %v7820
  %v7939 = vmul.f32 %v7767, %v7830
  %v7940 = vmul.f32 %v7768, %v7840
  %v7941 = vmul.f32 %v7769, %v7810
  %v7942 = vmul.f32 %v7770, %v7820
  %v7943 = vmul.f32 %v7771, %v7830
  %v7944 = vmul.f32 %v7772, %v7840
  %v7945 = vmul.f32 %v7773, %v7810
  %v7946 = vmul.f32 %v7774, %v7820
  %v7947 = vmul.f32 %v7775, %v7830
  %v7948 = vmul.f32 %v7776, %v7840
  %v7949 = vmul.f32 %v7777, %v7810
  %v7950 = vmul.f32 %v7778, %v7820
  %v7951 = vmul.f32 %v7779, %v7830
  %v7952 = vmul.f32 %v7780, %v7840
  %v7953 = vmul.f32 %v7781, %v7810
  %v7954 = vmul.f32 %v7782, %v7820
  %v7955 = vmul.f32 %v7783, %v7830
  %v7956 = vmul.f32 %v7784, %v7840
  %v7957 = vmul.f32 %v7785, %v7810
  %v7958 = vmul.f32 %v7786, %v7820
  %v7959 = vmul.f32 %v7787, %v7830
  %v7960 = vmul.f32 %v7788, %v7840
  %v7961 = vmul.f32 %v7789, %v7810
  %v7962 = vmul.f32 %v7790, %v7820
  %v7963 = vmul.f32 %v7791, %v7830
  %v7964 = vmul.f32 %v7792, %v7840
  %v7965 = vmul.f32 %v7793, %v7810
  %v7966 = vmul.f32 %v7794, %v7820
  %v7967 = vmul.f32 %v7795, %v7830
  %v7968 = vmul.f32 %v7796, %v7840
  %v7969 = vld [vmem:[%s2 + $0x22] sm:$0xf]
  %v7971 = vperm.slane %v7969, 0
  %v7972 = vperm.slane %v7969, 1
  %v7973 = vperm.slane %v7969, 2
  %v7974 = vperm.slane %v7969, 3
  %v7979 = vmul.f32 %v7841, %v7971
  %v7980 = vmul.f32 %v7842, %v7972
  %v7981 = vmul.f32 %v7843, %v7973
  %v7982 = vmul.f32 %v7844, %v7974
  %v7983 = vmul.f32 %v7845, %v7971
  %v7984 = vmul.f32 %v7846, %v7972
  %v7985 = vmul.f32 %v7847, %v7973
  %v7986 = vmul.f32 %v7848, %v7974
  %v7987 = vmul.f32 %v7849, %v7971
  %v7988 = vmul.f32 %v7850, %v7972
  %v7989 = vmul.f32 %v7851, %v7973
  %v7990 = vmul.f32 %v7852, %v7974
  %v7991 = vmul.f32 %v7853, %v7971
  %v7992 = vmul.f32 %v7854, %v7972
  %v7993 = vmul.f32 %v7855, %v7973
  %v7994 = vmul.f32 %v7856, %v7974
  %v7995 = vmul.f32 %v7857, %v7971
  %v7996 = vmul.f32 %v7858, %v7972
  %v7997 = vmul.f32 %v7859, %v7973
  %v7998 = vmul.f32 %v7860, %v7974
  %v7999 = vmul.f32 %v7861, %v7971
  %v8000 = vmul.f32 %v7862, %v7972
  %v8001 = vmul.f32 %v7863, %v7973
  %v8002 = vmul.f32 %v7864, %v7974
  %v8003 = vmul.f32 %v7865, %v7971
  %v8004 = vmul.f32 %v7866, %v7972
  %v8005 = vmul.f32 %v7867, %v7973
  %v8006 = vmul.f32 %v7868, %v7974
  %v8007 = vmul.f32 %v7869, %v7971
  %v8008 = vmul.f32 %v7870, %v7972
  %v8009 = vmul.f32 %v7871, %v7973
  %v8010 = vmul.f32 %v7872, %v7974
  %v8011 = vmul.f32 %v7873, %v7971
  %v8012 = vmul.f32 %v7874, %v7972
  %v8013 = vmul.f32 %v7875, %v7973
  %v8014 = vmul.f32 %v7876, %v7974
  %v8015 = vmul.f32 %v7877, %v7971
  %v8016 = vmul.f32 %v7878, %v7972
  %v8017 = vmul.f32 %v7879, %v7973
  %v8018 = vmul.f32 %v7880, %v7974
  %v8019 = vmul.f32 %v7881, %v7971
  %v8020 = vmul.f32 %v7882, %v7972
  %v8021 = vmul.f32 %v7883, %v7973
  %v8022 = vmul.f32 %v7884, %v7974
  %v8023 = vmul.f32 %v7885, %v7971
  %v8024 = vmul.f32 %v7886, %v7972
  %v8025 = vmul.f32 %v7887, %v7973
  %v8026 = vmul.f32 %v7888, %v7974
  %v8027 = vmul.f32 %v7889, %v7971
  %v8028 = vmul.f32 %v7890, %v7972
  %v8029 = vmul.f32 %v7891, %v7973
  %v8030 = vmul.f32 %v7892, %v7974
  %v8031 = vmul.f32 %v7893, %v7971
  %v8032 = vmul.f32 %v7894, %v7972
  %v8033 = vmul.f32 %v7895, %v7973
  %v8034 = vmul.f32 %v7896, %v7974
  %v8035 = vmul.f32 %v7897, %v7971
  %v8036 = vmul.f32 %v7898, %v7972
  %v8037 = vmul.f32 %v7899, %v7973
  %v8038 = vmul.f32 %v7900, %v7974
  %v8039 = vmul.f32 %v7901, %v7971
  %v8040 = vmul.f32 %v7902, %v7972
  %v8041 = vmul.f32 %v7903, %v7973
  %v8042 = vmul.f32 %v7904, %v7974
  %v8043 = vmul.f32 %v7905, %v7971
  %v8044 = vmul.f32 %v7906, %v7972
  %v8045 = vmul.f32 %v7907, %v7973
  %v8046 = vmul.f32 %v7908, %v7974
  %v8047 = vmul.f32 %v7909, %v7971
  %v8048 = vmul.f32 %v7910, %v7972
  %v8049 = vmul.f32 %v7911, %v7973
  %v8050 = vmul.f32 %v7912, %v7974
  %v8051 = vmul.f32 %v7913, %v7971
  %v8052 = vmul.f32 %v7914, %v7972
  %v8053 = vmul.f32 %v7915, %v7973
  %v8054 = vmul.f32 %v7916, %v7974
  %v8055 = vmul.f32 %v7917, %v7971
  %v8056 = vmul.f32 %v7918, %v7972
  %v8057 = vmul.f32 %v7919, %v7973
  %v8058 = vmul.f32 %v7920, %v7974
  %v8059 = vmul.f32 %v7921, %v7971
  %v8060 = vmul.f32 %v7922, %v7972
  %v8061 = vmul.f32 %v7923, %v7973
  %v8062 = vmul.f32 %v7924, %v7974
  %v8063 = vmul.f32 %v7925, %v7971
  %v8064 = vmul.f32 %v7926, %v7972
  %v8065 = vmul.f32 %v7927, %v7973
  %v8066 = vmul.f32 %v7928, %v7974
  %v8067 = vmul.f32 %v7929, %v7971
  %v8068 = vmul.f32 %v7930, %v7972
  %v8069 = vmul.f32 %v7931, %v7973
  %v8070 = vmul.f32 %v7932, %v7974
  %v8071 = vmul.f32 %v7933, %v7971
  %v8072 = vmul.f32 %v7934, %v7972
  %v8073 = vmul.f32 %v7935, %v7973
  %v8074 = vmul.f32 %v7936, %v7974
  %v8075 = vmul.f32 %v7937, %v7971
  %v8076 = vmul.f32 %v7938, %v7972
  %v8077 = vmul.f32 %v7939, %v7973
  %v8078 = vmul.f32 %v7940, %v7974
  %v8079 = vmul.f32 %v7941, %v7971
  %v8080 = vmul.f32 %v7942, %v7972
  %v8081 = vmul.f32 %v7943, %v7973
  %v8082 = vmul.f32 %v7944, %v7974
  %v8083 = vmul.f32 %v7945, %v7971
  %v8084 = vmul.f32 %v7946, %v7972
  %v8085 = vmul.f32 %v7947, %v7973
  %v8086 = vmul.f32 %v7948, %v7974
  %v8087 = vmul.f32 %v7949, %v7971
  %v8088 = vmul.f32 %v7950, %v7972
  %v8089 = vmul.f32 %v7951, %v7973
  %v8090 = vmul.f32 %v7952, %v7974
  %v8091 = vmul.f32 %v7953, %v7971
  %v8092 = vmul.f32 %v7954, %v7972
  %v8093 = vmul.f32 %v7955, %v7973
  %v8094 = vmul.f32 %v7956, %v7974
  %v8095 = vmul.f32 %v7957, %v7971
  %v8096 = vmul.f32 %v7958, %v7972
  %v8097 = vmul.f32 %v7959, %v7973
  %v8098 = vmul.f32 %v7960, %v7974
  %v8099 = vmul.f32 %v7961, %v7971
  %v8100 = vmul.f32 %v7962, %v7972
  %v8101 = vmul.f32 %v7963, %v7973
  %v8102 = vmul.f32 %v7964, %v7974
  %v8103 = vmul.f32 %v7965, %v7971
  %v8104 = vmul.f32 %v7966, %v7972
  %v8105 = vmul.f32 %v7967, %v7973
  %v8106 = vmul.f32 %v7968, %v7974
  %v8107 = vld [vmem:[%s2 + $0x26] sm:$0xf]
  %v8109 = vperm.slane %v8107, 0
  %v8110 = vperm.slane %v8107, 1
  %v8111 = vperm.slane %v8107, 2
  %v8112 = vperm.slane %v8107, 3
  %v8117 = vadd.f32 %v7979, %v8109
  %v8118 = vadd.f32 %v7980, %v8110
  %v8119 = vadd.f32 %v7981, %v8111
  %v8120 = vadd.f32 %v7982, %v8112
  %v8121 = vadd.f32 %v7983, %v8109
  %v8122 = vadd.f32 %v7984, %v8110
  %v8123 = vadd.f32 %v7985, %v8111
  %v8124 = vadd.f32 %v7986, %v8112
  %v8125 = vadd.f32 %v7987, %v8109
  %v8126 = vadd.f32 %v7988, %v8110
  %v8127 = vadd.f32 %v7989, %v8111
  %v8128 = vadd.f32 %v7990, %v8112
  %v8129 = vadd.f32 %v7991, %v8109
  %v8130 = vadd.f32 %v7992, %v8110
  %v8131 = vadd.f32 %v7993, %v8111
  %v8132 = vadd.f32 %v7994, %v8112
  %v8133 = vadd.f32 %v7995, %v8109
  %v8134 = vadd.f32 %v7996, %v8110
  %v8135 = vadd.f32 %v7997, %v8111
  %v8136 = vadd.f32 %v7998, %v8112
  %v8137 = vadd.f32 %v7999, %v8109
  %v8138 = vadd.f32 %v8000, %v8110
  %v8139 = vadd.f32 %v8001, %v8111
  %v8140 = vadd.f32 %v8002, %v8112
  %v8141 = vadd.f32 %v8003, %v8109
  %v8142 = vadd.f32 %v8004, %v8110
  %v8143 = vadd.f32 %v8005, %v8111
  %v8144 = vadd.f32 %v8006, %v8112
  %v8145 = vadd.f32 %v8007, %v8109
  %v8146 = vadd.f32 %v8008, %v8110
  %v8147 = vadd.f32 %v8009, %v8111
  %v8148 = vadd.f32 %v8010, %v8112
  %v8149 = vadd.f32 %v8011, %v8109
  %v8150 = vadd.f32 %v8012, %v8110
  %v8151 = vadd.f32 %v8013, %v8111
  %v8152 = vadd.f32 %v8014, %v8112
  %v8153 = vadd.f32 %v8015, %v8109
  %v8154 = vadd.f32 %v8016, %v8110
  %v8155 = vadd.f32 %v8017, %v8111
  %v8156 = vadd.f32 %v8018, %v8112
  %v8157 = vadd.f32 %v8019, %v8109
  %v8158 = vadd.f32 %v8020, %v8110
  %v8159 = vadd.f32 %v8021, %v8111
  %v8160 = vadd.f32 %v8022, %v8112
  %v8161 = vadd.f32 %v8023, %v8109
  %v8162 = vadd.f32 %v8024, %v8110
  %v8163 = vadd.f32 %v8025, %v8111
  %v8164 = vadd.f32 %v8026, %v8112
  %v8165 = vadd.f32 %v8027, %v8109
  %v8166 = vadd.f32 %v8028, %v8110
  %v8167 = vadd.f32 %v8029, %v8111
  %v8168 = vadd.f32 %v8030, %v8112
  %v8169 = vadd.f32 %v8031, %v8109
  %v8170 = vadd.f32 %v8032, %v8110
  %v8171 = vadd.f32 %v8033, %v8111
  %v8172 = vadd.f32 %v8034, %v8112
  %v8173 = vadd.f32 %v8035, %v8109
  %v8174 = vadd.f32 %v8036, %v8110
  %v8175 = vadd.f32 %v8037, %v8111
  %v8176 = vadd.f32 %v8038, %v8112
  %v8177 = vadd.f32 %v8039, %v8109
  %v8178 = vadd.f32 %v8040, %v8110
  %v8179 = vadd.f32 %v8041, %v8111
  %v8180 = vadd.f32 %v8042, %v8112
  %v8181 = vadd.f32 %v8043, %v8109
  %v8182 = vadd.f32 %v8044, %v8110
  %v8183 = vadd.f32 %v8045, %v8111
  %v8184 = vadd.f32 %v8046, %v8112
  %v8185 = vadd.f32 %v8047, %v8109
  %v8186 = vadd.f32 %v8048, %v8110
  %v8187 = vadd.f32 %v8049, %v8111
  %v8188 = vadd.f32 %v8050, %v8112
  %v8189 = vadd.f32 %v8051, %v8109
  %v8190 = vadd.f32 %v8052, %v8110
  %v8191 = vadd.f32 %v8053, %v8111
  %v8192 = vadd.f32 %v8054, %v8112
  %v8193 = vadd.f32 %v8055, %v8109
  %v8194 = vadd.f32 %v8056, %v8110
  %v8195 = vadd.f32 %v8057, %v8111
  %v8196 = vadd.f32 %v8058, %v8112
  %v8197 = vadd.f32 %v8059, %v8109
  %v8198 = vadd.f32 %v8060, %v8110
  %v8199 = vadd.f32 %v8061, %v8111
  %v8200 = vadd.f32 %v8062, %v8112
  %v8201 = vadd.f32 %v8063, %v8109
  %v8202 = vadd.f32 %v8064, %v8110
  %v8203 = vadd.f32 %v8065, %v8111
  %v8204 = vadd.f32 %v8066, %v8112
  %v8205 = vadd.f32 %v8067, %v8109
  %v8206 = vadd.f32 %v8068, %v8110
  %v8207 = vadd.f32 %v8069, %v8111
  %v8208 = vadd.f32 %v8070, %v8112
  %v8209 = vadd.f32 %v8071, %v8109
  %v8210 = vadd.f32 %v8072, %v8110
  %v8211 = vadd.f32 %v8073, %v8111
  %v8212 = vadd.f32 %v8074, %v8112
  %v8213 = vadd.f32 %v8075, %v8109
  %v8214 = vadd.f32 %v8076, %v8110
  %v8215 = vadd.f32 %v8077, %v8111
  %v8216 = vadd.f32 %v8078, %v8112
  %v8217 = vadd.f32 %v8079, %v8109
  %v8218 = vadd.f32 %v8080, %v8110
  %v8219 = vadd.f32 %v8081, %v8111
  %v8220 = vadd.f32 %v8082, %v8112
  %v8221 = vadd.f32 %v8083, %v8109
  %v8222 = vadd.f32 %v8084, %v8110
  %v8223 = vadd.f32 %v8085, %v8111
  %v8224 = vadd.f32 %v8086, %v8112
  %v8225 = vadd.f32 %v8087, %v8109
  %v8226 = vadd.f32 %v8088, %v8110
  %v8227 = vadd.f32 %v8089, %v8111
  %v8228 = vadd.f32 %v8090, %v8112
  %v8229 = vadd.f32 %v8091, %v8109
  %v8230 = vadd.f32 %v8092, %v8110
  %v8231 = vadd.f32 %v8093, %v8111
  %v8232 = vadd.f32 %v8094, %v8112
  %v8233 = vadd.f32 %v8095, %v8109
  %v8234 = vadd.f32 %v8096, %v8110
  %v8235 = vadd.f32 %v8097, %v8111
  %v8236 = vadd.f32 %v8098, %v8112
  %v8237 = vadd.f32 %v8099, %v8109
  %v8238 = vadd.f32 %v8100, %v8110
  %v8239 = vadd.f32 %v8101, %v8111
  %v8240 = vadd.f32 %v8102, %v8112
  %v8241 = vadd.f32 %v8103, %v8109
  %v8242 = vadd.f32 %v8104, %v8110
  %v8243 = vadd.f32 %v8105, %v8111
  %v8244 = vadd.f32 %v8106, %v8112
  %v8245 = vmul.f32 %v8117, 0.01
  %v8246 = vmul.f32 %v8118, 0.01
  %v8247 = vmul.f32 %v8119, 0.01
  %v8248 = vmul.f32 %v8120, 0.01
  %v8249 = vmul.f32 %v8121, 0.01
  %v8250 = vmul.f32 %v8122, 0.01
  %v8251 = vmul.f32 %v8123, 0.01
  %v8252 = vmul.f32 %v8124, 0.01
  %v8253 = vmul.f32 %v8125, 0.01
  %v8254 = vmul.f32 %v8126, 0.01
  %v8255 = vmul.f32 %v8127, 0.01
  %v8256 = vmul.f32 %v8128, 0.01
  %v8257 = vmul.f32 %v8129, 0.01
  %v8258 = vmul.f32 %v8130, 0.01
  %v8259 = vmul.f32 %v8131, 0.01
  %v8260 = vmul.f32 %v8132, 0.01
  %v8261 = vmul.f32 %v8133, 0.01
  %v8262 = vmul.f32 %v8134, 0.01
  %v8263 = vmul.f32 %v8135, 0.01
  %v8264 = vmul.f32 %v8136, 0.01
  %v8265 = vmul.f32 %v8137, 0.01
  %v8266 = vmul.f32 %v8138, 0.01
  %v8267 = vmul.f32 %v8139, 0.01
  %v8268 = vmul.f32 %v8140, 0.01
  %v8269 = vmul.f32 %v8141, 0.01
  %v8270 = vmul.f32 %v8142, 0.01
  %v8271 = vmul.f32 %v8143, 0.01
  %v8272 = vmul.f32 %v8144, 0.01
  %v8273 = vmul.f32 %v8145, 0.01
  %v8274 = vmul.f32 %v8146, 0.01
  %v8275 = vmul.f32 %v8147, 0.01
  %v8276 = vmul.f32 %v8148, 0.01
  %v8277 = vmul.f32 %v8149, 0.01
  %v8278 = vmul.f32 %v8150, 0.01
  %v8279 = vmul.f32 %v8151, 0.01
  %v8280 = vmul.f32 %v8152, 0.01
  %v8281 = vmul.f32 %v8153, 0.01
  %v8282 = vmul.f32 %v8154, 0.01
  %v8283 = vmul.f32 %v8155, 0.01
  %v8284 = vmul.f32 %v8156, 0.01
  %v8285 = vmul.f32 %v8157, 0.01
  %v8286 = vmul.f32 %v8158, 0.01
  %v8287 = vmul.f32 %v8159, 0.01
  %v8288 = vmul.f32 %v8160, 0.01
  %v8289 = vmul.f32 %v8161, 0.01
  %v8290 = vmul.f32 %v8162, 0.01
  %v8291 = vmul.f32 %v8163, 0.01
  %v8292 = vmul.f32 %v8164, 0.01
  %v8293 = vmul.f32 %v8165, 0.01
  %v8294 = vmul.f32 %v8166, 0.01
  %v8295 = vmul.f32 %v8167, 0.01
  %v8296 = vmul.f32 %v8168, 0.01
  %v8297 = vmul.f32 %v8169, 0.01
  %v8298 = vmul.f32 %v8170, 0.01
  %v8299 = vmul.f32 %v8171, 0.01
  %v8300 = vmul.f32 %v8172, 0.01
  %v8301 = vmul.f32 %v8173, 0.01
  %v8302 = vmul.f32 %v8174, 0.01
  %v8303 = vmul.f32 %v8175, 0.01
  %v8304 = vmul.f32 %v8176, 0.01
  %v8305 = vmul.f32 %v8177, 0.01
  %v8306 = vmul.f32 %v8178, 0.01
  %v8307 = vmul.f32 %v8179, 0.01
  %v8308 = vmul.f32 %v8180, 0.01
  %v8309 = vmul.f32 %v8181, 0.01
  %v8310 = vmul.f32 %v8182, 0.01
  %v8311 = vmul.f32 %v8183, 0.01
  %v8312 = vmul.f32 %v8184, 0.01
  %v8313 = vmul.f32 %v8185, 0.01
  %v8314 = vmul.f32 %v8186, 0.01
  %v8315 = vmul.f32 %v8187, 0.01
  %v8316 = vmul.f32 %v8188, 0.01
  %v8317 = vmul.f32 %v8189, 0.01
  %v8318 = vmul.f32 %v8190, 0.01
  %v8319 = vmul.f32 %v8191, 0.01
  %v8320 = vmul.f32 %v8192, 0.01
  %v8321 = vmul.f32 %v8193, 0.01
  %v8322 = vmul.f32 %v8194, 0.01
  %v8323 = vmul.f32 %v8195, 0.01
  %v8324 = vmul.f32 %v8196, 0.01
  %v8325 = vmul.f32 %v8197, 0.01
  %v8326 = vmul.f32 %v8198, 0.01
  %v8327 = vmul.f32 %v8199, 0.01
  %v8328 = vmul.f32 %v8200, 0.01
  %v8329 = vmul.f32 %v8201, 0.01
  %v8330 = vmul.f32 %v8202, 0.01
  %v8331 = vmul.f32 %v8203, 0.01
  %v8332 = vmul.f32 %v8204, 0.01
  %v8333 = vmul.f32 %v8205, 0.01
  %v8334 = vmul.f32 %v8206, 0.01
  %v8335 = vmul.f32 %v8207, 0.01
  %v8336 = vmul.f32 %v8208, 0.01
  %v8337 = vmul.f32 %v8209, 0.01
  %v8338 = vmul.f32 %v8210, 0.01
  %v8339 = vmul.f32 %v8211, 0.01
  %v8340 = vmul.f32 %v8212, 0.01
  %v8341 = vmul.f32 %v8213, 0.01
  %v8342 = vmul.f32 %v8214, 0.01
  %v8343 = vmul.f32 %v8215, 0.01
  %v8344 = vmul.f32 %v8216, 0.01
  %v8345 = vmul.f32 %v8217, 0.01
  %v8346 = vmul.f32 %v8218, 0.01
  %v8347 = vmul.f32 %v8219, 0.01
  %v8348 = vmul.f32 %v8220, 0.01
  %v8349 = vmul.f32 %v8221, 0.01
  %v8350 = vmul.f32 %v8222, 0.01
  %v8351 = vmul.f32 %v8223, 0.01
  %v8352 = vmul.f32 %v8224, 0.01
  %v8353 = vmul.f32 %v8225, 0.01
  %v8354 = vmul.f32 %v8226, 0.01
  %v8355 = vmul.f32 %v8227, 0.01
  %v8356 = vmul.f32 %v8228, 0.01
  %v8357 = vmul.f32 %v8229, 0.01
  %v8358 = vmul.f32 %v8230, 0.01
  %v8359 = vmul.f32 %v8231, 0.01
  %v8360 = vmul.f32 %v8232, 0.01
  %v8361 = vmul.f32 %v8233, 0.01
  %v8362 = vmul.f32 %v8234, 0.01
  %v8363 = vmul.f32 %v8235, 0.01
  %v8364 = vmul.f32 %v8236, 0.01
  %v8365 = vmul.f32 %v8237, 0.01
  %v8366 = vmul.f32 %v8238, 0.01
  %v8367 = vmul.f32 %v8239, 0.01
  %v8368 = vmul.f32 %v8240, 0.01
  %v8369 = vmul.f32 %v8241, 0.01
  %v8370 = vmul.f32 %v8242, 0.01
  %v8371 = vmul.f32 %v8243, 0.01
  %v8372 = vmul.f32 %v8244, 0.01
  %v8373 = vmax.f32 %v8117, %v8245
  %v8374 = vmax.f32 %v8118, %v8246
  %v8375 = vmax.f32 %v8119, %v8247
  %v8376 = vmax.f32 %v8120, %v8248
  %v8377 = vmax.f32 %v8121, %v8249
  %v8378 = vmax.f32 %v8122, %v8250
  %v8379 = vmax.f32 %v8123, %v8251
  %v8380 = vmax.f32 %v8124, %v8252
  %v8381 = vmax.f32 %v8125, %v8253
  %v8382 = vmax.f32 %v8126, %v8254
  %v8383 = vmax.f32 %v8127, %v8255
  %v8384 = vmax.f32 %v8128, %v8256
  %v8385 = vmax.f32 %v8129, %v8257
  %v8386 = vmax.f32 %v8130, %v8258
  %v8387 = vmax.f32 %v8131, %v8259
  %v8388 = vmax.f32 %v8132, %v8260
  %v8389 = vmax.f32 %v8133, %v8261
  %v8390 = vmax.f32 %v8134, %v8262
  %v8391 = vmax.f32 %v8135, %v8263
  %v8392 = vmax.f32 %v8136, %v8264
  %v8393 = vmax.f32 %v8137, %v8265
  %v8394 = vmax.f32 %v8138, %v8266
  %v8395 = vmax.f32 %v8139, %v8267
  %v8396 = vmax.f32 %v8140, %v8268
  %v8397 = vmax.f32 %v8141, %v8269
  %v8398 = vmax.f32 %v8142, %v8270
  %v8399 = vmax.f32 %v8143, %v8271
  %v8400 = vmax.f32 %v8144, %v8272
  %v8401 = vmax.f32 %v8145, %v8273
  %v8402 = vmax.f32 %v8146, %v8274
  %v8403 = vmax.f32 %v8147, %v8275
  %v8404 = vmax.f32 %v8148, %v8276
  %v8405 = vmax.f32 %v8149, %v8277
  %v8406 = vmax.f32 %v8150, %v8278
  %v8407 = vmax.f32 %v8151, %v8279
  %v8408 = vmax.f32 %v8152, %v8280
  %v8409 = vmax.f32 %v8153, %v8281
  %v8410 = vmax.f32 %v8154, %v8282
  %v8411 = vmax.f32 %v8155, %v8283
  %v8412 = vmax.f32 %v8156, %v8284
  %v8413 = vmax.f32 %v8157, %v8285
  %v8414 = vmax.f32 %v8158, %v8286
  %v8415 = vmax.f32 %v8159, %v8287
  %v8416 = vmax.f32 %v8160, %v8288
  %v8417 = vmax.f32 %v8161, %v8289
  %v8418 = vmax.f32 %v8162, %v8290
  %v8419 = vmax.f32 %v8163, %v8291
  %v8420 = vmax.f32 %v8164, %v8292
  %v8421 = vmax.f32 %v8165, %v8293
  %v8422 = vmax.f32 %v8166, %v8294
  %v8423 = vmax.f32 %v8167, %v8295
  %v8424 = vmax.f32 %v8168, %v8296
  %v8425 = vmax.f32 %v8169, %v8297
  %v8426 = vmax.f32 %v8170, %v8298
  %v8427 = vmax.f32 %v8171, %v8299
  %v8428 = vmax.f32 %v8172, %v8300
  %v8429 = vmax.f32 %v8173, %v8301
  %v8430 = vmax.f32 %v8174, %v8302
  %v8431 = vmax.f32 %v8175, %v8303
  %v8432 = vmax.f32 %v8176, %v8304
  %v8433 = vmax.f32 %v8177, %v8305
  %v8434 = vmax.f32 %v8178, %v8306
  %v8435 = vmax.f32 %v8179, %v8307
  %v8436 = vmax.f32 %v8180, %v8308
  %v8437 = vmax.f32 %v8181, %v8309
  %v8438 = vmax.f32 %v8182, %v8310
  %v8439 = vmax.f32 %v8183, %v8311
  %v8440 = vmax.f32 %v8184, %v8312
  %v8441 = vmax.f32 %v8185, %v8313
  %v8442 = vmax.f32 %v8186, %v8314
  %v8443 = vmax.f32 %v8187, %v8315
  %v8444 = vmax.f32 %v8188, %v8316
  %v8445 = vmax.f32 %v8189, %v8317
  %v8446 = vmax.f32 %v8190, %v8318
  %v8447 = vmax.f32 %v8191, %v8319
  %v8448 = vmax.f32 %v8192, %v8320
  %v8449 = vmax.f32 %v8193, %v8321
  %v8450 = vmax.f32 %v8194, %v8322
  %v8451 = vmax.f32 %v8195, %v8323
  %v8452 = vmax.f32 %v8196, %v8324
  %v8453 = vmax.f32 %v8197, %v8325
  %v8454 = vmax.f32 %v8198, %v8326
  %v8455 = vmax.f32 %v8199, %v8327
  %v8456 = vmax.f32 %v8200, %v8328
  %v8457 = vmax.f32 %v8201, %v8329
  %v8458 = vmax.f32 %v8202, %v8330
  %v8459 = vmax.f32 %v8203, %v8331
  %v8460 = vmax.f32 %v8204, %v8332
  %v8461 = vmax.f32 %v8205, %v8333
  %v8462 = vmax.f32 %v8206, %v8334
  %v8463 = vmax.f32 %v8207, %v8335
  %v8464 = vmax.f32 %v8208, %v8336
  %v8465 = vmax.f32 %v8209, %v8337
  %v8466 = vmax.f32 %v8210, %v8338
  %v8467 = vmax.f32 %v8211, %v8339
  %v8468 = vmax.f32 %v8212, %v8340
  %v8469 = vmax.f32 %v8213, %v8341
  %v8470 = vmax.f32 %v8214, %v8342
  %v8471 = vmax.f32 %v8215, %v8343
  %v8472 = vmax.f32 %v8216, %v8344
  %v8473 = vmax.f32 %v8217, %v8345
  %v8474 = vmax.f32 %v8218, %v8346
  %v8475 = vmax.f32 %v8219, %v8347
  %v8476 = vmax.f32 %v8220, %v8348
  %v8477 = vmax.f32 %v8221, %v8349
  %v8478 = vmax.f32 %v8222, %v8350
  %v8479 = vmax.f32 %v8223, %v8351
  %v8480 = vmax.f32 %v8224, %v8352
  %v8481 = vmax.f32 %v8225, %v8353
  %v8482 = vmax.f32 %v8226, %v8354
  %v8483 = vmax.f32 %v8227, %v8355
  %v8484 = vmax.f32 %v8228, %v8356
  %v8485 = vmax.f32 %v8229, %v8357
  %v8486 = vmax.f32 %v8230, %v8358
  %v8487 = vmax.f32 %v8231, %v8359
  %v8488 = vmax.f32 %v8232, %v8360
  %v8489 = vmax.f32 %v8233, %v8361
  %v8490 = vmax.f32 %v8234, %v8362
  %v8491 = vmax.f32 %v8235, %v8363
  %v8492 = vmax.f32 %v8236, %v8364
  %v8493 = vmax.f32 %v8237, %v8365
  %v8494 = vmax.f32 %v8238, %v8366
  %v8495 = vmax.f32 %v8239, %v8367
  %v8496 = vmax.f32 %v8240, %v8368
  %v8497 = vmax.f32 %v8241, %v8369
  %v8498 = vmax.f32 %v8242, %v8370
  %v8499 = vmax.f32 %v8243, %v8371
  %v8500 = vmax.f32 %v8244, %v8372
  %v8501 = vpack.c.bf16 %v8377, %v8373
  %v8502 = vpack.c.bf16 %v8378, %v8374
  %v8503 = vpack.c.bf16 %v8379, %v8375
  %v8504 = vpack.c.bf16 %v8380, %v8376
  %v8505 = vpack.c.bf16 %v8385, %v8381
  %v8506 = vpack.c.bf16 %v8386, %v8382
  %v8507 = vpack.c.bf16 %v8387, %v8383
  %v8508 = vpack.c.bf16 %v8388, %v8384
  %v8509 = vpack.c.bf16 %v8393, %v8389
  %v8510 = vpack.c.bf16 %v8394, %v8390
  %v8511 = vpack.c.bf16 %v8395, %v8391
  %v8512 = vpack.c.bf16 %v8396, %v8392
  %v8513 = vpack.c.bf16 %v8401, %v8397
  %v8514 = vpack.c.bf16 %v8402, %v8398
  %v8515 = vpack.c.bf16 %v8403, %v8399
  %v8516 = vpack.c.bf16 %v8404, %v8400
  %v8517 = vpack.c.bf16 %v8409, %v8405
  %v8518 = vpack.c.bf16 %v8410, %v8406
  %v8519 = vpack.c.bf16 %v8411, %v8407
  %v8520 = vpack.c.bf16 %v8412, %v8408
  %v8521 = vpack.c.bf16 %v8417, %v8413
  %v8522 = vpack.c.bf16 %v8418, %v8414
  %v8523 = vpack.c.bf16 %v8419, %v8415
  %v8524 = vpack.c.bf16 %v8420, %v8416
  %v8525 = vpack.c.bf16 %v8425, %v8421
  %v8526 = vpack.c.bf16 %v8426, %v8422
  %v8527 = vpack.c.bf16 %v8427, %v8423
  %v8528 = vpack.c.bf16 %v8428, %v8424
  %v8529 = vpack.c.bf16 %v8433, %v8429
  %v8530 = vpack.c.bf16 %v8434, %v8430
  %v8531 = vpack.c.bf16 %v8435, %v8431
  %v8532 = vpack.c.bf16 %v8436, %v8432
  %v8533 = vpack.c.bf16 %v8441, %v8437
  %v8534 = vpack.c.bf16 %v8442, %v8438
  %v8535 = vpack.c.bf16 %v8443, %v8439
  %v8536 = vpack.c.bf16 %v8444, %v8440
  %v8537 = vpack.c.bf16 %v8449, %v8445
  %v8538 = vpack.c.bf16 %v8450, %v8446
  %v8539 = vpack.c.bf16 %v8451, %v8447
  %v8540 = vpack.c.bf16 %v8452, %v8448
  %v8541 = vpack.c.bf16 %v8457, %v8453
  %v8542 = vpack.c.bf16 %v8458, %v8454
  %v8543 = vpack.c.bf16 %v8459, %v8455
  %v8544 = vpack.c.bf16 %v8460, %v8456
  %v8545 = vpack.c.bf16 %v8465, %v8461
  %v8546 = vpack.c.bf16 %v8466, %v8462
  %v8547 = vpack.c.bf16 %v8467, %v8463
  %v8548 = vpack.c.bf16 %v8468, %v8464
  %v8549 = vpack.c.bf16 %v8473, %v8469
  %v8550 = vpack.c.bf16 %v8474, %v8470
  %v8551 = vpack.c.bf16 %v8475, %v8471
  %v8552 = vpack.c.bf16 %v8476, %v8472
  %v8553 = vpack.c.bf16 %v8481, %v8477
  %v8554 = vpack.c.bf16 %v8482, %v8478
  %v8555 = vpack.c.bf16 %v8483, %v8479
  %v8556 = vpack.c.bf16 %v8484, %v8480
  %v8557 = vpack.c.bf16 %v8489, %v8485
  %v8558 = vpack.c.bf16 %v8490, %v8486
  %v8559 = vpack.c.bf16 %v8491, %v8487
  %v8560 = vpack.c.bf16 %v8492, %v8488
  %v8561 = vpack.c.bf16 %v8497, %v8493
  %v8562 = vpack.c.bf16 %v8498, %v8494
  %v8563 = vpack.c.bf16 %v8499, %v8495
  %v8564 = vpack.c.bf16 %v8500, %v8496
  %v8565 = vld [vmem:[%s1 + $0x3c] sm:$0xf]
  %v8566 = vld [vmem:[%s1 + $0x7c] sm:$0xf]
  %v8567 = vld [vmem:[%s1 + $0xbc] sm:$0xf]
  %v8568 = vld [vmem:[%s1 + $0xfc] sm:$0xf]
  %v8569 = vld [vmem:[%s1 + $0x13c] sm:$0xf]
  %v8570 = vld [vmem:[%s1 + $0x17c] sm:$0xf]
  %v8571 = vld [vmem:[%s1 + $0x1bc] sm:$0xf]
  %v8572 = vld [vmem:[%s1 + $0x1fc] sm:$0xf]
  %v8573 = vld [vmem:[%s1 + $0x23c] sm:$0xf]
  %v8574 = vld [vmem:[%s1 + $0x27c] sm:$0xf]
  %v8575 = vld [vmem:[%s1 + $0x2bc] sm:$0xf]
  %v8576 = vld [vmem:[%s1 + $0x2fc] sm:$0xf]
  %v8577 = vld [vmem:[%s1 + $0x33c] sm:$0xf]
  %v8578 = vld [vmem:[%s1 + $0x37c] sm:$0xf]
  %v8579 = vld [vmem:[%s1 + $0x3bc] sm:$0xf]
  %v8580 = vld [vmem:[%s1 + $0x3fc] sm:$0xf]
  %v8581 = vld [vmem:[%s1 + $0x43c] sm:$0xf]
  %v8582 = vld [vmem:[%s1 + $0x47c] sm:$0xf]
  %v8583 = vld [vmem:[%s1 + $0x4bc] sm:$0xf]
  %v8584 = vld [vmem:[%s1 + $0x4fc] sm:$0xf]
  %v8585 = vld [vmem:[%s1 + $0x53c] sm:$0xf]
  %v8586 = vld [vmem:[%s1 + $0x57c] sm:$0xf]
  %v8587 = vld [vmem:[%s1 + $0x5bc] sm:$0xf]
  %v8588 = vld [vmem:[%s1 + $0x5fc] sm:$0xf]
  %v8589 = vld [vmem:[%s1 + $0x63c] sm:$0xf]
  %v8590 = vld [vmem:[%s1 + $0x67c] sm:$0xf]
  %v8591 = vld [vmem:[%s1 + $0x6bc] sm:$0xf]
  %v8592 = vld [vmem:[%s1 + $0x6fc] sm:$0xf]
  %v8593 = vld [vmem:[%s1 + $0x73c] sm:$0xf]
  %v8594 = vld [vmem:[%s1 + $0x77c] sm:$0xf]
  %v8595 = vld [vmem:[%s1 + $0x7bc] sm:$0xf]
  %v8596 = vld [vmem:[%s1 + $0x7fc] sm:$0xf]
  %v8597 = vld [vmem:[%s1 + $0x83c] sm:$0xf]
  %v8598 = vld [vmem:[%s1 + $0x87c] sm:$0xf]
  %v8599 = vld [vmem:[%s1 + $0x8bc] sm:$0xf]
  %v8600 = vld [vmem:[%s1 + $0x8fc] sm:$0xf]
  %v8601 = vld [vmem:[%s1 + $0x93c] sm:$0xf]
  %v8602 = vld [vmem:[%s1 + $0x97c] sm:$0xf]
  %v8603 = vld [vmem:[%s1 + $0x9bc] sm:$0xf]
  %v8604 = vld [vmem:[%s1 + $0x9fc] sm:$0xf]
  %v8605 = vld [vmem:[%s1 + $0xa3c] sm:$0xf]
  %v8606 = vld [vmem:[%s1 + $0xa7c] sm:$0xf]
  %v8607 = vld [vmem:[%s1 + $0xabc] sm:$0xf]
  %v8608 = vld [vmem:[%s1 + $0xafc] sm:$0xf]
  %v8609 = vld [vmem:[%s1 + $0xb3c] sm:$0xf]
  %v8610 = vld [vmem:[%s1 + $0xb7c] sm:$0xf]
  %v8611 = vld [vmem:[%s1 + $0xbbc] sm:$0xf]
  %v8612 = vld [vmem:[%s1 + $0xbfc] sm:$0xf]
  %v8613 = vld [vmem:[%s1 + $0xc3c] sm:$0xf]
  %v8614 = vld [vmem:[%s1 + $0xc7c] sm:$0xf]
  %v8615 = vld [vmem:[%s1 + $0xcbc] sm:$0xf]
  %v8616 = vld [vmem:[%s1 + $0xcfc] sm:$0xf]
  %v8617 = vld [vmem:[%s1 + $0xd3c] sm:$0xf]
  %v8618 = vld [vmem:[%s1 + $0xd7c] sm:$0xf]
  %v8619 = vld [vmem:[%s1 + $0xdbc] sm:$0xf]
  %v8620 = vld [vmem:[%s1 + $0xdfc] sm:$0xf]
  %v8621 = vld [vmem:[%s1 + $0xe3c] sm:$0xf]
  %v8622 = vld [vmem:[%s1 + $0xe7c] sm:$0xf]
  %v8623 = vld [vmem:[%s1 + $0xebc] sm:$0xf]
  %v8624 = vld [vmem:[%s1 + $0xefc] sm:$0xf]
  %v8625 = vld [vmem:[%s1 + $0xf3c] sm:$0xf]
  %v8626 = vld [vmem:[%s1 + $0xf7c] sm:$0xf]
  %v8627 = vld [vmem:[%s1 + $0xfbc] sm:$0xf]
  %v8628 = vld [vmem:[%s1 + $0xffc] sm:$0xf]
  %v8629 = vld [vmem:[%s2 + $0x2a] sm:$0x1]
  %v8631 = vperm.slane %v8629, 0
  %v8697 = vunpack.c.l.b16 %v8565
  %v8698 = vunpack.c.l.b16 %v8566
  %v8699 = vunpack.c.l.b16 %v8567
  %v8700 = vunpack.c.l.b16 %v8568
  %v8701 = vunpack.c.l.b16 %v8569
  %v8702 = vunpack.c.l.b16 %v8570
  %v8703 = vunpack.c.l.b16 %v8571
  %v8704 = vunpack.c.l.b16 %v8572
  %v8705 = vunpack.c.l.b16 %v8573
  %v8706 = vunpack.c.l.b16 %v8574
  %v8707 = vunpack.c.l.b16 %v8575
  %v8708 = vunpack.c.l.b16 %v8576
  %v8709 = vunpack.c.l.b16 %v8577
  %v8710 = vunpack.c.l.b16 %v8578
  %v8711 = vunpack.c.l.b16 %v8579
  %v8712 = vunpack.c.l.b16 %v8580
  %v8713 = vunpack.c.l.b16 %v8581
  %v8714 = vunpack.c.l.b16 %v8582
  %v8715 = vunpack.c.l.b16 %v8583
  %v8716 = vunpack.c.l.b16 %v8584
  %v8717 = vunpack.c.l.b16 %v8585
  %v8718 = vunpack.c.l.b16 %v8586
  %v8719 = vunpack.c.l.b16 %v8587
  %v8720 = vunpack.c.l.b16 %v8588
  %v8721 = vunpack.c.l.b16 %v8589
  %v8722 = vunpack.c.l.b16 %v8590
  %v8723 = vunpack.c.l.b16 %v8591
  %v8724 = vunpack.c.l.b16 %v8592
  %v8725 = vunpack.c.l.b16 %v8593
  %v8726 = vunpack.c.l.b16 %v8594
  %v8727 = vunpack.c.l.b16 %v8595
  %v8728 = vunpack.c.l.b16 %v8596
  %v8729 = vunpack.c.l.b16 %v8597
  %v8730 = vunpack.c.l.b16 %v8598
  %v8731 = vunpack.c.l.b16 %v8599
  %v8732 = vunpack.c.l.b16 %v8600
  %v8733 = vunpack.c.l.b16 %v8601
  %v8734 = vunpack.c.l.b16 %v8602
  %v8735 = vunpack.c.l.b16 %v8603
  %v8736 = vunpack.c.l.b16 %v8604
  %v8737 = vunpack.c.l.b16 %v8605
  %v8738 = vunpack.c.l.b16 %v8606
  %v8739 = vunpack.c.l.b16 %v8607
  %v8740 = vunpack.c.l.b16 %v8608
  %v8741 = vunpack.c.l.b16 %v8609
  %v8742 = vunpack.c.l.b16 %v8610
  %v8743 = vunpack.c.l.b16 %v8611
  %v8744 = vunpack.c.l.b16 %v8612
  %v8745 = vunpack.c.l.b16 %v8613
  %v8746 = vunpack.c.l.b16 %v8614
  %v8747 = vunpack.c.l.b16 %v8615
  %v8748 = vunpack.c.l.b16 %v8616
  %v8749 = vunpack.c.l.b16 %v8617
  %v8750 = vunpack.c.l.b16 %v8618
  %v8751 = vunpack.c.l.b16 %v8619
  %v8752 = vunpack.c.l.b16 %v8620
  %v8753 = vunpack.c.l.b16 %v8621
  %v8754 = vunpack.c.l.b16 %v8622
  %v8755 = vunpack.c.l.b16 %v8623
  %v8756 = vunpack.c.l.b16 %v8624
  %v8757 = vunpack.c.l.b16 %v8625
  %v8758 = vunpack.c.l.b16 %v8626
  %v8759 = vunpack.c.l.b16 %v8627
  %v8760 = vunpack.c.l.b16 %v8628
  %v8761 = vpack.c.b16 %v8698, %v8697
  %v8762 = vpack.c.b16 %v8700, %v8699
  %v8763 = vpack.c.b16 %v8702, %v8701
  %v8764 = vpack.c.b16 %v8704, %v8703
  %v8765 = vpack.c.b16 %v8706, %v8705
  %v8766 = vpack.c.b16 %v8708, %v8707
  %v8767 = vpack.c.b16 %v8710, %v8709
  %v8768 = vpack.c.b16 %v8712, %v8711
  %v8769 = vpack.c.b16 %v8714, %v8713
  %v8770 = vpack.c.b16 %v8716, %v8715
  %v8771 = vpack.c.b16 %v8718, %v8717
  %v8772 = vpack.c.b16 %v8720, %v8719
  %v8773 = vpack.c.b16 %v8722, %v8721
  %v8774 = vpack.c.b16 %v8724, %v8723
  %v8775 = vpack.c.b16 %v8726, %v8725
  %v8776 = vpack.c.b16 %v8728, %v8727
  %v8777 = vpack.c.b16 %v8730, %v8729
  %v8778 = vpack.c.b16 %v8732, %v8731
  %v8779 = vpack.c.b16 %v8734, %v8733
  %v8780 = vpack.c.b16 %v8736, %v8735
  %v8781 = vpack.c.b16 %v8738, %v8737
  %v8782 = vpack.c.b16 %v8740, %v8739
  %v8783 = vpack.c.b16 %v8742, %v8741
  %v8784 = vpack.c.b16 %v8744, %v8743
  %v8785 = vpack.c.b16 %v8746, %v8745
  %v8786 = vpack.c.b16 %v8748, %v8747
  %v8787 = vpack.c.b16 %v8750, %v8749
  %v8788 = vpack.c.b16 %v8752, %v8751
  %v8789 = vpack.c.b16 %v8754, %v8753
  %v8790 = vpack.c.b16 %v8756, %v8755
  %v8791 = vpack.c.b16 %v8758, %v8757
  %v8792 = vpack.c.b16 %v8760, %v8759
  %8825 = vmatpush.bf16.msra.mxu0 %v8768
  %8826 = vmatpush.bf16.msra.mxu0 %v8767
  %8827 = vmatpush.bf16.msra.mxu0 %v8766
  %8828 = vmatpush.bf16.msra.mxu0 %v8765
  %8829 = vmatpush.bf16.msra.mxu0 %v8764
  %8830 = vmatpush.bf16.msra.mxu0 %v8763
  %8831 = vmatpush.bf16.msra.mxu0 %v8762
  %8832 = vmatpush.bf16.msra.mxu0 %v8761
  %8833 = vmatmul.bf16.gmra.mxu0 %v8501
  %v8834 = vpop.f32.mrf.mxu0
  %v8835 = vadd.f32 %v8631, %v8834
  %v8836 = vpop.f32.mrf.mxu0
  %v8837 = vadd.f32 %v8631, %v8836
  %8838 = vmatmul.bf16.gmra.mxu0 %v8505
  %v8839 = vpop.f32.mrf.mxu0
  %v8840 = vadd.f32 %v8631, %v8839
  %v8841 = vpop.f32.mrf.mxu0
  %v8842 = vadd.f32 %v8631, %v8841
  %8843 = vmatmul.bf16.gmra.mxu0 %v8509
  %v8844 = vpop.f32.mrf.mxu0
  %v8845 = vadd.f32 %v8631, %v8844
  %v8846 = vpop.f32.mrf.mxu0
  %v8847 = vadd.f32 %v8631, %v8846
  %8848 = vmatmul.bf16.gmra.mxu0 %v8513
  %v8849 = vpop.f32.mrf.mxu0
  %v8850 = vadd.f32 %v8631, %v8849
  %v8851 = vpop.f32.mrf.mxu0
  %v8852 = vadd.f32 %v8631, %v8851
  %8853 = vmatmul.bf16.gmra.mxu0 %v8517
  %v8854 = vpop.f32.mrf.mxu0
  %v8855 = vadd.f32 %v8631, %v8854
  %v8856 = vpop.f32.mrf.mxu0
  %v8857 = vadd.f32 %v8631, %v8856
  %8858 = vmatmul.bf16.gmra.mxu0 %v8521
  %v8859 = vpop.f32.mrf.mxu0
  %v8860 = vadd.f32 %v8631, %v8859
  %v8861 = vpop.f32.mrf.mxu0
  %v8862 = vadd.f32 %v8631, %v8861
  %8863 = vmatmul.bf16.gmra.mxu0 %v8525
  %v8864 = vpop.f32.mrf.mxu0
  %v8865 = vadd.f32 %v8631, %v8864
  %v8866 = vpop.f32.mrf.mxu0
  %v8867 = vadd.f32 %v8631, %v8866
  %8868 = vmatmul.bf16.gmra.mxu0 %v8529
  %v8869 = vpop.f32.mrf.mxu0
  %v8870 = vadd.f32 %v8631, %v8869
  %v8871 = vpop.f32.mrf.mxu0
  %v8872 = vadd.f32 %v8631, %v8871
  %8873 = vmatmul.bf16.gmra.mxu0 %v8533
  %v8874 = vpop.f32.mrf.mxu0
  %v8875 = vadd.f32 %v8631, %v8874
  %v8876 = vpop.f32.mrf.mxu0
  %v8877 = vadd.f32 %v8631, %v8876
  %8878 = vmatmul.bf16.gmra.mxu0 %v8537
  %v8879 = vpop.f32.mrf.mxu0
  %v8880 = vadd.f32 %v8631, %v8879
  %v8881 = vpop.f32.mrf.mxu0
  %v8882 = vadd.f32 %v8631, %v8881
  %8883 = vmatmul.bf16.gmra.mxu0 %v8541
  %v8884 = vpop.f32.mrf.mxu0
  %v8885 = vadd.f32 %v8631, %v8884
  %v8886 = vpop.f32.mrf.mxu0
  %v8887 = vadd.f32 %v8631, %v8886
  %8888 = vmatmul.bf16.gmra.mxu0 %v8545
  %v8889 = vpop.f32.mrf.mxu0
  %v8890 = vadd.f32 %v8631, %v8889
  %v8891 = vpop.f32.mrf.mxu0
  %v8892 = vadd.f32 %v8631, %v8891
  %8893 = vmatmul.bf16.gmra.mxu0 %v8549
  %v8894 = vpop.f32.mrf.mxu0
  %v8895 = vadd.f32 %v8631, %v8894
  %v8896 = vpop.f32.mrf.mxu0
  %v8897 = vadd.f32 %v8631, %v8896
  %8898 = vmatmul.bf16.gmra.mxu0 %v8553
  %v8899 = vpop.f32.mrf.mxu0
  %v8900 = vadd.f32 %v8631, %v8899
  %v8901 = vpop.f32.mrf.mxu0
  %v8902 = vadd.f32 %v8631, %v8901
  %8903 = vmatmul.bf16.gmra.mxu0 %v8557
  %v8904 = vpop.f32.mrf.mxu0
  %v8905 = vadd.f32 %v8631, %v8904
  %v8906 = vpop.f32.mrf.mxu0
  %v8907 = vadd.f32 %v8631, %v8906
  %8908 = vmatmul.bf16.gmra.mxu0 %v8561
  %v8909 = vpop.f32.mrf.mxu0
  %v8910 = vadd.f32 %v8631, %v8909
  %v8911 = vpop.f32.mrf.mxu0
  %v8912 = vadd.f32 %v8631, %v8911
  %8913 = vdwg.mxu0
  %8914 = vmatpush.bf16.msra.mxu0 %v8776
  %8915 = vmatpush.bf16.msra.mxu0 %v8775
  %8916 = vmatpush.bf16.msra.mxu0 %v8774
  %8917 = vmatpush.bf16.msra.mxu0 %v8773
  %8918 = vmatpush.bf16.msra.mxu0 %v8772
  %8919 = vmatpush.bf16.msra.mxu0 %v8771
  %8920 = vmatpush.bf16.msra.mxu0 %v8770
  %8921 = vmatpush.bf16.msra.mxu0 %v8769
  %8922 = vmatmul.bf16.gmra.mxu0 %v8502
  %v8923 = vpop.f32.mrf.mxu0
  %v8924 = vadd.f32 %v8835, %v8923
  %v8925 = vpop.f32.mrf.mxu0
  %v8926 = vadd.f32 %v8837, %v8925
  %8927 = vmatmul.bf16.gmra.mxu0 %v8506
  %v8928 = vpop.f32.mrf.mxu0
  %v8929 = vadd.f32 %v8840, %v8928
  %v8930 = vpop.f32.mrf.mxu0
  %v8931 = vadd.f32 %v8842, %v8930
  %8932 = vmatmul.bf16.gmra.mxu0 %v8510
  %v8933 = vpop.f32.mrf.mxu0
  %v8934 = vadd.f32 %v8845, %v8933
  %v8935 = vpop.f32.mrf.mxu0
  %v8936 = vadd.f32 %v8847, %v8935
  %8937 = vmatmul.bf16.gmra.mxu0 %v8514
  %v8938 = vpop.f32.mrf.mxu0
  %v8939 = vadd.f32 %v8850, %v8938
  %v8940 = vpop.f32.mrf.mxu0
  %v8941 = vadd.f32 %v8852, %v8940
  %8942 = vmatmul.bf16.gmra.mxu0 %v8518
  %v8943 = vpop.f32.mrf.mxu0
  %v8944 = vadd.f32 %v8855, %v8943
  %v8945 = vpop.f32.mrf.mxu0
  %v8946 = vadd.f32 %v8857, %v8945
  %8947 = vmatmul.bf16.gmra.mxu0 %v8522
  %v8948 = vpop.f32.mrf.mxu0
  %v8949 = vadd.f32 %v8860, %v8948
  %v8950 = vpop.f32.mrf.mxu0
  %v8951 = vadd.f32 %v8862, %v8950
  %8952 = vmatmul.bf16.gmra.mxu0 %v8526
  %v8953 = vpop.f32.mrf.mxu0
  %v8954 = vadd.f32 %v8865, %v8953
  %v8955 = vpop.f32.mrf.mxu0
  %v8956 = vadd.f32 %v8867, %v8955
  %8957 = vmatmul.bf16.gmra.mxu0 %v8530
  %v8958 = vpop.f32.mrf.mxu0
  %v8959 = vadd.f32 %v8870, %v8958
  %v8960 = vpop.f32.mrf.mxu0
  %v8961 = vadd.f32 %v8872, %v8960
  %8962 = vmatmul.bf16.gmra.mxu0 %v8534
  %v8963 = vpop.f32.mrf.mxu0
  %v8964 = vadd.f32 %v8875, %v8963
  %v8965 = vpop.f32.mrf.mxu0
  %v8966 = vadd.f32 %v8877, %v8965
  %8967 = vmatmul.bf16.gmra.mxu0 %v8538
  %v8968 = vpop.f32.mrf.mxu0
  %v8969 = vadd.f32 %v8880, %v8968
  %v8970 = vpop.f32.mrf.mxu0
  %v8971 = vadd.f32 %v8882, %v8970
  %8972 = vmatmul.bf16.gmra.mxu0 %v8542
  %v8973 = vpop.f32.mrf.mxu0
  %v8974 = vadd.f32 %v8885, %v8973
  %v8975 = vpop.f32.mrf.mxu0
  %v8976 = vadd.f32 %v8887, %v8975
  %8977 = vmatmul.bf16.gmra.mxu0 %v8546
  %v8978 = vpop.f32.mrf.mxu0
  %v8979 = vadd.f32 %v8890, %v8978
  %v8980 = vpop.f32.mrf.mxu0
  %v8981 = vadd.f32 %v8892, %v8980
  %8982 = vmatmul.bf16.gmra.mxu0 %v8550
  %v8983 = vpop.f32.mrf.mxu0
  %v8984 = vadd.f32 %v8895, %v8983
  %v8985 = vpop.f32.mrf.mxu0
  %v8986 = vadd.f32 %v8897, %v8985
  %8987 = vmatmul.bf16.gmra.mxu0 %v8554
  %v8988 = vpop.f32.mrf.mxu0
  %v8989 = vadd.f32 %v8900, %v8988
  %v8990 = vpop.f32.mrf.mxu0
  %v8991 = vadd.f32 %v8902, %v8990
  %8992 = vmatmul.bf16.gmra.mxu0 %v8558
  %v8993 = vpop.f32.mrf.mxu0
  %v8994 = vadd.f32 %v8905, %v8993
  %v8995 = vpop.f32.mrf.mxu0
  %v8996 = vadd.f32 %v8907, %v8995
  %8997 = vmatmul.bf16.gmra.mxu0 %v8562
  %v8998 = vpop.f32.mrf.mxu0
  %v8999 = vadd.f32 %v8910, %v8998
  %v9000 = vpop.f32.mrf.mxu0
  %v9001 = vadd.f32 %v8912, %v9000
  %9002 = vdwg.mxu0
  %9003 = vmatpush.bf16.msra.mxu0 %v8784
  %9004 = vmatpush.bf16.msra.mxu0 %v8783
  %9005 = vmatpush.bf16.msra.mxu0 %v8782
  %9006 = vmatpush.bf16.msra.mxu0 %v8781
  %9007 = vmatpush.bf16.msra.mxu0 %v8780
  %9008 = vmatpush.bf16.msra.mxu0 %v8779
  %9009 = vmatpush.bf16.msra.mxu0 %v8778
  %9010 = vmatpush.bf16.msra.mxu0 %v8777
  %9011 = vmatmul.bf16.gmra.mxu0 %v8503
  %v9012 = vpop.f32.mrf.mxu0
  %v9013 = vadd.f32 %v8924, %v9012
  %v9014 = vpop.f32.mrf.mxu0
  %v9015 = vadd.f32 %v8926, %v9014
  %9016 = vmatmul.bf16.gmra.mxu0 %v8507
  %v9017 = vpop.f32.mrf.mxu0
  %v9018 = vadd.f32 %v8929, %v9017
  %v9019 = vpop.f32.mrf.mxu0
  %v9020 = vadd.f32 %v8931, %v9019
  %9021 = vmatmul.bf16.gmra.mxu0 %v8511
  %v9022 = vpop.f32.mrf.mxu0
  %v9023 = vadd.f32 %v8934, %v9022
  %v9024 = vpop.f32.mrf.mxu0
  %v9025 = vadd.f32 %v8936, %v9024
  %9026 = vmatmul.bf16.gmra.mxu0 %v8515
  %v9027 = vpop.f32.mrf.mxu0
  %v9028 = vadd.f32 %v8939, %v9027
  %v9029 = vpop.f32.mrf.mxu0
  %v9030 = vadd.f32 %v8941, %v9029
  %9031 = vmatmul.bf16.gmra.mxu0 %v8519
  %v9032 = vpop.f32.mrf.mxu0
  %v9033 = vadd.f32 %v8944, %v9032
  %v9034 = vpop.f32.mrf.mxu0
  %v9035 = vadd.f32 %v8946, %v9034
  %9036 = vmatmul.bf16.gmra.mxu0 %v8523
  %v9037 = vpop.f32.mrf.mxu0
  %v9038 = vadd.f32 %v8949, %v9037
  %v9039 = vpop.f32.mrf.mxu0
  %v9040 = vadd.f32 %v8951, %v9039
  %9041 = vmatmul.bf16.gmra.mxu0 %v8527
  %v9042 = vpop.f32.mrf.mxu0
  %v9043 = vadd.f32 %v8954, %v9042
  %v9044 = vpop.f32.mrf.mxu0
  %v9045 = vadd.f32 %v8956, %v9044
  %9046 = vmatmul.bf16.gmra.mxu0 %v8531
  %v9047 = vpop.f32.mrf.mxu0
  %v9048 = vadd.f32 %v8959, %v9047
  %v9049 = vpop.f32.mrf.mxu0
  %v9050 = vadd.f32 %v8961, %v9049
  %9051 = vmatmul.bf16.gmra.mxu0 %v8535
  %v9052 = vpop.f32.mrf.mxu0
  %v9053 = vadd.f32 %v8964, %v9052
  %v9054 = vpop.f32.mrf.mxu0
  %v9055 = vadd.f32 %v8966, %v9054
  %9056 = vmatmul.bf16.gmra.mxu0 %v8539
  %v9057 = vpop.f32.mrf.mxu0
  %v9058 = vadd.f32 %v8969, %v9057
  %v9059 = vpop.f32.mrf.mxu0
  %v9060 = vadd.f32 %v8971, %v9059
  %9061 = vmatmul.bf16.gmra.mxu0 %v8543
  %v9062 = vpop.f32.mrf.mxu0
  %v9063 = vadd.f32 %v8974, %v9062
  %v9064 = vpop.f32.mrf.mxu0
  %v9065 = vadd.f32 %v8976, %v9064
  %9066 = vmatmul.bf16.gmra.mxu0 %v8547
  %v9067 = vpop.f32.mrf.mxu0
  %v9068 = vadd.f32 %v8979, %v9067
  %v9069 = vpop.f32.mrf.mxu0
  %v9070 = vadd.f32 %v8981, %v9069
  %9071 = vmatmul.bf16.gmra.mxu0 %v8551
  %v9072 = vpop.f32.mrf.mxu0
  %v9073 = vadd.f32 %v8984, %v9072
  %v9074 = vpop.f32.mrf.mxu0
  %v9075 = vadd.f32 %v8986, %v9074
  %9076 = vmatmul.bf16.gmra.mxu0 %v8555
  %v9077 = vpop.f32.mrf.mxu0
  %v9078 = vadd.f32 %v8989, %v9077
  %v9079 = vpop.f32.mrf.mxu0
  %v9080 = vadd.f32 %v8991, %v9079
  %9081 = vmatmul.bf16.gmra.mxu0 %v8559
  %v9082 = vpop.f32.mrf.mxu0
  %v9083 = vadd.f32 %v8994, %v9082
  %v9084 = vpop.f32.mrf.mxu0
  %v9085 = vadd.f32 %v8996, %v9084
  %9086 = vmatmul.bf16.gmra.mxu0 %v8563
  %v9087 = vpop.f32.mrf.mxu0
  %v9088 = vadd.f32 %v8999, %v9087
  %v9089 = vpop.f32.mrf.mxu0
  %v9090 = vadd.f32 %v9001, %v9089
  %9091 = vdwg.mxu0
  %9092 = vmatpush.bf16.msra.mxu0 %v8792
  %9093 = vmatpush.bf16.msra.mxu0 %v8791
  %9094 = vmatpush.bf16.msra.mxu0 %v8790
  %9095 = vmatpush.bf16.msra.mxu0 %v8789
  %9096 = vmatpush.bf16.msra.mxu0 %v8788
  %9097 = vmatpush.bf16.msra.mxu0 %v8787
  %9098 = vmatpush.bf16.msra.mxu0 %v8786
  %9099 = vmatpush.bf16.msra.mxu0 %v8785
  %9100 = vmatmul.bf16.gmra.mxu0 %v8504
  %v9101 = vpop.f32.mrf.mxu0
  %v9102 = vadd.f32 %v9013, %v9101
  %v9103 = vpop.f32.mrf.mxu0
  %v9104 = vadd.f32 %v9015, %v9103
  %9105 = vmatmul.bf16.gmra.mxu0 %v8508
  %v9106 = vpop.f32.mrf.mxu0
  %v9107 = vadd.f32 %v9018, %v9106
  %v9108 = vpop.f32.mrf.mxu0
  %v9109 = vadd.f32 %v9020, %v9108
  %9110 = vmatmul.bf16.gmra.mxu0 %v8512
  %v9111 = vpop.f32.mrf.mxu0
  %v9112 = vadd.f32 %v9023, %v9111
  %v9113 = vpop.f32.mrf.mxu0
  %v9114 = vadd.f32 %v9025, %v9113
  %9115 = vmatmul.bf16.gmra.mxu0 %v8516
  %v9116 = vpop.f32.mrf.mxu0
  %v9117 = vadd.f32 %v9028, %v9116
  %v9118 = vpop.f32.mrf.mxu0
  %v9119 = vadd.f32 %v9030, %v9118
  %9120 = vmatmul.bf16.gmra.mxu0 %v8520
  %v9121 = vpop.f32.mrf.mxu0
  %v9122 = vadd.f32 %v9033, %v9121
  %v9123 = vpop.f32.mrf.mxu0
  %v9124 = vadd.f32 %v9035, %v9123
  %9125 = vmatmul.bf16.gmra.mxu0 %v8524
  %v9126 = vpop.f32.mrf.mxu0
  %v9127 = vadd.f32 %v9038, %v9126
  %v9128 = vpop.f32.mrf.mxu0
  %v9129 = vadd.f32 %v9040, %v9128
  %9130 = vmatmul.bf16.gmra.mxu0 %v8528
  %v9131 = vpop.f32.mrf.mxu0
  %v9132 = vadd.f32 %v9043, %v9131
  %v9133 = vpop.f32.mrf.mxu0
  %v9134 = vadd.f32 %v9045, %v9133
  %9135 = vmatmul.bf16.gmra.mxu0 %v8532
  %v9136 = vpop.f32.mrf.mxu0
  %v9137 = vadd.f32 %v9048, %v9136
  %v9138 = vpop.f32.mrf.mxu0
  %v9139 = vadd.f32 %v9050, %v9138
  %9140 = vmatmul.bf16.gmra.mxu0 %v8536
  %v9141 = vpop.f32.mrf.mxu0
  %v9142 = vadd.f32 %v9053, %v9141
  %v9143 = vpop.f32.mrf.mxu0
  %v9144 = vadd.f32 %v9055, %v9143
  %9145 = vmatmul.bf16.gmra.mxu0 %v8540
  %v9146 = vpop.f32.mrf.mxu0
  %v9147 = vadd.f32 %v9058, %v9146
  %v9148 = vpop.f32.mrf.mxu0
  %v9149 = vadd.f32 %v9060, %v9148
  %9150 = vmatmul.bf16.gmra.mxu0 %v8544
  %v9151 = vpop.f32.mrf.mxu0
  %v9152 = vadd.f32 %v9063, %v9151
  %v9153 = vpop.f32.mrf.mxu0
  %v9154 = vadd.f32 %v9065, %v9153
  %9155 = vmatmul.bf16.gmra.mxu0 %v8548
  %v9156 = vpop.f32.mrf.mxu0
  %v9157 = vadd.f32 %v9068, %v9156
  %v9158 = vpop.f32.mrf.mxu0
  %v9159 = vadd.f32 %v9070, %v9158
  %9160 = vmatmul.bf16.gmra.mxu0 %v8552
  %v9161 = vpop.f32.mrf.mxu0
  %v9162 = vadd.f32 %v9073, %v9161
  %v9163 = vpop.f32.mrf.mxu0
  %v9164 = vadd.f32 %v9075, %v9163
  %9165 = vmatmul.bf16.gmra.mxu0 %v8556
  %v9166 = vpop.f32.mrf.mxu0
  %v9167 = vadd.f32 %v9078, %v9166
  %v9168 = vpop.f32.mrf.mxu0
  %v9169 = vadd.f32 %v9080, %v9168
  %9170 = vmatmul.bf16.gmra.mxu0 %v8560
  %v9171 = vpop.f32.mrf.mxu0
  %v9172 = vadd.f32 %v9083, %v9171
  %v9173 = vpop.f32.mrf.mxu0
  %v9174 = vadd.f32 %v9085, %v9173
  %9175 = vmatmul.bf16.gmra.mxu0 %v8564
  %v9176 = vpop.f32.mrf.mxu0
  %v9177 = vadd.f32 %v9088, %v9176
  %v9178 = vpop.f32.mrf.mxu0
  %v9179 = vadd.f32 %v9090, %v9178
  %9180 = vdwg.mxu0
  %v9181 = vtanh.pop %v9102
  %v9182 = vtanh.pop %v9104
  %v9183 = vtanh.pop %v9107
  %v9184 = vtanh.pop %v9109
  %v9185 = vtanh.pop %v9112
  %v9186 = vtanh.pop %v9114
  %v9187 = vtanh.pop %v9117
  %v9188 = vtanh.pop %v9119
  %v9189 = vtanh.pop %v9122
  %v9190 = vtanh.pop %v9124
  %v9191 = vtanh.pop %v9127
  %v9192 = vtanh.pop %v9129
  %v9193 = vtanh.pop %v9132
  %v9194 = vtanh.pop %v9134
  %v9195 = vtanh.pop %v9137
  %v9196 = vtanh.pop %v9139
  %v9197 = vtanh.pop %v9142
  %v9198 = vtanh.pop %v9144
  %v9199 = vtanh.pop %v9147
  %v9200 = vtanh.pop %v9149
  %v9201 = vtanh.pop %v9152
  %v9202 = vtanh.pop %v9154
  %v9203 = vtanh.pop %v9157
  %v9204 = vtanh.pop %v9159
  %v9205 = vtanh.pop %v9162
  %v9206 = vtanh.pop %v9164
  %v9207 = vtanh.pop %v9167
  %v9208 = vtanh.pop %v9169
  %v9209 = vtanh.pop %v9172
  %v9210 = vtanh.pop %v9174
  %v9211 = vtanh.pop %v9177
  %v9212 = vtanh.pop %v9179
  %9213 = vst [vmem:[%s4] sm:$0xff] %v9181
  %9214 = vst [vmem:[%s4 + $0x8] sm:$0xff] %v9182
  %9215 = vst [vmem:[%s4 + $0x10] sm:$0xff] %v9183
  %9216 = vst [vmem:[%s4 + $0x18] sm:$0xff] %v9184
  %9217 = vst [vmem:[%s4 + $0x20] sm:$0xff] %v9185
  %9218 = vst [vmem:[%s4 + $0x28] sm:$0xff] %v9186
  %9219 = vst [vmem:[%s4 + $0x30] sm:$0xff] %v9187
  %9220 = vst [vmem:[%s4 + $0x38] sm:$0xff] %v9188
  %9221 = vst [vmem:[%s4 + $0x40] sm:$0xff] %v9189
  %9222 = vst [vmem:[%s4 + $0x48] sm:$0xff] %v9190
  %9223 = vst [vmem:[%s4 + $0x50] sm:$0xff] %v9191
  %9224 = vst [vmem:[%s4 + $0x58] sm:$0xff] %v9192
  %9225 = vst [vmem:[%s4 + $0x60] sm:$0xff] %v9193
  %9226 = vst [vmem:[%s4 + $0x68] sm:$0xff] %v9194
  %9227 = vst [vmem:[%s4 + $0x70] sm:$0xff] %v9195
  %9228 = vst [vmem:[%s4 + $0x78] sm:$0xff] %v9196
  %9229 = vst [vmem:[%s4 + $0x80] sm:$0xff] %v9197
  %9230 = vst [vmem:[%s4 + $0x88] sm:$0xff] %v9198
  %9231 = vst [vmem:[%s4 + $0x90] sm:$0xff] %v9199
  %9232 = vst [vmem:[%s4 + $0x98] sm:$0xff] %v9200
  %9233 = vst [vmem:[%s4 + $0xa0] sm:$0xff] %v9201
  %9234 = vst [vmem:[%s4 + $0xa8] sm:$0xff] %v9202
  %9235 = vst [vmem:[%s4 + $0xb0] sm:$0xff] %v9203
  %9236 = vst [vmem:[%s4 + $0xb8] sm:$0xff] %v9204
  %9237 = vst [vmem:[%s4 + $0xc0] sm:$0xff] %v9205
  %9238 = vst [vmem:[%s4 + $0xc8] sm:$0xff] %v9206
  %9239 = vst [vmem:[%s4 + $0xd0] sm:$0xff] %v9207
  %9240 = vst [vmem:[%s4 + $0xd8] sm:$0xff] %v9208
  %9241 = vst [vmem:[%s4 + $0xe0] sm:$0xff] %v9209
  %9242 = vst [vmem:[%s4 + $0xe8] sm:$0xff] %v9210
  %9243 = vst [vmem:[%s4 + $0xf0] sm:$0xff] %v9211
  %9244 = vst [vmem:[%s4 + $0xf8] sm:$0xff] %v9212
  // Predicated region
  $region14: #{ae_forward.1} parent=0 // pred_check
    _
  $region15: #{ae_forward.1} parent=0 // pred_check_branch
    %9246 = sbr.rel (0) target = $region17
  $region16: #{ae_forward.1} parent=0 // pred_region
    _
  $region17: #{ae_forward.1} parent=0 // pred_fallthru
    _
  // Predicated region
  $region18: #{ae_forward.1} parent=0 // pred_check
    _
  $region19: #{ae_forward.1} parent=0 // pred_check_branch
    %9248 = sbr.rel (0) target = $region21
  $region20: #{ae_forward.1} parent=0 // pred_region
    _
  $region21: #{ae_forward.1} parent=0 // pred_fallthru
    _
  // Predicated region
  $region22: #{ae_forward.1} parent=0 // pred_check
    _
  $region23: #{ae_forward.1} parent=0 // pred_check_branch
    %9250 = sbr.rel (0) target = $region25
  $region24: #{ae_forward.1} parent=0 // pred_region
    _
  $region25: #{ae_forward.1} parent=0 // pred_fallthru
    _
  // Predicated region
  $region26: #{ae_forward.1} parent=0 // pred_check
    _
  $region27: #{ae_forward.1} parent=0 // pred_check_branch
    %9252 = sbr.rel (0) target = $region29
  $region28: #{ae_forward.1} parent=0 // pred_region
    _
  $region29: #{ae_forward.1} parent=0 // pred_fallthru
    _

</llo_original>
